<compile_context>
chip_gen: v6e
topology: v6e:2x2x1
jax: 0.10.0
libtpu: 0.0.40
codegen_flags: <defaults>
</compile_context>

<pallas_src>
import numpy as np

import jax
import jax.numpy as jnp
from jax.experimental import pallas as pl
from jax.experimental.pallas import tpu as pltpu


# ------------------------------ Pallas kernel ------------------------------ #

def _fuser_kernel(
    x_ref, v_ref,
    r1_ref, m1_ref, gs1_ref, gc1_ref, gb1_ref,
    srep_ref, tmat_ref, hmask_ref, wblk_ref, gf28_ref, bf28_ref,
    bsum_ref, bsumt_ref,
    r2_ref, m2_ref, gs2_ref, gc2_ref, gb2_ref,
    r3_ref, m3_ref, gs3_ref, gc3_ref, gb3_ref,
    r4_ref, m4_ref, gs4_ref, gc4_ref, gb4_ref,
    ph_ref, w1_ref, gbl_ref,
    w2_ref, b2_ref,
    o_ref,
):
    bf16 = jnp.bfloat16

    def bdot(a, b):
        # MXU matmul: bf16 operands (native single pass), f32 accumulation.
        return jnp.dot(a.astype(bf16), b.astype(bf16),
                       preferred_element_type=jnp.float32)

    def fdot(a, b):
        # Tiny f32 matmuls on the BN-statistics paths (kept full precision).
        return jnp.dot(a, b, preferred_element_type=jnp.float32)

    def conv(x, r_ref, m_ref):
        # 3x3 / stride-2 / pad-1 conv: lane-concat the three row-selected
        # copies of x (tiny 0/1 matmuls fold the stride-2 row gather + zero
        # padding over h), then ONE wide-K matmul against the di-stacked
        # weight matrix (folds the stride-2 column gather + padding over w).
        xb = x.astype(bf16)
        lhs = jnp.concatenate([bdot(r_ref[di], xb) for di in range(3)], axis=1)
        return bdot(lhs, m_ref[...])

    def bn2d_relu(y, gs_ref, gc_ref, gb_ref, count):
        # Train-mode BatchNorm2d (biased var, eps=1e-5) + ReLU on the
        # (rows, Wo*C) interleaved layout.  One-pass stats: reduce rows first,
        # then thin per-channel group-sum / broadcast matmuls.
        inv = 1.0 / count
        s1 = fdot(jnp.sum(y, axis=0, keepdims=True), gs_ref[...])       # (1, C)
        s2 = fdot(jnp.sum(y * y, axis=0, keepdims=True), gs_ref[...])   # (1, C)
        mean = s1 * inv
        var = jnp.maximum(s2 * inv - mean * mean, 0.0)
        gb = gb_ref[...]
        scale = jax.lax.rsqrt(var + 1e-5) * gb[0:1, :]
        offset = gb[1:2, :] - mean * scale
        return jnp.maximum(
            y * fdot(scale, gc_ref[...]) + fdot(offset, gc_ref[...]), 0.0)

    n = v_ref.shape[0]
    nf = float(n)

    # --- conv_layers1: Conv2d(1->8, 3x3, s2, p1) + BN2d + ReLU -------------- #
    y1 = bn2d_relu(conv(x_ref[...], r1_ref, m1_ref),
                   gs1_ref, gc1_ref, gb1_ref, nf * 28.0 * 28.0)    # (N*28, 224)

    # --- fusing_layers: Linear(10->784) + BN1d + ReLU, produced directly in
    #     the (N*28, 28) image layout (== torch view(-1, 1, 28, 28)). -------- #
    vt = bdot(bdot(srep_ref[...], v_ref[...]), tmat_ref[...])      # (N*28, 280)
    fpre = bdot(vt * hmask_ref[...], wblk_ref[...])                # (N*28, 28)
    inv = 1.0 / nf
    s1 = fdot(bsum_ref[...], fpre)                                 # (28, 28)
    s2 = fdot(bsum_ref[...], fpre * fpre)
    mean = s1 * inv
    var = jnp.maximum(s2 * inv - mean * mean, 0.0)
    scale = jax.lax.rsqrt(var + 1e-5) * gf28_ref[...]
    offset = bf28_ref[...] - mean * scale
    f28 = jnp.maximum(fpre * fdot(bsumt_ref[...], scale)
                      + fdot(bsumt_ref[...], offset), 0.0)         # (N*28, 28)

    # --- conv_layers2: conv2a sees [y1 channels 0..7 | fused-vector ch 8] --- #
    x2a = jnp.concatenate([y1, f28], axis=1)                       # (N*28, 252)
    y2 = bn2d_relu(conv(x2a, r2_ref, m2_ref),
                   gs2_ref, gc2_ref, gb2_ref, nf * 14.0 * 14.0)    # (N*14, 224)
    y3 = bn2d_relu(conv(y2, r3_ref, m3_ref),
                   gs3_ref, gc3_ref, gb3_ref, nf * 7.0 * 7.0)      # (N*7, 224)
    y4 = bn2d_relu(conv(y3, r4_ref, m4_ref),
                   gs4_ref, gc4_ref, gb4_ref, nf * 4.0 * 4.0)      # (N*4, 256)

    # --- linear_layers: Flatten(CHW) + Linear(1024->100) + BN1d + ReLU ------ #
    y4b = y4.astype(bf16)
    zl = jnp.concatenate([bdot(ph_ref[h], y4b) for h in range(4)], axis=1)
    z = bdot(zl, w1_ref[...])                                      # (N, 100)
    s1 = jnp.sum(z, axis=0, keepdims=True)
    s2 = jnp.sum(z * z, axis=0, keepdims=True)
    mean = s1 * inv
    var = jnp.maximum(s2 * inv - mean * mean, 0.0)
    gbl = gbl_ref[...]
    scale = jax.lax.rsqrt(var + 1e-5) * gbl[0:1, :]
    z = jnp.maximum(z * scale + (gbl[1:2, :] - mean * scale), 0.0)

    # --- final Linear(100 -> 1): bias kept (no BN follows) ------------------ #
    o_ref[...] = jnp.sum(z * w2_ref[...], axis=1, keepdims=True) + b2_ref[...]


# ---------------------- constant-operand construction ----------------------- #

def _conv_R(H, Ho, N):
    """0/1 row-selection matrices (3, N*Ho, N*H): stride-2 + pad-1 over rows."""
    R = np.zeros((3, N * Ho, N * H), np.float32)
    for di in range(3):
        for n in range(N):
            for ho in range(Ho):
                h = 2 * ho + di - 1
                if 0 <= h < H:
                    R[di, n * Ho + ho, n * H + h] = 1.0
    return R


def _conv_Mcat(w, W, Wo, K, col_of):
    """Conv weight (Cout, Cin, 3, 3) repacked + di-stacked to (3*K, Wo*Cout).

    col_of(w_pos, cin) gives the column of that (w, cin) pair in the input's
    minor-dim layout (lets the fused-vector channel ride at the end for conv2a).
    """
    Cout, Cin = w.shape[0], w.shape[1]
    M = np.zeros((3, K, Wo * Cout), np.float32)
    for di in range(3):
        for dj in range(3):
            for wo in range(Wo):
                ww = 2 * wo + dj - 1
                if 0 <= ww < W:
                    for ci in range(Cin):
                        M[di, col_of(ww, ci), wo * Cout:(wo + 1) * Cout] = w[:, ci, di, dj]
    return M.reshape(3 * K, Wo * Cout)


def _gsum(Wo, C):
    """(Wo*C, C): per-channel group-sum over the interleaved (w, c) minor dim."""
    return np.tile(np.eye(C, dtype=np.float32), (Wo, 1))


def _gbcast(Wo, C):
    """(C, Wo*C): broadcast per-channel values back to the (w, c) layout."""
    return np.tile(np.eye(C, dtype=np.float32), (1, Wo))


def _gb_rows(gamma, beta):
    return np.stack([np.asarray(gamma, np.float32), np.asarray(beta, np.float32)])


def prepare_constants(params, N):
    """Build every constant kernel operand (weight/shape derived, one-time)."""
    f32 = np.float32
    cs = []

    def add(a, dtype):
        cs.append(jnp.asarray(np.asarray(a, f32), dtype=dtype))

    # conv1: 56x56x1 -> 28x28x8
    w, _b, g, bt = params["conv1"]
    w = np.asarray(w, f32)
    add(_conv_R(56, 28, N), jnp.bfloat16)
    add(_conv_Mcat(w, 56, 28, 56, lambda ww, ci: ww), jnp.bfloat16)
    add(_gsum(28, 8), jnp.float32)
    add(_gbcast(28, 8), jnp.float32)
    add(_gb_rows(g, bt), jnp.float32)

    # fusing layers: Linear(10 -> 784) (bias dropped, cancels in BN1d)
    wf, _bf, gf, btf = params["fuse"]
    wf = np.asarray(wf, f32)                                   # (784, 10)
    srep = np.zeros((N * 28, N), f32)
    for n in range(N):
        srep[n * 28:(n + 1) * 28, n] = 1.0
    add(srep, jnp.bfloat16)
    add(np.tile(np.eye(10, dtype=f32), (1, 28)), jnp.bfloat16)  # T: (10, 280)
    hmask = np.zeros((N * 28, 280), f32)
    for n in range(N):
        for h in range(28):
            hmask[n * 28 + h, h * 10:(h + 1) * 10] = 1.0
    add(hmask, jnp.float32)
    wblk = np.zeros((280, 28), f32)
    for h in range(28):
        wblk[h * 10:(h + 1) * 10, :] = wf[h * 28:(h + 1) * 28, :].T
    add(wblk, jnp.bfloat16)
    add(np.asarray(gf, f32).reshape(28, 28), jnp.float32)
    add(np.asarray(btf, f32).reshape(28, 28), jnp.float32)
    bsum = np.zeros((28, N * 28), f32)
    for n in range(N):
        for h in range(28):
            bsum[h, n * 28 + h] = 1.0
    add(bsum, jnp.float32)
    add(bsum.T.copy(), jnp.float32)

    # conv2a: 28x28x9 -> 14x14x16 (channels 0..7 = conv1, channel 8 = vector)
    w, _b, g, bt = params["conv2a"]
    w = np.asarray(w, f32)
    add(_conv_R(28, 14, N), jnp.bfloat16)
    add(_conv_Mcat(w, 28, 14, 28 * 8 + 28,
                   lambda ww, ci: (ww * 8 + ci) if ci < 8 else (224 + ww)),
        jnp.bfloat16)
    add(_gsum(14, 16), jnp.float32)
    add(_gbcast(14, 16), jnp.float32)
    add(_gb_rows(g, bt), jnp.float32)

    # conv2b: 14x14x16 -> 7x7x32
    w, _b, g, bt = params["conv2b"]
    w = np.asarray(w, f32)
    add(_conv_R(14, 7, N), jnp.bfloat16)
    add(_conv_Mcat(w, 14, 7, 14 * 16, lambda ww, ci: ww * 16 + ci), jnp.bfloat16)
    add(_gsum(7, 32), jnp.float32)
    add(_gbcast(7, 32), jnp.float32)
    add(_gb_rows(g, bt), jnp.float32)

    # conv2c: 7x7x32 -> 4x4x64
    w, _b, g, bt = params["conv2c"]
    w = np.asarray(w, f32)
    add(_conv_R(7, 4, N), jnp.bfloat16)
    add(_conv_Mcat(w, 7, 4, 7 * 32, lambda ww, ci: ww * 32 + ci), jnp.bfloat16)
    add(_gsum(4, 64), jnp.float32)
    add(_gbcast(4, 64), jnp.float32)
    add(_gb_rows(g, bt), jnp.float32)

    # lin1: Flatten (feature = c*16 + h*4 + w) + Linear(1024->100), bias dropped
    w1, _b1, g1, bt1 = params["lin1"]
    w1 = np.asarray(w1, f32)
    ph = np.zeros((4, N, N * 4), f32)
    for h in range(4):
        for n in range(N):
            ph[h, n, n * 4 + h] = 1.0
    add(ph, jnp.bfloat16)
    w1cat = np.zeros((4 * 256, 100), f32)
    for h in range(4):
        for w_ in range(4):
            for c in range(64):
                w1cat[h * 256 + w_ * 64 + c, :] = w1[:, c * 16 + h * 4 + w_]
    add(w1cat, jnp.bfloat16)
    add(_gb_rows(g1, bt1), jnp.float32)

    # lin2: Linear(100 -> 1), bias kept (no BN after it)
    w2, b2 = params["lin2"]
    add(np.asarray(w2, f32).reshape(1, 100), jnp.float32)
    add(np.asarray(b2, f32).reshape(1, 1), jnp.float32)

    return cs


# ------------------------------ pallas wrapper ------------------------------ #

def _full_spec(shape):
    # Whole array as a single VMEM block (everything here is small).
    return pl.BlockSpec(shape, lambda i, _n=len(shape): (0,) * _n)


def build_fuser(params, n_batch):
    consts = prepare_constants(params, n_batch)
    arg_shapes = [(n_batch * 56, 56), (n_batch, 10)] + [tuple(c.shape) for c in consts]

    call = pl.pallas_call(
        _fuser_kernel,
        grid=(1,),
        out_shape=jax.ShapeDtypeStruct((n_batch, 1), jnp.float32),
        in_specs=[_full_spec(s) for s in arg_shapes],
        out_specs=_full_spec((n_batch, 1)),
        compiler_params=pltpu.CompilerParams(
            dimension_semantics=("arbitrary",),
            vmem_limit_bytes=32 * 1024 * 1024,   # v7x-safe budget
        ),
    )

    def forward(image_nchw, vector):
        # NCHW with Cin=1: (N,1,56,56) -> (N*56, 56) is a plain reshape and is
        # already the (N*H, W*Cin) layout the kernel works in (no transpose).
        x = image_nchw.reshape(n_batch * 56, 56).astype(jnp.float32)
        return call(x, vector, *consts)

    return forward


# ------------------------- pure-JAX reference (check) ----------------------- #

_HI = jax.lax.Precision.HIGHEST


def _bn_train(x, gamma, beta, axes):
    mean = jnp.mean(x, axis=axes, keepdims=True)
    var = jnp.mean(jnp.square(x - mean), axis=axes, keepdims=True)
    return (x - mean) * jax.lax.rsqrt(var + 1e-5) * gamma + beta


def _ref_conv_block(x, w, b, gamma, beta):
    y = jax.lax.conv_general_dilated(
        x, w, window_strides=(2, 2), padding=((1, 1), (1, 1)),
        dimension_numbers=("NCHW", "OIHW", "NCHW"), precision=_HI)
    y = y + b.reshape(1, -1, 1, 1)
    y = _bn_train(y, gamma.reshape(1, -1, 1, 1), beta.reshape(1, -1, 1, 1), (0, 2, 3))
    return jnp.maximum(y, 0.0)


def fuser_reference(params, image, vector):
    x = _ref_conv_block(image, *params["conv1"])
    wf, bf, gf, btf = params["fuse"]
    v = jnp.dot(vector, wf.T, precision=_HI) + bf
    v = jnp.maximum(_bn_train(v, gf, btf, (0,)), 0.0)
    x = jnp.concatenate([x, v.reshape(-1, 1, 28, 28)], axis=1)
    x = _ref_conv_block(x, *params["conv2a"])
    x = _ref_conv_block(x, *params["conv2b"])
    x = _ref_conv_block(x, *params["conv2c"])
    x = x.reshape(x.shape[0], -1)
    w1, b1, g1, bt1 = params["lin1"]
    x = jnp.maximum(_bn_train(jnp.dot(x, w1.T, precision=_HI) + b1, g1, bt1, (0,)), 0.0)
    w2, b2 = params["lin2"]
    return jnp.dot(x, w2.T, precision=_HI) + b2


# --------------------------- deterministic init ------------------------------ #

def _init_conv(key, cout, cin):
    k1, k2 = jax.random.split(key)
    bound = 1.0 / ((cin * 9) ** 0.5)
    w = jax.random.uniform(k1, (cout, cin, 3, 3), jnp.float32, -bound, bound)
    b = jax.random.uniform(k2, (cout,), jnp.float32, -bound, bound)
    return w, b, jnp.ones((cout,), jnp.float32), jnp.zeros((cout,), jnp.float32)


def _init_linear(key, cin, cout, with_bn=True):
    k1, k2 = jax.random.split(key)
    bound = 1.0 / (cin ** 0.5)
    w = jax.random.uniform(k1, (cout, cin), jnp.float32, -bound, bound)
    b = jax.random.uniform(k2, (cout,), jnp.float32, -bound, bound)
    if with_bn:
        return w, b, jnp.ones((cout,), jnp.float32), jnp.zeros((cout,), jnp.float32)
    return w, b


# ---------------------------------- main ------------------------------------ #

if __name__ == "__main__":
    dim_vector = 10
    key = jax.random.PRNGKey(0)
    ks = jax.random.split(key, 9)

    params = {
        "conv1": _init_conv(ks[0], 8, 1),
        "fuse": _init_linear(ks[1], dim_vector, 28 * 28),
        "conv2a": _init_conv(ks[2], 16, 9),
        "conv2b": _init_conv(ks[3], 32, 16),
        "conv2c": _init_conv(ks[4], 64, 32),
        "lin1": _init_linear(ks[5], 64 * 4 * 4, 100),
        "lin2": _init_linear(ks[6], 100, 1, with_bn=False),
    }

    # Image is 56x56 so conv_layers1 (stride 2) yields 28x28, matching the
    # 28*28 fusing layer (same shapes the PyTorch reference implies).
    image = jax.random.normal(ks[7], (2, 1, 56, 56), jnp.float32)   # NCHW input
    vector = jax.random.normal(ks[8], (2, dim_vector), jnp.float32)

    forward = build_fuser(params, n_batch=2)
    out = forward(image, vector)
    out = jax.block_until_ready(out)

    assert out.shape == (2, 1), out.shape
    assert bool(jnp.all(jnp.isfinite(out)))

    # Correctness vs. a plain-JAX (f32, HIGHEST precision) reference of the
    # PyTorch module in train-mode BN.  Tolerance is loosened relative to the
    # f32 kernel because the weights/activations now ride the MXU in bf16 and
    # train-mode BN over a batch of 2 is ill-conditioned; structural/layout
    # bugs would still show up as O(1) discrepancies.
    ref = fuser_reference(params, image, vector)
    assert jnp.allclose(out, ref, rtol=5e-2, atol=1e-1), (out, ref)

    print("KERNEL_OK")
</pallas_src>

<mosaic_0001>
module attributes {stable_mosaic.version = 11 : i64} {
  func.func @_fuser_kernel(%arg0: i32, %arg1: memref<112x56xf32, #tpu.memory_space<vmem>>, %arg2: memref<2x10xf32, #tpu.memory_space<vmem>>, %arg3: memref<3x56x112xbf16, #tpu.memory_space<vmem>>, %arg4: memref<168x224xbf16, #tpu.memory_space<vmem>>, %arg5: memref<224x8xf32, #tpu.memory_space<vmem>>, %arg6: memref<8x224xf32, #tpu.memory_space<vmem>>, %arg7: memref<2x8xf32, #tpu.memory_space<vmem>>, %arg8: memref<56x2xbf16, #tpu.memory_space<vmem>>, %arg9: memref<10x280xbf16, #tpu.memory_space<vmem>>, %arg10: memref<56x280xf32, #tpu.memory_space<vmem>>, %arg11: memref<280x28xbf16, #tpu.memory_space<vmem>>, %arg12: memref<28x28xf32, #tpu.memory_space<vmem>>, %arg13: memref<28x28xf32, #tpu.memory_space<vmem>>, %arg14: memref<28x56xf32, #tpu.memory_space<vmem>>, %arg15: memref<56x28xf32, #tpu.memory_space<vmem>>, %arg16: memref<3x28x56xbf16, #tpu.memory_space<vmem>>, %arg17: memref<756x224xbf16, #tpu.memory_space<vmem>>, %arg18: memref<224x16xf32, #tpu.memory_space<vmem>>, %arg19: memref<16x224xf32, #tpu.memory_space<vmem>>, %arg20: memref<2x16xf32, #tpu.memory_space<vmem>>, %arg21: memref<3x14x28xbf16, #tpu.memory_space<vmem>>, %arg22: memref<672x224xbf16, #tpu.memory_space<vmem>>, %arg23: memref<224x32xf32, #tpu.memory_space<vmem>>, %arg24: memref<32x224xf32, #tpu.memory_space<vmem>>, %arg25: memref<2x32xf32, #tpu.memory_space<vmem>>, %arg26: memref<3x8x14xbf16, #tpu.memory_space<vmem>>, %arg27: memref<672x256xbf16, #tpu.memory_space<vmem>>, %arg28: memref<256x64xf32, #tpu.memory_space<vmem>>, %arg29: memref<64x256xf32, #tpu.memory_space<vmem>>, %arg30: memref<2x64xf32, #tpu.memory_space<vmem>>, %arg31: memref<4x2x8xbf16, #tpu.memory_space<vmem>>, %arg32: memref<1024x100xbf16, #tpu.memory_space<vmem>>, %arg33: memref<2x100xf32, #tpu.memory_space<vmem>>, %arg34: memref<1x100xf32, #tpu.memory_space<vmem>>, %arg35: memref<1x1xf32, #tpu.memory_space<vmem>>, %arg36: memref<2x1xf32, #tpu.memory_space<vmem>>) attributes {dimension_semantics = [#tpu.dimension_semantics<arbitrary>], iteration_bounds = array<i64: 1>, scalar_prefetch = 0 : i64, scratch_operands = 0 : i64, tpu.core_type = #tpu.core_type<tc>, window_params = [{pipeline_mode = #tpu.pipeline_mode<synchronous>, transform_indices = @transform_0, window_bounds = array<i64: 112, 56>}, {pipeline_mode = #tpu.pipeline_mode<synchronous>, transform_indices = @transform_1, window_bounds = array<i64: 2, 10>}, {pipeline_mode = #tpu.pipeline_mode<synchronous>, transform_indices = @transform_2, window_bounds = array<i64: 3, 56, 112>}, {pipeline_mode = #tpu.pipeline_mode<synchronous>, transform_indices = @transform_3, window_bounds = array<i64: 168, 224>}, {pipeline_mode = #tpu.pipeline_mode<synchronous>, transform_indices = @transform_4, window_bounds = array<i64: 224, 8>}, {pipeline_mode = #tpu.pipeline_mode<synchronous>, transform_indices = @transform_5, window_bounds = array<i64: 8, 224>}, {pipeline_mode = #tpu.pipeline_mode<synchronous>, transform_indices = @transform_6, window_bounds = array<i64: 2, 8>}, {pipeline_mode = #tpu.pipeline_mode<synchronous>, transform_indices = @transform_7, window_bounds = array<i64: 56, 2>}, {pipeline_mode = #tpu.pipeline_mode<synchronous>, transform_indices = @transform_8, window_bounds = array<i64: 10, 280>}, {pipeline_mode = #tpu.pipeline_mode<synchronous>, transform_indices = @transform_9, window_bounds = array<i64: 56, 280>}, {pipeline_mode = #tpu.pipeline_mode<synchronous>, transform_indices = @transform_10, window_bounds = array<i64: 280, 28>}, {pipeline_mode = #tpu.pipeline_mode<synchronous>, transform_indices = @transform_11, window_bounds = array<i64: 28, 28>}, {pipeline_mode = #tpu.pipeline_mode<synchronous>, transform_indices = @transform_12, window_bounds = array<i64: 28, 28>}, {pipeline_mode = #tpu.pipeline_mode<synchronous>, transform_indices = @transform_13, window_bounds = array<i64: 28, 56>}, {pipeline_mode = #tpu.pipeline_mode<synchronous>, transform_indices = @transform_14, window_bounds = array<i64: 56, 28>}, {pipeline_mode = #tpu.pipeline_mode<synchronous>, transform_indices = @transform_15, window_bounds = array<i64: 3, 28, 56>}, {pipeline_mode = #tpu.pipeline_mode<synchronous>, transform_indices = @transform_16, window_bounds = array<i64: 756, 224>}, {pipeline_mode = #tpu.pipeline_mode<synchronous>, transform_indices = @transform_17, window_bounds = array<i64: 224, 16>}, {pipeline_mode = #tpu.pipeline_mode<synchronous>, transform_indices = @transform_18, window_bounds = array<i64: 16, 224>}, {pipeline_mode = #tpu.pipeline_mode<synchronous>, transform_indices = @transform_19, window_bounds = array<i64: 2, 16>}, {pipeline_mode = #tpu.pipeline_mode<synchronous>, transform_indices = @transform_20, window_bounds = array<i64: 3, 14, 28>}, {pipeline_mode = #tpu.pipeline_mode<synchronous>, transform_indices = @transform_21, window_bounds = array<i64: 672, 224>}, {pipeline_mode = #tpu.pipeline_mode<synchronous>, transform_indices = @transform_22, window_bounds = array<i64: 224, 32>}, {pipeline_mode = #tpu.pipeline_mode<synchronous>, transform_indices = @transform_23, window_bounds = array<i64: 32, 224>}, {pipeline_mode = #tpu.pipeline_mode<synchronous>, transform_indices = @transform_24, window_bounds = array<i64: 2, 32>}, {pipeline_mode = #tpu.pipeline_mode<synchronous>, transform_indices = @transform_25, window_bounds = array<i64: 3, 8, 14>}, {pipeline_mode = #tpu.pipeline_mode<synchronous>, transform_indices = @transform_26, window_bounds = array<i64: 672, 256>}, {pipeline_mode = #tpu.pipeline_mode<synchronous>, transform_indices = @transform_27, window_bounds = array<i64: 256, 64>}, {pipeline_mode = #tpu.pipeline_mode<synchronous>, transform_indices = @transform_28, window_bounds = array<i64: 64, 256>}, {pipeline_mode = #tpu.pipeline_mode<synchronous>, transform_indices = @transform_29, window_bounds = array<i64: 2, 64>}, {pipeline_mode = #tpu.pipeline_mode<synchronous>, transform_indices = @transform_30, window_bounds = array<i64: 4, 2, 8>}, {pipeline_mode = #tpu.pipeline_mode<synchronous>, transform_indices = @transform_31, window_bounds = array<i64: 1024, 100>}, {pipeline_mode = #tpu.pipeline_mode<synchronous>, transform_indices = @transform_32, window_bounds = array<i64: 2, 100>}, {pipeline_mode = #tpu.pipeline_mode<synchronous>, transform_indices = @transform_33, window_bounds = array<i64: 1, 100>}, {pipeline_mode = #tpu.pipeline_mode<synchronous>, transform_indices = @transform_34, window_bounds = array<i64: 1, 1>}, {pipeline_mode = #tpu.pipeline_mode<synchronous>, transform_indices = @transform_35, window_bounds = array<i64: 2, 1>}]} {
    %c0 = arith.constant 0 : index
    %c0_0 = arith.constant 0 : index
    %0 = vector.load %arg1[%c0, %c0_0] : memref<112x56xf32, #tpu.memory_space<vmem>>, vector<112x56xf32>
    %1 = arith.truncf %0 : vector<112x56xf32> to vector<112x56xbf16>
    %c0_1 = arith.constant 0 : index
    %c0_2 = arith.constant 0 : index
    %c0_3 = arith.constant 0 : index
    %2 = vector.load %arg3[%c0_1, %c0_2, %c0_3] : memref<3x56x112xbf16, #tpu.memory_space<vmem>>, vector<1x56x112xbf16>
    %3 = vector.shape_cast %2 : vector<1x56x112xbf16> to vector<56x112xbf16>
    %cst = arith.constant dense<0.000000e+00> : vector<56x56xf32>
    %4 = tpu.matmul %3, %1, %cst {dimension_numbers = #tpu.dot_dimension_numbers<[1], [0], [0], [1], [0, 0, 1, 1], [], []>} : vector<56x112xbf16>, vector<112x56xbf16>, vector<56x56xf32> -> vector<56x56xf32>
    %c1 = arith.constant 1 : index
    %c0_4 = arith.constant 0 : index
    %c0_5 = arith.constant 0 : index
    %5 = vector.load %arg3[%c1, %c0_4, %c0_5] : memref<3x56x112xbf16, #tpu.memory_space<vmem>>, vector<1x56x112xbf16>
    %6 = vector.shape_cast %5 : vector<1x56x112xbf16> to vector<56x112xbf16>
    %cst_6 = arith.constant dense<0.000000e+00> : vector<56x56xf32>
    %7 = tpu.matmul %6, %1, %cst_6 {dimension_numbers = #tpu.dot_dimension_numbers<[1], [0], [0], [1], [0, 0, 1, 1], [], []>} : vector<56x112xbf16>, vector<112x56xbf16>, vector<56x56xf32> -> vector<56x56xf32>
    %c2 = arith.constant 2 : index
    %c0_7 = arith.constant 0 : index
    %c0_8 = arith.constant 0 : index
    %8 = vector.load %arg3[%c2, %c0_7, %c0_8] : memref<3x56x112xbf16, #tpu.memory_space<vmem>>, vector<1x56x112xbf16>
    %9 = vector.shape_cast %8 : vector<1x56x112xbf16> to vector<56x112xbf16>
    %cst_9 = arith.constant dense<0.000000e+00> : vector<56x56xf32>
    %10 = tpu.matmul %9, %1, %cst_9 {dimension_numbers = #tpu.dot_dimension_numbers<[1], [0], [0], [1], [0, 0, 1, 1], [], []>} : vector<56x112xbf16>, vector<112x56xbf16>, vector<56x56xf32> -> vector<56x56xf32>
    %11 = tpu.concatenate %4, %7, %10 in 1 : vector<56x56xf32>, vector<56x56xf32>, vector<56x56xf32> -> vector<56x168xf32>
    %c0_10 = arith.constant 0 : index
    %c0_11 = arith.constant 0 : index
    %12 = vector.load %arg4[%c0_10, %c0_11] : memref<168x224xbf16, #tpu.memory_space<vmem>>, vector<168x224xbf16>
    %13 = arith.truncf %11 : vector<56x168xf32> to vector<56x168xbf16>
    %cst_12 = arith.constant dense<0.000000e+00> : vector<56x224xf32>
    %14 = tpu.matmul %13, %12, %cst_12 {dimension_numbers = #tpu.dot_dimension_numbers<[1], [0], [0], [1], [0, 0, 1, 1], [], []>} : vector<56x168xbf16>, vector<168x224xbf16>, vector<56x224xf32> -> vector<56x224xf32>
    %cst_13 = arith.constant dense<0.000000e+00> : vector<224xf32>
    %15 = vector.multi_reduction <add>, %14, %cst_13 [0] : vector<56x224xf32> to vector<224xf32>
    %16 = vector.shape_cast %15 : vector<224xf32> to vector<1x224xf32>
    %c0_14 = arith.constant 0 : index
    %c0_15 = arith.constant 0 : index
    %17 = vector.load %arg5[%c0_14, %c0_15] : memref<224x8xf32, #tpu.memory_space<vmem>>, vector<224x8xf32>
    %cst_16 = arith.constant dense<0.000000e+00> : vector<1x8xf32>
    %18 = tpu.matmul %16, %17, %cst_16 {dimension_numbers = #tpu.dot_dimension_numbers<[1], [0], [0], [1], [0, 0, 1, 1], [], []>} : vector<1x224xf32>, vector<224x8xf32>, vector<1x8xf32> -> vector<1x8xf32>
    %19 = arith.mulf %14, %14 : vector<56x224xf32>
    %cst_17 = arith.constant dense<0.000000e+00> : vector<224xf32>
    %20 = vector.multi_reduction <add>, %19, %cst_17 [0] : vector<56x224xf32> to vector<224xf32>
    %21 = vector.shape_cast %20 : vector<224xf32> to vector<1x224xf32>
    %c0_18 = arith.constant 0 : index
    %c0_19 = arith.constant 0 : index
    %22 = vector.load %arg5[%c0_18, %c0_19] : memref<224x8xf32, #tpu.memory_space<vmem>>, vector<224x8xf32>
    %cst_20 = arith.constant dense<0.000000e+00> : vector<1x8xf32>
    %23 = tpu.matmul %21, %22, %cst_20 {dimension_numbers = #tpu.dot_dimension_numbers<[1], [0], [0], [1], [0, 0, 1, 1], [], []>} : vector<1x224xf32>, vector<224x8xf32>, vector<1x8xf32> -> vector<1x8xf32>
    %cst_21 = arith.constant 6.37755089E-4 : f32
    %24 = vector.broadcast %cst_21 : f32 to vector<1x8xf32>
    %25 = arith.mulf %18, %24 : vector<1x8xf32>
    %cst_22 = arith.constant 6.37755089E-4 : f32
    %26 = vector.broadcast %cst_22 : f32 to vector<1x8xf32>
    %27 = arith.mulf %23, %26 : vector<1x8xf32>
    %28 = arith.mulf %25, %25 : vector<1x8xf32>
    %29 = arith.subf %27, %28 : vector<1x8xf32>
    %cst_23 = arith.constant 0.000000e+00 : f32
    %30 = vector.broadcast %cst_23 : f32 to vector<1x8xf32>
    %31 = arith.maximumf %29, %30 : vector<1x8xf32>
    %c0_24 = arith.constant 0 : index
    %c0_25 = arith.constant 0 : index
    %32 = vector.load %arg7[%c0_24, %c0_25] : memref<2x8xf32, #tpu.memory_space<vmem>>, vector<2x8xf32>
    %cst_26 = arith.constant 9.99999974E-6 : f32
    %33 = vector.broadcast %cst_26 : f32 to vector<1x8xf32>
    %34 = arith.addf %31, %33 : vector<1x8xf32>
    %35 = math.rsqrt %34 : vector<1x8xf32>
    %36 = vector.extract_strided_slice %32 {offsets = [0, 0], sizes = [1, 8], strides = [1, 1]} : vector<2x8xf32> to vector<1x8xf32>
    %37 = arith.mulf %35, %36 : vector<1x8xf32>
    %38 = vector.extract_strided_slice %32 {offsets = [1, 0], sizes = [1, 8], strides = [1, 1]} : vector<2x8xf32> to vector<1x8xf32>
    %39 = arith.mulf %25, %37 : vector<1x8xf32>
    %40 = arith.subf %38, %39 : vector<1x8xf32>
    %c0_27 = arith.constant 0 : index
    %c0_28 = arith.constant 0 : index
    %41 = vector.load %arg6[%c0_27, %c0_28] : memref<8x224xf32, #tpu.memory_space<vmem>>, vector<8x224xf32>
    %cst_29 = arith.constant dense<0.000000e+00> : vector<1x224xf32>
    %42 = tpu.matmul %37, %41, %cst_29 {dimension_numbers = #tpu.dot_dimension_numbers<[1], [0], [0], [1], [0, 0, 1, 1], [], []>} : vector<1x8xf32>, vector<8x224xf32>, vector<1x224xf32> -> vector<1x224xf32>
    %43 = vector.broadcast %42 : vector<1x224xf32> to vector<56x224xf32>
    %44 = arith.mulf %14, %43 : vector<56x224xf32>
    %c0_30 = arith.constant 0 : index
    %c0_31 = arith.constant 0 : index
    %45 = vector.load %arg6[%c0_30, %c0_31] : memref<8x224xf32, #tpu.memory_space<vmem>>, vector<8x224xf32>
    %cst_32 = arith.constant dense<0.000000e+00> : vector<1x224xf32>
    %46 = tpu.matmul %40, %45, %cst_32 {dimension_numbers = #tpu.dot_dimension_numbers<[1], [0], [0], [1], [0, 0, 1, 1], [], []>} : vector<1x8xf32>, vector<8x224xf32>, vector<1x224xf32> -> vector<1x224xf32>
    %47 = vector.broadcast %46 : vector<1x224xf32> to vector<56x224xf32>
    %48 = arith.addf %44, %47 : vector<56x224xf32>
    %cst_33 = arith.constant 0.000000e+00 : f32
    %49 = vector.broadcast %cst_33 : f32 to vector<56x224xf32>
    %50 = arith.maximumf %48, %49 : vector<56x224xf32>
    %c0_34 = arith.constant 0 : index
    %c0_35 = arith.constant 0 : index
    %51 = vector.load %arg8[%c0_34, %c0_35] : memref<56x2xbf16, #tpu.memory_space<vmem>>, vector<56x2xbf16>
    %c0_36 = arith.constant 0 : index
    %c0_37 = arith.constant 0 : index
    %52 = vector.load %arg2[%c0_36, %c0_37] : memref<2x10xf32, #tpu.memory_space<vmem>>, vector<2x10xf32>
    %53 = arith.truncf %52 : vector<2x10xf32> to vector<2x10xbf16>
    %cst_38 = arith.constant dense<0.000000e+00> : vector<56x10xf32>
    %54 = tpu.matmul %51, %53, %cst_38 {dimension_numbers = #tpu.dot_dimension_numbers<[1], [0], [0], [1], [0, 0, 1, 1], [], []>} : vector<56x2xbf16>, vector<2x10xbf16>, vector<56x10xf32> -> vector<56x10xf32>
    %c0_39 = arith.constant 0 : index
    %c0_40 = arith.constant 0 : index
    %55 = vector.load %arg9[%c0_39, %c0_40] : memref<10x280xbf16, #tpu.memory_space<vmem>>, vector<10x280xbf16>
    %56 = arith.truncf %54 : vector<56x10xf32> to vector<56x10xbf16>
    %cst_41 = arith.constant dense<0.000000e+00> : vector<56x280xf32>
    %57 = tpu.matmul %56, %55, %cst_41 {dimension_numbers = #tpu.dot_dimension_numbers<[1], [0], [0], [1], [0, 0, 1, 1], [], []>} : vector<56x10xbf16>, vector<10x280xbf16>, vector<56x280xf32> -> vector<56x280xf32>
    %c0_42 = arith.constant 0 : index
    %c0_43 = arith.constant 0 : index
    %58 = vector.load %arg10[%c0_42, %c0_43] : memref<56x280xf32, #tpu.memory_space<vmem>>, vector<56x280xf32>
    %59 = arith.mulf %57, %58 : vector<56x280xf32>
    %c0_44 = arith.constant 0 : index
    %c0_45 = arith.constant 0 : index
    %60 = vector.load %arg11[%c0_44, %c0_45] : memref<280x28xbf16, #tpu.memory_space<vmem>>, vector<280x28xbf16>
    %61 = arith.truncf %59 : vector<56x280xf32> to vector<56x280xbf16>
    %cst_46 = arith.constant dense<0.000000e+00> : vector<56x28xf32>
    %62 = tpu.matmul %61, %60, %cst_46 {dimension_numbers = #tpu.dot_dimension_numbers<[1], [0], [0], [1], [0, 0, 1, 1], [], []>} : vector<56x280xbf16>, vector<280x28xbf16>, vector<56x28xf32> -> vector<56x28xf32>
    %c0_47 = arith.constant 0 : index
    %c0_48 = arith.constant 0 : index
    %63 = vector.load %arg14[%c0_47, %c0_48] : memref<28x56xf32, #tpu.memory_space<vmem>>, vector<28x56xf32>
    %cst_49 = arith.constant dense<0.000000e+00> : vector<28x28xf32>
    %64 = tpu.matmul %63, %62, %cst_49 {dimension_numbers = #tpu.dot_dimension_numbers<[1], [0], [0], [1], [0, 0, 1, 1], [], []>} : vector<28x56xf32>, vector<56x28xf32>, vector<28x28xf32> -> vector<28x28xf32>
    %c0_50 = arith.constant 0 : index
    %c0_51 = arith.constant 0 : index
    %65 = vector.load %arg14[%c0_50, %c0_51] : memref<28x56xf32, #tpu.memory_space<vmem>>, vector<28x56xf32>
    %66 = arith.mulf %62, %62 : vector<56x28xf32>
    %cst_52 = arith.constant dense<0.000000e+00> : vector<28x28xf32>
    %67 = tpu.matmul %65, %66, %cst_52 {dimension_numbers = #tpu.dot_dimension_numbers<[1], [0], [0], [1], [0, 0, 1, 1], [], []>} : vector<28x56xf32>, vector<56x28xf32>, vector<28x28xf32> -> vector<28x28xf32>
    %cst_53 = arith.constant 5.000000e-01 : f32
    %68 = vector.broadcast %cst_53 : f32 to vector<28x28xf32>
    %69 = arith.mulf %64, %68 : vector<28x28xf32>
    %cst_54 = arith.constant 5.000000e-01 : f32
    %70 = vector.broadcast %cst_54 : f32 to vector<28x28xf32>
    %71 = arith.mulf %67, %70 : vector<28x28xf32>
    %72 = arith.mulf %69, %69 : vector<28x28xf32>
    %73 = arith.subf %71, %72 : vector<28x28xf32>
    %cst_55 = arith.constant 0.000000e+00 : f32
    %74 = vector.broadcast %cst_55 : f32 to vector<28x28xf32>
    %75 = arith.maximumf %73, %74 : vector<28x28xf32>
    %cst_56 = arith.constant 9.99999974E-6 : f32
    %76 = vector.broadcast %cst_56 : f32 to vector<28x28xf32>
    %77 = arith.addf %75, %76 : vector<28x28xf32>
    %78 = math.rsqrt %77 : vector<28x28xf32>
    %c0_57 = arith.constant 0 : index
    %c0_58 = arith.constant 0 : index
    %79 = vector.load %arg12[%c0_57, %c0_58] : memref<28x28xf32, #tpu.memory_space<vmem>>, vector<28x28xf32>
    %80 = arith.mulf %78, %79 : vector<28x28xf32>
    %c0_59 = arith.constant 0 : index
    %c0_60 = arith.constant 0 : index
    %81 = vector.load %arg13[%c0_59, %c0_60] : memref<28x28xf32, #tpu.memory_space<vmem>>, vector<28x28xf32>
    %82 = arith.mulf %69, %80 : vector<28x28xf32>
    %83 = arith.subf %81, %82 : vector<28x28xf32>
    %c0_61 = arith.constant 0 : index
    %c0_62 = arith.constant 0 : index
    %84 = vector.load %arg15[%c0_61, %c0_62] : memref<56x28xf32, #tpu.memory_space<vmem>>, vector<56x28xf32>
    %cst_63 = arith.constant dense<0.000000e+00> : vector<56x28xf32>
    %85 = tpu.matmul %84, %80, %cst_63 {dimension_numbers = #tpu.dot_dimension_numbers<[1], [0], [0], [1], [0, 0, 1, 1], [], []>} : vector<56x28xf32>, vector<28x28xf32>, vector<56x28xf32> -> vector<56x28xf32>
    %86 = arith.mulf %62, %85 : vector<56x28xf32>
    %c0_64 = arith.constant 0 : index
    %c0_65 = arith.constant 0 : index
    %87 = vector.load %arg15[%c0_64, %c0_65] : memref<56x28xf32, #tpu.memory_space<vmem>>, vector<56x28xf32>
    %cst_66 = arith.constant dense<0.000000e+00> : vector<56x28xf32>
    %88 = tpu.matmul %87, %83, %cst_66 {dimension_numbers = #tpu.dot_dimension_numbers<[1], [0], [0], [1], [0, 0, 1, 1], [], []>} : vector<56x28xf32>, vector<28x28xf32>, vector<56x28xf32> -> vector<56x28xf32>
    %89 = arith.addf %86, %88 : vector<56x28xf32>
    %cst_67 = arith.constant 0.000000e+00 : f32
    %90 = vector.broadcast %cst_67 : f32 to vector<56x28xf32>
    %91 = arith.maximumf %89, %90 : vector<56x28xf32>
    %92 = tpu.concatenate %50, %91 in 1 : vector<56x224xf32>, vector<56x28xf32> -> vector<56x252xf32>
    %93 = arith.truncf %92 : vector<56x252xf32> to vector<56x252xbf16>
    %c0_68 = arith.constant 0 : index
    %c0_69 = arith.constant 0 : index
    %c0_70 = arith.constant 0 : index
    %94 = vector.load %arg16[%c0_68, %c0_69, %c0_70] : memref<3x28x56xbf16, #tpu.memory_space<vmem>>, vector<1x28x56xbf16>
    %95 = vector.shape_cast %94 : vector<1x28x56xbf16> to vector<28x56xbf16>
    %cst_71 = arith.constant dense<0.000000e+00> : vector<28x252xf32>
    %96 = tpu.matmul %95, %93, %cst_71 {dimension_numbers = #tpu.dot_dimension_numbers<[1], [0], [0], [1], [0, 0, 1, 1], [], []>} : vector<28x56xbf16>, vector<56x252xbf16>, vector<28x252xf32> -> vector<28x252xf32>
    %c1_72 = arith.constant 1 : index
    %c0_73 = arith.constant 0 : index
    %c0_74 = arith.constant 0 : index
    %97 = vector.load %arg16[%c1_72, %c0_73, %c0_74] : memref<3x28x56xbf16, #tpu.memory_space<vmem>>, vector<1x28x56xbf16>
    %98 = vector.shape_cast %97 : vector<1x28x56xbf16> to vector<28x56xbf16>
    %cst_75 = arith.constant dense<0.000000e+00> : vector<28x252xf32>
    %99 = tpu.matmul %98, %93, %cst_75 {dimension_numbers = #tpu.dot_dimension_numbers<[1], [0], [0], [1], [0, 0, 1, 1], [], []>} : vector<28x56xbf16>, vector<56x252xbf16>, vector<28x252xf32> -> vector<28x252xf32>
    %c2_76 = arith.constant 2 : index
    %c0_77 = arith.constant 0 : index
    %c0_78 = arith.constant 0 : index
    %100 = vector.load %arg16[%c2_76, %c0_77, %c0_78] : memref<3x28x56xbf16, #tpu.memory_space<vmem>>, vector<1x28x56xbf16>
    %101 = vector.shape_cast %100 : vector<1x28x56xbf16> to vector<28x56xbf16>
    %cst_79 = arith.constant dense<0.000000e+00> : vector<28x252xf32>
    %102 = tpu.matmul %101, %93, %cst_79 {dimension_numbers = #tpu.dot_dimension_numbers<[1], [0], [0], [1], [0, 0, 1, 1], [], []>} : vector<28x56xbf16>, vector<56x252xbf16>, vector<28x252xf32> -> vector<28x252xf32>
    %103 = tpu.concatenate %96, %99, %102 in 1 : vector<28x252xf32>, vector<28x252xf32>, vector<28x252xf32> -> vector<28x756xf32>
    %c0_80 = arith.constant 0 : index
    %c0_81 = arith.constant 0 : index
    %104 = vector.load %arg17[%c0_80, %c0_81] : memref<756x224xbf16, #tpu.memory_space<vmem>>, vector<756x224xbf16>
    %105 = arith.truncf %103 : vector<28x756xf32> to vector<28x756xbf16>
    %cst_82 = arith.constant dense<0.000000e+00> : vector<28x224xf32>
    %106 = tpu.matmul %105, %104, %cst_82 {dimension_numbers = #tpu.dot_dimension_numbers<[1], [0], [0], [1], [0, 0, 1, 1], [], []>} : vector<28x756xbf16>, vector<756x224xbf16>, vector<28x224xf32> -> vector<28x224xf32>
    %cst_83 = arith.constant dense<0.000000e+00> : vector<224xf32>
    %107 = vector.multi_reduction <add>, %106, %cst_83 [0] : vector<28x224xf32> to vector<224xf32>
    %108 = vector.shape_cast %107 : vector<224xf32> to vector<1x224xf32>
    %c0_84 = arith.constant 0 : index
    %c0_85 = arith.constant 0 : index
    %109 = vector.load %arg18[%c0_84, %c0_85] : memref<224x16xf32, #tpu.memory_space<vmem>>, vector<224x16xf32>
    %cst_86 = arith.constant dense<0.000000e+00> : vector<1x16xf32>
    %110 = tpu.matmul %108, %109, %cst_86 {dimension_numbers = #tpu.dot_dimension_numbers<[1], [0], [0], [1], [0, 0, 1, 1], [], []>} : vector<1x224xf32>, vector<224x16xf32>, vector<1x16xf32> -> vector<1x16xf32>
    %111 = arith.mulf %106, %106 : vector<28x224xf32>
    %cst_87 = arith.constant dense<0.000000e+00> : vector<224xf32>
    %112 = vector.multi_reduction <add>, %111, %cst_87 [0] : vector<28x224xf32> to vector<224xf32>
    %113 = vector.shape_cast %112 : vector<224xf32> to vector<1x224xf32>
    %c0_88 = arith.constant 0 : index
    %c0_89 = arith.constant 0 : index
    %114 = vector.load %arg18[%c0_88, %c0_89] : memref<224x16xf32, #tpu.memory_space<vmem>>, vector<224x16xf32>
    %cst_90 = arith.constant dense<0.000000e+00> : vector<1x16xf32>
    %115 = tpu.matmul %113, %114, %cst_90 {dimension_numbers = #tpu.dot_dimension_numbers<[1], [0], [0], [1], [0, 0, 1, 1], [], []>} : vector<1x224xf32>, vector<224x16xf32>, vector<1x16xf32> -> vector<1x16xf32>
    %cst_91 = arith.constant 0.00255102036 : f32
    %116 = vector.broadcast %cst_91 : f32 to vector<1x16xf32>
    %117 = arith.mulf %110, %116 : vector<1x16xf32>
    %cst_92 = arith.constant 0.00255102036 : f32
    %118 = vector.broadcast %cst_92 : f32 to vector<1x16xf32>
    %119 = arith.mulf %115, %118 : vector<1x16xf32>
    %120 = arith.mulf %117, %117 : vector<1x16xf32>
    %121 = arith.subf %119, %120 : vector<1x16xf32>
    %cst_93 = arith.constant 0.000000e+00 : f32
    %122 = vector.broadcast %cst_93 : f32 to vector<1x16xf32>
    %123 = arith.maximumf %121, %122 : vector<1x16xf32>
    %c0_94 = arith.constant 0 : index
    %c0_95 = arith.constant 0 : index
    %124 = vector.load %arg20[%c0_94, %c0_95] : memref<2x16xf32, #tpu.memory_space<vmem>>, vector<2x16xf32>
    %cst_96 = arith.constant 9.99999974E-6 : f32
    %125 = vector.broadcast %cst_96 : f32 to vector<1x16xf32>
    %126 = arith.addf %123, %125 : vector<1x16xf32>
    %127 = math.rsqrt %126 : vector<1x16xf32>
    %128 = vector.extract_strided_slice %124 {offsets = [0, 0], sizes = [1, 16], strides = [1, 1]} : vector<2x16xf32> to vector<1x16xf32>
    %129 = arith.mulf %127, %128 : vector<1x16xf32>
    %130 = vector.extract_strided_slice %124 {offsets = [1, 0], sizes = [1, 16], strides = [1, 1]} : vector<2x16xf32> to vector<1x16xf32>
    %131 = arith.mulf %117, %129 : vector<1x16xf32>
    %132 = arith.subf %130, %131 : vector<1x16xf32>
    %c0_97 = arith.constant 0 : index
    %c0_98 = arith.constant 0 : index
    %133 = vector.load %arg19[%c0_97, %c0_98] : memref<16x224xf32, #tpu.memory_space<vmem>>, vector<16x224xf32>
    %cst_99 = arith.constant dense<0.000000e+00> : vector<1x224xf32>
    %134 = tpu.matmul %129, %133, %cst_99 {dimension_numbers = #tpu.dot_dimension_numbers<[1], [0], [0], [1], [0, 0, 1, 1], [], []>} : vector<1x16xf32>, vector<16x224xf32>, vector<1x224xf32> -> vector<1x224xf32>
    %135 = vector.broadcast %134 : vector<1x224xf32> to vector<28x224xf32>
    %136 = arith.mulf %106, %135 : vector<28x224xf32>
    %c0_100 = arith.constant 0 : index
    %c0_101 = arith.constant 0 : index
    %137 = vector.load %arg19[%c0_100, %c0_101] : memref<16x224xf32, #tpu.memory_space<vmem>>, vector<16x224xf32>
    %cst_102 = arith.constant dense<0.000000e+00> : vector<1x224xf32>
    %138 = tpu.matmul %132, %137, %cst_102 {dimension_numbers = #tpu.dot_dimension_numbers<[1], [0], [0], [1], [0, 0, 1, 1], [], []>} : vector<1x16xf32>, vector<16x224xf32>, vector<1x224xf32> -> vector<1x224xf32>
    %139 = vector.broadcast %138 : vector<1x224xf32> to vector<28x224xf32>
    %140 = arith.addf %136, %139 : vector<28x224xf32>
    %cst_103 = arith.constant 0.000000e+00 : f32
    %141 = vector.broadcast %cst_103 : f32 to vector<28x224xf32>
    %142 = arith.maximumf %140, %141 : vector<28x224xf32>
    %143 = arith.truncf %142 : vector<28x224xf32> to vector<28x224xbf16>
    %c0_104 = arith.constant 0 : index
    %c0_105 = arith.constant 0 : index
    %c0_106 = arith.constant 0 : index
    %144 = vector.load %arg21[%c0_104, %c0_105, %c0_106] : memref<3x14x28xbf16, #tpu.memory_space<vmem>>, vector<1x14x28xbf16>
    %145 = vector.shape_cast %144 : vector<1x14x28xbf16> to vector<14x28xbf16>
    %cst_107 = arith.constant dense<0.000000e+00> : vector<14x224xf32>
    %146 = tpu.matmul %145, %143, %cst_107 {dimension_numbers = #tpu.dot_dimension_numbers<[1], [0], [0], [1], [0, 0, 1, 1], [], []>} : vector<14x28xbf16>, vector<28x224xbf16>, vector<14x224xf32> -> vector<14x224xf32>
    %c1_108 = arith.constant 1 : index
    %c0_109 = arith.constant 0 : index
    %c0_110 = arith.constant 0 : index
    %147 = vector.load %arg21[%c1_108, %c0_109, %c0_110] : memref<3x14x28xbf16, #tpu.memory_space<vmem>>, vector<1x14x28xbf16>
    %148 = vector.shape_cast %147 : vector<1x14x28xbf16> to vector<14x28xbf16>
    %cst_111 = arith.constant dense<0.000000e+00> : vector<14x224xf32>
    %149 = tpu.matmul %148, %143, %cst_111 {dimension_numbers = #tpu.dot_dimension_numbers<[1], [0], [0], [1], [0, 0, 1, 1], [], []>} : vector<14x28xbf16>, vector<28x224xbf16>, vector<14x224xf32> -> vector<14x224xf32>
    %c2_112 = arith.constant 2 : index
    %c0_113 = arith.constant 0 : index
    %c0_114 = arith.constant 0 : index
    %150 = vector.load %arg21[%c2_112, %c0_113, %c0_114] : memref<3x14x28xbf16, #tpu.memory_space<vmem>>, vector<1x14x28xbf16>
    %151 = vector.shape_cast %150 : vector<1x14x28xbf16> to vector<14x28xbf16>
    %cst_115 = arith.constant dense<0.000000e+00> : vector<14x224xf32>
    %152 = tpu.matmul %151, %143, %cst_115 {dimension_numbers = #tpu.dot_dimension_numbers<[1], [0], [0], [1], [0, 0, 1, 1], [], []>} : vector<14x28xbf16>, vector<28x224xbf16>, vector<14x224xf32> -> vector<14x224xf32>
    %153 = tpu.concatenate %146, %149, %152 in 1 : vector<14x224xf32>, vector<14x224xf32>, vector<14x224xf32> -> vector<14x672xf32>
    %c0_116 = arith.constant 0 : index
    %c0_117 = arith.constant 0 : index
    %154 = vector.load %arg22[%c0_116, %c0_117] : memref<672x224xbf16, #tpu.memory_space<vmem>>, vector<672x224xbf16>
    %155 = arith.truncf %153 : vector<14x672xf32> to vector<14x672xbf16>
    %cst_118 = arith.constant dense<0.000000e+00> : vector<14x224xf32>
    %156 = tpu.matmul %155, %154, %cst_118 {dimension_numbers = #tpu.dot_dimension_numbers<[1], [0], [0], [1], [0, 0, 1, 1], [], []>} : vector<14x672xbf16>, vector<672x224xbf16>, vector<14x224xf32> -> vector<14x224xf32>
    %cst_119 = arith.constant dense<0.000000e+00> : vector<224xf32>
    %157 = vector.multi_reduction <add>, %156, %cst_119 [0] : vector<14x224xf32> to vector<224xf32>
    %158 = vector.shape_cast %157 : vector<224xf32> to vector<1x224xf32>
    %c0_120 = arith.constant 0 : index
    %c0_121 = arith.constant 0 : index
    %159 = vector.load %arg23[%c0_120, %c0_121] : memref<224x32xf32, #tpu.memory_space<vmem>>, vector<224x32xf32>
    %cst_122 = arith.constant dense<0.000000e+00> : vector<1x32xf32>
    %160 = tpu.matmul %158, %159, %cst_122 {dimension_numbers = #tpu.dot_dimension_numbers<[1], [0], [0], [1], [0, 0, 1, 1], [], []>} : vector<1x224xf32>, vector<224x32xf32>, vector<1x32xf32> -> vector<1x32xf32>
    %161 = arith.mulf %156, %156 : vector<14x224xf32>
    %cst_123 = arith.constant dense<0.000000e+00> : vector<224xf32>
    %162 = vector.multi_reduction <add>, %161, %cst_123 [0] : vector<14x224xf32> to vector<224xf32>
    %163 = vector.shape_cast %162 : vector<224xf32> to vector<1x224xf32>
    %c0_124 = arith.constant 0 : index
    %c0_125 = arith.constant 0 : index
    %164 = vector.load %arg23[%c0_124, %c0_125] : memref<224x32xf32, #tpu.memory_space<vmem>>, vector<224x32xf32>
    %cst_126 = arith.constant dense<0.000000e+00> : vector<1x32xf32>
    %165 = tpu.matmul %163, %164, %cst_126 {dimension_numbers = #tpu.dot_dimension_numbers<[1], [0], [0], [1], [0, 0, 1, 1], [], []>} : vector<1x224xf32>, vector<224x32xf32>, vector<1x32xf32> -> vector<1x32xf32>
    %cst_127 = arith.constant 0.0102040814 : f32
    %166 = vector.broadcast %cst_127 : f32 to vector<1x32xf32>
    %167 = arith.mulf %160, %166 : vector<1x32xf32>
    %cst_128 = arith.constant 0.0102040814 : f32
    %168 = vector.broadcast %cst_128 : f32 to vector<1x32xf32>
    %169 = arith.mulf %165, %168 : vector<1x32xf32>
    %170 = arith.mulf %167, %167 : vector<1x32xf32>
    %171 = arith.subf %169, %170 : vector<1x32xf32>
    %cst_129 = arith.constant 0.000000e+00 : f32
    %172 = vector.broadcast %cst_129 : f32 to vector<1x32xf32>
    %173 = arith.maximumf %171, %172 : vector<1x32xf32>
    %c0_130 = arith.constant 0 : index
    %c0_131 = arith.constant 0 : index
    %174 = vector.load %arg25[%c0_130, %c0_131] : memref<2x32xf32, #tpu.memory_space<vmem>>, vector<2x32xf32>
    %cst_132 = arith.constant 9.99999974E-6 : f32
    %175 = vector.broadcast %cst_132 : f32 to vector<1x32xf32>
    %176 = arith.addf %173, %175 : vector<1x32xf32>
    %177 = math.rsqrt %176 : vector<1x32xf32>
    %178 = vector.extract_strided_slice %174 {offsets = [0, 0], sizes = [1, 32], strides = [1, 1]} : vector<2x32xf32> to vector<1x32xf32>
    %179 = arith.mulf %177, %178 : vector<1x32xf32>
    %180 = vector.extract_strided_slice %174 {offsets = [1, 0], sizes = [1, 32], strides = [1, 1]} : vector<2x32xf32> to vector<1x32xf32>
    %181 = arith.mulf %167, %179 : vector<1x32xf32>
    %182 = arith.subf %180, %181 : vector<1x32xf32>
    %c0_133 = arith.constant 0 : index
    %c0_134 = arith.constant 0 : index
    %183 = vector.load %arg24[%c0_133, %c0_134] : memref<32x224xf32, #tpu.memory_space<vmem>>, vector<32x224xf32>
    %cst_135 = arith.constant dense<0.000000e+00> : vector<1x224xf32>
    %184 = tpu.matmul %179, %183, %cst_135 {dimension_numbers = #tpu.dot_dimension_numbers<[1], [0], [0], [1], [0, 0, 1, 1], [], []>} : vector<1x32xf32>, vector<32x224xf32>, vector<1x224xf32> -> vector<1x224xf32>
    %185 = vector.broadcast %184 : vector<1x224xf32> to vector<14x224xf32>
    %186 = arith.mulf %156, %185 : vector<14x224xf32>
    %c0_136 = arith.constant 0 : index
    %c0_137 = arith.constant 0 : index
    %187 = vector.load %arg24[%c0_136, %c0_137] : memref<32x224xf32, #tpu.memory_space<vmem>>, vector<32x224xf32>
    %cst_138 = arith.constant dense<0.000000e+00> : vector<1x224xf32>
    %188 = tpu.matmul %182, %187, %cst_138 {dimension_numbers = #tpu.dot_dimension_numbers<[1], [0], [0], [1], [0, 0, 1, 1], [], []>} : vector<1x32xf32>, vector<32x224xf32>, vector<1x224xf32> -> vector<1x224xf32>
    %189 = vector.broadcast %188 : vector<1x224xf32> to vector<14x224xf32>
    %190 = arith.addf %186, %189 : vector<14x224xf32>
    %cst_139 = arith.constant 0.000000e+00 : f32
    %191 = vector.broadcast %cst_139 : f32 to vector<14x224xf32>
    %192 = arith.maximumf %190, %191 : vector<14x224xf32>
    %193 = arith.truncf %192 : vector<14x224xf32> to vector<14x224xbf16>
    %c0_140 = arith.constant 0 : index
    %c0_141 = arith.constant 0 : index
    %c0_142 = arith.constant 0 : index
    %194 = vector.load %arg26[%c0_140, %c0_141, %c0_142] : memref<3x8x14xbf16, #tpu.memory_space<vmem>>, vector<1x8x14xbf16>
    %195 = vector.shape_cast %194 : vector<1x8x14xbf16> to vector<8x14xbf16>
    %cst_143 = arith.constant dense<0.000000e+00> : vector<8x224xf32>
    %196 = tpu.matmul %195, %193, %cst_143 {dimension_numbers = #tpu.dot_dimension_numbers<[1], [0], [0], [1], [0, 0, 1, 1], [], []>} : vector<8x14xbf16>, vector<14x224xbf16>, vector<8x224xf32> -> vector<8x224xf32>
    %c1_144 = arith.constant 1 : index
    %c0_145 = arith.constant 0 : index
    %c0_146 = arith.constant 0 : index
    %197 = vector.load %arg26[%c1_144, %c0_145, %c0_146] : memref<3x8x14xbf16, #tpu.memory_space<vmem>>, vector<1x8x14xbf16>
    %198 = vector.shape_cast %197 : vector<1x8x14xbf16> to vector<8x14xbf16>
    %cst_147 = arith.constant dense<0.000000e+00> : vector<8x224xf32>
    %199 = tpu.matmul %198, %193, %cst_147 {dimension_numbers = #tpu.dot_dimension_numbers<[1], [0], [0], [1], [0, 0, 1, 1], [], []>} : vector<8x14xbf16>, vector<14x224xbf16>, vector<8x224xf32> -> vector<8x224xf32>
    %c2_148 = arith.constant 2 : index
    %c0_149 = arith.constant 0 : index
    %c0_150 = arith.constant 0 : index
    %200 = vector.load %arg26[%c2_148, %c0_149, %c0_150] : memref<3x8x14xbf16, #tpu.memory_space<vmem>>, vector<1x8x14xbf16>
    %201 = vector.shape_cast %200 : vector<1x8x14xbf16> to vector<8x14xbf16>
    %cst_151 = arith.constant dense<0.000000e+00> : vector<8x224xf32>
    %202 = tpu.matmul %201, %193, %cst_151 {dimension_numbers = #tpu.dot_dimension_numbers<[1], [0], [0], [1], [0, 0, 1, 1], [], []>} : vector<8x14xbf16>, vector<14x224xbf16>, vector<8x224xf32> -> vector<8x224xf32>
    %203 = tpu.concatenate %196, %199, %202 in 1 : vector<8x224xf32>, vector<8x224xf32>, vector<8x224xf32> -> vector<8x672xf32>
    %c0_152 = arith.constant 0 : index
    %c0_153 = arith.constant 0 : index
    %204 = vector.load %arg27[%c0_152, %c0_153] : memref<672x256xbf16, #tpu.memory_space<vmem>>, vector<672x256xbf16>
    %205 = arith.truncf %203 : vector<8x672xf32> to vector<8x672xbf16>
    %cst_154 = arith.constant dense<0.000000e+00> : vector<8x256xf32>
    %206 = tpu.matmul %205, %204, %cst_154 {dimension_numbers = #tpu.dot_dimension_numbers<[1], [0], [0], [1], [0, 0, 1, 1], [], []>} : vector<8x672xbf16>, vector<672x256xbf16>, vector<8x256xf32> -> vector<8x256xf32>
    %cst_155 = arith.constant dense<0.000000e+00> : vector<256xf32>
    %207 = vector.multi_reduction <add>, %206, %cst_155 [0] : vector<8x256xf32> to vector<256xf32>
    %208 = vector.shape_cast %207 : vector<256xf32> to vector<1x256xf32>
    %c0_156 = arith.constant 0 : index
    %c0_157 = arith.constant 0 : index
    %209 = vector.load %arg28[%c0_156, %c0_157] : memref<256x64xf32, #tpu.memory_space<vmem>>, vector<256x64xf32>
    %cst_158 = arith.constant dense<0.000000e+00> : vector<1x64xf32>
    %210 = tpu.matmul %208, %209, %cst_158 {dimension_numbers = #tpu.dot_dimension_numbers<[1], [0], [0], [1], [0, 0, 1, 1], [], []>} : vector<1x256xf32>, vector<256x64xf32>, vector<1x64xf32> -> vector<1x64xf32>
    %211 = arith.mulf %206, %206 : vector<8x256xf32>
    %cst_159 = arith.constant dense<0.000000e+00> : vector<256xf32>
    %212 = vector.multi_reduction <add>, %211, %cst_159 [0] : vector<8x256xf32> to vector<256xf32>
    %213 = vector.shape_cast %212 : vector<256xf32> to vector<1x256xf32>
    %c0_160 = arith.constant 0 : index
    %c0_161 = arith.constant 0 : index
    %214 = vector.load %arg28[%c0_160, %c0_161] : memref<256x64xf32, #tpu.memory_space<vmem>>, vector<256x64xf32>
    %cst_162 = arith.constant dense<0.000000e+00> : vector<1x64xf32>
    %215 = tpu.matmul %213, %214, %cst_162 {dimension_numbers = #tpu.dot_dimension_numbers<[1], [0], [0], [1], [0, 0, 1, 1], [], []>} : vector<1x256xf32>, vector<256x64xf32>, vector<1x64xf32> -> vector<1x64xf32>
    %cst_163 = arith.constant 3.125000e-02 : f32
    %216 = vector.broadcast %cst_163 : f32 to vector<1x64xf32>
    %217 = arith.mulf %210, %216 : vector<1x64xf32>
    %cst_164 = arith.constant 3.125000e-02 : f32
    %218 = vector.broadcast %cst_164 : f32 to vector<1x64xf32>
    %219 = arith.mulf %215, %218 : vector<1x64xf32>
    %220 = arith.mulf %217, %217 : vector<1x64xf32>
    %221 = arith.subf %219, %220 : vector<1x64xf32>
    %cst_165 = arith.constant 0.000000e+00 : f32
    %222 = vector.broadcast %cst_165 : f32 to vector<1x64xf32>
    %223 = arith.maximumf %221, %222 : vector<1x64xf32>
    %c0_166 = arith.constant 0 : index
    %c0_167 = arith.constant 0 : index
    %224 = vector.load %arg30[%c0_166, %c0_167] : memref<2x64xf32, #tpu.memory_space<vmem>>, vector<2x64xf32>
    %cst_168 = arith.constant 9.99999974E-6 : f32
    %225 = vector.broadcast %cst_168 : f32 to vector<1x64xf32>
    %226 = arith.addf %223, %225 : vector<1x64xf32>
    %227 = math.rsqrt %226 : vector<1x64xf32>
    %228 = vector.extract_strided_slice %224 {offsets = [0, 0], sizes = [1, 64], strides = [1, 1]} : vector<2x64xf32> to vector<1x64xf32>
    %229 = arith.mulf %227, %228 : vector<1x64xf32>
    %230 = vector.extract_strided_slice %224 {offsets = [1, 0], sizes = [1, 64], strides = [1, 1]} : vector<2x64xf32> to vector<1x64xf32>
    %231 = arith.mulf %217, %229 : vector<1x64xf32>
    %232 = arith.subf %230, %231 : vector<1x64xf32>
    %c0_169 = arith.constant 0 : index
    %c0_170 = arith.constant 0 : index
    %233 = vector.load %arg29[%c0_169, %c0_170] : memref<64x256xf32, #tpu.memory_space<vmem>>, vector<64x256xf32>
    %cst_171 = arith.constant dense<0.000000e+00> : vector<1x256xf32>
    %234 = tpu.matmul %229, %233, %cst_171 {dimension_numbers = #tpu.dot_dimension_numbers<[1], [0], [0], [1], [0, 0, 1, 1], [], []>} : vector<1x64xf32>, vector<64x256xf32>, vector<1x256xf32> -> vector<1x256xf32>
    %235 = vector.broadcast %234 : vector<1x256xf32> to vector<8x256xf32>
    %236 = arith.mulf %206, %235 : vector<8x256xf32>
    %c0_172 = arith.constant 0 : index
    %c0_173 = arith.constant 0 : index
    %237 = vector.load %arg29[%c0_172, %c0_173] : memref<64x256xf32, #tpu.memory_space<vmem>>, vector<64x256xf32>
    %cst_174 = arith.constant dense<0.000000e+00> : vector<1x256xf32>
    %238 = tpu.matmul %232, %237, %cst_174 {dimension_numbers = #tpu.dot_dimension_numbers<[1], [0], [0], [1], [0, 0, 1, 1], [], []>} : vector<1x64xf32>, vector<64x256xf32>, vector<1x256xf32> -> vector<1x256xf32>
    %239 = vector.broadcast %238 : vector<1x256xf32> to vector<8x256xf32>
    %240 = arith.addf %236, %239 : vector<8x256xf32>
    %cst_175 = arith.constant 0.000000e+00 : f32
    %241 = vector.broadcast %cst_175 : f32 to vector<8x256xf32>
    %242 = arith.maximumf %240, %241 : vector<8x256xf32>
    %243 = arith.truncf %242 : vector<8x256xf32> to vector<8x256xbf16>
    %c0_176 = arith.constant 0 : index
    %c0_177 = arith.constant 0 : index
    %c0_178 = arith.constant 0 : index
    %244 = vector.load %arg31[%c0_176, %c0_177, %c0_178] : memref<4x2x8xbf16, #tpu.memory_space<vmem>>, vector<1x2x8xbf16>
    %245 = vector.shape_cast %244 : vector<1x2x8xbf16> to vector<2x8xbf16>
    %cst_179 = arith.constant dense<0.000000e+00> : vector<2x256xf32>
    %246 = tpu.matmul %245, %243, %cst_179 {dimension_numbers = #tpu.dot_dimension_numbers<[1], [0], [0], [1], [0, 0, 1, 1], [], []>} : vector<2x8xbf16>, vector<8x256xbf16>, vector<2x256xf32> -> vector<2x256xf32>
    %c1_180 = arith.constant 1 : index
    %c0_181 = arith.constant 0 : index
    %c0_182 = arith.constant 0 : index
    %247 = vector.load %arg31[%c1_180, %c0_181, %c0_182] : memref<4x2x8xbf16, #tpu.memory_space<vmem>>, vector<1x2x8xbf16>
    %248 = vector.shape_cast %247 : vector<1x2x8xbf16> to vector<2x8xbf16>
    %cst_183 = arith.constant dense<0.000000e+00> : vector<2x256xf32>
    %249 = tpu.matmul %248, %243, %cst_183 {dimension_numbers = #tpu.dot_dimension_numbers<[1], [0], [0], [1], [0, 0, 1, 1], [], []>} : vector<2x8xbf16>, vector<8x256xbf16>, vector<2x256xf32> -> vector<2x256xf32>
    %c2_184 = arith.constant 2 : index
    %c0_185 = arith.constant 0 : index
    %c0_186 = arith.constant 0 : index
    %250 = vector.load %arg31[%c2_184, %c0_185, %c0_186] : memref<4x2x8xbf16, #tpu.memory_space<vmem>>, vector<1x2x8xbf16>
    %251 = vector.shape_cast %250 : vector<1x2x8xbf16> to vector<2x8xbf16>
    %cst_187 = arith.constant dense<0.000000e+00> : vector<2x256xf32>
    %252 = tpu.matmul %251, %243, %cst_187 {dimension_numbers = #tpu.dot_dimension_numbers<[1], [0], [0], [1], [0, 0, 1, 1], [], []>} : vector<2x8xbf16>, vector<8x256xbf16>, vector<2x256xf32> -> vector<2x256xf32>
    %c3 = arith.constant 3 : index
    %c0_188 = arith.constant 0 : index
    %c0_189 = arith.constant 0 : index
    %253 = vector.load %arg31[%c3, %c0_188, %c0_189] : memref<4x2x8xbf16, #tpu.memory_space<vmem>>, vector<1x2x8xbf16>
    %254 = vector.shape_cast %253 : vector<1x2x8xbf16> to vector<2x8xbf16>
    %cst_190 = arith.constant dense<0.000000e+00> : vector<2x256xf32>
    %255 = tpu.matmul %254, %243, %cst_190 {dimension_numbers = #tpu.dot_dimension_numbers<[1], [0], [0], [1], [0, 0, 1, 1], [], []>} : vector<2x8xbf16>, vector<8x256xbf16>, vector<2x256xf32> -> vector<2x256xf32>
    %256 = tpu.concatenate %246, %249, %252, %255 in 1 : vector<2x256xf32>, vector<2x256xf32>, vector<2x256xf32>, vector<2x256xf32> -> vector<2x1024xf32>
    %c0_191 = arith.constant 0 : index
    %c0_192 = arith.constant 0 : index
    %257 = vector.load %arg32[%c0_191, %c0_192] : memref<1024x100xbf16, #tpu.memory_space<vmem>>, vector<1024x100xbf16>
    %258 = arith.truncf %256 : vector<2x1024xf32> to vector<2x1024xbf16>
    %cst_193 = arith.constant dense<0.000000e+00> : vector<2x100xf32>
    %259 = tpu.matmul %258, %257, %cst_193 {dimension_numbers = #tpu.dot_dimension_numbers<[1], [0], [0], [1], [0, 0, 1, 1], [], []>} : vector<2x1024xbf16>, vector<1024x100xbf16>, vector<2x100xf32> -> vector<2x100xf32>
    %cst_194 = arith.constant dense<0.000000e+00> : vector<100xf32>
    %260 = vector.multi_reduction <add>, %259, %cst_194 [0] : vector<2x100xf32> to vector<100xf32>
    %261 = vector.shape_cast %260 : vector<100xf32> to vector<1x100xf32>
    %262 = arith.mulf %259, %259 : vector<2x100xf32>
    %cst_195 = arith.constant dense<0.000000e+00> : vector<100xf32>
    %263 = vector.multi_reduction <add>, %262, %cst_195 [0] : vector<2x100xf32> to vector<100xf32>
    %264 = vector.shape_cast %263 : vector<100xf32> to vector<1x100xf32>
    %cst_196 = arith.constant 5.000000e-01 : f32
    %265 = vector.broadcast %cst_196 : f32 to vector<1x100xf32>
    %266 = arith.mulf %261, %265 : vector<1x100xf32>
    %cst_197 = arith.constant 5.000000e-01 : f32
    %267 = vector.broadcast %cst_197 : f32 to vector<1x100xf32>
    %268 = arith.mulf %264, %267 : vector<1x100xf32>
    %269 = arith.mulf %266, %266 : vector<1x100xf32>
    %270 = arith.subf %268, %269 : vector<1x100xf32>
    %cst_198 = arith.constant 0.000000e+00 : f32
    %271 = vector.broadcast %cst_198 : f32 to vector<1x100xf32>
    %272 = arith.maximumf %270, %271 : vector<1x100xf32>
    %c0_199 = arith.constant 0 : index
    %c0_200 = arith.constant 0 : index
    %273 = vector.load %arg33[%c0_199, %c0_200] : memref<2x100xf32, #tpu.memory_space<vmem>>, vector<2x100xf32>
    %cst_201 = arith.constant 9.99999974E-6 : f32
    %274 = vector.broadcast %cst_201 : f32 to vector<1x100xf32>
    %275 = arith.addf %272, %274 : vector<1x100xf32>
    %276 = math.rsqrt %275 : vector<1x100xf32>
    %277 = vector.extract_strided_slice %273 {offsets = [0, 0], sizes = [1, 100], strides = [1, 1]} : vector<2x100xf32> to vector<1x100xf32>
    %278 = arith.mulf %276, %277 : vector<1x100xf32>
    %279 = vector.broadcast %278 : vector<1x100xf32> to vector<2x100xf32>
    %280 = arith.mulf %259, %279 : vector<2x100xf32>
    %281 = vector.extract_strided_slice %273 {offsets = [1, 0], sizes = [1, 100], strides = [1, 1]} : vector<2x100xf32> to vector<1x100xf32>
    %282 = arith.mulf %266, %278 : vector<1x100xf32>
    %283 = arith.subf %281, %282 : vector<1x100xf32>
    %284 = vector.broadcast %283 : vector<1x100xf32> to vector<2x100xf32>
    %285 = arith.addf %280, %284 : vector<2x100xf32>
    %cst_202 = arith.constant 0.000000e+00 : f32
    %286 = vector.broadcast %cst_202 : f32 to vector<2x100xf32>
    %287 = arith.maximumf %285, %286 : vector<2x100xf32>
    %c0_203 = arith.constant 0 : index
    %c0_204 = arith.constant 0 : index
    %288 = vector.load %arg34[%c0_203, %c0_204] : memref<1x100xf32, #tpu.memory_space<vmem>>, vector<1x100xf32>
    %289 = vector.broadcast %288 : vector<1x100xf32> to vector<2x100xf32>
    %290 = arith.mulf %287, %289 : vector<2x100xf32>
    %cst_205 = arith.constant dense<0.000000e+00> : vector<2xf32>
    %291 = vector.multi_reduction <add>, %290, %cst_205 [1] : vector<2x100xf32> to vector<2xf32>
    %292 = vector.shape_cast %291 : vector<2xf32> to vector<2x1xf32>
    %c0_206 = arith.constant 0 : index
    %c0_207 = arith.constant 0 : index
    %293 = vector.load %arg35[%c0_206, %c0_207] : memref<1x1xf32, #tpu.memory_space<vmem>>, vector<1x1xf32>
    %294 = vector.broadcast %293 : vector<1x1xf32> to vector<2x1xf32>
    %295 = arith.addf %292, %294 : vector<2x1xf32>
    %c0_208 = arith.constant 0 : index
    %c0_209 = arith.constant 0 : index
    %296 = vector.load %arg36[%c0_208, %c0_209] : memref<2x1xf32, #tpu.memory_space<vmem>>, vector<2x1xf32>
    tpu.vector_store %arg36[%c0_208, %c0_209], %295 {strides = array<i32>} : memref<2x1xf32, #tpu.memory_space<vmem>>, vector<2x1xf32>,
    return
  }
  func.func @transform_0(%arg0: i32) -> (i32, i32) {
    %c0_i32 = arith.constant 0 : i32
    %c0_i32_0 = arith.constant 0 : i32
    %c0_i32_1 = arith.constant 0 : i32
    return %c0_i32, %c0_i32_0 : i32, i32
  }
  func.func @transform_1(%arg0: i32) -> (i32, i32) {
    %c0_i32 = arith.constant 0 : i32
    %c0_i32_0 = arith.constant 0 : i32
    %c0_i32_1 = arith.constant 0 : i32
    return %c0_i32, %c0_i32_0 : i32, i32
  }
  func.func @transform_2(%arg0: i32) -> (i32, i32, i32) {
    %c0_i32 = arith.constant 0 : i32
    %c0_i32_0 = arith.constant 0 : i32
    %c0_i32_1 = arith.constant 0 : i32
    %c0_i32_2 = arith.constant 0 : i32
    return %c0_i32, %c0_i32_0, %c0_i32_1 : i32, i32, i32
  }
  func.func @transform_3(%arg0: i32) -> (i32, i32) {
    %c0_i32 = arith.constant 0 : i32
    %c0_i32_0 = arith.constant 0 : i32
    %c0_i32_1 = arith.constant 0 : i32
    return %c0_i32, %c0_i32_0 : i32, i32
  }
  func.func @transform_4(%arg0: i32) -> (i32, i32) {
    %c0_i32 = arith.constant 0 : i32
    %c0_i32_0 = arith.constant 0 : i32
    %c0_i32_1 = arith.constant 0 : i32
    return %c0_i32, %c0_i32_0 : i32, i32
  }
  func.func @transform_5(%arg0: i32) -> (i32, i32) {
    %c0_i32 = arith.constant 0 : i32
    %c0_i32_0 = arith.constant 0 : i32
    %c0_i32_1 = arith.constant 0 : i32
    return %c0_i32, %c0_i32_0 : i32, i32
  }
  func.func @transform_6(%arg0: i32) -> (i32, i32) {
    %c0_i32 = arith.constant 0 : i32
    %c0_i32_0 = arith.constant 0 : i32
    %c0_i32_1 = arith.constant 0 : i32
    return %c0_i32, %c0_i32_0 : i32, i32
  }
  func.func @transform_7(%arg0: i32) -> (i32, i32) {
    %c0_i32 = arith.constant 0 : i32
    %c0_i32_0 = arith.constant 0 : i32
    %c0_i32_1 = arith.constant 0 : i32
    return %c0_i32, %c0_i32_0 : i32, i32
  }
  func.func @transform_8(%arg0: i32) -> (i32, i32) {
    %c0_i32 = arith.constant 0 : i32
    %c0_i32_0 = arith.constant 0 : i32
    %c0_i32_1 = arith.constant 0 : i32
    return %c0_i32, %c0_i32_0 : i32, i32
  }
  func.func @transform_9(%arg0: i32) -> (i32, i32) {
    %c0_i32 = arith.constant 0 : i32
    %c0_i32_0 = arith.constant 0 : i32
    %c0_i32_1 = arith.constant 0 : i32
    return %c0_i32, %c0_i32_0 : i32, i32
  }
  func.func @transform_10(%arg0: i32) -> (i32, i32) {
    %c0_i32 = arith.constant 0 : i32
    %c0_i32_0 = arith.constant 0 : i32
    %c0_i32_1 = arith.constant 0 : i32
    return %c0_i32, %c0_i32_0 : i32, i32
  }
  func.func @transform_11(%arg0: i32) -> (i32, i32) {
    %c0_i32 = arith.constant 0 : i32
    %c0_i32_0 = arith.constant 0 : i32
    %c0_i32_1 = arith.constant 0 : i32
    return %c0_i32, %c0_i32_0 : i32, i32
  }
  func.func @transform_12(%arg0: i32) -> (i32, i32) {
    %c0_i32 = arith.constant 0 : i32
    %c0_i32_0 = arith.constant 0 : i32
    %c0_i32_1 = arith.constant 0 : i32
    return %c0_i32, %c0_i32_0 : i32, i32
  }
  func.func @transform_13(%arg0: i32) -> (i32, i32) {
    %c0_i32 = arith.constant 0 : i32
    %c0_i32_0 = arith.constant 0 : i32
    %c0_i32_1 = arith.constant 0 : i32
    return %c0_i32, %c0_i32_0 : i32, i32
  }
  func.func @transform_14(%arg0: i32) -> (i32, i32) {
    %c0_i32 = arith.constant 0 : i32
    %c0_i32_0 = arith.constant 0 : i32
    %c0_i32_1 = arith.constant 0 : i32
    return %c0_i32, %c0_i32_0 : i32, i32
  }
  func.func @transform_15(%arg0: i32) -> (i32, i32, i32) {
    %c0_i32 = arith.constant 0 : i32
    %c0_i32_0 = arith.constant 0 : i32
    %c0_i32_1 = arith.constant 0 : i32
    %c0_i32_2 = arith.constant 0 : i32
    return %c0_i32, %c0_i32_0, %c0_i32_1 : i32, i32, i32
  }
  func.func @transform_16(%arg0: i32) -> (i32, i32) {
    %c0_i32 = arith.constant 0 : i32
    %c0_i32_0 = arith.constant 0 : i32
    %c0_i32_1 = arith.constant 0 : i32
    return %c0_i32, %c0_i32_0 : i32, i32
  }
  func.func @transform_17(%arg0: i32) -> (i32, i32) {
    %c0_i32 = arith.constant 0 : i32
    %c0_i32_0 = arith.constant 0 : i32
    %c0_i32_1 = arith.constant 0 : i32
    return %c0_i32, %c0_i32_0 : i32, i32
  }
  func.func @transform_18(%arg0: i32) -> (i32, i32) {
    %c0_i32 = arith.constant 0 : i32
    %c0_i32_0 = arith.constant 0 : i32
    %c0_i32_1 = arith.constant 0 : i32
    return %c0_i32, %c0_i32_0 : i32, i32
  }
  func.func @transform_19(%arg0: i32) -> (i32, i32) {
    %c0_i32 = arith.constant 0 : i32
    %c0_i32_0 = arith.constant 0 : i32
    %c0_i32_1 = arith.constant 0 : i32
    return %c0_i32, %c0_i32_0 : i32, i32
  }
  func.func @transform_20(%arg0: i32) -> (i32, i32, i32) {
    %c0_i32 = arith.constant 0 : i32
    %c0_i32_0 = arith.constant 0 : i32
    %c0_i32_1 = arith.constant 0 : i32
    %c0_i32_2 = arith.constant 0 : i32
    return %c0_i32, %c0_i32_0, %c0_i32_1 : i32, i32, i32
  }
  func.func @transform_21(%arg0: i32) -> (i32, i32) {
    %c0_i32 = arith.constant 0 : i32
    %c0_i32_0 = arith.constant 0 : i32
    %c0_i32_1 = arith.constant 0 : i32
    return %c0_i32, %c0_i32_0 : i32, i32
  }
  func.func @transform_22(%arg0: i32) -> (i32, i32) {
    %c0_i32 = arith.constant 0 : i32
    %c0_i32_0 = arith.constant 0 : i32
    %c0_i32_1 = arith.constant 0 : i32
    return %c0_i32, %c0_i32_0 : i32, i32
  }
  func.func @transform_23(%arg0: i32) -> (i32, i32) {
    %c0_i32 = arith.constant 0 : i32
    %c0_i32_0 = arith.constant 0 : i32
    %c0_i32_1 = arith.constant 0 : i32
    return %c0_i32, %c0_i32_0 : i32, i32
  }
  func.func @transform_24(%arg0: i32) -> (i32, i32) {
    %c0_i32 = arith.constant 0 : i32
    %c0_i32_0 = arith.constant 0 : i32
    %c0_i32_1 = arith.constant 0 : i32
    return %c0_i32, %c0_i32_0 : i32, i32
  }
  func.func @transform_25(%arg0: i32) -> (i32, i32, i32) {
    %c0_i32 = arith.constant 0 : i32
    %c0_i32_0 = arith.constant 0 : i32
    %c0_i32_1 = arith.constant 0 : i32
    %c0_i32_2 = arith.constant 0 : i32
    return %c0_i32, %c0_i32_0, %c0_i32_1 : i32, i32, i32
  }
  func.func @transform_26(%arg0: i32) -> (i32, i32) {
    %c0_i32 = arith.constant 0 : i32
    %c0_i32_0 = arith.constant 0 : i32
    %c0_i32_1 = arith.constant 0 : i32
    return %c0_i32, %c0_i32_0 : i32, i32
  }
  func.func @transform_27(%arg0: i32) -> (i32, i32) {
    %c0_i32 = arith.constant 0 : i32
    %c0_i32_0 = arith.constant 0 : i32
    %c0_i32_1 = arith.constant 0 : i32
    return %c0_i32, %c0_i32_0 : i32, i32
  }
  func.func @transform_28(%arg0: i32) -> (i32, i32) {
    %c0_i32 = arith.constant 0 : i32
    %c0_i32_0 = arith.constant 0 : i32
    %c0_i32_1 = arith.constant 0 : i32
    return %c0_i32, %c0_i32_0 : i32, i32
  }
  func.func @transform_29(%arg0: i32) -> (i32, i32) {
    %c0_i32 = arith.constant 0 : i32
    %c0_i32_0 = arith.constant 0 : i32
    %c0_i32_1 = arith.constant 0 : i32
    return %c0_i32, %c0_i32_0 : i32, i32
  }
  func.func @transform_30(%arg0: i32) -> (i32, i32, i32) {
    %c0_i32 = arith.constant 0 : i32
    %c0_i32_0 = arith.constant 0 : i32
    %c0_i32_1 = arith.constant 0 : i32
    %c0_i32_2 = arith.constant 0 : i32
    return %c0_i32, %c0_i32_0, %c0_i32_1 : i32, i32, i32
  }
  func.func @transform_31(%arg0: i32) -> (i32, i32) {
    %c0_i32 = arith.constant 0 : i32
    %c0_i32_0 = arith.constant 0 : i32
    %c0_i32_1 = arith.constant 0 : i32
    return %c0_i32, %c0_i32_0 : i32, i32
  }
  func.func @transform_32(%arg0: i32) -> (i32, i32) {
    %c0_i32 = arith.constant 0 : i32
    %c0_i32_0 = arith.constant 0 : i32
    %c0_i32_1 = arith.constant 0 : i32
    return %c0_i32, %c0_i32_0 : i32, i32
  }
  func.func @transform_33(%arg0: i32) -> (i32, i32) {
    %c0_i32 = arith.constant 0 : i32
    %c0_i32_0 = arith.constant 0 : i32
    %c0_i32_1 = arith.constant 0 : i32
    return %c0_i32, %c0_i32_0 : i32, i32
  }
  func.func @transform_34(%arg0: i32) -> (i32, i32) {
    %c0_i32 = arith.constant 0 : i32
    %c0_i32_0 = arith.constant 0 : i32
    %c0_i32_1 = arith.constant 0 : i32
    return %c0_i32, %c0_i32_0 : i32, i32
  }
  func.func @transform_35(%arg0: i32) -> (i32, i32) {
    %c0_i32 = arith.constant 0 : i32
    %c0_i32_0 = arith.constant 0 : i32
    %c0_i32_1 = arith.constant 0 : i32
    return %c0_i32, %c0_i32_0 : i32, i32
  }
}

</mosaic_0001>

<llo_original>
// kernel: tpu_custom_call.1
$region0: #{tpu_custom_call.1}
  #allocation0 [shape = 'u32[]', space=smem, size = 0x4, offset = 0x4, fixed_abs, tag = 'smem constant byte address 0x4 - core index']
  #allocation1 [shape = 'u32[144,128]{1,0:T(1,128)}', space=vmem, size = 0x12000, scoped, tag = 'internal scratch']
  #allocation2 [shape = 'f32[1,1]{1,0:T(1,128)S(1)}', space=vmem, size = 0x200, scoped, tag = 'scoped memory for tpu_custom_call.1']
  %s0 = inlined_call_operand.smem [shape: u32[36], index: -1, kind: input, shape index: {}]
  %s1 = sld [smem:[%s0]]
  %s2 = scalar_lea.smem %s0, 1
  %s3 = sld [smem:[%s2]]
  %s4 = scalar_lea.smem %s0, 2
  %s5 = sld [smem:[%s4]]
  %s6 = scalar_lea.smem %s0, 3
  %s7 = sld [smem:[%s6]]
  %s8 = scalar_lea.smem %s0, 4
  %s9 = sld [smem:[%s8]]
  %s10 = scalar_lea.smem %s0, 5
  %s11 = sld [smem:[%s10]]
  %s12 = scalar_lea.smem %s0, 6
  %s13 = sld [smem:[%s12]]
  %s14 = scalar_lea.smem %s0, 7
  %s15 = sld [smem:[%s14]]
  %s16 = scalar_lea.smem %s0, 8
  %s17 = sld [smem:[%s16]]
  %s18 = scalar_lea.smem %s0, 9
  %s19 = sld [smem:[%s18]]
  %s20 = scalar_lea.smem %s0, 10
  %s21 = sld [smem:[%s20]]
  %s22 = scalar_lea.smem %s0, 11
  %s23 = sld [smem:[%s22]]
  %s24 = scalar_lea.smem %s0, 12
  %s25 = sld [smem:[%s24]]
  %s26 = scalar_lea.smem %s0, 13
  %s27 = sld [smem:[%s26]]
  %s28 = scalar_lea.smem %s0, 14
  %s29 = sld [smem:[%s28]]
  %s30 = scalar_lea.smem %s0, 15
  %s31 = sld [smem:[%s30]]
  %s32 = scalar_lea.smem %s0, 16
  %s33 = sld [smem:[%s32]]
  %s34 = scalar_lea.smem %s0, 17
  %s35 = sld [smem:[%s34]]
  %s36 = scalar_lea.smem %s0, 18
  %s37 = sld [smem:[%s36]]
  %s38 = scalar_lea.smem %s0, 19
  %s39 = sld [smem:[%s38]]
  %s40 = scalar_lea.smem %s0, 20
  %s41 = sld [smem:[%s40]]
  %s42 = scalar_lea.smem %s0, 21
  %s43 = sld [smem:[%s42]]
  %s44 = scalar_lea.smem %s0, 22
  %s45 = sld [smem:[%s44]]
  %s46 = scalar_lea.smem %s0, 23
  %s47 = sld [smem:[%s46]]
  %s48 = scalar_lea.smem %s0, 24
  %s49 = sld [smem:[%s48]]
  %s50 = scalar_lea.smem %s0, 25
  %s51 = sld [smem:[%s50]]
  %s52 = scalar_lea.smem %s0, 26
  %s53 = sld [smem:[%s52]]
  %s54 = scalar_lea.smem %s0, 27
  %s55 = sld [smem:[%s54]]
  %s56 = scalar_lea.smem %s0, 28
  %s57 = sld [smem:[%s56]]
  %s58 = scalar_lea.smem %s0, 29
  %s59 = sld [smem:[%s58]]
  %s60 = scalar_lea.smem %s0, 30
  %s61 = sld [smem:[%s60]]
  %s62 = scalar_lea.smem %s0, 31
  %s63 = sld [smem:[%s62]]
  %s64 = scalar_lea.smem %s0, 32
  %s65 = sld [smem:[%s64]]
  %s66 = scalar_lea.smem %s0, 33
  %s67 = sld [smem:[%s66]]
  %s68 = scalar_lea.smem %s0, 34
  %s69 = sld [smem:[%s68]]
  %s70 = scalar_lea.smem %s0, 35
  %s71 = sld [smem:[%s70]]
  %s72 = sld [smem:[#allocation0]]
  $region150: #{tpu_custom_call.1} parent=0
    _
  %s74 = ssub.s32 1, %s72
  %s75 = scalar_select 0, %s74, %s72
  %v76 = vstv %s69
  %77 = vst [vmem:[#allocation2] sm:$0x1] %v76
  // Predicated region
  $region2: #{tpu_custom_call.1} parent=0 // pred_check
    _
  $region3: #{tpu_custom_call.1} parent=0 // pred_check_branch
    %79 = sbr.rel (0) target = $region5
  $region4: #{tpu_custom_call.1} parent=0 // pred_region
    _
  $region5: #{tpu_custom_call.1} parent=0 // pred_fallthru
    _
  // Predicated region
  $region6: #{tpu_custom_call.1} parent=0 // pred_check
    _
  $region7: #{tpu_custom_call.1} parent=0 // pred_check_branch
    %81 = sbr.rel (0) target = $region9
  $region8: #{tpu_custom_call.1} parent=0 // pred_region
    _
  $region9: #{tpu_custom_call.1} parent=0 // pred_fallthru
    _
  // Predicated region
  $region10: #{tpu_custom_call.1} parent=0 // pred_check
    _
  $region11: #{tpu_custom_call.1} parent=0 // pred_check_branch
    %83 = sbr.rel (0) target = $region13
  $region12: #{tpu_custom_call.1} parent=0 // pred_region
    _
  $region13: #{tpu_custom_call.1} parent=0 // pred_fallthru
    _
  // Predicated region
  $region14: #{tpu_custom_call.1} parent=0 // pred_check
    _
  $region15: #{tpu_custom_call.1} parent=0 // pred_check_branch
    %85 = sbr.rel (0) target = $region17
  $region16: #{tpu_custom_call.1} parent=0 // pred_region
    _
  $region17: #{tpu_custom_call.1} parent=0 // pred_fallthru
    _
  // Predicated region
  $region18: #{tpu_custom_call.1} parent=0 // pred_check
    _
  $region19: #{tpu_custom_call.1} parent=0 // pred_check_branch
    %87 = sbr.rel (0) target = $region21
  $region20: #{tpu_custom_call.1} parent=0 // pred_region
    _
  $region21: #{tpu_custom_call.1} parent=0 // pred_fallthru
    _
  // Predicated region
  $region22: #{tpu_custom_call.1} parent=0 // pred_check
    _
  $region23: #{tpu_custom_call.1} parent=0 // pred_check_branch
    %89 = sbr.rel (0) target = $region25
  $region24: #{tpu_custom_call.1} parent=0 // pred_region
    _
  $region25: #{tpu_custom_call.1} parent=0 // pred_fallthru
    _
  // Predicated region
  $region26: #{tpu_custom_call.1} parent=0 // pred_check
    _
  $region27: #{tpu_custom_call.1} parent=0 // pred_check_branch
    %91 = sbr.rel (0) target = $region29
  $region28: #{tpu_custom_call.1} parent=0 // pred_region
    _
  $region29: #{tpu_custom_call.1} parent=0 // pred_fallthru
    _
  // Predicated region
  $region30: #{tpu_custom_call.1} parent=0 // pred_check
    _
  $region31: #{tpu_custom_call.1} parent=0 // pred_check_branch
    %93 = sbr.rel (0) target = $region33
  $region32: #{tpu_custom_call.1} parent=0 // pred_region
    _
  $region33: #{tpu_custom_call.1} parent=0 // pred_fallthru
    _
  // Predicated region
  $region34: #{tpu_custom_call.1} parent=0 // pred_check
    _
  $region35: #{tpu_custom_call.1} parent=0 // pred_check_branch
    %95 = sbr.rel (0) target = $region37
  $region36: #{tpu_custom_call.1} parent=0 // pred_region
    _
  $region37: #{tpu_custom_call.1} parent=0 // pred_fallthru
    _
  // Predicated region
  $region38: #{tpu_custom_call.1} parent=0 // pred_check
    _
  $region39: #{tpu_custom_call.1} parent=0 // pred_check_branch
    %97 = sbr.rel (0) target = $region41
  $region40: #{tpu_custom_call.1} parent=0 // pred_region
    _
  $region41: #{tpu_custom_call.1} parent=0 // pred_fallthru
    _
  // Predicated region
  $region42: #{tpu_custom_call.1} parent=0 // pred_check
    _
  $region43: #{tpu_custom_call.1} parent=0 // pred_check_branch
    %99 = sbr.rel (0) target = $region45
  $region44: #{tpu_custom_call.1} parent=0 // pred_region
    _
  $region45: #{tpu_custom_call.1} parent=0 // pred_fallthru
    _
  // Predicated region
  $region46: #{tpu_custom_call.1} parent=0 // pred_check
    _
  $region47: #{tpu_custom_call.1} parent=0 // pred_check_branch
    %101 = sbr.rel (0) target = $region49
  $region48: #{tpu_custom_call.1} parent=0 // pred_region
    _
  $region49: #{tpu_custom_call.1} parent=0 // pred_fallthru
    _
  // Predicated region
  $region50: #{tpu_custom_call.1} parent=0 // pred_check
    _
  $region51: #{tpu_custom_call.1} parent=0 // pred_check_branch
    %103 = sbr.rel (0) target = $region53
  $region52: #{tpu_custom_call.1} parent=0 // pred_region
    _
  $region53: #{tpu_custom_call.1} parent=0 // pred_fallthru
    _
  // Predicated region
  $region54: #{tpu_custom_call.1} parent=0 // pred_check
    _
  $region55: #{tpu_custom_call.1} parent=0 // pred_check_branch
    %105 = sbr.rel (0) target = $region57
  $region56: #{tpu_custom_call.1} parent=0 // pred_region
    _
  $region57: #{tpu_custom_call.1} parent=0 // pred_fallthru
    _
  // Predicated region
  $region58: #{tpu_custom_call.1} parent=0 // pred_check
    _
  $region59: #{tpu_custom_call.1} parent=0 // pred_check_branch
    %107 = sbr.rel (0) target = $region61
  $region60: #{tpu_custom_call.1} parent=0 // pred_region
    _
  $region61: #{tpu_custom_call.1} parent=0 // pred_fallthru
    _
  // Predicated region
  $region62: #{tpu_custom_call.1} parent=0 // pred_check
    _
  $region63: #{tpu_custom_call.1} parent=0 // pred_check_branch
    %109 = sbr.rel (0) target = $region65
  $region64: #{tpu_custom_call.1} parent=0 // pred_region
    _
  $region65: #{tpu_custom_call.1} parent=0 // pred_fallthru
    _
  // Predicated region
  $region66: #{tpu_custom_call.1} parent=0 // pred_check
    _
  $region67: #{tpu_custom_call.1} parent=0 // pred_check_branch
    %111 = sbr.rel (0) target = $region69
  $region68: #{tpu_custom_call.1} parent=0 // pred_region
    _
  $region69: #{tpu_custom_call.1} parent=0 // pred_fallthru
    _
  // Predicated region
  $region70: #{tpu_custom_call.1} parent=0 // pred_check
    _
  $region71: #{tpu_custom_call.1} parent=0 // pred_check_branch
    %113 = sbr.rel (0) target = $region73
  $region72: #{tpu_custom_call.1} parent=0 // pred_region
    _
  $region73: #{tpu_custom_call.1} parent=0 // pred_fallthru
    _
  // Predicated region
  $region74: #{tpu_custom_call.1} parent=0 // pred_check
    _
  $region75: #{tpu_custom_call.1} parent=0 // pred_check_branch
    %115 = sbr.rel (0) target = $region77
  $region76: #{tpu_custom_call.1} parent=0 // pred_region
    _
  $region77: #{tpu_custom_call.1} parent=0 // pred_fallthru
    _
  // Predicated region
  $region78: #{tpu_custom_call.1} parent=0 // pred_check
    _
  $region79: #{tpu_custom_call.1} parent=0 // pred_check_branch
    %117 = sbr.rel (0) target = $region81
  $region80: #{tpu_custom_call.1} parent=0 // pred_region
    _
  $region81: #{tpu_custom_call.1} parent=0 // pred_fallthru
    _
  // Predicated region
  $region82: #{tpu_custom_call.1} parent=0 // pred_check
    _
  $region83: #{tpu_custom_call.1} parent=0 // pred_check_branch
    %119 = sbr.rel (0) target = $region85
  $region84: #{tpu_custom_call.1} parent=0 // pred_region
    _
  $region85: #{tpu_custom_call.1} parent=0 // pred_fallthru
    _
  // Predicated region
  $region86: #{tpu_custom_call.1} parent=0 // pred_check
    _
  $region87: #{tpu_custom_call.1} parent=0 // pred_check_branch
    %121 = sbr.rel (0) target = $region89
  $region88: #{tpu_custom_call.1} parent=0 // pred_region
    _
  $region89: #{tpu_custom_call.1} parent=0 // pred_fallthru
    _
  // Predicated region
  $region90: #{tpu_custom_call.1} parent=0 // pred_check
    _
  $region91: #{tpu_custom_call.1} parent=0 // pred_check_branch
    %123 = sbr.rel (0) target = $region93
  $region92: #{tpu_custom_call.1} parent=0 // pred_region
    _
  $region93: #{tpu_custom_call.1} parent=0 // pred_fallthru
    _
  // Predicated region
  $region94: #{tpu_custom_call.1} parent=0 // pred_check
    _
  $region95: #{tpu_custom_call.1} parent=0 // pred_check_branch
    %125 = sbr.rel (0) target = $region97
  $region96: #{tpu_custom_call.1} parent=0 // pred_region
    _
  $region97: #{tpu_custom_call.1} parent=0 // pred_fallthru
    _
  // Predicated region
  $region98: #{tpu_custom_call.1} parent=0 // pred_check
    _
  $region99: #{tpu_custom_call.1} parent=0 // pred_check_branch
    %127 = sbr.rel (0) target = $region101
  $region100: #{tpu_custom_call.1} parent=0 // pred_region
    _
  $region101: #{tpu_custom_call.1} parent=0 // pred_fallthru
    _
  // Predicated region
  $region102: #{tpu_custom_call.1} parent=0 // pred_check
    _
  $region103: #{tpu_custom_call.1} parent=0 // pred_check_branch
    %129 = sbr.rel (0) target = $region105
  $region104: #{tpu_custom_call.1} parent=0 // pred_region
    _
  $region105: #{tpu_custom_call.1} parent=0 // pred_fallthru
    _
  // Predicated region
  $region106: #{tpu_custom_call.1} parent=0 // pred_check
    _
  $region107: #{tpu_custom_call.1} parent=0 // pred_check_branch
    %131 = sbr.rel (0) target = $region109
  $region108: #{tpu_custom_call.1} parent=0 // pred_region
    _
  $region109: #{tpu_custom_call.1} parent=0 // pred_fallthru
    _
  // Predicated region
  $region110: #{tpu_custom_call.1} parent=0 // pred_check
    _
  $region111: #{tpu_custom_call.1} parent=0 // pred_check_branch
    %133 = sbr.rel (0) target = $region113
  $region112: #{tpu_custom_call.1} parent=0 // pred_region
    _
  $region113: #{tpu_custom_call.1} parent=0 // pred_fallthru
    _
  // Predicated region
  $region114: #{tpu_custom_call.1} parent=0 // pred_check
    _
  $region115: #{tpu_custom_call.1} parent=0 // pred_check_branch
    %135 = sbr.rel (0) target = $region117
  $region116: #{tpu_custom_call.1} parent=0 // pred_region
    _
  $region117: #{tpu_custom_call.1} parent=0 // pred_fallthru
    _
  // Predicated region
  $region118: #{tpu_custom_call.1} parent=0 // pred_check
    _
  $region119: #{tpu_custom_call.1} parent=0 // pred_check_branch
    %137 = sbr.rel (0) target = $region121
  $region120: #{tpu_custom_call.1} parent=0 // pred_region
    _
  $region121: #{tpu_custom_call.1} parent=0 // pred_fallthru
    _
  // Predicated region
  $region122: #{tpu_custom_call.1} parent=0 // pred_check
    _
  $region123: #{tpu_custom_call.1} parent=0 // pred_check_branch
    %139 = sbr.rel (0) target = $region125
  $region124: #{tpu_custom_call.1} parent=0 // pred_region
    _
  $region125: #{tpu_custom_call.1} parent=0 // pred_fallthru
    _
  // Predicated region
  $region126: #{tpu_custom_call.1} parent=0 // pred_check
    _
  $region127: #{tpu_custom_call.1} parent=0 // pred_check_branch
    %141 = sbr.rel (0) target = $region129
  $region128: #{tpu_custom_call.1} parent=0 // pred_region
    _
  $region129: #{tpu_custom_call.1} parent=0 // pred_fallthru
    _
  // Predicated region
  $region130: #{tpu_custom_call.1} parent=0 // pred_check
    _
  $region131: #{tpu_custom_call.1} parent=0 // pred_check_branch
    %143 = sbr.rel (0) target = $region133
  $region132: #{tpu_custom_call.1} parent=0 // pred_region
    _
  $region133: #{tpu_custom_call.1} parent=0 // pred_fallthru
    _
  // Predicated region
  $region134: #{tpu_custom_call.1} parent=0 // pred_check
    _
  $region135: #{tpu_custom_call.1} parent=0 // pred_check_branch
    %145 = sbr.rel (0) target = $region137
  $region136: #{tpu_custom_call.1} parent=0 // pred_region
    _
  $region137: #{tpu_custom_call.1} parent=0 // pred_fallthru
    _
  // Predicated region
  $region138: #{tpu_custom_call.1} parent=0 // pred_check
    _
  $region139: #{tpu_custom_call.1} parent=0 // pred_check_branch
    %147 = sbr.rel (0) target = $region141
  $region140: #{tpu_custom_call.1} parent=0 // pred_region
    _
  $region141: #{tpu_custom_call.1} parent=0 // pred_fallthru
    _
  %v149 = vld [vmem:[%s1] sm:$0xff]
  %v150 = vld [vmem:[%s1 + $0x8] sm:$0xff]
  %v151 = vld [vmem:[%s1 + $0x10] sm:$0xff]
  %v152 = vld [vmem:[%s1 + $0x18] sm:$0xff]
  %v153 = vld [vmem:[%s1 + $0x20] sm:$0xff]
  %v154 = vld [vmem:[%s1 + $0x28] sm:$0xff]
  %v155 = vld [vmem:[%s1 + $0x30] sm:$0xff]
  %v156 = vld [vmem:[%s1 + $0x38] sm:$0xff]
  %v157 = vld [vmem:[%s1 + $0x40] sm:$0xff]
  %v158 = vld [vmem:[%s1 + $0x48] sm:$0xff]
  %v159 = vld [vmem:[%s1 + $0x50] sm:$0xff]
  %v160 = vld [vmem:[%s1 + $0x58] sm:$0xff]
  %v161 = vld [vmem:[%s1 + $0x60] sm:$0xff]
  %v162 = vld [vmem:[%s1 + $0x68] sm:$0xff]
  %v163 = vpack.c.bf16 %v150, %v149
  %v164 = vpack.c.bf16 %v152, %v151
  %v165 = vpack.c.bf16 %v154, %v153
  %v166 = vpack.c.bf16 %v156, %v155
  %v167 = vpack.c.bf16 %v158, %v157
  %v168 = vpack.c.bf16 %v160, %v159
  %v169 = vpack.c.bf16 %v162, %v161
  %v170 = vld [vmem:[%s5] sm:$0xf]
  %v171 = vld [vmem:[%s5 + $0x4] sm:$0xf]
  %v172 = vld [vmem:[%s5 + $0x8] sm:$0xf]
  %v173 = vld [vmem:[%s5 + $0xc] sm:$0xf]
  %v174 = vld [vmem:[%s5 + $0x10] sm:$0xf]
  %v175 = vld [vmem:[%s5 + $0x14] sm:$0xf]
  %v176 = vld [vmem:[%s5 + $0x18] sm:$0xf]
  %v184 = vunpack.c.l.b16 %v170
  %v185 = vunpack.c.l.b16 %v171
  %v186 = vunpack.c.l.b16 %v172
  %v187 = vunpack.c.l.b16 %v173
  %v188 = vunpack.c.l.b16 %v174
  %v189 = vunpack.c.l.b16 %v175
  %v190 = vunpack.c.l.b16 %v176
  %v191 = vpack.c.b16 %v185, %v184
  %v192 = vpack.c.b16 %v187, %v186
  %v193 = vpack.c.b16 %v189, %v188
  %v194 = vpack.c.b16 %v190, %v190
  %vm195 = vcmask 916480
  %v197 = vsel %vm195, %v191, 0
  %v200 = vsel %vm195, %v192, 0
  %v203 = vsel %vm195, %v193, 0
  %v206 = vsel %vm195, %v194, 0
  %208 = vmatprep.subr.bf16.mxu0 0
  %209 = vmatpush1.bf16.msra.mxu0 0
  %210 = vmatprep.subr.bf16.mxu0 0
  %211 = vmatpush1.bf16.msra.mxu0 %v169
  %212 = vmatprep.subr.bf16.mxu0 0
  %213 = vmatpush1.bf16.msra.mxu0 %v168
  %214 = vmatprep.subr.bf16.mxu0 0
  %215 = vmatpush1.bf16.msra.mxu0 %v167
  %216 = vmatprep.subr.bf16.mxu0 0
  %217 = vmatpush1.bf16.msra.mxu0 %v166
  %218 = vmatprep.subr.bf16.mxu0 0
  %219 = vmatpush1.bf16.msra.mxu0 %v165
  %220 = vmatprep.subr.bf16.mxu0 0
  %221 = vmatpush1.bf16.msra.mxu0 %v164
  %222 = vmatprep.subr.bf16.mxu0 0
  %223 = vmatpush1.bf16.msra.mxu0 %v163
  %224 = vmatprep.subr.bf16.mxu0 0
  %225 = vmatpush2.bf16.msra.mxu0 0
  %226 = vmatprep.subr.bf16.mxu0 0
  %227 = vmatpush2.bf16.msra.mxu0 0
  %228 = vmatprep.subr.bf16.mxu0 0
  %229 = vmatpush2.bf16.msra.mxu0 0
  %230 = vmatprep.subr.bf16.mxu0 0
  %231 = vmatpush2.bf16.msra.mxu0 0
  %232 = vmatprep.subr.bf16.mxu0 0
  %233 = vmatpush2.bf16.msra.mxu0 0
  %234 = vmatprep.subr.bf16.mxu0 0
  %235 = vmatpush2.bf16.msra.mxu0 0
  %236 = vmatprep.subr.bf16.mxu0 0
  %237 = vmatpush2.bf16.msra.mxu0 0
  %238 = vmatprep.subr.bf16.mxu0 0
  %239 = vmatpush2.bf16.msra.mxu0 0
  %240 = vmatprep.mubr.bf16.mxu0 0
  %241 = vmatmul.mubr.bf16.gmra.mxu0 %v197
  %v242 = vpop.f32.mrf.mxu0
  %v243 = vadd.f32 0.0, %v242
  %v244 = vpop.f32.mrf.mxu0
  %v245 = vpop.f32.mrf.mxu0
  %v246 = vadd.f32 0.0, %v245
  %v247 = vpop.f32.mrf.mxu0
  %248 = vmatprep.mubr.bf16.mxu0 0
  %249 = vmatmul.mubr.bf16.gmra.mxu0 %v200
  %v250 = vpop.f32.mrf.mxu0
  %v251 = vadd.f32 0.0, %v250
  %v252 = vpop.f32.mrf.mxu0
  %v253 = vpop.f32.mrf.mxu0
  %v254 = vadd.f32 0.0, %v253
  %v255 = vpop.f32.mrf.mxu0
  %256 = vmatprep.mubr.bf16.mxu0 0
  %257 = vmatmul.mubr.bf16.gmra.mxu0 %v203
  %v258 = vpop.f32.mrf.mxu0
  %v259 = vadd.f32 0.0, %v258
  %v260 = vpop.f32.mrf.mxu0
  %v261 = vpop.f32.mrf.mxu0
  %v262 = vadd.f32 0.0, %v261
  %v263 = vpop.f32.mrf.mxu0
  %264 = vmatprep.mubr.bf16.mxu0 0
  %265 = vmatmul.mubr.bf16.gmra.mxu0 %v206
  %v266 = vpop.f32.mrf.mxu0
  %v267 = vadd.f32 0.0, %v266
  %v268 = vpop.f32.mrf.mxu0
  %v269 = vpop.f32.mrf.mxu0
  %v270 = vpop.f32.mrf.mxu0
  %271 = vdwg.mxu0
  %s272 = scalar_lea.vmem %s5, 28
  %v273 = vld [vmem:[%s272] sm:$0xf]
  %v274 = vld [vmem:[%s272 + $0x4] sm:$0xf]
  %v275 = vld [vmem:[%s272 + $0x8] sm:$0xf]
  %v276 = vld [vmem:[%s272 + $0xc] sm:$0xf]
  %v277 = vld [vmem:[%s272 + $0x10] sm:$0xf]
  %v278 = vld [vmem:[%s272 + $0x14] sm:$0xf]
  %v279 = vld [vmem:[%s272 + $0x18] sm:$0xf]
  %v287 = vunpack.c.l.b16 %v273
  %v288 = vunpack.c.l.b16 %v274
  %v289 = vunpack.c.l.b16 %v275
  %v290 = vunpack.c.l.b16 %v276
  %v291 = vunpack.c.l.b16 %v277
  %v292 = vunpack.c.l.b16 %v278
  %v293 = vunpack.c.l.b16 %v279
  %v294 = vpack.c.b16 %v288, %v287
  %v295 = vpack.c.b16 %v290, %v289
  %v296 = vpack.c.b16 %v292, %v291
  %v297 = vpack.c.b16 %v293, %v293
  %v299 = vsel %vm195, %v294, 0
  %v302 = vsel %vm195, %v295, 0
  %v305 = vsel %vm195, %v296, 0
  %v308 = vsel %vm195, %v297, 0
  %310 = vmatprep.subr.bf16.mxu0 0
  %311 = vmatpush1.bf16.msra.mxu0 0
  %312 = vmatprep.subr.bf16.mxu0 0
  %313 = vmatpush1.bf16.msra.mxu0 %v169
  %314 = vmatprep.subr.bf16.mxu0 0
  %315 = vmatpush1.bf16.msra.mxu0 %v168
  %316 = vmatprep.subr.bf16.mxu0 0
  %317 = vmatpush1.bf16.msra.mxu0 %v167
  %318 = vmatprep.subr.bf16.mxu0 0
  %319 = vmatpush1.bf16.msra.mxu0 %v166
  %320 = vmatprep.subr.bf16.mxu0 0
  %321 = vmatpush1.bf16.msra.mxu0 %v165
  %322 = vmatprep.subr.bf16.mxu0 0
  %323 = vmatpush1.bf16.msra.mxu0 %v164
  %324 = vmatprep.subr.bf16.mxu0 0
  %325 = vmatpush1.bf16.msra.mxu0 %v163
  %326 = vmatprep.subr.bf16.mxu0 0
  %327 = vmatpush2.bf16.msra.mxu0 0
  %328 = vmatprep.subr.bf16.mxu0 0
  %329 = vmatpush2.bf16.msra.mxu0 0
  %330 = vmatprep.subr.bf16.mxu0 0
  %331 = vmatpush2.bf16.msra.mxu0 0
  %332 = vmatprep.subr.bf16.mxu0 0
  %333 = vmatpush2.bf16.msra.mxu0 0
  %334 = vmatprep.subr.bf16.mxu0 0
  %335 = vmatpush2.bf16.msra.mxu0 0
  %336 = vmatprep.subr.bf16.mxu0 0
  %337 = vmatpush2.bf16.msra.mxu0 0
  %338 = vmatprep.subr.bf16.mxu0 0
  %339 = vmatpush2.bf16.msra.mxu0 0
  %340 = vmatprep.subr.bf16.mxu0 0
  %341 = vmatpush2.bf16.msra.mxu0 0
  %342 = vmatprep.mubr.bf16.mxu0 0
  %343 = vmatmul.mubr.bf16.gmra.mxu0 %v299
  %v344 = vpop.f32.mrf.mxu0
  %v345 = vadd.f32 0.0, %v344
  %v346 = vpop.f32.mrf.mxu0
  %v347 = vpop.f32.mrf.mxu0
  %v348 = vadd.f32 0.0, %v347
  %v349 = vpop.f32.mrf.mxu0
  %350 = vmatprep.mubr.bf16.mxu0 0
  %351 = vmatmul.mubr.bf16.gmra.mxu0 %v302
  %v352 = vpop.f32.mrf.mxu0
  %v353 = vadd.f32 0.0, %v352
  %v354 = vpop.f32.mrf.mxu0
  %v355 = vpop.f32.mrf.mxu0
  %v356 = vadd.f32 0.0, %v355
  %v357 = vpop.f32.mrf.mxu0
  %358 = vmatprep.mubr.bf16.mxu0 0
  %359 = vmatmul.mubr.bf16.gmra.mxu0 %v305
  %v360 = vpop.f32.mrf.mxu0
  %v361 = vadd.f32 0.0, %v360
  %v362 = vpop.f32.mrf.mxu0
  %v363 = vpop.f32.mrf.mxu0
  %v364 = vadd.f32 0.0, %v363
  %v365 = vpop.f32.mrf.mxu0
  %366 = vmatprep.mubr.bf16.mxu0 0
  %367 = vmatmul.mubr.bf16.gmra.mxu0 %v308
  %v368 = vpop.f32.mrf.mxu0
  %v369 = vadd.f32 0.0, %v368
  %v370 = vpop.f32.mrf.mxu0
  %v371 = vpop.f32.mrf.mxu0
  %v372 = vpop.f32.mrf.mxu0
  %373 = vdwg.mxu0
  %s374 = scalar_lea.vmem %s5, 56
  %v375 = vld [vmem:[%s374] sm:$0xf]
  %v376 = vld [vmem:[%s374 + $0x4] sm:$0xf]
  %v377 = vld [vmem:[%s374 + $0x8] sm:$0xf]
  %v378 = vld [vmem:[%s374 + $0xc] sm:$0xf]
  %v379 = vld [vmem:[%s374 + $0x10] sm:$0xf]
  %v380 = vld [vmem:[%s374 + $0x14] sm:$0xf]
  %v381 = vld [vmem:[%s374 + $0x18] sm:$0xf]
  %v389 = vunpack.c.l.b16 %v375
  %v390 = vunpack.c.l.b16 %v376
  %v391 = vunpack.c.l.b16 %v377
  %v392 = vunpack.c.l.b16 %v378
  %v393 = vunpack.c.l.b16 %v379
  %v394 = vunpack.c.l.b16 %v380
  %v395 = vunpack.c.l.b16 %v381
  %v396 = vpack.c.b16 %v390, %v389
  %v397 = vpack.c.b16 %v392, %v391
  %v398 = vpack.c.b16 %v394, %v393
  %v399 = vpack.c.b16 %v395, %v395
  %v401 = vsel %vm195, %v396, 0
  %v404 = vsel %vm195, %v397, 0
  %v407 = vsel %vm195, %v398, 0
  %v410 = vsel %vm195, %v399, 0
  %412 = vmatprep.subr.bf16.mxu0 0
  %413 = vmatpush1.bf16.msra.mxu0 0
  %414 = vmatprep.subr.bf16.mxu0 0
  %415 = vmatpush1.bf16.msra.mxu0 %v169
  %416 = vmatprep.subr.bf16.mxu0 0
  %417 = vmatpush1.bf16.msra.mxu0 %v168
  %418 = vmatprep.subr.bf16.mxu0 0
  %419 = vmatpush1.bf16.msra.mxu0 %v167
  %420 = vmatprep.subr.bf16.mxu0 0
  %421 = vmatpush1.bf16.msra.mxu0 %v166
  %422 = vmatprep.subr.bf16.mxu0 0
  %423 = vmatpush1.bf16.msra.mxu0 %v165
  %424 = vmatprep.subr.bf16.mxu0 0
  %425 = vmatpush1.bf16.msra.mxu0 %v164
  %426 = vmatprep.subr.bf16.mxu0 0
  %427 = vmatpush1.bf16.msra.mxu0 %v163
  %428 = vmatprep.subr.bf16.mxu0 0
  %429 = vmatpush2.bf16.msra.mxu0 0
  %430 = vmatprep.subr.bf16.mxu0 0
  %431 = vmatpush2.bf16.msra.mxu0 0
  %432 = vmatprep.subr.bf16.mxu0 0
  %433 = vmatpush2.bf16.msra.mxu0 0
  %434 = vmatprep.subr.bf16.mxu0 0
  %435 = vmatpush2.bf16.msra.mxu0 0
  %436 = vmatprep.subr.bf16.mxu0 0
  %437 = vmatpush2.bf16.msra.mxu0 0
  %438 = vmatprep.subr.bf16.mxu0 0
  %439 = vmatpush2.bf16.msra.mxu0 0
  %440 = vmatprep.subr.bf16.mxu0 0
  %441 = vmatpush2.bf16.msra.mxu0 0
  %442 = vmatprep.subr.bf16.mxu0 0
  %443 = vmatpush2.bf16.msra.mxu0 0
  %444 = vmatprep.mubr.bf16.mxu0 0
  %445 = vmatmul.mubr.bf16.gmra.mxu0 %v401
  %v446 = vpop.f32.mrf.mxu0
  %v447 = vadd.f32 0.0, %v446
  %v448 = vpop.f32.mrf.mxu0
  %v449 = vpop.f32.mrf.mxu0
  %v450 = vadd.f32 0.0, %v449
  %v451 = vpop.f32.mrf.mxu0
  %452 = vmatprep.mubr.bf16.mxu0 0
  %453 = vmatmul.mubr.bf16.gmra.mxu0 %v404
  %v454 = vpop.f32.mrf.mxu0
  %v455 = vadd.f32 0.0, %v454
  %v456 = vpop.f32.mrf.mxu0
  %v457 = vpop.f32.mrf.mxu0
  %v458 = vadd.f32 0.0, %v457
  %v459 = vpop.f32.mrf.mxu0
  %460 = vmatprep.mubr.bf16.mxu0 0
  %461 = vmatmul.mubr.bf16.gmra.mxu0 %v407
  %v462 = vpop.f32.mrf.mxu0
  %v463 = vadd.f32 0.0, %v462
  %v464 = vpop.f32.mrf.mxu0
  %v465 = vpop.f32.mrf.mxu0
  %v466 = vadd.f32 0.0, %v465
  %v467 = vpop.f32.mrf.mxu0
  %468 = vmatprep.mubr.bf16.mxu0 0
  %469 = vmatmul.mubr.bf16.gmra.mxu0 %v410
  %v470 = vpop.f32.mrf.mxu0
  %v471 = vadd.f32 0.0, %v470
  %v472 = vpop.f32.mrf.mxu0
  %v473 = vpop.f32.mrf.mxu0
  %v474 = vpop.f32.mrf.mxu0
  %475 = vdwg.mxu0
  %483 = vrot.lane.b32.xlu0 %v345, 56
  %v484 = vpop.permute.xlu0 %483
  %485 = vrot.lane.b32.xlu0 %v348, 56
  %v486 = vpop.permute.xlu0 %485
  %487 = vrot.lane.b32.xlu0 %v353, 56
  %v488 = vpop.permute.xlu0 %487
  %489 = vrot.lane.b32.xlu0 %v356, 56
  %v490 = vpop.permute.xlu0 %489
  %491 = vrot.lane.b32.xlu0 %v361, 56
  %v492 = vpop.permute.xlu0 %491
  %493 = vrot.lane.b32.xlu0 %v364, 56
  %v494 = vpop.permute.xlu0 %493
  %495 = vrot.lane.b32.xlu0 %v369, 56
  %v496 = vpop.permute.xlu0 %495
  %511 = vrot.lane.b32.xlu0 %v447, 112
  %v512 = vpop.permute.xlu0 %511
  %513 = vrot.lane.b32.xlu0 %v450, 112
  %v514 = vpop.permute.xlu0 %513
  %515 = vrot.lane.b32.xlu0 %v455, 112
  %v516 = vpop.permute.xlu0 %515
  %517 = vrot.lane.b32.xlu0 %v458, 112
  %v518 = vpop.permute.xlu0 %517
  %519 = vrot.lane.b32.xlu0 %v463, 112
  %v520 = vpop.permute.xlu0 %519
  %521 = vrot.lane.b32.xlu0 %v466, 112
  %v522 = vpop.permute.xlu0 %521
  %523 = vrot.lane.b32.xlu0 %v471, 112
  %v524 = vpop.permute.xlu0 %523
  %vm532 = vcmask 457728
  %v533 = vsel %vm532, %v243, %v484
  %v534 = vsel %vm532, %v246, %v486
  %v535 = vsel %vm532, %v251, %v488
  %v536 = vsel %vm532, %v254, %v490
  %v537 = vsel %vm532, %v259, %v492
  %v538 = vsel %vm532, %v262, %v494
  %v539 = vsel %vm532, %v267, %v496
  %v540 = vsel %vm195, %v533, %v512
  %v541 = vsel %vm195, %v534, %v514
  %v542 = vsel %vm195, %v535, %v516
  %v543 = vsel %vm195, %v536, %v518
  %v544 = vsel %vm195, %v537, %v520
  %v545 = vsel %vm195, %v538, %v522
  %v546 = vsel %vm195, %v539, %v524
  %v547 = vld [vmem:[%s7] sm:$0xff]
  %v548 = vld [vmem:[%s7 + $0x8] sm:$0xff]
  %v549 = vld [vmem:[%s7 + $0x10] sm:$0xff]
  %v550 = vld [vmem:[%s7 + $0x18] sm:$0xff]
  %v551 = vld [vmem:[%s7 + $0x20] sm:$0xff]
  %v552 = vld [vmem:[%s7 + $0x28] sm:$0xff]
  %v553 = vld [vmem:[%s7 + $0x30] sm:$0xff]
  %v554 = vld [vmem:[%s7 + $0x38] sm:$0xff]
  %v555 = vld [vmem:[%s7 + $0x40] sm:$0xff]
  %v556 = vld [vmem:[%s7 + $0x48] sm:$0xff]
  %v557 = vld [vmem:[%s7 + $0x50] sm:$0xff]
  %v558 = vld [vmem:[%s7 + $0x58] sm:$0xff]
  %v559 = vld [vmem:[%s7 + $0x60] sm:$0xff]
  %v560 = vld [vmem:[%s7 + $0x68] sm:$0xff]
  %v561 = vld [vmem:[%s7 + $0x70] sm:$0xff]
  %v562 = vld [vmem:[%s7 + $0x78] sm:$0xff]
  %v563 = vld [vmem:[%s7 + $0x80] sm:$0xff]
  %v564 = vld [vmem:[%s7 + $0x88] sm:$0xff]
  %v565 = vld [vmem:[%s7 + $0x90] sm:$0xff]
  %v566 = vld [vmem:[%s7 + $0x98] sm:$0xff]
  %v567 = vld [vmem:[%s7 + $0xa0] sm:$0xff]
  %v568 = vpack.c.bf16 %v541, %v540
  %v569 = vpack.c.bf16 %v514, %v512
  %v570 = vpack.c.bf16 %v543, %v542
  %v571 = vpack.c.bf16 %v518, %v516
  %v572 = vpack.c.bf16 %v545, %v544
  %v573 = vpack.c.bf16 %v522, %v520
  %v574 = vpack.c.bf16 %v546, %v546
  %v575 = vpack.c.bf16 %v524, %v524
  %v597 = vunpack.c.l.b16 %v547
  %v598 = vunpack.c.h.b16 %v547
  %v599 = vunpack.c.l.b16 %v548
  %v600 = vunpack.c.h.b16 %v548
  %v601 = vunpack.c.l.b16 %v549
  %v602 = vunpack.c.h.b16 %v549
  %v603 = vunpack.c.l.b16 %v550
  %v604 = vunpack.c.h.b16 %v550
  %v605 = vunpack.c.l.b16 %v551
  %v606 = vunpack.c.h.b16 %v551
  %v607 = vunpack.c.l.b16 %v552
  %v608 = vunpack.c.h.b16 %v552
  %v609 = vunpack.c.l.b16 %v553
  %v610 = vunpack.c.h.b16 %v553
  %v611 = vunpack.c.l.b16 %v554
  %v612 = vunpack.c.h.b16 %v554
  %v613 = vunpack.c.l.b16 %v555
  %v614 = vunpack.c.h.b16 %v555
  %v615 = vunpack.c.l.b16 %v556
  %v616 = vunpack.c.h.b16 %v556
  %v617 = vunpack.c.l.b16 %v557
  %v618 = vunpack.c.h.b16 %v557
  %v619 = vunpack.c.l.b16 %v558
  %v620 = vunpack.c.h.b16 %v558
  %v621 = vunpack.c.l.b16 %v559
  %v622 = vunpack.c.h.b16 %v559
  %v623 = vunpack.c.l.b16 %v560
  %v624 = vunpack.c.h.b16 %v560
  %v625 = vunpack.c.l.b16 %v561
  %v626 = vunpack.c.h.b16 %v561
  %v627 = vunpack.c.l.b16 %v562
  %v628 = vunpack.c.h.b16 %v562
  %v629 = vunpack.c.l.b16 %v563
  %v630 = vunpack.c.h.b16 %v563
  %v631 = vunpack.c.l.b16 %v564
  %v632 = vunpack.c.h.b16 %v564
  %v633 = vunpack.c.l.b16 %v565
  %v634 = vunpack.c.h.b16 %v565
  %v635 = vunpack.c.l.b16 %v566
  %v636 = vunpack.c.h.b16 %v566
  %v637 = vunpack.c.l.b16 %v567
  %v638 = vunpack.c.h.b16 %v567
  %v639 = vpack.c.b16 %v599, %v597
  %v640 = vpack.c.b16 %v600, %v598
  %v641 = vpack.c.b16 %v603, %v601
  %v642 = vpack.c.b16 %v604, %v602
  %v643 = vpack.c.b16 %v607, %v605
  %v644 = vpack.c.b16 %v608, %v606
  %v645 = vpack.c.b16 %v611, %v609
  %v646 = vpack.c.b16 %v612, %v610
  %v647 = vpack.c.b16 %v615, %v613
  %v648 = vpack.c.b16 %v616, %v614
  %v649 = vpack.c.b16 %v619, %v617
  %v650 = vpack.c.b16 %v620, %v618
  %v651 = vpack.c.b16 %v623, %v621
  %v652 = vpack.c.b16 %v624, %v622
  %v653 = vpack.c.b16 %v627, %v625
  %v654 = vpack.c.b16 %v628, %v626
  %v655 = vpack.c.b16 %v631, %v629
  %v656 = vpack.c.b16 %v632, %v630
  %v657 = vpack.c.b16 %v635, %v633
  %v658 = vpack.c.b16 %v636, %v634
  %v659 = vpack.c.b16 %v637, %v637
  %v660 = vpack.c.b16 %v638, %v638
  %vm681 = vcmask 326656
  %v683 = vsel %vm681, %v569, 0
  %v686 = vsel %vm681, %v571, 0
  %v689 = vsel %vm681, %v573, 0
  %v692 = vsel %vm681, %v575, 0
  %vm694 = vcmask 1043456
  %v696 = vsel %vm694, %v659, 0
  %v699 = vsel %vm694, %v660, 0
  %701 = vmatprep.subr.bf16.mxu0 %v654
  %702 = vmatpush1.bf16.msra.mxu0 %v653
  %703 = vmatprep.subr.bf16.mxu0 %v652
  %704 = vmatpush1.bf16.msra.mxu0 %v651
  %705 = vmatprep.subr.bf16.mxu0 %v650
  %706 = vmatpush1.bf16.msra.mxu0 %v649
  %707 = vmatprep.subr.bf16.mxu0 %v648
  %708 = vmatpush1.bf16.msra.mxu0 %v647
  %709 = vmatprep.subr.bf16.mxu0 %v646
  %710 = vmatpush1.bf16.msra.mxu0 %v645
  %711 = vmatprep.subr.bf16.mxu0 %v644
  %712 = vmatpush1.bf16.msra.mxu0 %v643
  %713 = vmatprep.subr.bf16.mxu0 %v642
  %714 = vmatpush1.bf16.msra.mxu0 %v641
  %715 = vmatprep.subr.bf16.mxu0 %v640
  %716 = vmatpush1.bf16.msra.mxu0 %v639
  %717 = vmatprep.subr.bf16.mxu0 0
  %718 = vmatpush2.bf16.msra.mxu0 0
  %719 = vmatprep.subr.bf16.mxu0 0
  %720 = vmatpush2.bf16.msra.mxu0 0
  %721 = vmatprep.subr.bf16.mxu0 0
  %722 = vmatpush2.bf16.msra.mxu0 0
  %723 = vmatprep.subr.bf16.mxu0 0
  %724 = vmatpush2.bf16.msra.mxu0 0
  %725 = vmatprep.subr.bf16.mxu0 0
  %726 = vmatpush2.bf16.msra.mxu0 0
  %727 = vmatprep.subr.bf16.mxu0 %v699
  %728 = vmatpush2.bf16.msra.mxu0 %v696
  %729 = vmatprep.subr.bf16.mxu0 %v658
  %730 = vmatpush2.bf16.msra.mxu0 %v657
  %731 = vmatprep.subr.bf16.mxu0 %v656
  %732 = vmatpush2.bf16.msra.mxu0 %v655
  %733 = vmatprep.mubr.bf16.mxu0 %v683
  %734 = vmatmul.mubr.bf16.gmra.mxu0 %v568
  %v735 = vpop.f32.mrf.mxu0
  %v736 = vadd.f32 0.0, %v735
  %v737 = vpop.f32.mrf.mxu0
  %v738 = vadd.f32 0.0, %v737
  %v739 = vpop.f32.mrf.mxu0
  %v740 = vadd.f32 0.0, %v739
  %v741 = vpop.f32.mrf.mxu0
  %v742 = vadd.f32 0.0, %v741
  %743 = vmatprep.mubr.bf16.mxu0 %v686
  %744 = vmatmul.mubr.bf16.gmra.mxu0 %v570
  %v745 = vpop.f32.mrf.mxu0
  %v746 = vadd.f32 0.0, %v745
  %v747 = vpop.f32.mrf.mxu0
  %v748 = vadd.f32 0.0, %v747
  %v749 = vpop.f32.mrf.mxu0
  %v750 = vadd.f32 0.0, %v749
  %v751 = vpop.f32.mrf.mxu0
  %v752 = vadd.f32 0.0, %v751
  %753 = vmatprep.mubr.bf16.mxu0 %v689
  %754 = vmatmul.mubr.bf16.gmra.mxu0 %v572
  %v755 = vpop.f32.mrf.mxu0
  %v756 = vadd.f32 0.0, %v755
  %v757 = vpop.f32.mrf.mxu0
  %v758 = vadd.f32 0.0, %v757
  %v759 = vpop.f32.mrf.mxu0
  %v760 = vadd.f32 0.0, %v759
  %v761 = vpop.f32.mrf.mxu0
  %v762 = vadd.f32 0.0, %v761
  %763 = vmatprep.mubr.bf16.mxu0 %v692
  %764 = vmatmul.mubr.bf16.gmra.mxu0 %v574
  %v765 = vpop.f32.mrf.mxu0
  %v766 = vadd.f32 0.0, %v765
  %v767 = vpop.f32.mrf.mxu0
  %v768 = vadd.f32 0.0, %v767
  %v769 = vpop.f32.mrf.mxu0
  %v770 = vpop.f32.mrf.mxu0
  %771 = vdwg.mxu0
  %v772 = vadd.f32 %v736, %v740
  %v773 = vadd.f32 %v772, %v746
  %v774 = vadd.f32 %v773, %v750
  %v775 = vadd.f32 %v774, %v756
  %v776 = vadd.f32 %v775, %v760
  %v777 = vadd.f32 %v776, %v766
  %v778 = vrot.slane %v777, 4
  %v779 = vadd.f32 %v777, %v778
  %v780 = vrot.slane %v779, 2
  %v781 = vadd.f32 %v779, %v780
  %v782 = vrot.slane %v781, 1
  %v783 = vadd.f32 %v781, %v782
  %vm784 = vcmask 785408
  %v785 = vsel %vm784, %v738, 0.0
  %v786 = vsel %vm784, %v742, 0.0
  %v787 = vadd.f32 %v785, %v786
  %v788 = vsel %vm784, %v748, 0.0
  %v789 = vadd.f32 %v787, %v788
  %v790 = vsel %vm784, %v752, 0.0
  %v791 = vadd.f32 %v789, %v790
  %v792 = vsel %vm784, %v758, 0.0
  %v793 = vadd.f32 %v791, %v792
  %v794 = vsel %vm784, %v762, 0.0
  %v795 = vadd.f32 %v793, %v794
  %v796 = vsel %vm784, %v768, 0.0
  %v797 = vadd.f32 %v795, %v796
  %v798 = vrot.slane %v797, 4
  %v799 = vadd.f32 %v797, %v798
  %v800 = vrot.slane %v799, 2
  %v801 = vadd.f32 %v799, %v800
  %v802 = vrot.slane %v801, 1
  %v803 = vadd.f32 %v801, %v802
  %v804 = vld [vmem:[%s9] sm:$0xff]
  %v805 = vld [vmem:[%s9 + $0x8] sm:$0xff]
  %v806 = vld [vmem:[%s9 + $0x10] sm:$0xff]
  %v807 = vld [vmem:[%s9 + $0x18] sm:$0xff]
  %v808 = vld [vmem:[%s9 + $0x20] sm:$0xff]
  %v809 = vld [vmem:[%s9 + $0x28] sm:$0xff]
  %v810 = vld [vmem:[%s9 + $0x30] sm:$0xff]
  %v811 = vld [vmem:[%s9 + $0x38] sm:$0xff]
  %v812 = vld [vmem:[%s9 + $0x40] sm:$0xff]
  %v813 = vld [vmem:[%s9 + $0x48] sm:$0xff]
  %v814 = vld [vmem:[%s9 + $0x50] sm:$0xff]
  %v815 = vld [vmem:[%s9 + $0x58] sm:$0xff]
  %v816 = vld [vmem:[%s9 + $0x60] sm:$0xff]
  %v817 = vld [vmem:[%s9 + $0x68] sm:$0xff]
  %v818 = vld [vmem:[%s9 + $0x70] sm:$0xff]
  %v819 = vld [vmem:[%s9 + $0x78] sm:$0xff]
  %v820 = vld [vmem:[%s9 + $0x80] sm:$0xff]
  %v821 = vld [vmem:[%s9 + $0x88] sm:$0xff]
  %v822 = vld [vmem:[%s9 + $0x90] sm:$0xff]
  %v823 = vld [vmem:[%s9 + $0x98] sm:$0xff]
  %v824 = vld [vmem:[%s9 + $0xa0] sm:$0xff]
  %v825 = vld [vmem:[%s9 + $0xa8] sm:$0xff]
  %v826 = vld [vmem:[%s9 + $0xb0] sm:$0xff]
  %v827 = vld [vmem:[%s9 + $0xb8] sm:$0xff]
  %v828 = vld [vmem:[%s9 + $0xc0] sm:$0xff]
  %v829 = vld [vmem:[%s9 + $0xc8] sm:$0xff]
  %v830 = vld [vmem:[%s9 + $0xd0] sm:$0xff]
  %v831 = vld [vmem:[%s9 + $0xd8] sm:$0xff]
  %v833 = vsel %vm784, %v803, 0
  %835 = vmatprep.subr.mxu0 0.0
  %836 = vmatpush1.msra.mxu0 %v819
  %837 = vmatprep.subr.mxu0 0.0
  %838 = vmatpush1.msra.mxu0 %v818
  %839 = vmatprep.subr.mxu0 0.0
  %840 = vmatpush1.msra.mxu0 %v817
  %841 = vmatprep.subr.mxu0 0.0
  %842 = vmatpush1.msra.mxu0 %v816
  %843 = vmatprep.subr.mxu0 0.0
  %844 = vmatpush1.msra.mxu0 %v815
  %845 = vmatprep.subr.mxu0 0.0
  %846 = vmatpush1.msra.mxu0 %v814
  %847 = vmatprep.subr.mxu0 0.0
  %848 = vmatpush1.msra.mxu0 %v813
  %849 = vmatprep.subr.mxu0 0.0
  %850 = vmatpush1.msra.mxu0 %v812
  %851 = vmatprep.subr.mxu0 0.0
  %852 = vmatpush1.msra.mxu0 %v811
  %853 = vmatprep.subr.mxu0 0.0
  %854 = vmatpush1.msra.mxu0 %v810
  %855 = vmatprep.subr.mxu0 0.0
  %856 = vmatpush1.msra.mxu0 %v809
  %857 = vmatprep.subr.mxu0 0.0
  %858 = vmatpush1.msra.mxu0 %v808
  %859 = vmatprep.subr.mxu0 0.0
  %860 = vmatpush1.msra.mxu0 %v807
  %861 = vmatprep.subr.mxu0 0.0
  %862 = vmatpush1.msra.mxu0 %v806
  %863 = vmatprep.subr.mxu0 0.0
  %864 = vmatpush1.msra.mxu0 %v805
  %865 = vmatprep.subr.mxu0 0.0
  %866 = vmatpush1.msra.mxu0 %v804
  %867 = vmatprep.subr.mxu0 0.0
  %868 = vmatpush2.msra.mxu0 0.0
  %869 = vmatprep.subr.mxu0 0.0
  %870 = vmatpush2.msra.mxu0 0.0
  %871 = vmatprep.subr.mxu0 0.0
  %872 = vmatpush2.msra.mxu0 0.0
  %873 = vmatprep.subr.mxu0 0.0
  %874 = vmatpush2.msra.mxu0 0.0
  %875 = vmatprep.subr.mxu0 0.0
  %876 = vmatpush2.msra.mxu0 %v831
  %877 = vmatprep.subr.mxu0 0.0
  %878 = vmatpush2.msra.mxu0 %v830
  %879 = vmatprep.subr.mxu0 0.0
  %880 = vmatpush2.msra.mxu0 %v829
  %881 = vmatprep.subr.mxu0 0.0
  %882 = vmatpush2.msra.mxu0 %v828
  %883 = vmatprep.subr.mxu0 0.0
  %884 = vmatpush2.msra.mxu0 %v827
  %885 = vmatprep.subr.mxu0 0.0
  %886 = vmatpush2.msra.mxu0 %v826
  %887 = vmatprep.subr.mxu0 0.0
  %888 = vmatpush2.msra.mxu0 %v825
  %889 = vmatprep.subr.mxu0 0.0
  %890 = vmatpush2.msra.mxu0 %v824
  %891 = vmatprep.subr.mxu0 0.0
  %892 = vmatpush2.msra.mxu0 %v823
  %893 = vmatprep.subr.mxu0 0.0
  %894 = vmatpush2.msra.mxu0 %v822
  %895 = vmatprep.subr.mxu0 0.0
  %896 = vmatpush2.msra.mxu0 %v821
  %897 = vmatprep.subr.mxu0 0.0
  %898 = vmatpush2.msra.mxu0 %v820
  %899 = vmatprep.mubr.f32.mxu0 %v833
  %900 = vmatmul.mubr.f32.gmra.mxu0 %v783
  %v901 = vpop.f32.mrf.mxu0
  %v902 = vadd.f32 0.0, %v901
  %v903 = vpop.f32.mrf.mxu0
  %904 = vdwg.mxu0
  %v905 = vmul.f32 %v736, %v736
  %v906 = vmul.f32 %v738, %v738
  %v907 = vmul.f32 %v740, %v740
  %v908 = vmul.f32 %v742, %v742
  %v909 = vmul.f32 %v746, %v746
  %v910 = vmul.f32 %v748, %v748
  %v911 = vmul.f32 %v750, %v750
  %v912 = vmul.f32 %v752, %v752
  %v913 = vmul.f32 %v756, %v756
  %v914 = vmul.f32 %v758, %v758
  %v915 = vmul.f32 %v760, %v760
  %v916 = vmul.f32 %v762, %v762
  %v917 = vmul.f32 %v766, %v766
  %v918 = vmul.f32 %v768, %v768
  %v919 = vadd.f32 %v905, %v907
  %v920 = vadd.f32 %v919, %v909
  %v921 = vadd.f32 %v920, %v911
  %v922 = vadd.f32 %v921, %v913
  %v923 = vadd.f32 %v922, %v915
  %v924 = vadd.f32 %v923, %v917
  %v925 = vrot.slane %v924, 4
  %v926 = vadd.f32 %v924, %v925
  %v927 = vrot.slane %v926, 2
  %v928 = vadd.f32 %v926, %v927
  %v929 = vrot.slane %v928, 1
  %v930 = vadd.f32 %v928, %v929
  %v931 = vsel %vm784, %v906, 0.0
  %v932 = vsel %vm784, %v908, 0.0
  %v933 = vadd.f32 %v931, %v932
  %v934 = vsel %vm784, %v910, 0.0
  %v935 = vadd.f32 %v933, %v934
  %v936 = vsel %vm784, %v912, 0.0
  %v937 = vadd.f32 %v935, %v936
  %v938 = vsel %vm784, %v914, 0.0
  %v939 = vadd.f32 %v937, %v938
  %v940 = vsel %vm784, %v916, 0.0
  %v941 = vadd.f32 %v939, %v940
  %v942 = vsel %vm784, %v918, 0.0
  %v943 = vadd.f32 %v941, %v942
  %v944 = vrot.slane %v943, 4
  %v945 = vadd.f32 %v943, %v944
  %v946 = vrot.slane %v945, 2
  %v947 = vadd.f32 %v945, %v946
  %v948 = vrot.slane %v947, 1
  %v949 = vadd.f32 %v947, %v948
  %v951 = vsel %vm784, %v949, 0
  %953 = vmatprep.subr.mxu0 0.0
  %954 = vmatpush1.msra.mxu0 %v819
  %955 = vmatprep.subr.mxu0 0.0
  %956 = vmatpush1.msra.mxu0 %v818
  %957 = vmatprep.subr.mxu0 0.0
  %958 = vmatpush1.msra.mxu0 %v817
  %959 = vmatprep.subr.mxu0 0.0
  %960 = vmatpush1.msra.mxu0 %v816
  %961 = vmatprep.subr.mxu0 0.0
  %962 = vmatpush1.msra.mxu0 %v815
  %963 = vmatprep.subr.mxu0 0.0
  %964 = vmatpush1.msra.mxu0 %v814
  %965 = vmatprep.subr.mxu0 0.0
  %966 = vmatpush1.msra.mxu0 %v813
  %967 = vmatprep.subr.mxu0 0.0
  %968 = vmatpush1.msra.mxu0 %v812
  %969 = vmatprep.subr.mxu0 0.0
  %970 = vmatpush1.msra.mxu0 %v811
  %971 = vmatprep.subr.mxu0 0.0
  %972 = vmatpush1.msra.mxu0 %v810
  %973 = vmatprep.subr.mxu0 0.0
  %974 = vmatpush1.msra.mxu0 %v809
  %975 = vmatprep.subr.mxu0 0.0
  %976 = vmatpush1.msra.mxu0 %v808
  %977 = vmatprep.subr.mxu0 0.0
  %978 = vmatpush1.msra.mxu0 %v807
  %979 = vmatprep.subr.mxu0 0.0
  %980 = vmatpush1.msra.mxu0 %v806
  %981 = vmatprep.subr.mxu0 0.0
  %982 = vmatpush1.msra.mxu0 %v805
  %983 = vmatprep.subr.mxu0 0.0
  %984 = vmatpush1.msra.mxu0 %v804
  %985 = vmatprep.subr.mxu0 0.0
  %986 = vmatpush2.msra.mxu0 0.0
  %987 = vmatprep.subr.mxu0 0.0
  %988 = vmatpush2.msra.mxu0 0.0
  %989 = vmatprep.subr.mxu0 0.0
  %990 = vmatpush2.msra.mxu0 0.0
  %991 = vmatprep.subr.mxu0 0.0
  %992 = vmatpush2.msra.mxu0 0.0
  %993 = vmatprep.subr.mxu0 0.0
  %994 = vmatpush2.msra.mxu0 %v831
  %995 = vmatprep.subr.mxu0 0.0
  %996 = vmatpush2.msra.mxu0 %v830
  %997 = vmatprep.subr.mxu0 0.0
  %998 = vmatpush2.msra.mxu0 %v829
  %999 = vmatprep.subr.mxu0 0.0
  %1000 = vmatpush2.msra.mxu0 %v828
  %1001 = vmatprep.subr.mxu0 0.0
  %1002 = vmatpush2.msra.mxu0 %v827
  %1003 = vmatprep.subr.mxu0 0.0
  %1004 = vmatpush2.msra.mxu0 %v826
  %1005 = vmatprep.subr.mxu0 0.0
  %1006 = vmatpush2.msra.mxu0 %v825
  %1007 = vmatprep.subr.mxu0 0.0
  %1008 = vmatpush2.msra.mxu0 %v824
  %1009 = vmatprep.subr.mxu0 0.0
  %1010 = vmatpush2.msra.mxu0 %v823
  %1011 = vmatprep.subr.mxu0 0.0
  %1012 = vmatpush2.msra.mxu0 %v822
  %1013 = vmatprep.subr.mxu0 0.0
  %1014 = vmatpush2.msra.mxu0 %v821
  %1015 = vmatprep.subr.mxu0 0.0
  %1016 = vmatpush2.msra.mxu0 %v820
  %1017 = vmatprep.mubr.f32.mxu0 %v951
  %1018 = vmatmul.mubr.f32.gmra.mxu0 %v930
  %v1019 = vpop.f32.mrf.mxu0
  %v1020 = vadd.f32 0.0, %v1019
  %v1021 = vpop.f32.mrf.mxu0
  %1022 = vdwg.mxu0
  %v1023 = vmul.f32 %v902, 0.0006377551
  %v1024 = vmul.f32 %v1020, 0.0006377551
  %v1025 = vmul.f32 %v1023, %v1023
  %v1026 = vsub.f32 %v1024, %v1025
  %v1027 = vmax.f32 %v1026, 0.0
  %v1028 = vld [vmem:[%s13] sm:$0x3]
  %v1029 = vadd.f32 %v1027, 1e-05
  %v1030 = vrsqrt.pop %v1029
  %v1031 = vmul.f32 %v1030, %v1028
  %v1032 = vmul.f32 %v1023, %v1031
  %v1034 = vrot.slane %v1032, 7
  %v1036 = vsub.f32 %v1028, %v1034
  %v1037 = vld [vmem:[%s11] sm:$0xff]
  %v1038 = vld [vmem:[%s11 + $0x8] sm:$0xff]
  %vm1039 = vcmask 64512
  %v1041 = vsel %vm1039, %v1031, 0
  %1043 = vmatprep.subr.mxu0 0.0
  %1044 = vmatpush1.msra.mxu0 0.0
  %1045 = vmatprep.subr.mxu0 0.0
  %1046 = vmatpush1.msra.mxu0 0.0
  %1047 = vmatprep.subr.mxu0 0.0
  %1048 = vmatpush1.msra.mxu0 0.0
  %1049 = vmatprep.subr.mxu0 0.0
  %1050 = vmatpush1.msra.mxu0 0.0
  %1051 = vmatprep.subr.mxu0 0.0
  %1052 = vmatpush1.msra.mxu0 0.0
  %1053 = vmatprep.subr.mxu0 0.0
  %1054 = vmatpush1.msra.mxu0 0.0
  %1055 = vmatprep.subr.mxu0 0.0
  %1056 = vmatpush1.msra.mxu0 0.0
  %1057 = vmatprep.subr.mxu0 0.0
  %1058 = vmatpush1.msra.mxu0 0.0
  %1059 = vmatprep.subr.mxu0 0.0
  %1060 = vmatpush1.msra.mxu0 0.0
  %1061 = vmatprep.subr.mxu0 0.0
  %1062 = vmatpush1.msra.mxu0 0.0
  %1063 = vmatprep.subr.mxu0 0.0
  %1064 = vmatpush1.msra.mxu0 0.0
  %1065 = vmatprep.subr.mxu0 0.0
  %1066 = vmatpush1.msra.mxu0 0.0
  %1067 = vmatprep.subr.mxu0 0.0
  %1068 = vmatpush1.msra.mxu0 0.0
  %1069 = vmatprep.subr.mxu0 0.0
  %1070 = vmatpush1.msra.mxu0 0.0
  %1071 = vmatprep.subr.mxu0 0.0
  %1072 = vmatpush1.msra.mxu0 0.0
  %1073 = vmatprep.subr.mxu0 %v1038
  %1074 = vmatpush1.msra.mxu0 %v1037
  %1075 = vmatprep.subr.mxu0 0.0
  %1076 = vmatpush2.msra.mxu0 0.0
  %1077 = vmatprep.subr.mxu0 0.0
  %1078 = vmatpush2.msra.mxu0 0.0
  %1079 = vmatprep.subr.mxu0 0.0
  %1080 = vmatpush2.msra.mxu0 0.0
  %1081 = vmatprep.subr.mxu0 0.0
  %1082 = vmatpush2.msra.mxu0 0.0
  %1083 = vmatprep.subr.mxu0 0.0
  %1084 = vmatpush2.msra.mxu0 0.0
  %1085 = vmatprep.subr.mxu0 0.0
  %1086 = vmatpush2.msra.mxu0 0.0
  %1087 = vmatprep.subr.mxu0 0.0
  %1088 = vmatpush2.msra.mxu0 0.0
  %1089 = vmatprep.subr.mxu0 0.0
  %1090 = vmatpush2.msra.mxu0 0.0
  %1091 = vmatprep.subr.mxu0 0.0
  %1092 = vmatpush2.msra.mxu0 0.0
  %1093 = vmatprep.subr.mxu0 0.0
  %1094 = vmatpush2.msra.mxu0 0.0
  %1095 = vmatprep.subr.mxu0 0.0
  %1096 = vmatpush2.msra.mxu0 0.0
  %1097 = vmatprep.subr.mxu0 0.0
  %1098 = vmatpush2.msra.mxu0 0.0
  %1099 = vmatprep.subr.mxu0 0.0
  %1100 = vmatpush2.msra.mxu0 0.0
  %1101 = vmatprep.subr.mxu0 0.0
  %1102 = vmatpush2.msra.mxu0 0.0
  %1103 = vmatprep.subr.mxu0 0.0
  %1104 = vmatpush2.msra.mxu0 0.0
  %1105 = vmatprep.subr.mxu0 0.0
  %1106 = vmatpush2.msra.mxu0 0.0
  %1107 = vmatprep.mubr.f32.mxu0 0.0
  %1108 = vmatmul.mubr.f32.gmra.mxu0 %v1041
  %v1109 = vpop.f32.mrf.mxu0
  %v1110 = vadd.f32 0.0, %v1109
  %v1111 = vpop.f32.mrf.mxu0
  %v1112 = vadd.f32 0.0, %v1111
  %1113 = vdwg.mxu0
  %v1114 = vlaneseq
  %v1115 = vshrl.u32 %v1114, 7
  %v1116 = vsub.s32 0, %v1115
  %v1117 = vrot.slane %v1110, %v1116
  %v1118 = vlaneseq
  %v1119 = vshrl.u32 %v1118, 7
  %v1120 = vsub.s32 0, %v1119
  %v1121 = vrot.slane %v1112, %v1120
  %v1122 = vmul.f32 %v736, %v1117
  %v1123 = vmul.f32 %v738, %v1121
  %v1124 = vmul.f32 %v740, %v1117
  %v1125 = vmul.f32 %v742, %v1121
  %v1126 = vmul.f32 %v746, %v1117
  %v1127 = vmul.f32 %v748, %v1121
  %v1128 = vmul.f32 %v750, %v1117
  %v1129 = vmul.f32 %v752, %v1121
  %v1130 = vmul.f32 %v756, %v1117
  %v1131 = vmul.f32 %v758, %v1121
  %v1132 = vmul.f32 %v760, %v1117
  %v1133 = vmul.f32 %v762, %v1121
  %v1134 = vmul.f32 %v766, %v1117
  %v1135 = vmul.f32 %v768, %v1121
  %v1137 = vrot.slane %v1036, 1
  %v1138 = vsel %vm1039, %v1137, 0
  %1140 = vmatprep.subr.mxu0 0.0
  %1141 = vmatpush1.msra.mxu0 0.0
  %1142 = vmatprep.subr.mxu0 0.0
  %1143 = vmatpush1.msra.mxu0 0.0
  %1144 = vmatprep.subr.mxu0 0.0
  %1145 = vmatpush1.msra.mxu0 0.0
  %1146 = vmatprep.subr.mxu0 0.0
  %1147 = vmatpush1.msra.mxu0 0.0
  %1148 = vmatprep.subr.mxu0 0.0
  %1149 = vmatpush1.msra.mxu0 0.0
  %1150 = vmatprep.subr.mxu0 0.0
  %1151 = vmatpush1.msra.mxu0 0.0
  %1152 = vmatprep.subr.mxu0 0.0
  %1153 = vmatpush1.msra.mxu0 0.0
  %1154 = vmatprep.subr.mxu0 0.0
  %1155 = vmatpush1.msra.mxu0 0.0
  %1156 = vmatprep.subr.mxu0 0.0
  %1157 = vmatpush1.msra.mxu0 0.0
  %1158 = vmatprep.subr.mxu0 0.0
  %1159 = vmatpush1.msra.mxu0 0.0
  %1160 = vmatprep.subr.mxu0 0.0
  %1161 = vmatpush1.msra.mxu0 0.0
  %1162 = vmatprep.subr.mxu0 0.0
  %1163 = vmatpush1.msra.mxu0 0.0
  %1164 = vmatprep.subr.mxu0 0.0
  %1165 = vmatpush1.msra.mxu0 0.0
  %1166 = vmatprep.subr.mxu0 0.0
  %1167 = vmatpush1.msra.mxu0 0.0
  %1168 = vmatprep.subr.mxu0 0.0
  %1169 = vmatpush1.msra.mxu0 0.0
  %1170 = vmatprep.subr.mxu0 %v1038
  %1171 = vmatpush1.msra.mxu0 %v1037
  %1172 = vmatprep.subr.mxu0 0.0
  %1173 = vmatpush2.msra.mxu0 0.0
  %1174 = vmatprep.subr.mxu0 0.0
  %1175 = vmatpush2.msra.mxu0 0.0
  %1176 = vmatprep.subr.mxu0 0.0
  %1177 = vmatpush2.msra.mxu0 0.0
  %1178 = vmatprep.subr.mxu0 0.0
  %1179 = vmatpush2.msra.mxu0 0.0
  %1180 = vmatprep.subr.mxu0 0.0
  %1181 = vmatpush2.msra.mxu0 0.0
  %1182 = vmatprep.subr.mxu0 0.0
  %1183 = vmatpush2.msra.mxu0 0.0
  %1184 = vmatprep.subr.mxu0 0.0
  %1185 = vmatpush2.msra.mxu0 0.0
  %1186 = vmatprep.subr.mxu0 0.0
  %1187 = vmatpush2.msra.mxu0 0.0
  %1188 = vmatprep.subr.mxu0 0.0
  %1189 = vmatpush2.msra.mxu0 0.0
  %1190 = vmatprep.subr.mxu0 0.0
  %1191 = vmatpush2.msra.mxu0 0.0
  %1192 = vmatprep.subr.mxu0 0.0
  %1193 = vmatpush2.msra.mxu0 0.0
  %1194 = vmatprep.subr.mxu0 0.0
  %1195 = vmatpush2.msra.mxu0 0.0
  %1196 = vmatprep.subr.mxu0 0.0
  %1197 = vmatpush2.msra.mxu0 0.0
  %1198 = vmatprep.subr.mxu0 0.0
  %1199 = vmatpush2.msra.mxu0 0.0
  %1200 = vmatprep.subr.mxu0 0.0
  %1201 = vmatpush2.msra.mxu0 0.0
  %1202 = vmatprep.subr.mxu0 0.0
  %1203 = vmatpush2.msra.mxu0 0.0
  %1204 = vmatprep.mubr.f32.mxu0 0.0
  %1205 = vmatmul.mubr.f32.gmra.mxu0 %v1138
  %v1206 = vpop.f32.mrf.mxu0
  %v1207 = vadd.f32 0.0, %v1206
  %v1208 = vpop.f32.mrf.mxu0
  %v1209 = vadd.f32 0.0, %v1208
  %1210 = vdwg.mxu0
  %v1211 = vlaneseq
  %v1212 = vshrl.u32 %v1211, 7
  %v1213 = vsub.s32 0, %v1212
  %v1214 = vrot.slane %v1207, %v1213
  %v1215 = vlaneseq
  %v1216 = vshrl.u32 %v1215, 7
  %v1217 = vsub.s32 0, %v1216
  %v1218 = vrot.slane %v1209, %v1217
  %v1219 = vadd.f32 %v1122, %v1214
  %v1220 = vadd.f32 %v1123, %v1218
  %v1221 = vadd.f32 %v1124, %v1214
  %v1222 = vadd.f32 %v1125, %v1218
  %v1223 = vadd.f32 %v1126, %v1214
  %v1224 = vadd.f32 %v1127, %v1218
  %v1225 = vadd.f32 %v1128, %v1214
  %v1226 = vadd.f32 %v1129, %v1218
  %v1227 = vadd.f32 %v1130, %v1214
  %v1228 = vadd.f32 %v1131, %v1218
  %v1229 = vadd.f32 %v1132, %v1214
  %v1230 = vadd.f32 %v1133, %v1218
  %v1231 = vadd.f32 %v1134, %v1214
  %v1232 = vadd.f32 %v1135, %v1218
  %v1233 = vmax.f32 %v1219, 0.0
  %v1234 = vmax.f32 %v1220, 0.0
  %v1235 = vmax.f32 %v1221, 0.0
  %v1236 = vmax.f32 %v1222, 0.0
  %v1237 = vmax.f32 %v1223, 0.0
  %v1238 = vmax.f32 %v1224, 0.0
  %v1239 = vmax.f32 %v1225, 0.0
  %v1240 = vmax.f32 %v1226, 0.0
  %v1241 = vmax.f32 %v1227, 0.0
  %v1242 = vmax.f32 %v1228, 0.0
  %v1243 = vmax.f32 %v1229, 0.0
  %v1244 = vmax.f32 %v1230, 0.0
  %v1245 = vmax.f32 %v1231, 0.0
  %v1246 = vmax.f32 %v1232, 0.0
  %v1247 = vld [vmem:[%s15] sm:$0xf]
  %v1248 = vld [vmem:[%s15 + $0x4] sm:$0xf]
  %v1249 = vld [vmem:[%s15 + $0x8] sm:$0xf]
  %v1250 = vld [vmem:[%s15 + $0xc] sm:$0xf]
  %v1251 = vld [vmem:[%s15 + $0x10] sm:$0xf]
  %v1252 = vld [vmem:[%s15 + $0x14] sm:$0xf]
  %v1253 = vld [vmem:[%s15 + $0x18] sm:$0xf]
  %v1254 = vld [vmem:[%s3] sm:$0x3]
  %v1255 = vpack.c.bf16 %v1254, %v1254
  %v1263 = vunpack.c.l.b16 %v1247
  %v1264 = vunpack.c.l.b16 %v1248
  %v1265 = vunpack.c.l.b16 %v1249
  %v1266 = vunpack.c.l.b16 %v1250
  %v1267 = vunpack.c.l.b16 %v1251
  %v1268 = vunpack.c.l.b16 %v1252
  %v1269 = vunpack.c.l.b16 %v1253
  %v1270 = vpack.c.b16 %v1264, %v1263
  %v1271 = vpack.c.b16 %v1266, %v1265
  %v1272 = vpack.c.b16 %v1268, %v1267
  %v1273 = vpack.c.b16 %v1269, %v1269
  %vm1274 = vcmask 15360
  %v1276 = vsel %vm1274, %v1270, 0
  %v1279 = vsel %vm1274, %v1271, 0
  %v1282 = vsel %vm1274, %v1272, 0
  %v1285 = vsel %vm1274, %v1273, 0
  %vm1287 = vcmask 1040384
  %v1289 = vsel %vm1287, %v1255, 0
  %1291 = vmatprep.subr.bf16.mxu0 0
  %1292 = vmatpush1.bf16.msra.mxu0 0
  %1293 = vmatprep.subr.bf16.mxu0 0
  %1294 = vmatpush1.bf16.msra.mxu0 0
  %1295 = vmatprep.subr.bf16.mxu0 0
  %1296 = vmatpush1.bf16.msra.mxu0 0
  %1297 = vmatprep.subr.bf16.mxu0 0
  %1298 = vmatpush1.bf16.msra.mxu0 0
  %1299 = vmatprep.subr.bf16.mxu0 0
  %1300 = vmatpush1.bf16.msra.mxu0 0
  %1301 = vmatprep.subr.bf16.mxu0 0
  %1302 = vmatpush1.bf16.msra.mxu0 0
  %1303 = vmatprep.subr.bf16.mxu0 0
  %1304 = vmatpush1.bf16.msra.mxu0 0
  %1305 = vmatprep.subr.bf16.mxu0 0
  %1306 = vmatpush1.bf16.msra.mxu0 %v1289
  %1307 = vmatprep.subr.bf16.mxu0 0
  %1308 = vmatpush2.bf16.msra.mxu0 0
  %1309 = vmatprep.subr.bf16.mxu0 0
  %1310 = vmatpush2.bf16.msra.mxu0 0
  %1311 = vmatprep.subr.bf16.mxu0 0
  %1312 = vmatpush2.bf16.msra.mxu0 0
  %1313 = vmatprep.subr.bf16.mxu0 0
  %1314 = vmatpush2.bf16.msra.mxu0 0
  %1315 = vmatprep.subr.bf16.mxu0 0
  %1316 = vmatpush2.bf16.msra.mxu0 0
  %1317 = vmatprep.subr.bf16.mxu0 0
  %1318 = vmatpush2.bf16.msra.mxu0 0
  %1319 = vmatprep.subr.bf16.mxu0 0
  %1320 = vmatpush2.bf16.msra.mxu0 0
  %1321 = vmatprep.subr.bf16.mxu0 0
  %1322 = vmatpush2.bf16.msra.mxu0 0
  %1323 = vmatprep.mubr.bf16.mxu0 0
  %1324 = vmatmul.mubr.bf16.gmra.mxu0 %v1276
  %v1325 = vpop.f32.mrf.mxu0
  %v1326 = vadd.f32 0.0, %v1325
  %v1327 = vpop.f32.mrf.mxu0
  %v1328 = vpop.f32.mrf.mxu0
  %v1329 = vadd.f32 0.0, %v1328
  %v1330 = vpop.f32.mrf.mxu0
  %1331 = vmatprep.mubr.bf16.mxu0 0
  %1332 = vmatmul.mubr.bf16.gmra.mxu0 %v1279
  %v1333 = vpop.f32.mrf.mxu0
  %v1334 = vadd.f32 0.0, %v1333
  %v1335 = vpop.f32.mrf.mxu0
  %v1336 = vpop.f32.mrf.mxu0
  %v1337 = vadd.f32 0.0, %v1336
  %v1338 = vpop.f32.mrf.mxu0
  %1339 = vmatprep.mubr.bf16.mxu0 0
  %1340 = vmatmul.mubr.bf16.gmra.mxu0 %v1282
  %v1341 = vpop.f32.mrf.mxu0
  %v1342 = vadd.f32 0.0, %v1341
  %v1343 = vpop.f32.mrf.mxu0
  %v1344 = vpop.f32.mrf.mxu0
  %v1345 = vadd.f32 0.0, %v1344
  %v1346 = vpop.f32.mrf.mxu0
  %1347 = vmatprep.mubr.bf16.mxu0 0
  %1348 = vmatmul.mubr.bf16.gmra.mxu0 %v1285
  %v1349 = vpop.f32.mrf.mxu0
  %v1350 = vadd.f32 0.0, %v1349
  %v1351 = vpop.f32.mrf.mxu0
  %v1352 = vpop.f32.mrf.mxu0
  %v1353 = vpop.f32.mrf.mxu0
  %1354 = vdwg.mxu0
  %v1355 = vld [vmem:[%s17] sm:$0xff]
  %v1356 = vld [vmem:[%s17 + $0x8] sm:$0xf]
  %v1357 = vld [vmem:[%s17 + $0xc] sm:$0x11]
  %v1358 = vld [vmem:[%s17 + $0x14] sm:$0x1]
  %v1359 = vpack.c.bf16 %v1329, %v1326
  %v1360 = vpack.c.bf16 %v1337, %v1334
  %v1361 = vpack.c.bf16 %v1345, %v1342
  %v1362 = vpack.c.bf16 %v1350, %v1350
  %v1367 = vunpack.c.l.b16 %v1355
  %v1368 = vunpack.c.h.b16 %v1355
  %v1369 = vunpack.c.l.b16 %v1356
  %v1370 = vunpack.c.l.b16 %v1357
  %v1371 = vunpack.c.h.b16 %v1357
  %v1372 = vunpack.c.l.b16 %v1358
  %v1373 = vpack.c.b16 %v1370, %v1367
  %v1374 = vpack.c.b16 %v1371, %v1368
  %v1375 = vpack.c.b16 %v1372, %v1369
  %vm1376 = vcmask 80896
  %v1378 = vsel %vm1376, %v1359, 0
  %v1381 = vsel %vm1376, %v1360, 0
  %v1384 = vsel %vm1376, %v1361, 0
  %v1387 = vsel %vm1376, %v1362, 0
  %vm1389 = vcmask 1044480
  %v1391 = vsel %vm1389, %v1373, 0
  %v1394 = vsel %vm1389, %v1374, 0
  %v1397 = vsel %vm1389, %v1375, 0
  %1399 = vmatprep.subr.bf16.mxu0 0
  %1400 = vmatpush1.bf16.msra.mxu0 0
  %1401 = vmatprep.subr.bf16.mxu0 0
  %1402 = vmatpush1.bf16.msra.mxu0 0
  %1403 = vmatprep.subr.bf16.mxu0 0
  %1404 = vmatpush1.bf16.msra.mxu0 0
  %1405 = vmatprep.subr.bf16.mxu0 0
  %1406 = vmatpush1.bf16.msra.mxu0 0
  %1407 = vmatprep.subr.bf16.mxu0 0
  %1408 = vmatpush1.bf16.msra.mxu0 0
  %1409 = vmatprep.subr.bf16.mxu0 0
  %1410 = vmatpush1.bf16.msra.mxu0 0
  %1411 = vmatprep.subr.bf16.mxu0 0
  %1412 = vmatpush1.bf16.msra.mxu0 0
  %1413 = vmatprep.subr.bf16.mxu0 %v1394
  %1414 = vmatpush1.bf16.msra.mxu0 %v1391
  %1415 = vmatprep.subr.bf16.mxu0 0
  %1416 = vmatpush2.bf16.msra.mxu0 0
  %1417 = vmatprep.subr.bf16.mxu0 0
  %1418 = vmatpush2.bf16.msra.mxu0 0
  %1419 = vmatprep.subr.bf16.mxu0 0
  %1420 = vmatpush2.bf16.msra.mxu0 0
  %1421 = vmatprep.subr.bf16.mxu0 0
  %1422 = vmatpush2.bf16.msra.mxu0 0
  %1423 = vmatprep.subr.bf16.mxu0 0
  %1424 = vmatpush2.bf16.msra.mxu0 0
  %1425 = vmatprep.subr.bf16.mxu0 0
  %1426 = vmatpush2.bf16.msra.mxu0 0
  %1427 = vmatprep.subr.bf16.mxu0 0
  %1428 = vmatpush2.bf16.msra.mxu0 0
  %1429 = vmatprep.subr.bf16.mxu0 0
  %1430 = vmatpush2.bf16.msra.mxu0 0
  %1431 = vmatprep.mubr.bf16.mxu0 0
  %1432 = vmatmul.mubr.bf16.gmra.mxu0 %v1378
  %v1433 = vpop.f32.mrf.mxu0
  %v1434 = vadd.f32 0.0, %v1433
  %v1435 = vpop.f32.mrf.mxu0
  %v1436 = vadd.f32 0.0, %v1435
  %v1437 = vpop.f32.mrf.mxu0
  %v1438 = vadd.f32 0.0, %v1437
  %v1439 = vpop.f32.mrf.mxu0
  %v1440 = vadd.f32 0.0, %v1439
  %1441 = vmatprep.mubr.bf16.mxu0 0
  %1442 = vmatmul.mubr.bf16.gmra.mxu0 %v1381
  %v1443 = vpop.f32.mrf.mxu0
  %v1444 = vadd.f32 0.0, %v1443
  %v1445 = vpop.f32.mrf.mxu0
  %v1446 = vadd.f32 0.0, %v1445
  %v1447 = vpop.f32.mrf.mxu0
  %v1448 = vadd.f32 0.0, %v1447
  %v1449 = vpop.f32.mrf.mxu0
  %v1450 = vadd.f32 0.0, %v1449
  %1451 = vmatprep.mubr.bf16.mxu0 0
  %1452 = vmatmul.mubr.bf16.gmra.mxu0 %v1384
  %v1453 = vpop.f32.mrf.mxu0
  %v1454 = vadd.f32 0.0, %v1453
  %v1455 = vpop.f32.mrf.mxu0
  %v1456 = vadd.f32 0.0, %v1455
  %v1457 = vpop.f32.mrf.mxu0
  %v1458 = vadd.f32 0.0, %v1457
  %v1459 = vpop.f32.mrf.mxu0
  %v1460 = vadd.f32 0.0, %v1459
  %1461 = vmatprep.mubr.bf16.mxu0 0
  %1462 = vmatmul.mubr.bf16.gmra.mxu0 %v1387
  %v1463 = vpop.f32.mrf.mxu0
  %v1464 = vadd.f32 0.0, %v1463
  %v1465 = vpop.f32.mrf.mxu0
  %v1466 = vadd.f32 0.0, %v1465
  %v1467 = vpop.f32.mrf.mxu0
  %v1468 = vpop.f32.mrf.mxu0
  %1469 = vdwg.mxu0
  %1470 = vmatprep.subr.bf16.mxu0 0
  %1471 = vmatpush1.bf16.msra.mxu0 0
  %1472 = vmatprep.subr.bf16.mxu0 0
  %1473 = vmatpush1.bf16.msra.mxu0 0
  %1474 = vmatprep.subr.bf16.mxu0 0
  %1475 = vmatpush1.bf16.msra.mxu0 0
  %1476 = vmatprep.subr.bf16.mxu0 0
  %1477 = vmatpush1.bf16.msra.mxu0 0
  %1478 = vmatprep.subr.bf16.mxu0 0
  %1479 = vmatpush1.bf16.msra.mxu0 0
  %1480 = vmatprep.subr.bf16.mxu0 0
  %1481 = vmatpush1.bf16.msra.mxu0 0
  %1482 = vmatprep.subr.bf16.mxu0 0
  %1483 = vmatpush1.bf16.msra.mxu0 0
  %1484 = vmatprep.subr.bf16.mxu0 0
  %1485 = vmatpush1.bf16.msra.mxu0 %v1397
  %1486 = vmatprep.subr.bf16.mxu0 0
  %1487 = vmatpush2.bf16.msra.mxu0 0
  %1488 = vmatprep.subr.bf16.mxu0 0
  %1489 = vmatpush2.bf16.msra.mxu0 0
  %1490 = vmatprep.subr.bf16.mxu0 0
  %1491 = vmatpush2.bf16.msra.mxu0 0
  %1492 = vmatprep.subr.bf16.mxu0 0
  %1493 = vmatpush2.bf16.msra.mxu0 0
  %1494 = vmatprep.subr.bf16.mxu0 0
  %1495 = vmatpush2.bf16.msra.mxu0 0
  %1496 = vmatprep.subr.bf16.mxu0 0
  %1497 = vmatpush2.bf16.msra.mxu0 0
  %1498 = vmatprep.subr.bf16.mxu0 0
  %1499 = vmatpush2.bf16.msra.mxu0 0
  %1500 = vmatprep.subr.bf16.mxu0 0
  %1501 = vmatpush2.bf16.msra.mxu0 0
  %1502 = vmatprep.mubr.bf16.mxu0 0
  %1503 = vmatmul.mubr.bf16.gmra.mxu0 %v1378
  %v1504 = vpop.f32.mrf.mxu0
  %v1505 = vadd.f32 0.0, %v1504
  %v1506 = vpop.f32.mrf.mxu0
  %v1507 = vpop.f32.mrf.mxu0
  %v1508 = vadd.f32 0.0, %v1507
  %v1509 = vpop.f32.mrf.mxu0
  %1510 = vmatprep.mubr.bf16.mxu0 0
  %1511 = vmatmul.mubr.bf16.gmra.mxu0 %v1381
  %v1512 = vpop.f32.mrf.mxu0
  %v1513 = vadd.f32 0.0, %v1512
  %v1514 = vpop.f32.mrf.mxu0
  %v1515 = vpop.f32.mrf.mxu0
  %v1516 = vadd.f32 0.0, %v1515
  %v1517 = vpop.f32.mrf.mxu0
  %1518 = vmatprep.mubr.bf16.mxu0 0
  %1519 = vmatmul.mubr.bf16.gmra.mxu0 %v1384
  %v1520 = vpop.f32.mrf.mxu0
  %v1521 = vadd.f32 0.0, %v1520
  %v1522 = vpop.f32.mrf.mxu0
  %v1523 = vpop.f32.mrf.mxu0
  %v1524 = vadd.f32 0.0, %v1523
  %v1525 = vpop.f32.mrf.mxu0
  %1526 = vmatprep.mubr.bf16.mxu0 0
  %1527 = vmatmul.mubr.bf16.gmra.mxu0 %v1387
  %v1528 = vpop.f32.mrf.mxu0
  %v1529 = vadd.f32 0.0, %v1528
  %v1530 = vpop.f32.mrf.mxu0
  %v1531 = vpop.f32.mrf.mxu0
  %v1532 = vpop.f32.mrf.mxu0
  %1533 = vdwg.mxu0
  %v1534 = vld [vmem:[%s19] sm:$0xff]
  %v1535 = vld [vmem:[%s19 + $0x8] sm:$0xff]
  %v1536 = vld [vmem:[%s19 + $0x10] sm:$0xff]
  %v1537 = vld [vmem:[%s19 + $0x18] sm:$0xff]
  %v1538 = vld [vmem:[%s19 + $0x20] sm:$0xff]
  %v1539 = vld [vmem:[%s19 + $0x28] sm:$0xff]
  %v1540 = vld [vmem:[%s19 + $0x30] sm:$0xff]
  %v1541 = vld [vmem:[%s19 + $0x38] sm:$0xff]
  %v1542 = vld [vmem:[%s19 + $0x40] sm:$0xff]
  %v1543 = vld [vmem:[%s19 + $0x48] sm:$0xff]
  %v1544 = vld [vmem:[%s19 + $0x50] sm:$0xff]
  %v1545 = vld [vmem:[%s19 + $0x58] sm:$0xff]
  %v1546 = vld [vmem:[%s19 + $0x60] sm:$0xff]
  %v1547 = vld [vmem:[%s19 + $0x68] sm:$0xff]
  %v1548 = vld [vmem:[%s19 + $0x70] sm:$0xff]
  %v1549 = vld [vmem:[%s19 + $0x78] sm:$0xff]
  %v1550 = vld [vmem:[%s19 + $0x80] sm:$0xff]
  %v1551 = vld [vmem:[%s19 + $0x88] sm:$0xff]
  %v1552 = vld [vmem:[%s19 + $0x90] sm:$0xff]
  %v1553 = vld [vmem:[%s19 + $0x98] sm:$0xff]
  %v1554 = vld [vmem:[%s19 + $0xa0] sm:$0xff]
  %v1555 = vmul.f32 %v1434, %v1534
  %v1556 = vmul.f32 %v1436, %v1535
  %v1557 = vmul.f32 %v1505, %v1536
  %v1558 = vmul.f32 %v1438, %v1537
  %v1559 = vmul.f32 %v1440, %v1538
  %v1560 = vmul.f32 %v1508, %v1539
  %v1561 = vmul.f32 %v1444, %v1540
  %v1562 = vmul.f32 %v1446, %v1541
  %v1563 = vmul.f32 %v1513, %v1542
  %v1564 = vmul.f32 %v1448, %v1543
  %v1565 = vmul.f32 %v1450, %v1544
  %v1566 = vmul.f32 %v1516, %v1545
  %v1567 = vmul.f32 %v1454, %v1546
  %v1568 = vmul.f32 %v1456, %v1547
  %v1569 = vmul.f32 %v1521, %v1548
  %v1570 = vmul.f32 %v1458, %v1549
  %v1571 = vmul.f32 %v1460, %v1550
  %v1572 = vmul.f32 %v1524, %v1551
  %v1573 = vmul.f32 %v1464, %v1552
  %v1574 = vmul.f32 %v1466, %v1553
  %v1575 = vmul.f32 %v1529, %v1554
  %v1576 = vld [vmem:[%s21] sm:$0xf]
  %v1577 = vld [vmem:[%s21 + $0x4] sm:$0xf]
  %v1578 = vld [vmem:[%s21 + $0x8] sm:$0xf]
  %v1579 = vld [vmem:[%s21 + $0xc] sm:$0xf]
  %v1580 = vld [vmem:[%s21 + $0x10] sm:$0xf]
  %v1581 = vld [vmem:[%s21 + $0x14] sm:$0xf]
  %v1582 = vld [vmem:[%s21 + $0x18] sm:$0xf]
  %v1583 = vld [vmem:[%s21 + $0x1c] sm:$0xf]
  %v1584 = vld [vmem:[%s21 + $0x20] sm:$0xf]
  %v1585 = vld [vmem:[%s21 + $0x24] sm:$0xf]
  %v1586 = vld [vmem:[%s21 + $0x28] sm:$0xf]
  %v1587 = vld [vmem:[%s21 + $0x2c] sm:$0xf]
  %v1588 = vld [vmem:[%s21 + $0x30] sm:$0xf]
  %v1589 = vld [vmem:[%s21 + $0x34] sm:$0xf]
  %v1590 = vld [vmem:[%s21 + $0x38] sm:$0xf]
  %v1591 = vld [vmem:[%s21 + $0x3c] sm:$0xf]
  %v1592 = vld [vmem:[%s21 + $0x40] sm:$0xf]
  %v1593 = vld [vmem:[%s21 + $0x44] sm:$0xf]
  %v1594 = vld [vmem:[%s21 + $0x48] sm:$0xf]
  %v1595 = vld [vmem:[%s21 + $0x4c] sm:$0xf]
  %v1596 = vld [vmem:[%s21 + $0x50] sm:$0xf]
  %v1597 = vld [vmem:[%s21 + $0x54] sm:$0xf]
  %v1598 = vld [vmem:[%s21 + $0x58] sm:$0xf]
  %v1599 = vld [vmem:[%s21 + $0x5c] sm:$0xf]
  %v1600 = vld [vmem:[%s21 + $0x60] sm:$0xf]
  %v1601 = vld [vmem:[%s21 + $0x64] sm:$0xf]
  %v1602 = vld [vmem:[%s21 + $0x68] sm:$0xf]
  %v1603 = vld [vmem:[%s21 + $0x6c] sm:$0xf]
  %v1604 = vld [vmem:[%s21 + $0x70] sm:$0xf]
  %v1605 = vld [vmem:[%s21 + $0x74] sm:$0xf]
  %v1606 = vld [vmem:[%s21 + $0x78] sm:$0xf]
  %v1607 = vld [vmem:[%s21 + $0x7c] sm:$0xf]
  %v1608 = vld [vmem:[%s21 + $0x80] sm:$0xf]
  %v1609 = vld [vmem:[%s21 + $0x84] sm:$0xf]
  %v1610 = vld [vmem:[%s21 + $0x88] sm:$0xf]
  %v1611 = vpack.c.bf16 %v1558, %v1555
  %v1612 = vpack.c.bf16 %v1559, %v1556
  %v1613 = vpack.c.bf16 %v1560, %v1557
  %v1614 = vpack.c.bf16 %v1564, %v1561
  %v1615 = vpack.c.bf16 %v1565, %v1562
  %v1616 = vpack.c.bf16 %v1566, %v1563
  %v1617 = vpack.c.bf16 %v1570, %v1567
  %v1618 = vpack.c.bf16 %v1571, %v1568
  %v1619 = vpack.c.bf16 %v1572, %v1569
  %v1620 = vpack.c.bf16 %v1573, %v1573
  %v1621 = vpack.c.bf16 %v1574, %v1574
  %v1622 = vpack.c.bf16 %v1575, %v1575
  %v1658 = vunpack.c.l.b16 %v1576
  %v1659 = vunpack.c.l.b16 %v1577
  %v1660 = vunpack.c.l.b16 %v1578
  %v1661 = vunpack.c.l.b16 %v1579
  %v1662 = vunpack.c.l.b16 %v1580
  %v1663 = vunpack.c.l.b16 %v1581
  %v1664 = vunpack.c.l.b16 %v1582
  %v1665 = vunpack.c.l.b16 %v1583
  %v1666 = vunpack.c.l.b16 %v1584
  %v1667 = vunpack.c.l.b16 %v1585
  %v1668 = vunpack.c.l.b16 %v1586
  %v1669 = vunpack.c.l.b16 %v1587
  %v1670 = vunpack.c.l.b16 %v1588
  %v1671 = vunpack.c.l.b16 %v1589
  %v1672 = vunpack.c.l.b16 %v1590
  %v1673 = vunpack.c.l.b16 %v1591
  %v1674 = vunpack.c.l.b16 %v1592
  %v1675 = vunpack.c.l.b16 %v1593
  %v1676 = vunpack.c.l.b16 %v1594
  %v1677 = vunpack.c.l.b16 %v1595
  %v1678 = vunpack.c.l.b16 %v1596
  %v1679 = vunpack.c.l.b16 %v1597
  %v1680 = vunpack.c.l.b16 %v1598
  %v1681 = vunpack.c.l.b16 %v1599
  %v1682 = vunpack.c.l.b16 %v1600
  %v1683 = vunpack.c.l.b16 %v1601
  %v1684 = vunpack.c.l.b16 %v1602
  %v1685 = vunpack.c.l.b16 %v1603
  %v1686 = vunpack.c.l.b16 %v1604
  %v1687 = vunpack.c.l.b16 %v1605
  %v1688 = vunpack.c.l.b16 %v1606
  %v1689 = vunpack.c.l.b16 %v1607
  %v1690 = vunpack.c.l.b16 %v1608
  %v1691 = vunpack.c.l.b16 %v1609
  %v1692 = vunpack.c.l.b16 %v1610
  %v1693 = vpack.c.b16 %v1659, %v1658
  %v1694 = vpack.c.b16 %v1661, %v1660
  %v1695 = vpack.c.b16 %v1663, %v1662
  %v1696 = vpack.c.b16 %v1665, %v1664
  %v1697 = vpack.c.b16 %v1667, %v1666
  %v1698 = vpack.c.b16 %v1669, %v1668
  %v1699 = vpack.c.b16 %v1671, %v1670
  %v1700 = vpack.c.b16 %v1673, %v1672
  %v1701 = vpack.c.b16 %v1675, %v1674
  %v1702 = vpack.c.b16 %v1677, %v1676
  %v1703 = vpack.c.b16 %v1679, %v1678
  %v1704 = vpack.c.b16 %v1681, %v1680
  %v1705 = vpack.c.b16 %v1683, %v1682
  %v1706 = vpack.c.b16 %v1685, %v1684
  %v1707 = vpack.c.b16 %v1687, %v1686
  %v1708 = vpack.c.b16 %v1689, %v1688
  %v1709 = vpack.c.b16 %v1691, %v1690
  %v1710 = vpack.c.b16 %v1692, %v1692
  %vm1728 = vcmask 195584
  %v1730 = vsel %vm1728, %v1613, 0
  %v1733 = vsel %vm1728, %v1616, 0
  %v1736 = vsel %vm1728, %v1619, 0
  %v1739 = vsel %vm1728, %v1622, 0
  %v1742 = vsel %vm694, %v1710, 0
  %1744 = vmatprep.subr.bf16.mxu0 0
  %1745 = vmatpush1.bf16.msra.mxu0 %v1700
  %1746 = vmatprep.subr.bf16.mxu0 0
  %1747 = vmatpush1.bf16.msra.mxu0 %v1699
  %1748 = vmatprep.subr.bf16.mxu0 0
  %1749 = vmatpush1.bf16.msra.mxu0 %v1698
  %1750 = vmatprep.subr.bf16.mxu0 0
  %1751 = vmatpush1.bf16.msra.mxu0 %v1697
  %1752 = vmatprep.subr.bf16.mxu0 0
  %1753 = vmatpush1.bf16.msra.mxu0 %v1696
  %1754 = vmatprep.subr.bf16.mxu0 0
  %1755 = vmatpush1.bf16.msra.mxu0 %v1695
  %1756 = vmatprep.subr.bf16.mxu0 0
  %1757 = vmatpush1.bf16.msra.mxu0 %v1694
  %1758 = vmatprep.subr.bf16.mxu0 0
  %1759 = vmatpush1.bf16.msra.mxu0 %v1693
  %1760 = vmatprep.subr.bf16.mxu0 0
  %1761 = vmatpush2.bf16.msra.mxu0 %v1708
  %1762 = vmatprep.subr.bf16.mxu0 0
  %1763 = vmatpush2.bf16.msra.mxu0 %v1707
  %1764 = vmatprep.subr.bf16.mxu0 0
  %1765 = vmatpush2.bf16.msra.mxu0 %v1706
  %1766 = vmatprep.subr.bf16.mxu0 0
  %1767 = vmatpush2.bf16.msra.mxu0 %v1705
  %1768 = vmatprep.subr.bf16.mxu0 0
  %1769 = vmatpush2.bf16.msra.mxu0 %v1704
  %1770 = vmatprep.subr.bf16.mxu0 0
  %1771 = vmatpush2.bf16.msra.mxu0 %v1703
  %1772 = vmatprep.subr.bf16.mxu0 0
  %1773 = vmatpush2.bf16.msra.mxu0 %v1702
  %1774 = vmatprep.subr.bf16.mxu0 0
  %1775 = vmatpush2.bf16.msra.mxu0 %v1701
  %1776 = vmatprep.mubr.bf16.mxu0 %v1612
  %1777 = vmatmul.mubr.bf16.gmra.mxu0 %v1611
  %v1778 = vpop.f32.mrf.mxu0
  %v1779 = vadd.f32 0.0, %v1778
  %v1780 = vpop.f32.mrf.mxu0
  %v1781 = vpop.f32.mrf.mxu0
  %v1782 = vadd.f32 0.0, %v1781
  %v1783 = vpop.f32.mrf.mxu0
  %1784 = vmatprep.mubr.bf16.mxu0 %v1615
  %1785 = vmatmul.mubr.bf16.gmra.mxu0 %v1614
  %v1786 = vpop.f32.mrf.mxu0
  %v1787 = vadd.f32 0.0, %v1786
  %v1788 = vpop.f32.mrf.mxu0
  %v1789 = vpop.f32.mrf.mxu0
  %v1790 = vadd.f32 0.0, %v1789
  %v1791 = vpop.f32.mrf.mxu0
  %1792 = vmatprep.mubr.bf16.mxu0 %v1618
  %1793 = vmatmul.mubr.bf16.gmra.mxu0 %v1617
  %v1794 = vpop.f32.mrf.mxu0
  %v1795 = vadd.f32 0.0, %v1794
  %v1796 = vpop.f32.mrf.mxu0
  %v1797 = vpop.f32.mrf.mxu0
  %v1798 = vadd.f32 0.0, %v1797
  %v1799 = vpop.f32.mrf.mxu0
  %1800 = vmatprep.mubr.bf16.mxu0 %v1621
  %1801 = vmatmul.mubr.bf16.gmra.mxu0 %v1620
  %v1802 = vpop.f32.mrf.mxu0
  %v1803 = vadd.f32 0.0, %v1802
  %v1804 = vpop.f32.mrf.mxu0
  %v1805 = vpop.f32.mrf.mxu0
  %v1806 = vpop.f32.mrf.mxu0
  %1807 = vdwg.mxu0
  %1808 = vmatprep.subr.bf16.mxu0 0
  %1809 = vmatpush1.bf16.msra.mxu0 0
  %1810 = vmatprep.subr.bf16.mxu0 0
  %1811 = vmatpush1.bf16.msra.mxu0 0
  %1812 = vmatprep.subr.bf16.mxu0 0
  %1813 = vmatpush1.bf16.msra.mxu0 0
  %1814 = vmatprep.subr.bf16.mxu0 0
  %1815 = vmatpush1.bf16.msra.mxu0 0
  %1816 = vmatprep.subr.bf16.mxu0 0
  %1817 = vmatpush1.bf16.msra.mxu0 0
  %1818 = vmatprep.subr.bf16.mxu0 0
  %1819 = vmatpush1.bf16.msra.mxu0 0
  %1820 = vmatprep.subr.bf16.mxu0 0
  %1821 = vmatpush1.bf16.msra.mxu0 %v1742
  %1822 = vmatprep.subr.bf16.mxu0 0
  %1823 = vmatpush1.bf16.msra.mxu0 %v1709
  %1824 = vmatprep.subr.bf16.mxu0 0
  %1825 = vmatpush2.bf16.msra.mxu0 0
  %1826 = vmatprep.subr.bf16.mxu0 0
  %1827 = vmatpush2.bf16.msra.mxu0 0
  %1828 = vmatprep.subr.bf16.mxu0 0
  %1829 = vmatpush2.bf16.msra.mxu0 0
  %1830 = vmatprep.subr.bf16.mxu0 0
  %1831 = vmatpush2.bf16.msra.mxu0 0
  %1832 = vmatprep.subr.bf16.mxu0 0
  %1833 = vmatpush2.bf16.msra.mxu0 0
  %1834 = vmatprep.subr.bf16.mxu0 0
  %1835 = vmatpush2.bf16.msra.mxu0 0
  %1836 = vmatprep.subr.bf16.mxu0 0
  %1837 = vmatpush2.bf16.msra.mxu0 0
  %1838 = vmatprep.subr.bf16.mxu0 0
  %1839 = vmatpush2.bf16.msra.mxu0 0
  %1840 = vmatprep.mubr.bf16.mxu0 0
  %1841 = vmatmul.mubr.bf16.gmra.mxu0 %v1730
  %v1842 = vpop.f32.mrf.mxu0
  %v1843 = vadd.f32 %v1779, %v1842
  %v1844 = vpop.f32.mrf.mxu0
  %v1845 = vpop.f32.mrf.mxu0
  %v1846 = vadd.f32 %v1782, %v1845
  %v1847 = vpop.f32.mrf.mxu0
  %1848 = vmatprep.mubr.bf16.mxu0 0
  %1849 = vmatmul.mubr.bf16.gmra.mxu0 %v1733
  %v1850 = vpop.f32.mrf.mxu0
  %v1851 = vadd.f32 %v1787, %v1850
  %v1852 = vpop.f32.mrf.mxu0
  %v1853 = vpop.f32.mrf.mxu0
  %v1854 = vadd.f32 %v1790, %v1853
  %v1855 = vpop.f32.mrf.mxu0
  %1856 = vmatprep.mubr.bf16.mxu0 0
  %1857 = vmatmul.mubr.bf16.gmra.mxu0 %v1736
  %v1858 = vpop.f32.mrf.mxu0
  %v1859 = vadd.f32 %v1795, %v1858
  %v1860 = vpop.f32.mrf.mxu0
  %v1861 = vpop.f32.mrf.mxu0
  %v1862 = vadd.f32 %v1798, %v1861
  %v1863 = vpop.f32.mrf.mxu0
  %1864 = vmatprep.mubr.bf16.mxu0 0
  %1865 = vmatmul.mubr.bf16.gmra.mxu0 %v1739
  %v1866 = vpop.f32.mrf.mxu0
  %v1867 = vadd.f32 %v1803, %v1866
  %v1868 = vpop.f32.mrf.mxu0
  %v1869 = vpop.f32.mrf.mxu0
  %v1870 = vpop.f32.mrf.mxu0
  %1871 = vdwg.mxu0
  %v1872 = vld [vmem:[%s27] sm:$0xff]
  %v1873 = vld [vmem:[%s27 + $0x8] sm:$0xff]
  %v1874 = vld [vmem:[%s27 + $0x10] sm:$0xff]
  %v1875 = vld [vmem:[%s27 + $0x18] sm:$0xf]
  %v1877 = vsel %vm532, %v1872, 0
  %v1880 = vsel %vm532, %v1873, 0
  %v1883 = vsel %vm532, %v1874, 0
  %v1886 = vsel %vm532, %v1875, 0
  %1888 = vmatprep.subr.mxu0 0.0
  %1889 = vmatpush1.msra.mxu0 0.0
  %1890 = vmatprep.subr.mxu0 0.0
  %1891 = vmatpush1.msra.mxu0 0.0
  %1892 = vmatprep.subr.mxu0 0.0
  %1893 = vmatpush1.msra.mxu0 0.0
  %1894 = vmatprep.subr.mxu0 0.0
  %1895 = vmatpush1.msra.mxu0 0.0
  %1896 = vmatprep.subr.mxu0 0.0
  %1897 = vmatpush1.msra.mxu0 0.0
  %1898 = vmatprep.subr.mxu0 0.0
  %1899 = vmatpush1.msra.mxu0 0.0
  %1900 = vmatprep.subr.mxu0 0.0
  %1901 = vmatpush1.msra.mxu0 0.0
  %1902 = vmatprep.subr.mxu0 0.0
  %1903 = vmatpush1.msra.mxu0 0.0
  %1904 = vmatprep.subr.mxu0 0.0
  %1905 = vmatpush1.msra.mxu0 0.0
  %1906 = vmatprep.subr.mxu0 0.0
  %1907 = vmatpush1.msra.mxu0 %v1867
  %1908 = vmatprep.subr.mxu0 0.0
  %1909 = vmatpush1.msra.mxu0 %v1862
  %1910 = vmatprep.subr.mxu0 0.0
  %1911 = vmatpush1.msra.mxu0 %v1859
  %1912 = vmatprep.subr.mxu0 0.0
  %1913 = vmatpush1.msra.mxu0 %v1854
  %1914 = vmatprep.subr.mxu0 0.0
  %1915 = vmatpush1.msra.mxu0 %v1851
  %1916 = vmatprep.subr.mxu0 0.0
  %1917 = vmatpush1.msra.mxu0 %v1846
  %1918 = vmatprep.subr.mxu0 0.0
  %1919 = vmatpush1.msra.mxu0 %v1843
  %1920 = vmatprep.subr.mxu0 0.0
  %1921 = vmatpush2.msra.mxu0 0.0
  %1922 = vmatprep.subr.mxu0 0.0
  %1923 = vmatpush2.msra.mxu0 0.0
  %1924 = vmatprep.subr.mxu0 0.0
  %1925 = vmatpush2.msra.mxu0 0.0
  %1926 = vmatprep.subr.mxu0 0.0
  %1927 = vmatpush2.msra.mxu0 0.0
  %1928 = vmatprep.subr.mxu0 0.0
  %1929 = vmatpush2.msra.mxu0 0.0
  %1930 = vmatprep.subr.mxu0 0.0
  %1931 = vmatpush2.msra.mxu0 0.0
  %1932 = vmatprep.subr.mxu0 0.0
  %1933 = vmatpush2.msra.mxu0 0.0
  %1934 = vmatprep.subr.mxu0 0.0
  %1935 = vmatpush2.msra.mxu0 0.0
  %1936 = vmatprep.subr.mxu0 0.0
  %1937 = vmatpush2.msra.mxu0 0.0
  %1938 = vmatprep.subr.mxu0 0.0
  %1939 = vmatpush2.msra.mxu0 0.0
  %1940 = vmatprep.subr.mxu0 0.0
  %1941 = vmatpush2.msra.mxu0 0.0
  %1942 = vmatprep.subr.mxu0 0.0
  %1943 = vmatpush2.msra.mxu0 0.0
  %1944 = vmatprep.subr.mxu0 0.0
  %1945 = vmatpush2.msra.mxu0 0.0
  %1946 = vmatprep.subr.mxu0 0.0
  %1947 = vmatpush2.msra.mxu0 0.0
  %1948 = vmatprep.subr.mxu0 0.0
  %1949 = vmatpush2.msra.mxu0 0.0
  %1950 = vmatprep.subr.mxu0 0.0
  %1951 = vmatpush2.msra.mxu0 0.0
  %1952 = vmatprep.mubr.f32.mxu0 0.0
  %1953 = vmatmul.mubr.f32.gmra.mxu0 %v1877
  %v1954 = vpop.f32.mrf.mxu0
  %v1955 = vadd.f32 0.0, %v1954
  %v1956 = vpop.f32.mrf.mxu0
  %1957 = vmatprep.mubr.f32.mxu0 0.0
  %1958 = vmatmul.mubr.f32.gmra.mxu0 %v1880
  %v1959 = vpop.f32.mrf.mxu0
  %v1960 = vadd.f32 0.0, %v1959
  %v1961 = vpop.f32.mrf.mxu0
  %1962 = vmatprep.mubr.f32.mxu0 0.0
  %1963 = vmatmul.mubr.f32.gmra.mxu0 %v1883
  %v1964 = vpop.f32.mrf.mxu0
  %v1965 = vadd.f32 0.0, %v1964
  %v1966 = vpop.f32.mrf.mxu0
  %1967 = vmatprep.mubr.f32.mxu0 0.0
  %1968 = vmatmul.mubr.f32.gmra.mxu0 %v1886
  %v1969 = vpop.f32.mrf.mxu0
  %v1970 = vadd.f32 0.0, %v1969
  %v1971 = vpop.f32.mrf.mxu0
  %1972 = vdwg.mxu0
  %v1973 = vmul.f32 %v1843, %v1843
  %v1974 = vmul.f32 %v1846, %v1846
  %v1975 = vmul.f32 %v1851, %v1851
  %v1976 = vmul.f32 %v1854, %v1854
  %v1977 = vmul.f32 %v1859, %v1859
  %v1978 = vmul.f32 %v1862, %v1862
  %v1979 = vmul.f32 %v1867, %v1867
  %1980 = vmatprep.subr.mxu0 0.0
  %1981 = vmatpush1.msra.mxu0 0.0
  %1982 = vmatprep.subr.mxu0 0.0
  %1983 = vmatpush1.msra.mxu0 0.0
  %1984 = vmatprep.subr.mxu0 0.0
  %1985 = vmatpush1.msra.mxu0 0.0
  %1986 = vmatprep.subr.mxu0 0.0
  %1987 = vmatpush1.msra.mxu0 0.0
  %1988 = vmatprep.subr.mxu0 0.0
  %1989 = vmatpush1.msra.mxu0 0.0
  %1990 = vmatprep.subr.mxu0 0.0
  %1991 = vmatpush1.msra.mxu0 0.0
  %1992 = vmatprep.subr.mxu0 0.0
  %1993 = vmatpush1.msra.mxu0 0.0
  %1994 = vmatprep.subr.mxu0 0.0
  %1995 = vmatpush1.msra.mxu0 0.0
  %1996 = vmatprep.subr.mxu0 0.0
  %1997 = vmatpush1.msra.mxu0 0.0
  %1998 = vmatprep.subr.mxu0 0.0
  %1999 = vmatpush1.msra.mxu0 %v1979
  %2000 = vmatprep.subr.mxu0 0.0
  %2001 = vmatpush1.msra.mxu0 %v1978
  %2002 = vmatprep.subr.mxu0 0.0
  %2003 = vmatpush1.msra.mxu0 %v1977
  %2004 = vmatprep.subr.mxu0 0.0
  %2005 = vmatpush1.msra.mxu0 %v1976
  %2006 = vmatprep.subr.mxu0 0.0
  %2007 = vmatpush1.msra.mxu0 %v1975
  %2008 = vmatprep.subr.mxu0 0.0
  %2009 = vmatpush1.msra.mxu0 %v1974
  %2010 = vmatprep.subr.mxu0 0.0
  %2011 = vmatpush1.msra.mxu0 %v1973
  %2012 = vmatprep.subr.mxu0 0.0
  %2013 = vmatpush2.msra.mxu0 0.0
  %2014 = vmatprep.subr.mxu0 0.0
  %2015 = vmatpush2.msra.mxu0 0.0
  %2016 = vmatprep.subr.mxu0 0.0
  %2017 = vmatpush2.msra.mxu0 0.0
  %2018 = vmatprep.subr.mxu0 0.0
  %2019 = vmatpush2.msra.mxu0 0.0
  %2020 = vmatprep.subr.mxu0 0.0
  %2021 = vmatpush2.msra.mxu0 0.0
  %2022 = vmatprep.subr.mxu0 0.0
  %2023 = vmatpush2.msra.mxu0 0.0
  %2024 = vmatprep.subr.mxu0 0.0
  %2025 = vmatpush2.msra.mxu0 0.0
  %2026 = vmatprep.subr.mxu0 0.0
  %2027 = vmatpush2.msra.mxu0 0.0
  %2028 = vmatprep.subr.mxu0 0.0
  %2029 = vmatpush2.msra.mxu0 0.0
  %2030 = vmatprep.subr.mxu0 0.0
  %2031 = vmatpush2.msra.mxu0 0.0
  %2032 = vmatprep.subr.mxu0 0.0
  %2033 = vmatpush2.msra.mxu0 0.0
  %2034 = vmatprep.subr.mxu0 0.0
  %2035 = vmatpush2.msra.mxu0 0.0
  %2036 = vmatprep.subr.mxu0 0.0
  %2037 = vmatpush2.msra.mxu0 0.0
  %2038 = vmatprep.subr.mxu0 0.0
  %2039 = vmatpush2.msra.mxu0 0.0
  %2040 = vmatprep.subr.mxu0 0.0
  %2041 = vmatpush2.msra.mxu0 0.0
  %2042 = vmatprep.subr.mxu0 0.0
  %2043 = vmatpush2.msra.mxu0 0.0
  %2044 = vmatprep.mubr.f32.mxu0 0.0
  %2045 = vmatmul.mubr.f32.gmra.mxu0 %v1877
  %v2046 = vpop.f32.mrf.mxu0
  %v2047 = vadd.f32 0.0, %v2046
  %v2048 = vpop.f32.mrf.mxu0
  %2049 = vmatprep.mubr.f32.mxu0 0.0
  %2050 = vmatmul.mubr.f32.gmra.mxu0 %v1880
  %v2051 = vpop.f32.mrf.mxu0
  %v2052 = vadd.f32 0.0, %v2051
  %v2053 = vpop.f32.mrf.mxu0
  %2054 = vmatprep.mubr.f32.mxu0 0.0
  %2055 = vmatmul.mubr.f32.gmra.mxu0 %v1883
  %v2056 = vpop.f32.mrf.mxu0
  %v2057 = vadd.f32 0.0, %v2056
  %v2058 = vpop.f32.mrf.mxu0
  %2059 = vmatprep.mubr.f32.mxu0 0.0
  %2060 = vmatmul.mubr.f32.gmra.mxu0 %v1886
  %v2061 = vpop.f32.mrf.mxu0
  %v2062 = vadd.f32 0.0, %v2061
  %v2063 = vpop.f32.mrf.mxu0
  %2064 = vdwg.mxu0
  %v2065 = vmul.f32 %v1955, 0.5
  %v2066 = vmul.f32 %v1960, 0.5
  %v2067 = vmul.f32 %v1965, 0.5
  %v2068 = vmul.f32 %v1970, 0.5
  %v2069 = vmul.f32 %v2047, 0.5
  %v2070 = vmul.f32 %v2052, 0.5
  %v2071 = vmul.f32 %v2057, 0.5
  %v2072 = vmul.f32 %v2062, 0.5
  %v2073 = vmul.f32 %v2065, %v2065
  %v2074 = vmul.f32 %v2066, %v2066
  %v2075 = vmul.f32 %v2067, %v2067
  %v2076 = vmul.f32 %v2068, %v2068
  %v2077 = vsub.f32 %v2069, %v2073
  %v2078 = vsub.f32 %v2070, %v2074
  %v2079 = vsub.f32 %v2071, %v2075
  %v2080 = vsub.f32 %v2072, %v2076
  %v2081 = vmax.f32 %v2077, 0.0
  %v2082 = vmax.f32 %v2078, 0.0
  %v2083 = vmax.f32 %v2079, 0.0
  %v2084 = vmax.f32 %v2080, 0.0
  %v2085 = vadd.f32 %v2081, 1e-05
  %v2086 = vadd.f32 %v2082, 1e-05
  %v2087 = vadd.f32 %v2083, 1e-05
  %v2088 = vadd.f32 %v2084, 1e-05
  %v2089 = vrsqrt.pop %v2085
  %v2090 = vrsqrt.pop %v2086
  %v2091 = vrsqrt.pop %v2087
  %v2092 = vrsqrt.pop %v2088
  %v2093 = vld [vmem:[%s23] sm:$0xff]
  %v2094 = vld [vmem:[%s23 + $0x8] sm:$0xff]
  %v2095 = vld [vmem:[%s23 + $0x10] sm:$0xff]
  %v2096 = vld [vmem:[%s23 + $0x18] sm:$0xf]
  %v2097 = vmul.f32 %v2089, %v2093
  %v2098 = vmul.f32 %v2090, %v2094
  %v2099 = vmul.f32 %v2091, %v2095
  %v2100 = vmul.f32 %v2092, %v2096
  %v2101 = vld [vmem:[%s25] sm:$0xff]
  %v2102 = vld [vmem:[%s25 + $0x8] sm:$0xff]
  %v2103 = vld [vmem:[%s25 + $0x10] sm:$0xff]
  %v2104 = vld [vmem:[%s25 + $0x18] sm:$0xf]
  %v2105 = vmul.f32 %v2065, %v2097
  %v2106 = vmul.f32 %v2066, %v2098
  %v2107 = vmul.f32 %v2067, %v2099
  %v2108 = vmul.f32 %v2068, %v2100
  %v2109 = vsub.f32 %v2101, %v2105
  %v2110 = vsub.f32 %v2102, %v2106
  %v2111 = vsub.f32 %v2103, %v2107
  %v2112 = vsub.f32 %v2104, %v2108
  %v2113 = vld [vmem:[%s29] sm:$0xff]
  %v2114 = vld [vmem:[%s29 + $0x8] sm:$0xff]
  %v2115 = vld [vmem:[%s29 + $0x10] sm:$0xff]
  %v2116 = vld [vmem:[%s29 + $0x18] sm:$0xff]
  %v2117 = vld [vmem:[%s29 + $0x20] sm:$0xff]
  %v2118 = vld [vmem:[%s29 + $0x28] sm:$0xff]
  %v2119 = vld [vmem:[%s29 + $0x30] sm:$0xff]
  %vm2120 = vcmask 228352
  %v2122 = vsel %vm2120, %v2113, 0
  %v2125 = vsel %vm2120, %v2114, 0
  %v2128 = vsel %vm2120, %v2115, 0
  %v2131 = vsel %vm2120, %v2116, 0
  %v2134 = vsel %vm2120, %v2117, 0
  %v2137 = vsel %vm2120, %v2118, 0
  %v2140 = vsel %vm2120, %v2119, 0
  %v2143 = vsel %vm694, %v2100, 0
  %2145 = vmatprep.subr.mxu0 0.0
  %2146 = vmatpush1.msra.mxu0 0.0
  %2147 = vmatprep.subr.mxu0 0.0
  %2148 = vmatpush1.msra.mxu0 0.0
  %2149 = vmatprep.subr.mxu0 0.0
  %2150 = vmatpush1.msra.mxu0 0.0
  %2151 = vmatprep.subr.mxu0 0.0
  %2152 = vmatpush1.msra.mxu0 0.0
  %2153 = vmatprep.subr.mxu0 0.0
  %2154 = vmatpush1.msra.mxu0 0.0
  %2155 = vmatprep.subr.mxu0 0.0
  %2156 = vmatpush1.msra.mxu0 0.0
  %2157 = vmatprep.subr.mxu0 0.0
  %2158 = vmatpush1.msra.mxu0 0.0
  %2159 = vmatprep.subr.mxu0 0.0
  %2160 = vmatpush1.msra.mxu0 0.0
  %2161 = vmatprep.subr.mxu0 0.0
  %2162 = vmatpush1.msra.mxu0 0.0
  %2163 = vmatprep.subr.mxu0 0.0
  %2164 = vmatpush1.msra.mxu0 0.0
  %2165 = vmatprep.subr.mxu0 0.0
  %2166 = vmatpush1.msra.mxu0 0.0
  %2167 = vmatprep.subr.mxu0 0.0
  %2168 = vmatpush1.msra.mxu0 0.0
  %2169 = vmatprep.subr.mxu0 0.0
  %2170 = vmatpush1.msra.mxu0 %v2143
  %2171 = vmatprep.subr.mxu0 0.0
  %2172 = vmatpush1.msra.mxu0 %v2099
  %2173 = vmatprep.subr.mxu0 0.0
  %2174 = vmatpush1.msra.mxu0 %v2098
  %2175 = vmatprep.subr.mxu0 0.0
  %2176 = vmatpush1.msra.mxu0 %v2097
  %2177 = vmatprep.subr.mxu0 0.0
  %2178 = vmatpush2.msra.mxu0 0.0
  %2179 = vmatprep.subr.mxu0 0.0
  %2180 = vmatpush2.msra.mxu0 0.0
  %2181 = vmatprep.subr.mxu0 0.0
  %2182 = vmatpush2.msra.mxu0 0.0
  %2183 = vmatprep.subr.mxu0 0.0
  %2184 = vmatpush2.msra.mxu0 0.0
  %2185 = vmatprep.subr.mxu0 0.0
  %2186 = vmatpush2.msra.mxu0 0.0
  %2187 = vmatprep.subr.mxu0 0.0
  %2188 = vmatpush2.msra.mxu0 0.0
  %2189 = vmatprep.subr.mxu0 0.0
  %2190 = vmatpush2.msra.mxu0 0.0
  %2191 = vmatprep.subr.mxu0 0.0
  %2192 = vmatpush2.msra.mxu0 0.0
  %2193 = vmatprep.subr.mxu0 0.0
  %2194 = vmatpush2.msra.mxu0 0.0
  %2195 = vmatprep.subr.mxu0 0.0
  %2196 = vmatpush2.msra.mxu0 0.0
  %2197 = vmatprep.subr.mxu0 0.0
  %2198 = vmatpush2.msra.mxu0 0.0
  %2199 = vmatprep.subr.mxu0 0.0
  %2200 = vmatpush2.msra.mxu0 0.0
  %2201 = vmatprep.subr.mxu0 0.0
  %2202 = vmatpush2.msra.mxu0 0.0
  %2203 = vmatprep.subr.mxu0 0.0
  %2204 = vmatpush2.msra.mxu0 0.0
  %2205 = vmatprep.subr.mxu0 0.0
  %2206 = vmatpush2.msra.mxu0 0.0
  %2207 = vmatprep.subr.mxu0 0.0
  %2208 = vmatpush2.msra.mxu0 0.0
  %2209 = vmatprep.mubr.f32.mxu0 0.0
  %2210 = vmatmul.mubr.f32.gmra.mxu0 %v2122
  %v2211 = vpop.f32.mrf.mxu0
  %v2212 = vadd.f32 0.0, %v2211
  %v2213 = vpop.f32.mrf.mxu0
  %2214 = vmatprep.mubr.f32.mxu0 0.0
  %2215 = vmatmul.mubr.f32.gmra.mxu0 %v2125
  %v2216 = vpop.f32.mrf.mxu0
  %v2217 = vadd.f32 0.0, %v2216
  %v2218 = vpop.f32.mrf.mxu0
  %2219 = vmatprep.mubr.f32.mxu0 0.0
  %2220 = vmatmul.mubr.f32.gmra.mxu0 %v2128
  %v2221 = vpop.f32.mrf.mxu0
  %v2222 = vadd.f32 0.0, %v2221
  %v2223 = vpop.f32.mrf.mxu0
  %2224 = vmatprep.mubr.f32.mxu0 0.0
  %2225 = vmatmul.mubr.f32.gmra.mxu0 %v2131
  %v2226 = vpop.f32.mrf.mxu0
  %v2227 = vadd.f32 0.0, %v2226
  %v2228 = vpop.f32.mrf.mxu0
  %2229 = vmatprep.mubr.f32.mxu0 0.0
  %2230 = vmatmul.mubr.f32.gmra.mxu0 %v2134
  %v2231 = vpop.f32.mrf.mxu0
  %v2232 = vadd.f32 0.0, %v2231
  %v2233 = vpop.f32.mrf.mxu0
  %2234 = vmatprep.mubr.f32.mxu0 0.0
  %2235 = vmatmul.mubr.f32.gmra.mxu0 %v2137
  %v2236 = vpop.f32.mrf.mxu0
  %v2237 = vadd.f32 0.0, %v2236
  %v2238 = vpop.f32.mrf.mxu0
  %2239 = vmatprep.mubr.f32.mxu0 0.0
  %2240 = vmatmul.mubr.f32.gmra.mxu0 %v2140
  %v2241 = vpop.f32.mrf.mxu0
  %v2242 = vadd.f32 0.0, %v2241
  %v2243 = vpop.f32.mrf.mxu0
  %2244 = vdwg.mxu0
  %v2245 = vmul.f32 %v1843, %v2212
  %v2246 = vmul.f32 %v1846, %v2217
  %v2247 = vmul.f32 %v1851, %v2222
  %v2248 = vmul.f32 %v1854, %v2227
  %v2249 = vmul.f32 %v1859, %v2232
  %v2250 = vmul.f32 %v1862, %v2237
  %v2251 = vmul.f32 %v1867, %v2242
  %v2253 = vsel %vm694, %v2112, 0
  %2255 = vmatprep.subr.mxu0 0.0
  %2256 = vmatpush1.msra.mxu0 0.0
  %2257 = vmatprep.subr.mxu0 0.0
  %2258 = vmatpush1.msra.mxu0 0.0
  %2259 = vmatprep.subr.mxu0 0.0
  %2260 = vmatpush1.msra.mxu0 0.0
  %2261 = vmatprep.subr.mxu0 0.0
  %2262 = vmatpush1.msra.mxu0 0.0
  %2263 = vmatprep.subr.mxu0 0.0
  %2264 = vmatpush1.msra.mxu0 0.0
  %2265 = vmatprep.subr.mxu0 0.0
  %2266 = vmatpush1.msra.mxu0 0.0
  %2267 = vmatprep.subr.mxu0 0.0
  %2268 = vmatpush1.msra.mxu0 0.0
  %2269 = vmatprep.subr.mxu0 0.0
  %2270 = vmatpush1.msra.mxu0 0.0
  %2271 = vmatprep.subr.mxu0 0.0
  %2272 = vmatpush1.msra.mxu0 0.0
  %2273 = vmatprep.subr.mxu0 0.0
  %2274 = vmatpush1.msra.mxu0 0.0
  %2275 = vmatprep.subr.mxu0 0.0
  %2276 = vmatpush1.msra.mxu0 0.0
  %2277 = vmatprep.subr.mxu0 0.0
  %2278 = vmatpush1.msra.mxu0 0.0
  %2279 = vmatprep.subr.mxu0 0.0
  %2280 = vmatpush1.msra.mxu0 %v2253
  %2281 = vmatprep.subr.mxu0 0.0
  %2282 = vmatpush1.msra.mxu0 %v2111
  %2283 = vmatprep.subr.mxu0 0.0
  %2284 = vmatpush1.msra.mxu0 %v2110
  %2285 = vmatprep.subr.mxu0 0.0
  %2286 = vmatpush1.msra.mxu0 %v2109
  %2287 = vmatprep.subr.mxu0 0.0
  %2288 = vmatpush2.msra.mxu0 0.0
  %2289 = vmatprep.subr.mxu0 0.0
  %2290 = vmatpush2.msra.mxu0 0.0
  %2291 = vmatprep.subr.mxu0 0.0
  %2292 = vmatpush2.msra.mxu0 0.0
  %2293 = vmatprep.subr.mxu0 0.0
  %2294 = vmatpush2.msra.mxu0 0.0
  %2295 = vmatprep.subr.mxu0 0.0
  %2296 = vmatpush2.msra.mxu0 0.0
  %2297 = vmatprep.subr.mxu0 0.0
  %2298 = vmatpush2.msra.mxu0 0.0
  %2299 = vmatprep.subr.mxu0 0.0
  %2300 = vmatpush2.msra.mxu0 0.0
  %2301 = vmatprep.subr.mxu0 0.0
  %2302 = vmatpush2.msra.mxu0 0.0
  %2303 = vmatprep.subr.mxu0 0.0
  %2304 = vmatpush2.msra.mxu0 0.0
  %2305 = vmatprep.subr.mxu0 0.0
  %2306 = vmatpush2.msra.mxu0 0.0
  %2307 = vmatprep.subr.mxu0 0.0
  %2308 = vmatpush2.msra.mxu0 0.0
  %2309 = vmatprep.subr.mxu0 0.0
  %2310 = vmatpush2.msra.mxu0 0.0
  %2311 = vmatprep.subr.mxu0 0.0
  %2312 = vmatpush2.msra.mxu0 0.0
  %2313 = vmatprep.subr.mxu0 0.0
  %2314 = vmatpush2.msra.mxu0 0.0
  %2315 = vmatprep.subr.mxu0 0.0
  %2316 = vmatpush2.msra.mxu0 0.0
  %2317 = vmatprep.subr.mxu0 0.0
  %2318 = vmatpush2.msra.mxu0 0.0
  %2319 = vmatprep.mubr.f32.mxu0 0.0
  %2320 = vmatmul.mubr.f32.gmra.mxu0 %v2122
  %v2321 = vpop.f32.mrf.mxu0
  %v2322 = vadd.f32 0.0, %v2321
  %v2323 = vpop.f32.mrf.mxu0
  %2324 = vmatprep.mubr.f32.mxu0 0.0
  %2325 = vmatmul.mubr.f32.gmra.mxu0 %v2125
  %v2326 = vpop.f32.mrf.mxu0
  %v2327 = vadd.f32 0.0, %v2326
  %v2328 = vpop.f32.mrf.mxu0
  %2329 = vmatprep.mubr.f32.mxu0 0.0
  %2330 = vmatmul.mubr.f32.gmra.mxu0 %v2128
  %v2331 = vpop.f32.mrf.mxu0
  %v2332 = vadd.f32 0.0, %v2331
  %v2333 = vpop.f32.mrf.mxu0
  %2334 = vmatprep.mubr.f32.mxu0 0.0
  %2335 = vmatmul.mubr.f32.gmra.mxu0 %v2131
  %v2336 = vpop.f32.mrf.mxu0
  %v2337 = vadd.f32 0.0, %v2336
  %v2338 = vpop.f32.mrf.mxu0
  %2339 = vmatprep.mubr.f32.mxu0 0.0
  %2340 = vmatmul.mubr.f32.gmra.mxu0 %v2134
  %v2341 = vpop.f32.mrf.mxu0
  %v2342 = vadd.f32 0.0, %v2341
  %v2343 = vpop.f32.mrf.mxu0
  %2344 = vmatprep.mubr.f32.mxu0 0.0
  %2345 = vmatmul.mubr.f32.gmra.mxu0 %v2137
  %v2346 = vpop.f32.mrf.mxu0
  %v2347 = vadd.f32 0.0, %v2346
  %v2348 = vpop.f32.mrf.mxu0
  %2349 = vmatprep.mubr.f32.mxu0 0.0
  %2350 = vmatmul.mubr.f32.gmra.mxu0 %v2140
  %v2351 = vpop.f32.mrf.mxu0
  %v2352 = vadd.f32 0.0, %v2351
  %v2353 = vpop.f32.mrf.mxu0
  %2354 = vdwg.mxu0
  %v2355 = vadd.f32 %v2245, %v2322
  %v2356 = vadd.f32 %v2246, %v2327
  %v2357 = vadd.f32 %v2247, %v2332
  %v2358 = vadd.f32 %v2248, %v2337
  %v2359 = vadd.f32 %v2249, %v2342
  %v2360 = vadd.f32 %v2250, %v2347
  %v2361 = vadd.f32 %v2251, %v2352
  %v2362 = vmax.f32 %v2355, 0.0
  %v2363 = vmax.f32 %v2356, 0.0
  %v2364 = vmax.f32 %v2357, 0.0
  %v2365 = vmax.f32 %v2358, 0.0
  %v2366 = vmax.f32 %v2359, 0.0
  %v2367 = vmax.f32 %v2360, 0.0
  %v2368 = vmax.f32 %v2361, 0.0
  %2376 = vrot.lane.b32.xlu0 %v2362, 96
  %v2377 = vpop.permute.xlu0 %2376
  %2378 = vrot.lane.b32.xlu0 %v2363, 96
  %v2379 = vpop.permute.xlu0 %2378
  %2380 = vrot.lane.b32.xlu0 %v2364, 96
  %v2381 = vpop.permute.xlu0 %2380
  %2382 = vrot.lane.b32.xlu0 %v2365, 96
  %v2383 = vpop.permute.xlu0 %2382
  %2384 = vrot.lane.b32.xlu0 %v2366, 96
  %v2385 = vpop.permute.xlu0 %2384
  %2386 = vrot.lane.b32.xlu0 %v2367, 96
  %v2387 = vpop.permute.xlu0 %2386
  %2388 = vrot.lane.b32.xlu0 %v2368, 96
  %v2389 = vpop.permute.xlu0 %2388
  %v2397 = vsel %vm784, %v1234, %v2377
  %v2398 = vsel %vm784, %v1236, %v2379
  %v2399 = vsel %vm784, %v1238, %v2381
  %v2400 = vsel %vm784, %v1240, %v2383
  %v2401 = vsel %vm784, %v1242, %v2385
  %v2402 = vsel %vm784, %v1244, %v2387
  %v2403 = vsel %vm784, %v1246, %v2389
  %v2404 = vpack.c.bf16 %v1235, %v1233
  %v2405 = vpack.c.bf16 %v2398, %v2397
  %v2406 = vpack.c.bf16 %v1239, %v1237
  %v2407 = vpack.c.bf16 %v2400, %v2399
  %v2408 = vpack.c.bf16 %v1243, %v1241
  %v2409 = vpack.c.bf16 %v2402, %v2401
  %v2410 = vpack.c.bf16 %v1245, %v1245
  %v2411 = vpack.c.bf16 %v2403, %v2403
  %v2412 = vld [vmem:[%s31] sm:$0xf]
  %v2413 = vld [vmem:[%s31 + $0x4] sm:$0xf]
  %v2414 = vld [vmem:[%s31 + $0x8] sm:$0xf]
  %v2415 = vld [vmem:[%s31 + $0xc] sm:$0x3]
  %v2420 = vunpack.c.l.b16 %v2412
  %v2421 = vunpack.c.l.b16 %v2413
  %v2422 = vunpack.c.l.b16 %v2414
  %v2423 = vunpack.c.l.b16 %v2415
  %v2424 = vpack.c.b16 %v2421, %v2420
  %v2425 = vpack.c.b16 %v2423, %v2422
  %v2427 = vsel %vm532, %v2424, 0
  %v2430 = vsel %vm532, %v2425, 0
  %v2433 = vsel %vm694, %v2410, 0
  %v2436 = vsel %vm694, %v2411, 0
  %2438 = vmatprep.subr.bf16.mxu0 0
  %2439 = vmatpush1.bf16.msra.mxu0 0
  %2440 = vmatprep.subr.bf16.mxu0 0
  %2441 = vmatpush1.bf16.msra.mxu0 0
  %2442 = vmatprep.subr.bf16.mxu0 0
  %2443 = vmatpush1.bf16.msra.mxu0 0
  %2444 = vmatprep.subr.bf16.mxu0 0
  %2445 = vmatpush1.bf16.msra.mxu0 0
  %2446 = vmatprep.subr.bf16.mxu0 %v2436
  %2447 = vmatpush1.bf16.msra.mxu0 %v2433
  %2448 = vmatprep.subr.bf16.mxu0 %v2409
  %2449 = vmatpush1.bf16.msra.mxu0 %v2408
  %2450 = vmatprep.subr.bf16.mxu0 %v2407
  %2451 = vmatpush1.bf16.msra.mxu0 %v2406
  %2452 = vmatprep.subr.bf16.mxu0 %v2405
  %2453 = vmatpush1.bf16.msra.mxu0 %v2404
  %2454 = vmatprep.subr.bf16.mxu0 0
  %2455 = vmatpush2.bf16.msra.mxu0 0
  %2456 = vmatprep.subr.bf16.mxu0 0
  %2457 = vmatpush2.bf16.msra.mxu0 0
  %2458 = vmatprep.subr.bf16.mxu0 0
  %2459 = vmatpush2.bf16.msra.mxu0 0
  %2460 = vmatprep.subr.bf16.mxu0 0
  %2461 = vmatpush2.bf16.msra.mxu0 0
  %2462 = vmatprep.subr.bf16.mxu0 0
  %2463 = vmatpush2.bf16.msra.mxu0 0
  %2464 = vmatprep.subr.bf16.mxu0 0
  %2465 = vmatpush2.bf16.msra.mxu0 0
  %2466 = vmatprep.subr.bf16.mxu0 0
  %2467 = vmatpush2.bf16.msra.mxu0 0
  %2468 = vmatprep.subr.bf16.mxu0 0
  %2469 = vmatpush2.bf16.msra.mxu0 0
  %2470 = vmatprep.mubr.bf16.mxu0 0
  %2471 = vmatmul.mubr.bf16.gmra.mxu0 %v2427
  %v2472 = vpop.f32.mrf.mxu0
  %v2473 = vadd.f32 0.0, %v2472
  %v2474 = vpop.f32.mrf.mxu0
  %v2475 = vadd.f32 0.0, %v2474
  %v2476 = vpop.f32.mrf.mxu0
  %v2477 = vadd.f32 0.0, %v2476
  %v2478 = vpop.f32.mrf.mxu0
  %v2479 = vadd.f32 0.0, %v2478
  %2480 = vmatprep.mubr.bf16.mxu0 0
  %2481 = vmatmul.mubr.bf16.gmra.mxu0 %v2430
  %v2482 = vpop.f32.mrf.mxu0
  %v2483 = vadd.f32 0.0, %v2482
  %v2484 = vpop.f32.mrf.mxu0
  %v2485 = vadd.f32 0.0, %v2484
  %v2486 = vpop.f32.mrf.mxu0
  %v2487 = vadd.f32 0.0, %v2486
  %v2488 = vpop.f32.mrf.mxu0
  %v2489 = vadd.f32 0.0, %v2488
  %2490 = vdwg.mxu0
  %s2491 = scalar_lea.vmem %s31, 16
  %v2492 = vld [vmem:[%s2491] sm:$0xf]
  %v2493 = vld [vmem:[%s2491 + $0x4] sm:$0xf]
  %v2494 = vld [vmem:[%s2491 + $0x8] sm:$0xf]
  %v2495 = vld [vmem:[%s2491 + $0xc] sm:$0x3]
  %v2500 = vunpack.c.l.b16 %v2492
  %v2501 = vunpack.c.l.b16 %v2493
  %v2502 = vunpack.c.l.b16 %v2494
  %v2503 = vunpack.c.l.b16 %v2495
  %v2504 = vpack.c.b16 %v2501, %v2500
  %v2505 = vpack.c.b16 %v2503, %v2502
  %v2507 = vsel %vm532, %v2504, 0
  %v2510 = vsel %vm532, %v2505, 0
  %2512 = vmatprep.subr.bf16.mxu0 0
  %2513 = vmatpush1.bf16.msra.mxu0 0
  %2514 = vmatprep.subr.bf16.mxu0 0
  %2515 = vmatpush1.bf16.msra.mxu0 0
  %2516 = vmatprep.subr.bf16.mxu0 0
  %2517 = vmatpush1.bf16.msra.mxu0 0
  %2518 = vmatprep.subr.bf16.mxu0 0
  %2519 = vmatpush1.bf16.msra.mxu0 0
  %2520 = vmatprep.subr.bf16.mxu0 %v2436
  %2521 = vmatpush1.bf16.msra.mxu0 %v2433
  %2522 = vmatprep.subr.bf16.mxu0 %v2409
  %2523 = vmatpush1.bf16.msra.mxu0 %v2408
  %2524 = vmatprep.subr.bf16.mxu0 %v2407
  %2525 = vmatpush1.bf16.msra.mxu0 %v2406
  %2526 = vmatprep.subr.bf16.mxu0 %v2405
  %2527 = vmatpush1.bf16.msra.mxu0 %v2404
  %2528 = vmatprep.subr.bf16.mxu0 0
  %2529 = vmatpush2.bf16.msra.mxu0 0
  %2530 = vmatprep.subr.bf16.mxu0 0
  %2531 = vmatpush2.bf16.msra.mxu0 0
  %2532 = vmatprep.subr.bf16.mxu0 0
  %2533 = vmatpush2.bf16.msra.mxu0 0
  %2534 = vmatprep.subr.bf16.mxu0 0
  %2535 = vmatpush2.bf16.msra.mxu0 0
  %2536 = vmatprep.subr.bf16.mxu0 0
  %2537 = vmatpush2.bf16.msra.mxu0 0
  %2538 = vmatprep.subr.bf16.mxu0 0
  %2539 = vmatpush2.bf16.msra.mxu0 0
  %2540 = vmatprep.subr.bf16.mxu0 0
  %2541 = vmatpush2.bf16.msra.mxu0 0
  %2542 = vmatprep.subr.bf16.mxu0 0
  %2543 = vmatpush2.bf16.msra.mxu0 0
  %2544 = vmatprep.mubr.bf16.mxu0 0
  %2545 = vmatmul.mubr.bf16.gmra.mxu0 %v2507
  %v2546 = vpop.f32.mrf.mxu0
  %v2547 = vadd.f32 0.0, %v2546
  %v2548 = vpop.f32.mrf.mxu0
  %v2549 = vadd.f32 0.0, %v2548
  %v2550 = vpop.f32.mrf.mxu0
  %v2551 = vadd.f32 0.0, %v2550
  %v2552 = vpop.f32.mrf.mxu0
  %v2553 = vadd.f32 0.0, %v2552
  %2554 = vmatprep.mubr.bf16.mxu0 0
  %2555 = vmatmul.mubr.bf16.gmra.mxu0 %v2510
  %v2556 = vpop.f32.mrf.mxu0
  %v2557 = vadd.f32 0.0, %v2556
  %v2558 = vpop.f32.mrf.mxu0
  %v2559 = vadd.f32 0.0, %v2558
  %v2560 = vpop.f32.mrf.mxu0
  %v2561 = vadd.f32 0.0, %v2560
  %v2562 = vpop.f32.mrf.mxu0
  %v2563 = vadd.f32 0.0, %v2562
  %2564 = vdwg.mxu0
  %s2565 = scalar_lea.vmem %s31, 32
  %v2566 = vld [vmem:[%s2565] sm:$0xf]
  %v2567 = vld [vmem:[%s2565 + $0x4] sm:$0xf]
  %v2568 = vld [vmem:[%s2565 + $0x8] sm:$0xf]
  %v2569 = vld [vmem:[%s2565 + $0xc] sm:$0x3]
  %v2574 = vunpack.c.l.b16 %v2566
  %v2575 = vunpack.c.l.b16 %v2567
  %v2576 = vunpack.c.l.b16 %v2568
  %v2577 = vunpack.c.l.b16 %v2569
  %v2578 = vpack.c.b16 %v2575, %v2574
  %v2579 = vpack.c.b16 %v2577, %v2576
  %v2581 = vsel %vm532, %v2578, 0
  %v2584 = vsel %vm532, %v2579, 0
  %2586 = vmatprep.subr.bf16.mxu0 0
  %2587 = vmatpush1.bf16.msra.mxu0 0
  %2588 = vmatprep.subr.bf16.mxu0 0
  %2589 = vmatpush1.bf16.msra.mxu0 0
  %2590 = vmatprep.subr.bf16.mxu0 0
  %2591 = vmatpush1.bf16.msra.mxu0 0
  %2592 = vmatprep.subr.bf16.mxu0 0
  %2593 = vmatpush1.bf16.msra.mxu0 0
  %2594 = vmatprep.subr.bf16.mxu0 %v2436
  %2595 = vmatpush1.bf16.msra.mxu0 %v2433
  %2596 = vmatprep.subr.bf16.mxu0 %v2409
  %2597 = vmatpush1.bf16.msra.mxu0 %v2408
  %2598 = vmatprep.subr.bf16.mxu0 %v2407
  %2599 = vmatpush1.bf16.msra.mxu0 %v2406
  %2600 = vmatprep.subr.bf16.mxu0 %v2405
  %2601 = vmatpush1.bf16.msra.mxu0 %v2404
  %2602 = vmatprep.subr.bf16.mxu0 0
  %2603 = vmatpush2.bf16.msra.mxu0 0
  %2604 = vmatprep.subr.bf16.mxu0 0
  %2605 = vmatpush2.bf16.msra.mxu0 0
  %2606 = vmatprep.subr.bf16.mxu0 0
  %2607 = vmatpush2.bf16.msra.mxu0 0
  %2608 = vmatprep.subr.bf16.mxu0 0
  %2609 = vmatpush2.bf16.msra.mxu0 0
  %2610 = vmatprep.subr.bf16.mxu0 0
  %2611 = vmatpush2.bf16.msra.mxu0 0
  %2612 = vmatprep.subr.bf16.mxu0 0
  %2613 = vmatpush2.bf16.msra.mxu0 0
  %2614 = vmatprep.subr.bf16.mxu0 0
  %2615 = vmatpush2.bf16.msra.mxu0 0
  %2616 = vmatprep.subr.bf16.mxu0 0
  %2617 = vmatpush2.bf16.msra.mxu0 0
  %2618 = vmatprep.mubr.bf16.mxu0 0
  %2619 = vmatmul.mubr.bf16.gmra.mxu0 %v2581
  %v2620 = vpop.f32.mrf.mxu0
  %v2621 = vadd.f32 0.0, %v2620
  %v2622 = vpop.f32.mrf.mxu0
  %v2623 = vadd.f32 0.0, %v2622
  %v2624 = vpop.f32.mrf.mxu0
  %v2625 = vadd.f32 0.0, %v2624
  %v2626 = vpop.f32.mrf.mxu0
  %v2627 = vadd.f32 0.0, %v2626
  %2628 = vmatprep.mubr.bf16.mxu0 0
  %2629 = vmatmul.mubr.bf16.gmra.mxu0 %v2584
  %v2630 = vpop.f32.mrf.mxu0
  %v2631 = vadd.f32 0.0, %v2630
  %v2632 = vpop.f32.mrf.mxu0
  %v2633 = vadd.f32 0.0, %v2632
  %v2634 = vpop.f32.mrf.mxu0
  %v2635 = vadd.f32 0.0, %v2634
  %v2636 = vpop.f32.mrf.mxu0
  %v2637 = vadd.f32 0.0, %v2636
  %2638 = vdwg.mxu0
  %2647 = vrot.lane.b32.xlu0 %v2547, 124
  %v2648 = vpop.permute.xlu0 %2647
  %2649 = vrot.lane.b32.xlu0 %v2549, 124
  %v2650 = vpop.permute.xlu0 %2649
  %2651 = vrot.lane.b32.xlu0 %v2551, 124
  %v2652 = vpop.permute.xlu0 %2651
  %2653 = vrot.lane.b32.xlu0 %v2553, 124
  %v2654 = vpop.permute.xlu0 %2653
  %2655 = vrot.lane.b32.xlu0 %v2557, 124
  %v2656 = vpop.permute.xlu0 %2655
  %2657 = vrot.lane.b32.xlu0 %v2559, 124
  %v2658 = vpop.permute.xlu0 %2657
  %2659 = vrot.lane.b32.xlu0 %v2561, 124
  %v2660 = vpop.permute.xlu0 %2659
  %2661 = vrot.lane.b32.xlu0 %v2563, 124
  %v2662 = vpop.permute.xlu0 %2661
  %vm2663 = vcmask 1014784
  %v2664 = vsel %vm2663, %v2648, %v2650
  %v2665 = vsel %vm2663, %v2652, %v2654
  %v2666 = vsel %vm2663, %v2656, %v2658
  %v2667 = vsel %vm2663, %v2660, %v2662
  %2688 = vrot.lane.b32.xlu0 %v2621, 120
  %v2689 = vpop.permute.xlu0 %2688
  %2690 = vrot.lane.b32.xlu0 %v2623, 120
  %v2691 = vpop.permute.xlu0 %2690
  %2692 = vrot.lane.b32.xlu0 %v2625, 120
  %v2693 = vpop.permute.xlu0 %2692
  %2694 = vrot.lane.b32.xlu0 %v2627, 120
  %v2695 = vpop.permute.xlu0 %2694
  %2696 = vrot.lane.b32.xlu0 %v2631, 120
  %v2697 = vpop.permute.xlu0 %2696
  %2698 = vrot.lane.b32.xlu0 %v2633, 120
  %v2699 = vpop.permute.xlu0 %2698
  %2700 = vrot.lane.b32.xlu0 %v2635, 120
  %v2701 = vpop.permute.xlu0 %2700
  %2702 = vrot.lane.b32.xlu0 %v2637, 120
  %v2703 = vpop.permute.xlu0 %2702
  %vm2704 = vcmask 982016
  %v2705 = vsel %vm2704, %v2689, %v2691
  %v2706 = vsel %vm2704, %v2693, %v2695
  %v2707 = vsel %vm2704, %v2697, %v2699
  %v2708 = vsel %vm2704, %v2701, %v2703
  %v2721 = vsel %vm2663, %v2475, %v2648
  %v2722 = vsel %vm2663, %v2479, %v2652
  %v2723 = vsel %vm2663, %v2485, %v2656
  %v2724 = vsel %vm2663, %v2489, %v2660
  %v2725 = vsel %vm2704, %v2650, %v2689
  %v2726 = vsel %vm2704, %v2654, %v2693
  %v2727 = vsel %vm2704, %v2658, %v2697
  %v2728 = vsel %vm2704, %v2662, %v2701
  %v2729 = vld [vmem:[%s33] sm:$0xff]
  %v2730 = vld [vmem:[%s33 + $0x8] sm:$0xff]
  %v2731 = vld [vmem:[%s33 + $0x10] sm:$0xff]
  %v2732 = vld [vmem:[%s33 + $0x18] sm:$0xff]
  %v2733 = vld [vmem:[%s33 + $0x20] sm:$0xff]
  %v2734 = vld [vmem:[%s33 + $0x28] sm:$0xff]
  %v2735 = vld [vmem:[%s33 + $0x30] sm:$0xff]
  %v2736 = vld [vmem:[%s33 + $0x38] sm:$0xff]
  %v2737 = vld [vmem:[%s33 + $0x40] sm:$0xff]
  %v2738 = vld [vmem:[%s33 + $0x48] sm:$0xff]
  %v2739 = vld [vmem:[%s33 + $0x50] sm:$0xff]
  %v2740 = vld [vmem:[%s33 + $0x58] sm:$0xff]
  %v2741 = vld [vmem:[%s33 + $0x60] sm:$0xff]
  %v2742 = vld [vmem:[%s33 + $0x68] sm:$0xff]
  %v2743 = vld [vmem:[%s33 + $0x70] sm:$0xff]
  %v2744 = vld [vmem:[%s33 + $0x78] sm:$0xff]
  %v2745 = vld [vmem:[%s33 + $0x80] sm:$0xff]
  %v2746 = vld [vmem:[%s33 + $0x88] sm:$0xff]
  %v2747 = vld [vmem:[%s33 + $0x90] sm:$0xff]
  %v2748 = vld [vmem:[%s33 + $0x98] sm:$0xff]
  %v2749 = vld [vmem:[%s33 + $0xa0] sm:$0xff]
  %v2750 = vld [vmem:[%s33 + $0xa8] sm:$0xff]
  %v2751 = vld [vmem:[%s33 + $0xb0] sm:$0xff]
  %v2752 = vld [vmem:[%s33 + $0xb8] sm:$0xff]
  %v2753 = vld [vmem:[%s33 + $0xc0] sm:$0xff]
  %v2754 = vld [vmem:[%s33 + $0xc8] sm:$0xff]
  %v2755 = vld [vmem:[%s33 + $0xd0] sm:$0xff]
  %v2756 = vld [vmem:[%s33 + $0xd8] sm:$0xff]
  %v2757 = vld [vmem:[%s33 + $0xe0] sm:$0xff]
  %v2758 = vld [vmem:[%s33 + $0xe8] sm:$0xff]
  %v2759 = vld [vmem:[%s33 + $0xf0] sm:$0xff]
  %v2760 = vld [vmem:[%s33 + $0xf8] sm:$0xff]
  %v2761 = vld [vmem:[%s33 + $0x100] sm:$0xff]
  %v2762 = vld [vmem:[%s33 + $0x108] sm:$0xff]
  %v2763 = vld [vmem:[%s33 + $0x110] sm:$0xff]
  %v2764 = vld [vmem:[%s33 + $0x118] sm:$0xff]
  %v2765 = vld [vmem:[%s33 + $0x120] sm:$0xff]
  %v2766 = vld [vmem:[%s33 + $0x128] sm:$0xff]
  %v2767 = vld [vmem:[%s33 + $0x130] sm:$0xff]
  %v2768 = vld [vmem:[%s33 + $0x138] sm:$0xff]
  %v2769 = vld [vmem:[%s33 + $0x140] sm:$0xff]
  %v2770 = vld [vmem:[%s33 + $0x148] sm:$0xff]
  %v2771 = vld [vmem:[%s33 + $0x150] sm:$0xff]
  %v2772 = vld [vmem:[%s33 + $0x158] sm:$0xff]
  %v2773 = vld [vmem:[%s33 + $0x160] sm:$0xff]
  %v2774 = vld [vmem:[%s33 + $0x168] sm:$0xff]
  %v2775 = vld [vmem:[%s33 + $0x170] sm:$0xff]
  %v2776 = vld [vmem:[%s33 + $0x178] sm:$0xff]
  %v2777 = vld [vmem:[%s33 + $0x180] sm:$0xff]
  %v2778 = vld [vmem:[%s33 + $0x188] sm:$0xff]
  %v2779 = vld [vmem:[%s33 + $0x190] sm:$0xff]
  %v2780 = vld [vmem:[%s33 + $0x198] sm:$0xff]
  %v2781 = vld [vmem:[%s33 + $0x1a0] sm:$0xff]
  %v2782 = vld [vmem:[%s33 + $0x1a8] sm:$0xff]
  %v2783 = vld [vmem:[%s33 + $0x1b0] sm:$0xff]
  %v2784 = vld [vmem:[%s33 + $0x1b8] sm:$0xff]
  %v2785 = vld [vmem:[%s33 + $0x1c0] sm:$0xff]
  %v2786 = vld [vmem:[%s33 + $0x1c8] sm:$0xff]
  %v2787 = vld [vmem:[%s33 + $0x1d0] sm:$0xff]
  %v2788 = vld [vmem:[%s33 + $0x1d8] sm:$0xff]
  %v2789 = vld [vmem:[%s33 + $0x1e0] sm:$0xff]
  %v2790 = vld [vmem:[%s33 + $0x1e8] sm:$0xff]
  %v2791 = vld [vmem:[%s33 + $0x1f0] sm:$0xff]
  %v2792 = vld [vmem:[%s33 + $0x1f8] sm:$0xff]
  %v2793 = vld [vmem:[%s33 + $0x200] sm:$0xff]
  %v2794 = vld [vmem:[%s33 + $0x208] sm:$0xff]
  %v2795 = vld [vmem:[%s33 + $0x210] sm:$0xff]
  %v2796 = vld [vmem:[%s33 + $0x218] sm:$0xff]
  %v2797 = vld [vmem:[%s33 + $0x220] sm:$0xff]
  %v2798 = vld [vmem:[%s33 + $0x228] sm:$0xff]
  %v2799 = vld [vmem:[%s33 + $0x230] sm:$0xff]
  %v2800 = vld [vmem:[%s33 + $0x238] sm:$0xff]
  %v2801 = vld [vmem:[%s33 + $0x240] sm:$0xff]
  %v2802 = vld [vmem:[%s33 + $0x248] sm:$0xff]
  %v2803 = vld [vmem:[%s33 + $0x250] sm:$0xff]
  %v2804 = vld [vmem:[%s33 + $0x258] sm:$0xff]
  %v2805 = vld [vmem:[%s33 + $0x260] sm:$0xff]
  %v2806 = vld [vmem:[%s33 + $0x268] sm:$0xff]
  %v2807 = vld [vmem:[%s33 + $0x270] sm:$0xff]
  %v2808 = vld [vmem:[%s33 + $0x278] sm:$0xff]
  %v2809 = vld [vmem:[%s33 + $0x280] sm:$0xff]
  %v2810 = vld [vmem:[%s33 + $0x288] sm:$0xff]
  %v2811 = vld [vmem:[%s33 + $0x290] sm:$0xff]
  %v2812 = vld [vmem:[%s33 + $0x298] sm:$0xff]
  %v2813 = vld [vmem:[%s33 + $0x2a0] sm:$0xff]
  %v2814 = vld [vmem:[%s33 + $0x2a8] sm:$0xff]
  %v2815 = vld [vmem:[%s33 + $0x2b0] sm:$0xff]
  %v2816 = vld [vmem:[%s33 + $0x2b8] sm:$0xff]
  %v2817 = vld [vmem:[%s33 + $0x2c0] sm:$0xff]
  %v2818 = vld [vmem:[%s33 + $0x2c8] sm:$0xff]
  %v2819 = vld [vmem:[%s33 + $0x2d0] sm:$0xff]
  %v2820 = vld [vmem:[%s33 + $0x2d8] sm:$0xff]
  %v2821 = vld [vmem:[%s33 + $0x2e0] sm:$0xff]
  %v2822 = vld [vmem:[%s33 + $0x2e8] sm:$0xff]
  %v2823 = vld [vmem:[%s33 + $0x2f0] sm:$0x33]
  %v2824 = vpack.c.bf16 %v2477, %v2473
  %v2825 = vpack.c.bf16 %v2722, %v2721
  %v2826 = vpack.c.bf16 %v2665, %v2664
  %v2827 = vpack.c.bf16 %v2726, %v2725
  %v2828 = vpack.c.bf16 %v2706, %v2705
  %v2829 = vpack.c.bf16 %v2695, %v2691
  %v2830 = vpack.c.bf16 %v2487, %v2483
  %v2831 = vpack.c.bf16 %v2724, %v2723
  %v2832 = vpack.c.bf16 %v2667, %v2666
  %v2833 = vpack.c.bf16 %v2728, %v2727
  %v2834 = vpack.c.bf16 %v2708, %v2707
  %v2835 = vpack.c.bf16 %v2703, %v2699
  %v2931 = vunpack.c.l.b16 %v2729
  %v2932 = vunpack.c.h.b16 %v2729
  %v2933 = vunpack.c.l.b16 %v2730
  %v2934 = vunpack.c.h.b16 %v2730
  %v2935 = vunpack.c.l.b16 %v2731
  %v2936 = vunpack.c.h.b16 %v2731
  %v2937 = vunpack.c.l.b16 %v2732
  %v2938 = vunpack.c.h.b16 %v2732
  %v2939 = vunpack.c.l.b16 %v2733
  %v2940 = vunpack.c.h.b16 %v2733
  %v2941 = vunpack.c.l.b16 %v2734
  %v2942 = vunpack.c.h.b16 %v2734
  %v2943 = vunpack.c.l.b16 %v2735
  %v2944 = vunpack.c.h.b16 %v2735
  %v2945 = vunpack.c.l.b16 %v2736
  %v2946 = vunpack.c.h.b16 %v2736
  %v2947 = vunpack.c.l.b16 %v2737
  %v2948 = vunpack.c.h.b16 %v2737
  %v2949 = vunpack.c.l.b16 %v2738
  %v2950 = vunpack.c.h.b16 %v2738
  %v2951 = vunpack.c.l.b16 %v2739
  %v2952 = vunpack.c.h.b16 %v2739
  %v2953 = vunpack.c.l.b16 %v2740
  %v2954 = vunpack.c.h.b16 %v2740
  %v2955 = vunpack.c.l.b16 %v2741
  %v2956 = vunpack.c.h.b16 %v2741
  %v2957 = vunpack.c.l.b16 %v2742
  %v2958 = vunpack.c.h.b16 %v2742
  %v2959 = vunpack.c.l.b16 %v2743
  %v2960 = vunpack.c.h.b16 %v2743
  %v2961 = vunpack.c.l.b16 %v2744
  %v2962 = vunpack.c.h.b16 %v2744
  %v2963 = vunpack.c.l.b16 %v2745
  %v2964 = vunpack.c.h.b16 %v2745
  %v2965 = vunpack.c.l.b16 %v2746
  %v2966 = vunpack.c.h.b16 %v2746
  %v2967 = vunpack.c.l.b16 %v2747
  %v2968 = vunpack.c.h.b16 %v2747
  %v2969 = vunpack.c.l.b16 %v2748
  %v2970 = vunpack.c.h.b16 %v2748
  %v2971 = vunpack.c.l.b16 %v2749
  %v2972 = vunpack.c.h.b16 %v2749
  %v2973 = vunpack.c.l.b16 %v2750
  %v2974 = vunpack.c.h.b16 %v2750
  %v2975 = vunpack.c.l.b16 %v2751
  %v2976 = vunpack.c.h.b16 %v2751
  %v2977 = vunpack.c.l.b16 %v2752
  %v2978 = vunpack.c.h.b16 %v2752
  %v2979 = vunpack.c.l.b16 %v2753
  %v2980 = vunpack.c.h.b16 %v2753
  %v2981 = vunpack.c.l.b16 %v2754
  %v2982 = vunpack.c.h.b16 %v2754
  %v2983 = vunpack.c.l.b16 %v2755
  %v2984 = vunpack.c.h.b16 %v2755
  %v2985 = vunpack.c.l.b16 %v2756
  %v2986 = vunpack.c.h.b16 %v2756
  %v2987 = vunpack.c.l.b16 %v2757
  %v2988 = vunpack.c.h.b16 %v2757
  %v2989 = vunpack.c.l.b16 %v2758
  %v2990 = vunpack.c.h.b16 %v2758
  %v2991 = vunpack.c.l.b16 %v2759
  %v2992 = vunpack.c.h.b16 %v2759
  %v2993 = vunpack.c.l.b16 %v2760
  %v2994 = vunpack.c.h.b16 %v2760
  %v2995 = vunpack.c.l.b16 %v2761
  %v2996 = vunpack.c.h.b16 %v2761
  %v2997 = vunpack.c.l.b16 %v2762
  %v2998 = vunpack.c.h.b16 %v2762
  %v2999 = vunpack.c.l.b16 %v2763
  %v3000 = vunpack.c.h.b16 %v2763
  %v3001 = vunpack.c.l.b16 %v2764
  %v3002 = vunpack.c.h.b16 %v2764
  %v3003 = vunpack.c.l.b16 %v2765
  %v3004 = vunpack.c.h.b16 %v2765
  %v3005 = vunpack.c.l.b16 %v2766
  %v3006 = vunpack.c.h.b16 %v2766
  %v3007 = vunpack.c.l.b16 %v2767
  %v3008 = vunpack.c.h.b16 %v2767
  %v3009 = vunpack.c.l.b16 %v2768
  %v3010 = vunpack.c.h.b16 %v2768
  %v3011 = vunpack.c.l.b16 %v2769
  %v3012 = vunpack.c.h.b16 %v2769
  %v3013 = vunpack.c.l.b16 %v2770
  %v3014 = vunpack.c.h.b16 %v2770
  %v3015 = vunpack.c.l.b16 %v2771
  %v3016 = vunpack.c.h.b16 %v2771
  %v3017 = vunpack.c.l.b16 %v2772
  %v3018 = vunpack.c.h.b16 %v2772
  %v3019 = vunpack.c.l.b16 %v2773
  %v3020 = vunpack.c.h.b16 %v2773
  %v3021 = vunpack.c.l.b16 %v2774
  %v3022 = vunpack.c.h.b16 %v2774
  %v3023 = vunpack.c.l.b16 %v2775
  %v3024 = vunpack.c.h.b16 %v2775
  %v3025 = vunpack.c.l.b16 %v2776
  %v3026 = vunpack.c.h.b16 %v2776
  %v3027 = vunpack.c.l.b16 %v2777
  %v3028 = vunpack.c.h.b16 %v2777
  %v3029 = vunpack.c.l.b16 %v2778
  %v3030 = vunpack.c.h.b16 %v2778
  %v3031 = vunpack.c.l.b16 %v2779
  %v3032 = vunpack.c.h.b16 %v2779
  %v3033 = vunpack.c.l.b16 %v2780
  %v3034 = vunpack.c.h.b16 %v2780
  %v3035 = vunpack.c.l.b16 %v2781
  %v3036 = vunpack.c.h.b16 %v2781
  %v3037 = vunpack.c.l.b16 %v2782
  %v3038 = vunpack.c.h.b16 %v2782
  %v3039 = vunpack.c.l.b16 %v2783
  %v3040 = vunpack.c.h.b16 %v2783
  %v3041 = vunpack.c.l.b16 %v2784
  %v3042 = vunpack.c.h.b16 %v2784
  %v3043 = vunpack.c.l.b16 %v2785
  %v3044 = vunpack.c.h.b16 %v2785
  %v3045 = vunpack.c.l.b16 %v2786
  %v3046 = vunpack.c.h.b16 %v2786
  %v3047 = vunpack.c.l.b16 %v2787
  %v3048 = vunpack.c.h.b16 %v2787
  %v3049 = vunpack.c.l.b16 %v2788
  %v3050 = vunpack.c.h.b16 %v2788
  %v3051 = vunpack.c.l.b16 %v2789
  %v3052 = vunpack.c.h.b16 %v2789
  %v3053 = vunpack.c.l.b16 %v2790
  %v3054 = vunpack.c.h.b16 %v2790
  %v3055 = vunpack.c.l.b16 %v2791
  %v3056 = vunpack.c.h.b16 %v2791
  %v3057 = vunpack.c.l.b16 %v2792
  %v3058 = vunpack.c.h.b16 %v2792
  %v3059 = vunpack.c.l.b16 %v2793
  %v3060 = vunpack.c.h.b16 %v2793
  %v3061 = vunpack.c.l.b16 %v2794
  %v3062 = vunpack.c.h.b16 %v2794
  %v3063 = vunpack.c.l.b16 %v2795
  %v3064 = vunpack.c.h.b16 %v2795
  %v3065 = vunpack.c.l.b16 %v2796
  %v3066 = vunpack.c.h.b16 %v2796
  %v3067 = vunpack.c.l.b16 %v2797
  %v3068 = vunpack.c.h.b16 %v2797
  %v3069 = vunpack.c.l.b16 %v2798
  %v3070 = vunpack.c.h.b16 %v2798
  %v3071 = vunpack.c.l.b16 %v2799
  %v3072 = vunpack.c.h.b16 %v2799
  %v3073 = vunpack.c.l.b16 %v2800
  %v3074 = vunpack.c.h.b16 %v2800
  %v3075 = vunpack.c.l.b16 %v2801
  %v3076 = vunpack.c.h.b16 %v2801
  %v3077 = vunpack.c.l.b16 %v2802
  %v3078 = vunpack.c.h.b16 %v2802
  %v3079 = vunpack.c.l.b16 %v2803
  %v3080 = vunpack.c.h.b16 %v2803
  %v3081 = vunpack.c.l.b16 %v2804
  %v3082 = vunpack.c.h.b16 %v2804
  %v3083 = vunpack.c.l.b16 %v2805
  %v3084 = vunpack.c.h.b16 %v2805
  %v3085 = vunpack.c.l.b16 %v2806
  %v3086 = vunpack.c.h.b16 %v2806
  %v3087 = vunpack.c.l.b16 %v2807
  %v3088 = vunpack.c.h.b16 %v2807
  %v3089 = vunpack.c.l.b16 %v2808
  %v3090 = vunpack.c.h.b16 %v2808
  %v3091 = vunpack.c.l.b16 %v2809
  %v3092 = vunpack.c.h.b16 %v2809
  %v3093 = vunpack.c.l.b16 %v2810
  %v3094 = vunpack.c.h.b16 %v2810
  %v3095 = vunpack.c.l.b16 %v2811
  %v3096 = vunpack.c.h.b16 %v2811
  %v3097 = vunpack.c.l.b16 %v2812
  %v3098 = vunpack.c.h.b16 %v2812
  %v3099 = vunpack.c.l.b16 %v2813
  %v3100 = vunpack.c.h.b16 %v2813
  %v3101 = vunpack.c.l.b16 %v2814
  %v3102 = vunpack.c.h.b16 %v2814
  %v3103 = vunpack.c.l.b16 %v2815
  %v3104 = vunpack.c.h.b16 %v2815
  %v3105 = vunpack.c.l.b16 %v2816
  %v3106 = vunpack.c.h.b16 %v2816
  %v3107 = vunpack.c.l.b16 %v2817
  %v3108 = vunpack.c.h.b16 %v2817
  %v3109 = vunpack.c.l.b16 %v2818
  %v3110 = vunpack.c.h.b16 %v2818
  %v3111 = vunpack.c.l.b16 %v2819
  %v3112 = vunpack.c.h.b16 %v2819
  %v3113 = vunpack.c.l.b16 %v2820
  %v3114 = vunpack.c.h.b16 %v2820
  %v3115 = vunpack.c.l.b16 %v2821
  %v3116 = vunpack.c.h.b16 %v2821
  %v3117 = vunpack.c.l.b16 %v2822
  %v3118 = vunpack.c.h.b16 %v2822
  %v3119 = vunpack.c.l.b16 %v2823
  %v3120 = vunpack.c.h.b16 %v2823
  %v3121 = vpack.c.b16 %v2933, %v2931
  %v3122 = vpack.c.b16 %v2934, %v2932
  %v3123 = vpack.c.b16 %v2937, %v2935
  %v3124 = vpack.c.b16 %v2938, %v2936
  %v3125 = vpack.c.b16 %v2941, %v2939
  %v3126 = vpack.c.b16 %v2942, %v2940
  %v3127 = vpack.c.b16 %v2945, %v2943
  %v3128 = vpack.c.b16 %v2946, %v2944
  %v3129 = vpack.c.b16 %v2949, %v2947
  %v3130 = vpack.c.b16 %v2950, %v2948
  %v3131 = vpack.c.b16 %v2953, %v2951
  %v3132 = vpack.c.b16 %v2954, %v2952
  %v3133 = vpack.c.b16 %v2957, %v2955
  %v3134 = vpack.c.b16 %v2958, %v2956
  %v3135 = vpack.c.b16 %v2961, %v2959
  %v3136 = vpack.c.b16 %v2962, %v2960
  %v3137 = vpack.c.b16 %v2965, %v2963
  %v3138 = vpack.c.b16 %v2966, %v2964
  %v3139 = vpack.c.b16 %v2969, %v2967
  %v3140 = vpack.c.b16 %v2970, %v2968
  %v3141 = vpack.c.b16 %v2973, %v2971
  %v3142 = vpack.c.b16 %v2974, %v2972
  %v3143 = vpack.c.b16 %v2977, %v2975
  %v3144 = vpack.c.b16 %v2978, %v2976
  %v3145 = vpack.c.b16 %v2981, %v2979
  %v3146 = vpack.c.b16 %v2982, %v2980
  %v3147 = vpack.c.b16 %v2985, %v2983
  %v3148 = vpack.c.b16 %v2986, %v2984
  %v3149 = vpack.c.b16 %v2989, %v2987
  %v3150 = vpack.c.b16 %v2990, %v2988
  %v3151 = vpack.c.b16 %v2993, %v2991
  %v3152 = vpack.c.b16 %v2994, %v2992
  %v3153 = vpack.c.b16 %v2997, %v2995
  %v3154 = vpack.c.b16 %v2998, %v2996
  %v3155 = vpack.c.b16 %v3001, %v2999
  %v3156 = vpack.c.b16 %v3002, %v3000
  %v3157 = vpack.c.b16 %v3005, %v3003
  %v3158 = vpack.c.b16 %v3006, %v3004
  %v3159 = vpack.c.b16 %v3009, %v3007
  %v3160 = vpack.c.b16 %v3010, %v3008
  %v3161 = vpack.c.b16 %v3013, %v3011
  %v3162 = vpack.c.b16 %v3014, %v3012
  %v3163 = vpack.c.b16 %v3017, %v3015
  %v3164 = vpack.c.b16 %v3018, %v3016
  %v3165 = vpack.c.b16 %v3021, %v3019
  %v3166 = vpack.c.b16 %v3022, %v3020
  %v3167 = vpack.c.b16 %v3025, %v3023
  %v3168 = vpack.c.b16 %v3026, %v3024
  %v3169 = vpack.c.b16 %v3029, %v3027
  %v3170 = vpack.c.b16 %v3030, %v3028
  %v3171 = vpack.c.b16 %v3033, %v3031
  %v3172 = vpack.c.b16 %v3034, %v3032
  %v3173 = vpack.c.b16 %v3037, %v3035
  %v3174 = vpack.c.b16 %v3038, %v3036
  %v3175 = vpack.c.b16 %v3041, %v3039
  %v3176 = vpack.c.b16 %v3042, %v3040
  %v3177 = vpack.c.b16 %v3045, %v3043
  %v3178 = vpack.c.b16 %v3046, %v3044
  %v3179 = vpack.c.b16 %v3049, %v3047
  %v3180 = vpack.c.b16 %v3050, %v3048
  %v3181 = vpack.c.b16 %v3053, %v3051
  %v3182 = vpack.c.b16 %v3054, %v3052
  %v3183 = vpack.c.b16 %v3057, %v3055
  %v3184 = vpack.c.b16 %v3058, %v3056
  %v3185 = vpack.c.b16 %v3061, %v3059
  %v3186 = vpack.c.b16 %v3062, %v3060
  %v3187 = vpack.c.b16 %v3065, %v3063
  %v3188 = vpack.c.b16 %v3066, %v3064
  %v3189 = vpack.c.b16 %v3069, %v3067
  %v3190 = vpack.c.b16 %v3070, %v3068
  %v3191 = vpack.c.b16 %v3073, %v3071
  %v3192 = vpack.c.b16 %v3074, %v3072
  %v3193 = vpack.c.b16 %v3077, %v3075
  %v3194 = vpack.c.b16 %v3078, %v3076
  %v3195 = vpack.c.b16 %v3081, %v3079
  %v3196 = vpack.c.b16 %v3082, %v3080
  %v3197 = vpack.c.b16 %v3085, %v3083
  %v3198 = vpack.c.b16 %v3086, %v3084
  %v3199 = vpack.c.b16 %v3089, %v3087
  %v3200 = vpack.c.b16 %v3090, %v3088
  %v3201 = vpack.c.b16 %v3093, %v3091
  %v3202 = vpack.c.b16 %v3094, %v3092
  %v3203 = vpack.c.b16 %v3097, %v3095
  %v3204 = vpack.c.b16 %v3098, %v3096
  %v3205 = vpack.c.b16 %v3101, %v3099
  %v3206 = vpack.c.b16 %v3102, %v3100
  %v3207 = vpack.c.b16 %v3105, %v3103
  %v3208 = vpack.c.b16 %v3106, %v3104
  %v3209 = vpack.c.b16 %v3109, %v3107
  %v3210 = vpack.c.b16 %v3110, %v3108
  %v3211 = vpack.c.b16 %v3113, %v3111
  %v3212 = vpack.c.b16 %v3114, %v3112
  %v3213 = vpack.c.b16 %v3117, %v3115
  %v3214 = vpack.c.b16 %v3118, %v3116
  %v3215 = vpack.c.b16 %v3119, %v3119
  %v3216 = vpack.c.b16 %v3120, %v3120
  %vm3311 = vcmask 949248
  %v3313 = vsel %vm3311, %v2829, 0
  %v3316 = vsel %vm3311, %v2835, 0
  %vm3318 = vcmask 1041408
  %v3320 = vsel %vm3318, %v3215, 0
  %v3323 = vsel %vm3318, %v3216, 0
  %3325 = vmatprep.subr.bf16.mxu0 %v3136
  %3326 = vmatpush1.bf16.msra.mxu0 %v3135
  %3327 = vmatprep.subr.bf16.mxu0 %v3134
  %3328 = vmatpush1.bf16.msra.mxu0 %v3133
  %3329 = vmatprep.subr.bf16.mxu0 %v3132
  %3330 = vmatpush1.bf16.msra.mxu0 %v3131
  %3331 = vmatprep.subr.bf16.mxu0 %v3130
  %3332 = vmatpush1.bf16.msra.mxu0 %v3129
  %3333 = vmatprep.subr.bf16.mxu0 %v3128
  %3334 = vmatpush1.bf16.msra.mxu0 %v3127
  %3335 = vmatprep.subr.bf16.mxu0 %v3126
  %3336 = vmatpush1.bf16.msra.mxu0 %v3125
  %3337 = vmatprep.subr.bf16.mxu0 %v3124
  %3338 = vmatpush1.bf16.msra.mxu0 %v3123
  %3339 = vmatprep.subr.bf16.mxu0 %v3122
  %3340 = vmatpush1.bf16.msra.mxu0 %v3121
  %3341 = vmatprep.subr.bf16.mxu0 %v3152
  %3342 = vmatpush2.bf16.msra.mxu0 %v3151
  %3343 = vmatprep.subr.bf16.mxu0 %v3150
  %3344 = vmatpush2.bf16.msra.mxu0 %v3149
  %3345 = vmatprep.subr.bf16.mxu0 %v3148
  %3346 = vmatpush2.bf16.msra.mxu0 %v3147
  %3347 = vmatprep.subr.bf16.mxu0 %v3146
  %3348 = vmatpush2.bf16.msra.mxu0 %v3145
  %3349 = vmatprep.subr.bf16.mxu0 %v3144
  %3350 = vmatpush2.bf16.msra.mxu0 %v3143
  %3351 = vmatprep.subr.bf16.mxu0 %v3142
  %3352 = vmatpush2.bf16.msra.mxu0 %v3141
  %3353 = vmatprep.subr.bf16.mxu0 %v3140
  %3354 = vmatpush2.bf16.msra.mxu0 %v3139
  %3355 = vmatprep.subr.bf16.mxu0 %v3138
  %3356 = vmatpush2.bf16.msra.mxu0 %v3137
  %3357 = vmatprep.mubr.bf16.mxu0 %v2825
  %3358 = vmatmul.mubr.bf16.gmra.mxu0 %v2824
  %v3359 = vpop.f32.mrf.mxu0
  %v3360 = vadd.f32 0.0, %v3359
  %v3361 = vpop.f32.mrf.mxu0
  %v3362 = vadd.f32 0.0, %v3361
  %v3363 = vpop.f32.mrf.mxu0
  %v3364 = vadd.f32 0.0, %v3363
  %v3365 = vpop.f32.mrf.mxu0
  %v3366 = vadd.f32 0.0, %v3365
  %3367 = vmatprep.mubr.bf16.mxu0 %v2831
  %3368 = vmatmul.mubr.bf16.gmra.mxu0 %v2830
  %v3369 = vpop.f32.mrf.mxu0
  %v3370 = vadd.f32 0.0, %v3369
  %v3371 = vpop.f32.mrf.mxu0
  %v3372 = vadd.f32 0.0, %v3371
  %v3373 = vpop.f32.mrf.mxu0
  %v3374 = vadd.f32 0.0, %v3373
  %v3375 = vpop.f32.mrf.mxu0
  %v3376 = vadd.f32 0.0, %v3375
  %3377 = vdwg.mxu0
  %3378 = vmatprep.subr.bf16.mxu0 %v3168
  %3379 = vmatpush1.bf16.msra.mxu0 %v3167
  %3380 = vmatprep.subr.bf16.mxu0 %v3166
  %3381 = vmatpush1.bf16.msra.mxu0 %v3165
  %3382 = vmatprep.subr.bf16.mxu0 %v3164
  %3383 = vmatpush1.bf16.msra.mxu0 %v3163
  %3384 = vmatprep.subr.bf16.mxu0 %v3162
  %3385 = vmatpush1.bf16.msra.mxu0 %v3161
  %3386 = vmatprep.subr.bf16.mxu0 %v3160
  %3387 = vmatpush1.bf16.msra.mxu0 %v3159
  %3388 = vmatprep.subr.bf16.mxu0 %v3158
  %3389 = vmatpush1.bf16.msra.mxu0 %v3157
  %3390 = vmatprep.subr.bf16.mxu0 %v3156
  %3391 = vmatpush1.bf16.msra.mxu0 %v3155
  %3392 = vmatprep.subr.bf16.mxu0 %v3154
  %3393 = vmatpush1.bf16.msra.mxu0 %v3153
  %3394 = vmatprep.subr.bf16.mxu0 %v3184
  %3395 = vmatpush2.bf16.msra.mxu0 %v3183
  %3396 = vmatprep.subr.bf16.mxu0 %v3182
  %3397 = vmatpush2.bf16.msra.mxu0 %v3181
  %3398 = vmatprep.subr.bf16.mxu0 %v3180
  %3399 = vmatpush2.bf16.msra.mxu0 %v3179
  %3400 = vmatprep.subr.bf16.mxu0 %v3178
  %3401 = vmatpush2.bf16.msra.mxu0 %v3177
  %3402 = vmatprep.subr.bf16.mxu0 %v3176
  %3403 = vmatpush2.bf16.msra.mxu0 %v3175
  %3404 = vmatprep.subr.bf16.mxu0 %v3174
  %3405 = vmatpush2.bf16.msra.mxu0 %v3173
  %3406 = vmatprep.subr.bf16.mxu0 %v3172
  %3407 = vmatpush2.bf16.msra.mxu0 %v3171
  %3408 = vmatprep.subr.bf16.mxu0 %v3170
  %3409 = vmatpush2.bf16.msra.mxu0 %v3169
  %3410 = vmatprep.mubr.bf16.mxu0 %v2827
  %3411 = vmatmul.mubr.bf16.gmra.mxu0 %v2826
  %v3412 = vpop.f32.mrf.mxu0
  %v3413 = vadd.f32 %v3360, %v3412
  %v3414 = vpop.f32.mrf.mxu0
  %v3415 = vadd.f32 %v3362, %v3414
  %v3416 = vpop.f32.mrf.mxu0
  %v3417 = vadd.f32 %v3364, %v3416
  %v3418 = vpop.f32.mrf.mxu0
  %v3419 = vadd.f32 %v3366, %v3418
  %3420 = vmatprep.mubr.bf16.mxu0 %v2833
  %3421 = vmatmul.mubr.bf16.gmra.mxu0 %v2832
  %v3422 = vpop.f32.mrf.mxu0
  %v3423 = vadd.f32 %v3370, %v3422
  %v3424 = vpop.f32.mrf.mxu0
  %v3425 = vadd.f32 %v3372, %v3424
  %v3426 = vpop.f32.mrf.mxu0
  %v3427 = vadd.f32 %v3374, %v3426
  %v3428 = vpop.f32.mrf.mxu0
  %v3429 = vadd.f32 %v3376, %v3428
  %3430 = vdwg.mxu0
  %3431 = vmatprep.subr.bf16.mxu0 %v3200
  %3432 = vmatpush1.bf16.msra.mxu0 %v3199
  %3433 = vmatprep.subr.bf16.mxu0 %v3198
  %3434 = vmatpush1.bf16.msra.mxu0 %v3197
  %3435 = vmatprep.subr.bf16.mxu0 %v3196
  %3436 = vmatpush1.bf16.msra.mxu0 %v3195
  %3437 = vmatprep.subr.bf16.mxu0 %v3194
  %3438 = vmatpush1.bf16.msra.mxu0 %v3193
  %3439 = vmatprep.subr.bf16.mxu0 %v3192
  %3440 = vmatpush1.bf16.msra.mxu0 %v3191
  %3441 = vmatprep.subr.bf16.mxu0 %v3190
  %3442 = vmatpush1.bf16.msra.mxu0 %v3189
  %3443 = vmatprep.subr.bf16.mxu0 %v3188
  %3444 = vmatpush1.bf16.msra.mxu0 %v3187
  %3445 = vmatprep.subr.bf16.mxu0 %v3186
  %3446 = vmatpush1.bf16.msra.mxu0 %v3185
  %3447 = vmatprep.subr.bf16.mxu0 %v3323
  %3448 = vmatpush2.bf16.msra.mxu0 %v3320
  %3449 = vmatprep.subr.bf16.mxu0 %v3214
  %3450 = vmatpush2.bf16.msra.mxu0 %v3213
  %3451 = vmatprep.subr.bf16.mxu0 %v3212
  %3452 = vmatpush2.bf16.msra.mxu0 %v3211
  %3453 = vmatprep.subr.bf16.mxu0 %v3210
  %3454 = vmatpush2.bf16.msra.mxu0 %v3209
  %3455 = vmatprep.subr.bf16.mxu0 %v3208
  %3456 = vmatpush2.bf16.msra.mxu0 %v3207
  %3457 = vmatprep.subr.bf16.mxu0 %v3206
  %3458 = vmatpush2.bf16.msra.mxu0 %v3205
  %3459 = vmatprep.subr.bf16.mxu0 %v3204
  %3460 = vmatpush2.bf16.msra.mxu0 %v3203
  %3461 = vmatprep.subr.bf16.mxu0 %v3202
  %3462 = vmatpush2.bf16.msra.mxu0 %v3201
  %3463 = vmatprep.mubr.bf16.mxu0 %v3313
  %3464 = vmatmul.mubr.bf16.gmra.mxu0 %v2828
  %v3465 = vpop.f32.mrf.mxu0
  %v3466 = vadd.f32 %v3413, %v3465
  %v3467 = vpop.f32.mrf.mxu0
  %v3468 = vadd.f32 %v3415, %v3467
  %v3469 = vpop.f32.mrf.mxu0
  %v3470 = vadd.f32 %v3417, %v3469
  %v3471 = vpop.f32.mrf.mxu0
  %v3472 = vadd.f32 %v3419, %v3471
  %3473 = vmatprep.mubr.bf16.mxu0 %v3316
  %3474 = vmatmul.mubr.bf16.gmra.mxu0 %v2834
  %v3475 = vpop.f32.mrf.mxu0
  %v3476 = vadd.f32 %v3423, %v3475
  %v3477 = vpop.f32.mrf.mxu0
  %v3478 = vadd.f32 %v3425, %v3477
  %v3479 = vpop.f32.mrf.mxu0
  %v3480 = vadd.f32 %v3427, %v3479
  %v3481 = vpop.f32.mrf.mxu0
  %v3482 = vadd.f32 %v3429, %v3481
  %3483 = vdwg.mxu0
  %v3484 = vadd.f32 %v3466, %v3470
  %v3485 = vadd.f32 %v3484, %v3476
  %v3486 = vsel %vm694, %v3480, 0.0
  %v3487 = vadd.f32 %v3485, %v3486
  %v3488 = vrot.slane %v3487, 4
  %v3489 = vadd.f32 %v3487, %v3488
  %v3490 = vrot.slane %v3489, 2
  %v3491 = vadd.f32 %v3489, %v3490
  %v3492 = vrot.slane %v3491, 1
  %v3493 = vadd.f32 %v3491, %v3492
  %v3494 = vsel %vm784, %v3468, 0.0
  %v3495 = vsel %vm784, %v3472, 0.0
  %v3496 = vadd.f32 %v3494, %v3495
  %v3497 = vsel %vm784, %v3478, 0.0
  %v3498 = vadd.f32 %v3496, %v3497
  %vm3499 = vcmask 781312
  %v3500 = vsel %vm3499, %v3482, 0.0
  %v3501 = vadd.f32 %v3498, %v3500
  %v3502 = vrot.slane %v3501, 4
  %v3503 = vadd.f32 %v3501, %v3502
  %v3504 = vrot.slane %v3503, 2
  %v3505 = vadd.f32 %v3503, %v3504
  %v3506 = vrot.slane %v3505, 1
  %v3507 = vadd.f32 %v3505, %v3506
  %v3508 = vld [vmem:[%s35] sm:$0xff]
  %v3509 = vld [vmem:[%s35 + $0x8] sm:$0xff]
  %v3510 = vld [vmem:[%s35 + $0x10] sm:$0xff]
  %v3511 = vld [vmem:[%s35 + $0x18] sm:$0xff]
  %v3512 = vld [vmem:[%s35 + $0x20] sm:$0xff]
  %v3513 = vld [vmem:[%s35 + $0x28] sm:$0xff]
  %v3514 = vld [vmem:[%s35 + $0x30] sm:$0xff]
  %v3515 = vld [vmem:[%s35 + $0x38] sm:$0xff]
  %v3516 = vld [vmem:[%s35 + $0x40] sm:$0xff]
  %v3517 = vld [vmem:[%s35 + $0x48] sm:$0xff]
  %v3518 = vld [vmem:[%s35 + $0x50] sm:$0xff]
  %v3519 = vld [vmem:[%s35 + $0x58] sm:$0xff]
  %v3520 = vld [vmem:[%s35 + $0x60] sm:$0xff]
  %v3521 = vld [vmem:[%s35 + $0x68] sm:$0xff]
  %v3522 = vld [vmem:[%s35 + $0x70] sm:$0xff]
  %v3523 = vld [vmem:[%s35 + $0x78] sm:$0xff]
  %v3524 = vld [vmem:[%s35 + $0x80] sm:$0xff]
  %v3525 = vld [vmem:[%s35 + $0x88] sm:$0xff]
  %v3526 = vld [vmem:[%s35 + $0x90] sm:$0xff]
  %v3527 = vld [vmem:[%s35 + $0x98] sm:$0xff]
  %v3528 = vld [vmem:[%s35 + $0xa0] sm:$0xff]
  %v3529 = vld [vmem:[%s35 + $0xa8] sm:$0xff]
  %v3530 = vld [vmem:[%s35 + $0xb0] sm:$0xff]
  %v3531 = vld [vmem:[%s35 + $0xb8] sm:$0xff]
  %v3532 = vld [vmem:[%s35 + $0xc0] sm:$0xff]
  %v3533 = vld [vmem:[%s35 + $0xc8] sm:$0xff]
  %v3534 = vld [vmem:[%s35 + $0xd0] sm:$0xff]
  %v3535 = vld [vmem:[%s35 + $0xd8] sm:$0xff]
  %v3537 = vsel %vm784, %v3507, 0
  %3539 = vmatprep.subr.mxu0 0.0
  %3540 = vmatpush1.msra.mxu0 %v3523
  %3541 = vmatprep.subr.mxu0 0.0
  %3542 = vmatpush1.msra.mxu0 %v3522
  %3543 = vmatprep.subr.mxu0 0.0
  %3544 = vmatpush1.msra.mxu0 %v3521
  %3545 = vmatprep.subr.mxu0 0.0
  %3546 = vmatpush1.msra.mxu0 %v3520
  %3547 = vmatprep.subr.mxu0 0.0
  %3548 = vmatpush1.msra.mxu0 %v3519
  %3549 = vmatprep.subr.mxu0 0.0
  %3550 = vmatpush1.msra.mxu0 %v3518
  %3551 = vmatprep.subr.mxu0 0.0
  %3552 = vmatpush1.msra.mxu0 %v3517
  %3553 = vmatprep.subr.mxu0 0.0
  %3554 = vmatpush1.msra.mxu0 %v3516
  %3555 = vmatprep.subr.mxu0 0.0
  %3556 = vmatpush1.msra.mxu0 %v3515
  %3557 = vmatprep.subr.mxu0 0.0
  %3558 = vmatpush1.msra.mxu0 %v3514
  %3559 = vmatprep.subr.mxu0 0.0
  %3560 = vmatpush1.msra.mxu0 %v3513
  %3561 = vmatprep.subr.mxu0 0.0
  %3562 = vmatpush1.msra.mxu0 %v3512
  %3563 = vmatprep.subr.mxu0 0.0
  %3564 = vmatpush1.msra.mxu0 %v3511
  %3565 = vmatprep.subr.mxu0 0.0
  %3566 = vmatpush1.msra.mxu0 %v3510
  %3567 = vmatprep.subr.mxu0 0.0
  %3568 = vmatpush1.msra.mxu0 %v3509
  %3569 = vmatprep.subr.mxu0 0.0
  %3570 = vmatpush1.msra.mxu0 %v3508
  %3571 = vmatprep.subr.mxu0 0.0
  %3572 = vmatpush2.msra.mxu0 0.0
  %3573 = vmatprep.subr.mxu0 0.0
  %3574 = vmatpush2.msra.mxu0 0.0
  %3575 = vmatprep.subr.mxu0 0.0
  %3576 = vmatpush2.msra.mxu0 0.0
  %3577 = vmatprep.subr.mxu0 0.0
  %3578 = vmatpush2.msra.mxu0 0.0
  %3579 = vmatprep.subr.mxu0 0.0
  %3580 = vmatpush2.msra.mxu0 %v3535
  %3581 = vmatprep.subr.mxu0 0.0
  %3582 = vmatpush2.msra.mxu0 %v3534
  %3583 = vmatprep.subr.mxu0 0.0
  %3584 = vmatpush2.msra.mxu0 %v3533
  %3585 = vmatprep.subr.mxu0 0.0
  %3586 = vmatpush2.msra.mxu0 %v3532
  %3587 = vmatprep.subr.mxu0 0.0
  %3588 = vmatpush2.msra.mxu0 %v3531
  %3589 = vmatprep.subr.mxu0 0.0
  %3590 = vmatpush2.msra.mxu0 %v3530
  %3591 = vmatprep.subr.mxu0 0.0
  %3592 = vmatpush2.msra.mxu0 %v3529
  %3593 = vmatprep.subr.mxu0 0.0
  %3594 = vmatpush2.msra.mxu0 %v3528
  %3595 = vmatprep.subr.mxu0 0.0
  %3596 = vmatpush2.msra.mxu0 %v3527
  %3597 = vmatprep.subr.mxu0 0.0
  %3598 = vmatpush2.msra.mxu0 %v3526
  %3599 = vmatprep.subr.mxu0 0.0
  %3600 = vmatpush2.msra.mxu0 %v3525
  %3601 = vmatprep.subr.mxu0 0.0
  %3602 = vmatpush2.msra.mxu0 %v3524
  %3603 = vmatprep.mubr.f32.mxu0 %v3537
  %3604 = vmatmul.mubr.f32.gmra.mxu0 %v3493
  %v3605 = vpop.f32.mrf.mxu0
  %v3606 = vadd.f32 0.0, %v3605
  %v3607 = vpop.f32.mrf.mxu0
  %3608 = vdwg.mxu0
  %v3609 = vmul.f32 %v3466, %v3466
  %v3610 = vmul.f32 %v3468, %v3468
  %v3611 = vmul.f32 %v3470, %v3470
  %v3612 = vmul.f32 %v3472, %v3472
  %v3613 = vmul.f32 %v3476, %v3476
  %v3614 = vmul.f32 %v3478, %v3478
  %v3615 = vmul.f32 %v3480, %v3480
  %v3616 = vmul.f32 %v3482, %v3482
  %v3617 = vadd.f32 %v3609, %v3611
  %v3618 = vadd.f32 %v3617, %v3613
  %v3619 = vsel %vm694, %v3615, 0.0
  %v3620 = vadd.f32 %v3618, %v3619
  %v3621 = vrot.slane %v3620, 4
  %v3622 = vadd.f32 %v3620, %v3621
  %v3623 = vrot.slane %v3622, 2
  %v3624 = vadd.f32 %v3622, %v3623
  %v3625 = vrot.slane %v3624, 1
  %v3626 = vadd.f32 %v3624, %v3625
  %v3627 = vsel %vm784, %v3610, 0.0
  %v3628 = vsel %vm784, %v3612, 0.0
  %v3629 = vadd.f32 %v3627, %v3628
  %v3630 = vsel %vm784, %v3614, 0.0
  %v3631 = vadd.f32 %v3629, %v3630
  %v3632 = vsel %vm3499, %v3616, 0.0
  %v3633 = vadd.f32 %v3631, %v3632
  %v3634 = vrot.slane %v3633, 4
  %v3635 = vadd.f32 %v3633, %v3634
  %v3636 = vrot.slane %v3635, 2
  %v3637 = vadd.f32 %v3635, %v3636
  %v3638 = vrot.slane %v3637, 1
  %v3639 = vadd.f32 %v3637, %v3638
  %v3641 = vsel %vm784, %v3639, 0
  %3643 = vmatprep.subr.mxu0 0.0
  %3644 = vmatpush1.msra.mxu0 %v3523
  %3645 = vmatprep.subr.mxu0 0.0
  %3646 = vmatpush1.msra.mxu0 %v3522
  %3647 = vmatprep.subr.mxu0 0.0
  %3648 = vmatpush1.msra.mxu0 %v3521
  %3649 = vmatprep.subr.mxu0 0.0
  %3650 = vmatpush1.msra.mxu0 %v3520
  %3651 = vmatprep.subr.mxu0 0.0
  %3652 = vmatpush1.msra.mxu0 %v3519
  %3653 = vmatprep.subr.mxu0 0.0
  %3654 = vmatpush1.msra.mxu0 %v3518
  %3655 = vmatprep.subr.mxu0 0.0
  %3656 = vmatpush1.msra.mxu0 %v3517
  %3657 = vmatprep.subr.mxu0 0.0
  %3658 = vmatpush1.msra.mxu0 %v3516
  %3659 = vmatprep.subr.mxu0 0.0
  %3660 = vmatpush1.msra.mxu0 %v3515
  %3661 = vmatprep.subr.mxu0 0.0
  %3662 = vmatpush1.msra.mxu0 %v3514
  %3663 = vmatprep.subr.mxu0 0.0
  %3664 = vmatpush1.msra.mxu0 %v3513
  %3665 = vmatprep.subr.mxu0 0.0
  %3666 = vmatpush1.msra.mxu0 %v3512
  %3667 = vmatprep.subr.mxu0 0.0
  %3668 = vmatpush1.msra.mxu0 %v3511
  %3669 = vmatprep.subr.mxu0 0.0
  %3670 = vmatpush1.msra.mxu0 %v3510
  %3671 = vmatprep.subr.mxu0 0.0
  %3672 = vmatpush1.msra.mxu0 %v3509
  %3673 = vmatprep.subr.mxu0 0.0
  %3674 = vmatpush1.msra.mxu0 %v3508
  %3675 = vmatprep.subr.mxu0 0.0
  %3676 = vmatpush2.msra.mxu0 0.0
  %3677 = vmatprep.subr.mxu0 0.0
  %3678 = vmatpush2.msra.mxu0 0.0
  %3679 = vmatprep.subr.mxu0 0.0
  %3680 = vmatpush2.msra.mxu0 0.0
  %3681 = vmatprep.subr.mxu0 0.0
  %3682 = vmatpush2.msra.mxu0 0.0
  %3683 = vmatprep.subr.mxu0 0.0
  %3684 = vmatpush2.msra.mxu0 %v3535
  %3685 = vmatprep.subr.mxu0 0.0
  %3686 = vmatpush2.msra.mxu0 %v3534
  %3687 = vmatprep.subr.mxu0 0.0
  %3688 = vmatpush2.msra.mxu0 %v3533
  %3689 = vmatprep.subr.mxu0 0.0
  %3690 = vmatpush2.msra.mxu0 %v3532
  %3691 = vmatprep.subr.mxu0 0.0
  %3692 = vmatpush2.msra.mxu0 %v3531
  %3693 = vmatprep.subr.mxu0 0.0
  %3694 = vmatpush2.msra.mxu0 %v3530
  %3695 = vmatprep.subr.mxu0 0.0
  %3696 = vmatpush2.msra.mxu0 %v3529
  %3697 = vmatprep.subr.mxu0 0.0
  %3698 = vmatpush2.msra.mxu0 %v3528
  %3699 = vmatprep.subr.mxu0 0.0
  %3700 = vmatpush2.msra.mxu0 %v3527
  %3701 = vmatprep.subr.mxu0 0.0
  %3702 = vmatpush2.msra.mxu0 %v3526
  %3703 = vmatprep.subr.mxu0 0.0
  %3704 = vmatpush2.msra.mxu0 %v3525
  %3705 = vmatprep.subr.mxu0 0.0
  %3706 = vmatpush2.msra.mxu0 %v3524
  %3707 = vmatprep.mubr.f32.mxu0 %v3641
  %3708 = vmatmul.mubr.f32.gmra.mxu0 %v3626
  %v3709 = vpop.f32.mrf.mxu0
  %v3710 = vadd.f32 0.0, %v3709
  %v3711 = vpop.f32.mrf.mxu0
  %3712 = vdwg.mxu0
  %v3713 = vmul.f32 %v3606, 0.0025510204
  %v3714 = vmul.f32 %v3710, 0.0025510204
  %v3715 = vmul.f32 %v3713, %v3713
  %v3716 = vsub.f32 %v3714, %v3715
  %v3717 = vmax.f32 %v3716, 0.0
  %v3718 = vld [vmem:[%s39] sm:$0x3]
  %v3719 = vadd.f32 %v3717, 1e-05
  %v3720 = vrsqrt.pop %v3719
  %v3721 = vmul.f32 %v3720, %v3718
  %v3722 = vmul.f32 %v3713, %v3721
  %v3724 = vrot.slane %v3722, 7
  %v3726 = vsub.f32 %v3718, %v3724
  %v3727 = vld [vmem:[%s37] sm:$0xff]
  %v3728 = vld [vmem:[%s37 + $0x8] sm:$0xff]
  %v3729 = vld [vmem:[%s37 + $0x10] sm:$0xff]
  %v3730 = vld [vmem:[%s37 + $0x18] sm:$0xff]
  %vm3731 = vcmask 130048
  %v3733 = vsel %vm3731, %v3721, 0
  %3735 = vmatprep.subr.mxu0 0.0
  %3736 = vmatpush1.msra.mxu0 0.0
  %3737 = vmatprep.subr.mxu0 0.0
  %3738 = vmatpush1.msra.mxu0 0.0
  %3739 = vmatprep.subr.mxu0 0.0
  %3740 = vmatpush1.msra.mxu0 0.0
  %3741 = vmatprep.subr.mxu0 0.0
  %3742 = vmatpush1.msra.mxu0 0.0
  %3743 = vmatprep.subr.mxu0 0.0
  %3744 = vmatpush1.msra.mxu0 0.0
  %3745 = vmatprep.subr.mxu0 0.0
  %3746 = vmatpush1.msra.mxu0 0.0
  %3747 = vmatprep.subr.mxu0 0.0
  %3748 = vmatpush1.msra.mxu0 0.0
  %3749 = vmatprep.subr.mxu0 0.0
  %3750 = vmatpush1.msra.mxu0 0.0
  %3751 = vmatprep.subr.mxu0 0.0
  %3752 = vmatpush1.msra.mxu0 0.0
  %3753 = vmatprep.subr.mxu0 0.0
  %3754 = vmatpush1.msra.mxu0 0.0
  %3755 = vmatprep.subr.mxu0 0.0
  %3756 = vmatpush1.msra.mxu0 0.0
  %3757 = vmatprep.subr.mxu0 0.0
  %3758 = vmatpush1.msra.mxu0 0.0
  %3759 = vmatprep.subr.mxu0 0.0
  %3760 = vmatpush1.msra.mxu0 0.0
  %3761 = vmatprep.subr.mxu0 0.0
  %3762 = vmatpush1.msra.mxu0 0.0
  %3763 = vmatprep.subr.mxu0 %v3730
  %3764 = vmatpush1.msra.mxu0 %v3729
  %3765 = vmatprep.subr.mxu0 %v3728
  %3766 = vmatpush1.msra.mxu0 %v3727
  %3767 = vmatprep.subr.mxu0 0.0
  %3768 = vmatpush2.msra.mxu0 0.0
  %3769 = vmatprep.subr.mxu0 0.0
  %3770 = vmatpush2.msra.mxu0 0.0
  %3771 = vmatprep.subr.mxu0 0.0
  %3772 = vmatpush2.msra.mxu0 0.0
  %3773 = vmatprep.subr.mxu0 0.0
  %3774 = vmatpush2.msra.mxu0 0.0
  %3775 = vmatprep.subr.mxu0 0.0
  %3776 = vmatpush2.msra.mxu0 0.0
  %3777 = vmatprep.subr.mxu0 0.0
  %3778 = vmatpush2.msra.mxu0 0.0
  %3779 = vmatprep.subr.mxu0 0.0
  %3780 = vmatpush2.msra.mxu0 0.0
  %3781 = vmatprep.subr.mxu0 0.0
  %3782 = vmatpush2.msra.mxu0 0.0
  %3783 = vmatprep.subr.mxu0 0.0
  %3784 = vmatpush2.msra.mxu0 0.0
  %3785 = vmatprep.subr.mxu0 0.0
  %3786 = vmatpush2.msra.mxu0 0.0
  %3787 = vmatprep.subr.mxu0 0.0
  %3788 = vmatpush2.msra.mxu0 0.0
  %3789 = vmatprep.subr.mxu0 0.0
  %3790 = vmatpush2.msra.mxu0 0.0
  %3791 = vmatprep.subr.mxu0 0.0
  %3792 = vmatpush2.msra.mxu0 0.0
  %3793 = vmatprep.subr.mxu0 0.0
  %3794 = vmatpush2.msra.mxu0 0.0
  %3795 = vmatprep.subr.mxu0 0.0
  %3796 = vmatpush2.msra.mxu0 0.0
  %3797 = vmatprep.subr.mxu0 0.0
  %3798 = vmatpush2.msra.mxu0 0.0
  %3799 = vmatprep.mubr.f32.mxu0 0.0
  %3800 = vmatmul.mubr.f32.gmra.mxu0 %v3733
  %v3801 = vpop.f32.mrf.mxu0
  %v3802 = vadd.f32 0.0, %v3801
  %v3803 = vpop.f32.mrf.mxu0
  %v3804 = vadd.f32 0.0, %v3803
  %3805 = vdwg.mxu0
  %v3806 = vlaneseq
  %v3807 = vshrl.u32 %v3806, 7
  %v3808 = vsub.s32 0, %v3807
  %v3809 = vrot.slane %v3802, %v3808
  %v3810 = vlaneseq
  %v3811 = vshrl.u32 %v3810, 7
  %v3812 = vsub.s32 0, %v3811
  %v3813 = vrot.slane %v3804, %v3812
  %v3814 = vmul.f32 %v3466, %v3809
  %v3815 = vmul.f32 %v3468, %v3813
  %v3816 = vmul.f32 %v3470, %v3809
  %v3817 = vmul.f32 %v3472, %v3813
  %v3818 = vmul.f32 %v3476, %v3809
  %v3819 = vmul.f32 %v3478, %v3813
  %v3820 = vmul.f32 %v3480, %v3809
  %v3821 = vmul.f32 %v3482, %v3813
  %v3823 = vrot.slane %v3726, 1
  %v3824 = vsel %vm3731, %v3823, 0
  %3826 = vmatprep.subr.mxu0 0.0
  %3827 = vmatpush1.msra.mxu0 0.0
  %3828 = vmatprep.subr.mxu0 0.0
  %3829 = vmatpush1.msra.mxu0 0.0
  %3830 = vmatprep.subr.mxu0 0.0
  %3831 = vmatpush1.msra.mxu0 0.0
  %3832 = vmatprep.subr.mxu0 0.0
  %3833 = vmatpush1.msra.mxu0 0.0
  %3834 = vmatprep.subr.mxu0 0.0
  %3835 = vmatpush1.msra.mxu0 0.0
  %3836 = vmatprep.subr.mxu0 0.0
  %3837 = vmatpush1.msra.mxu0 0.0
  %3838 = vmatprep.subr.mxu0 0.0
  %3839 = vmatpush1.msra.mxu0 0.0
  %3840 = vmatprep.subr.mxu0 0.0
  %3841 = vmatpush1.msra.mxu0 0.0
  %3842 = vmatprep.subr.mxu0 0.0
  %3843 = vmatpush1.msra.mxu0 0.0
  %3844 = vmatprep.subr.mxu0 0.0
  %3845 = vmatpush1.msra.mxu0 0.0
  %3846 = vmatprep.subr.mxu0 0.0
  %3847 = vmatpush1.msra.mxu0 0.0
  %3848 = vmatprep.subr.mxu0 0.0
  %3849 = vmatpush1.msra.mxu0 0.0
  %3850 = vmatprep.subr.mxu0 0.0
  %3851 = vmatpush1.msra.mxu0 0.0
  %3852 = vmatprep.subr.mxu0 0.0
  %3853 = vmatpush1.msra.mxu0 0.0
  %3854 = vmatprep.subr.mxu0 %v3730
  %3855 = vmatpush1.msra.mxu0 %v3729
  %3856 = vmatprep.subr.mxu0 %v3728
  %3857 = vmatpush1.msra.mxu0 %v3727
  %3858 = vmatprep.subr.mxu0 0.0
  %3859 = vmatpush2.msra.mxu0 0.0
  %3860 = vmatprep.subr.mxu0 0.0
  %3861 = vmatpush2.msra.mxu0 0.0
  %3862 = vmatprep.subr.mxu0 0.0
  %3863 = vmatpush2.msra.mxu0 0.0
  %3864 = vmatprep.subr.mxu0 0.0
  %3865 = vmatpush2.msra.mxu0 0.0
  %3866 = vmatprep.subr.mxu0 0.0
  %3867 = vmatpush2.msra.mxu0 0.0
  %3868 = vmatprep.subr.mxu0 0.0
  %3869 = vmatpush2.msra.mxu0 0.0
  %3870 = vmatprep.subr.mxu0 0.0
  %3871 = vmatpush2.msra.mxu0 0.0
  %3872 = vmatprep.subr.mxu0 0.0
  %3873 = vmatpush2.msra.mxu0 0.0
  %3874 = vmatprep.subr.mxu0 0.0
  %3875 = vmatpush2.msra.mxu0 0.0
  %3876 = vmatprep.subr.mxu0 0.0
  %3877 = vmatpush2.msra.mxu0 0.0
  %3878 = vmatprep.subr.mxu0 0.0
  %3879 = vmatpush2.msra.mxu0 0.0
  %3880 = vmatprep.subr.mxu0 0.0
  %3881 = vmatpush2.msra.mxu0 0.0
  %3882 = vmatprep.subr.mxu0 0.0
  %3883 = vmatpush2.msra.mxu0 0.0
  %3884 = vmatprep.subr.mxu0 0.0
  %3885 = vmatpush2.msra.mxu0 0.0
  %3886 = vmatprep.subr.mxu0 0.0
  %3887 = vmatpush2.msra.mxu0 0.0
  %3888 = vmatprep.subr.mxu0 0.0
  %3889 = vmatpush2.msra.mxu0 0.0
  %3890 = vmatprep.mubr.f32.mxu0 0.0
  %3891 = vmatmul.mubr.f32.gmra.mxu0 %v3824
  %v3892 = vpop.f32.mrf.mxu0
  %v3893 = vadd.f32 0.0, %v3892
  %v3894 = vpop.f32.mrf.mxu0
  %v3895 = vadd.f32 0.0, %v3894
  %3896 = vdwg.mxu0
  %v3897 = vlaneseq
  %v3898 = vshrl.u32 %v3897, 7
  %v3899 = vsub.s32 0, %v3898
  %v3900 = vrot.slane %v3893, %v3899
  %v3901 = vlaneseq
  %v3902 = vshrl.u32 %v3901, 7
  %v3903 = vsub.s32 0, %v3902
  %v3904 = vrot.slane %v3895, %v3903
  %v3905 = vadd.f32 %v3814, %v3900
  %v3906 = vadd.f32 %v3815, %v3904
  %v3907 = vadd.f32 %v3816, %v3900
  %v3908 = vadd.f32 %v3817, %v3904
  %v3909 = vadd.f32 %v3818, %v3900
  %v3910 = vadd.f32 %v3819, %v3904
  %v3911 = vadd.f32 %v3820, %v3900
  %v3912 = vadd.f32 %v3821, %v3904
  %v3913 = vmax.f32 %v3905, 0.0
  %v3914 = vmax.f32 %v3906, 0.0
  %v3915 = vmax.f32 %v3907, 0.0
  %v3916 = vmax.f32 %v3908, 0.0
  %v3917 = vmax.f32 %v3909, 0.0
  %v3918 = vmax.f32 %v3910, 0.0
  %v3919 = vmax.f32 %v3911, 0.0
  %v3920 = vmax.f32 %v3912, 0.0
  %v3921 = vpack.c.bf16 %v3915, %v3913
  %v3922 = vpack.c.bf16 %v3916, %v3914
  %v3923 = vpack.c.bf16 %v3919, %v3917
  %v3924 = vpack.c.bf16 %v3920, %v3918
  %v3925 = vld [vmem:[%s41] sm:$0xf]
  %v3926 = vld [vmem:[%s41 + $0x4] sm:$0x7]
  %v3929 = vunpack.c.l.b16 %v3925
  %v3930 = vunpack.c.l.b16 %v3926
  %v3931 = vpack.c.b16 %v3930, %v3929
  %v3933 = vsel %vm2120, %v3931, 0
  %vm3935 = vcmask 1045504
  %v3937 = vsel %vm3935, %v3923, 0
  %v3940 = vsel %vm3935, %v3924, 0
  %3942 = vmatprep.subr.bf16.mxu0 0
  %3943 = vmatpush1.bf16.msra.mxu0 0
  %3944 = vmatprep.subr.bf16.mxu0 0
  %3945 = vmatpush1.bf16.msra.mxu0 0
  %3946 = vmatprep.subr.bf16.mxu0 0
  %3947 = vmatpush1.bf16.msra.mxu0 0
  %3948 = vmatprep.subr.bf16.mxu0 0
  %3949 = vmatpush1.bf16.msra.mxu0 0
  %3950 = vmatprep.subr.bf16.mxu0 0
  %3951 = vmatpush1.bf16.msra.mxu0 0
  %3952 = vmatprep.subr.bf16.mxu0 0
  %3953 = vmatpush1.bf16.msra.mxu0 0
  %3954 = vmatprep.subr.bf16.mxu0 %v3940
  %3955 = vmatpush1.bf16.msra.mxu0 %v3937
  %3956 = vmatprep.subr.bf16.mxu0 %v3922
  %3957 = vmatpush1.bf16.msra.mxu0 %v3921
  %3958 = vmatprep.subr.bf16.mxu0 0
  %3959 = vmatpush2.bf16.msra.mxu0 0
  %3960 = vmatprep.subr.bf16.mxu0 0
  %3961 = vmatpush2.bf16.msra.mxu0 0
  %3962 = vmatprep.subr.bf16.mxu0 0
  %3963 = vmatpush2.bf16.msra.mxu0 0
  %3964 = vmatprep.subr.bf16.mxu0 0
  %3965 = vmatpush2.bf16.msra.mxu0 0
  %3966 = vmatprep.subr.bf16.mxu0 0
  %3967 = vmatpush2.bf16.msra.mxu0 0
  %3968 = vmatprep.subr.bf16.mxu0 0
  %3969 = vmatpush2.bf16.msra.mxu0 0
  %3970 = vmatprep.subr.bf16.mxu0 0
  %3971 = vmatpush2.bf16.msra.mxu0 0
  %3972 = vmatprep.subr.bf16.mxu0 0
  %3973 = vmatpush2.bf16.msra.mxu0 0
  %3974 = vmatprep.mubr.bf16.mxu0 0
  %3975 = vmatmul.mubr.bf16.gmra.mxu0 %v3933
  %v3976 = vpop.f32.mrf.mxu0
  %v3977 = vadd.f32 0.0, %v3976
  %v3978 = vpop.f32.mrf.mxu0
  %v3979 = vadd.f32 0.0, %v3978
  %v3980 = vpop.f32.mrf.mxu0
  %v3981 = vadd.f32 0.0, %v3980
  %v3982 = vpop.f32.mrf.mxu0
  %v3983 = vadd.f32 0.0, %v3982
  %3984 = vdwg.mxu0
  %s3985 = scalar_lea.vmem %s41, 8
  %v3986 = vld [vmem:[%s3985] sm:$0xf]
  %v3987 = vld [vmem:[%s3985 + $0x4] sm:$0x7]
  %v3990 = vunpack.c.l.b16 %v3986
  %v3991 = vunpack.c.l.b16 %v3987
  %v3992 = vpack.c.b16 %v3991, %v3990
  %v3994 = vsel %vm2120, %v3992, 0
  %3996 = vmatprep.subr.bf16.mxu0 0
  %3997 = vmatpush1.bf16.msra.mxu0 0
  %3998 = vmatprep.subr.bf16.mxu0 0
  %3999 = vmatpush1.bf16.msra.mxu0 0
  %4000 = vmatprep.subr.bf16.mxu0 0
  %4001 = vmatpush1.bf16.msra.mxu0 0
  %4002 = vmatprep.subr.bf16.mxu0 0
  %4003 = vmatpush1.bf16.msra.mxu0 0
  %4004 = vmatprep.subr.bf16.mxu0 0
  %4005 = vmatpush1.bf16.msra.mxu0 0
  %4006 = vmatprep.subr.bf16.mxu0 0
  %4007 = vmatpush1.bf16.msra.mxu0 0
  %4008 = vmatprep.subr.bf16.mxu0 %v3940
  %4009 = vmatpush1.bf16.msra.mxu0 %v3937
  %4010 = vmatprep.subr.bf16.mxu0 %v3922
  %4011 = vmatpush1.bf16.msra.mxu0 %v3921
  %4012 = vmatprep.subr.bf16.mxu0 0
  %4013 = vmatpush2.bf16.msra.mxu0 0
  %4014 = vmatprep.subr.bf16.mxu0 0
  %4015 = vmatpush2.bf16.msra.mxu0 0
  %4016 = vmatprep.subr.bf16.mxu0 0
  %4017 = vmatpush2.bf16.msra.mxu0 0
  %4018 = vmatprep.subr.bf16.mxu0 0
  %4019 = vmatpush2.bf16.msra.mxu0 0
  %4020 = vmatprep.subr.bf16.mxu0 0
  %4021 = vmatpush2.bf16.msra.mxu0 0
  %4022 = vmatprep.subr.bf16.mxu0 0
  %4023 = vmatpush2.bf16.msra.mxu0 0
  %4024 = vmatprep.subr.bf16.mxu0 0
  %4025 = vmatpush2.bf16.msra.mxu0 0
  %4026 = vmatprep.subr.bf16.mxu0 0
  %4027 = vmatpush2.bf16.msra.mxu0 0
  %4028 = vmatprep.mubr.bf16.mxu0 0
  %4029 = vmatmul.mubr.bf16.gmra.mxu0 %v3994
  %v4030 = vpop.f32.mrf.mxu0
  %v4031 = vadd.f32 0.0, %v4030
  %v4032 = vpop.f32.mrf.mxu0
  %v4033 = vadd.f32 0.0, %v4032
  %v4034 = vpop.f32.mrf.mxu0
  %v4035 = vadd.f32 0.0, %v4034
  %v4036 = vpop.f32.mrf.mxu0
  %v4037 = vadd.f32 0.0, %v4036
  %4038 = vdwg.mxu0
  %s4039 = scalar_lea.vmem %s41, 16
  %v4040 = vld [vmem:[%s4039] sm:$0xf]
  %v4041 = vld [vmem:[%s4039 + $0x4] sm:$0x7]
  %v4044 = vunpack.c.l.b16 %v4040
  %v4045 = vunpack.c.l.b16 %v4041
  %v4046 = vpack.c.b16 %v4045, %v4044
  %v4048 = vsel %vm2120, %v4046, 0
  %4050 = vmatprep.subr.bf16.mxu0 0
  %4051 = vmatpush1.bf16.msra.mxu0 0
  %4052 = vmatprep.subr.bf16.mxu0 0
  %4053 = vmatpush1.bf16.msra.mxu0 0
  %4054 = vmatprep.subr.bf16.mxu0 0
  %4055 = vmatpush1.bf16.msra.mxu0 0
  %4056 = vmatprep.subr.bf16.mxu0 0
  %4057 = vmatpush1.bf16.msra.mxu0 0
  %4058 = vmatprep.subr.bf16.mxu0 0
  %4059 = vmatpush1.bf16.msra.mxu0 0
  %4060 = vmatprep.subr.bf16.mxu0 0
  %4061 = vmatpush1.bf16.msra.mxu0 0
  %4062 = vmatprep.subr.bf16.mxu0 %v3940
  %4063 = vmatpush1.bf16.msra.mxu0 %v3937
  %4064 = vmatprep.subr.bf16.mxu0 %v3922
  %4065 = vmatpush1.bf16.msra.mxu0 %v3921
  %4066 = vmatprep.subr.bf16.mxu0 0
  %4067 = vmatpush2.bf16.msra.mxu0 0
  %4068 = vmatprep.subr.bf16.mxu0 0
  %4069 = vmatpush2.bf16.msra.mxu0 0
  %4070 = vmatprep.subr.bf16.mxu0 0
  %4071 = vmatpush2.bf16.msra.mxu0 0
  %4072 = vmatprep.subr.bf16.mxu0 0
  %4073 = vmatpush2.bf16.msra.mxu0 0
  %4074 = vmatprep.subr.bf16.mxu0 0
  %4075 = vmatpush2.bf16.msra.mxu0 0
  %4076 = vmatprep.subr.bf16.mxu0 0
  %4077 = vmatpush2.bf16.msra.mxu0 0
  %4078 = vmatprep.subr.bf16.mxu0 0
  %4079 = vmatpush2.bf16.msra.mxu0 0
  %4080 = vmatprep.subr.bf16.mxu0 0
  %4081 = vmatpush2.bf16.msra.mxu0 0
  %4082 = vmatprep.mubr.bf16.mxu0 0
  %4083 = vmatmul.mubr.bf16.gmra.mxu0 %v4048
  %v4084 = vpop.f32.mrf.mxu0
  %v4085 = vadd.f32 0.0, %v4084
  %v4086 = vpop.f32.mrf.mxu0
  %v4087 = vadd.f32 0.0, %v4086
  %v4088 = vpop.f32.mrf.mxu0
  %v4089 = vadd.f32 0.0, %v4088
  %v4090 = vpop.f32.mrf.mxu0
  %v4091 = vadd.f32 0.0, %v4090
  %4092 = vdwg.mxu0
  %4097 = vrot.lane.b32.xlu0 %v4031, 96
  %v4098 = vpop.permute.xlu0 %4097
  %4099 = vrot.lane.b32.xlu0 %v4033, 96
  %v4100 = vpop.permute.xlu0 %4099
  %4101 = vrot.lane.b32.xlu0 %v4035, 96
  %v4102 = vpop.permute.xlu0 %4101
  %4103 = vrot.lane.b32.xlu0 %v4037, 96
  %v4104 = vpop.permute.xlu0 %4103
  %v4105 = vsel %vm784, %v4098, %v4100
  %v4106 = vsel %vm784, %v4102, %v4104
  %4117 = vrot.lane.b32.xlu0 %v4085, 64
  %v4118 = vpop.permute.xlu0 %4117
  %4119 = vrot.lane.b32.xlu0 %v4087, 64
  %v4120 = vpop.permute.xlu0 %4119
  %4121 = vrot.lane.b32.xlu0 %v4089, 64
  %v4122 = vpop.permute.xlu0 %4121
  %4123 = vrot.lane.b32.xlu0 %v4091, 64
  %v4124 = vpop.permute.xlu0 %4123
  %vm4125 = vcmask 523264
  %v4126 = vsel %vm4125, %v4118, %v4120
  %v4127 = vsel %vm4125, %v4122, %v4124
  %v4134 = vsel %vm784, %v3979, %v4098
  %v4135 = vsel %vm784, %v3983, %v4102
  %v4136 = vsel %vm4125, %v4100, %v4118
  %v4137 = vsel %vm4125, %v4104, %v4122
  %v4138 = vld [vmem:[%s43] sm:$0xff]
  %v4139 = vld [vmem:[%s43 + $0x8] sm:$0xff]
  %v4140 = vld [vmem:[%s43 + $0x10] sm:$0xff]
  %v4141 = vld [vmem:[%s43 + $0x18] sm:$0xff]
  %v4142 = vld [vmem:[%s43 + $0x20] sm:$0xff]
  %v4143 = vld [vmem:[%s43 + $0x28] sm:$0xff]
  %v4144 = vld [vmem:[%s43 + $0x30] sm:$0xff]
  %v4145 = vld [vmem:[%s43 + $0x38] sm:$0xff]
  %v4146 = vld [vmem:[%s43 + $0x40] sm:$0xff]
  %v4147 = vld [vmem:[%s43 + $0x48] sm:$0xff]
  %v4148 = vld [vmem:[%s43 + $0x50] sm:$0xff]
  %v4149 = vld [vmem:[%s43 + $0x58] sm:$0xff]
  %v4150 = vld [vmem:[%s43 + $0x60] sm:$0xff]
  %v4151 = vld [vmem:[%s43 + $0x68] sm:$0xff]
  %v4152 = vld [vmem:[%s43 + $0x70] sm:$0xff]
  %v4153 = vld [vmem:[%s43 + $0x78] sm:$0xff]
  %v4154 = vld [vmem:[%s43 + $0x80] sm:$0xff]
  %v4155 = vld [vmem:[%s43 + $0x88] sm:$0xff]
  %v4156 = vld [vmem:[%s43 + $0x90] sm:$0xff]
  %v4157 = vld [vmem:[%s43 + $0x98] sm:$0xff]
  %v4158 = vld [vmem:[%s43 + $0xa0] sm:$0xff]
  %v4159 = vld [vmem:[%s43 + $0xa8] sm:$0xff]
  %v4160 = vld [vmem:[%s43 + $0xb0] sm:$0xff]
  %v4161 = vld [vmem:[%s43 + $0xb8] sm:$0xff]
  %v4162 = vld [vmem:[%s43 + $0xc0] sm:$0xff]
  %v4163 = vld [vmem:[%s43 + $0xc8] sm:$0xff]
  %v4164 = vld [vmem:[%s43 + $0xd0] sm:$0xff]
  %v4165 = vld [vmem:[%s43 + $0xd8] sm:$0xff]
  %v4166 = vld [vmem:[%s43 + $0xe0] sm:$0xff]
  %v4167 = vld [vmem:[%s43 + $0xe8] sm:$0xff]
  %v4168 = vld [vmem:[%s43 + $0xf0] sm:$0xff]
  %v4169 = vld [vmem:[%s43 + $0xf8] sm:$0xff]
  %v4170 = vld [vmem:[%s43 + $0x100] sm:$0xff]
  %v4171 = vld [vmem:[%s43 + $0x108] sm:$0xff]
  %v4172 = vld [vmem:[%s43 + $0x110] sm:$0xff]
  %v4173 = vld [vmem:[%s43 + $0x118] sm:$0xff]
  %v4174 = vld [vmem:[%s43 + $0x120] sm:$0xff]
  %v4175 = vld [vmem:[%s43 + $0x128] sm:$0xff]
  %v4176 = vld [vmem:[%s43 + $0x130] sm:$0xff]
  %v4177 = vld [vmem:[%s43 + $0x138] sm:$0xff]
  %v4178 = vld [vmem:[%s43 + $0x140] sm:$0xff]
  %v4179 = vld [vmem:[%s43 + $0x148] sm:$0xff]
  %v4180 = vld [vmem:[%s43 + $0x150] sm:$0xff]
  %v4181 = vld [vmem:[%s43 + $0x158] sm:$0xff]
  %v4182 = vld [vmem:[%s43 + $0x160] sm:$0xff]
  %v4183 = vld [vmem:[%s43 + $0x168] sm:$0xff]
  %v4184 = vld [vmem:[%s43 + $0x170] sm:$0xff]
  %v4185 = vld [vmem:[%s43 + $0x178] sm:$0xff]
  %v4186 = vld [vmem:[%s43 + $0x180] sm:$0xff]
  %v4187 = vld [vmem:[%s43 + $0x188] sm:$0xff]
  %v4188 = vld [vmem:[%s43 + $0x190] sm:$0xff]
  %v4189 = vld [vmem:[%s43 + $0x198] sm:$0xff]
  %v4190 = vld [vmem:[%s43 + $0x1a0] sm:$0xff]
  %v4191 = vld [vmem:[%s43 + $0x1a8] sm:$0xff]
  %v4192 = vld [vmem:[%s43 + $0x1b0] sm:$0xff]
  %v4193 = vld [vmem:[%s43 + $0x1b8] sm:$0xff]
  %v4194 = vld [vmem:[%s43 + $0x1c0] sm:$0xff]
  %v4195 = vld [vmem:[%s43 + $0x1c8] sm:$0xff]
  %v4196 = vld [vmem:[%s43 + $0x1d0] sm:$0xff]
  %v4197 = vld [vmem:[%s43 + $0x1d8] sm:$0xff]
  %v4198 = vld [vmem:[%s43 + $0x1e0] sm:$0xff]
  %v4199 = vld [vmem:[%s43 + $0x1e8] sm:$0xff]
  %v4200 = vld [vmem:[%s43 + $0x1f0] sm:$0xff]
  %v4201 = vld [vmem:[%s43 + $0x1f8] sm:$0xff]
  %v4202 = vld [vmem:[%s43 + $0x200] sm:$0xff]
  %v4203 = vld [vmem:[%s43 + $0x208] sm:$0xff]
  %v4204 = vld [vmem:[%s43 + $0x210] sm:$0xff]
  %v4205 = vld [vmem:[%s43 + $0x218] sm:$0xff]
  %v4206 = vld [vmem:[%s43 + $0x220] sm:$0xff]
  %v4207 = vld [vmem:[%s43 + $0x228] sm:$0xff]
  %v4208 = vld [vmem:[%s43 + $0x230] sm:$0xff]
  %v4209 = vld [vmem:[%s43 + $0x238] sm:$0xff]
  %v4210 = vld [vmem:[%s43 + $0x240] sm:$0xff]
  %v4211 = vld [vmem:[%s43 + $0x248] sm:$0xff]
  %v4212 = vld [vmem:[%s43 + $0x250] sm:$0xff]
  %v4213 = vld [vmem:[%s43 + $0x258] sm:$0xff]
  %v4214 = vld [vmem:[%s43 + $0x260] sm:$0xff]
  %v4215 = vld [vmem:[%s43 + $0x268] sm:$0xff]
  %v4216 = vld [vmem:[%s43 + $0x270] sm:$0xff]
  %v4217 = vld [vmem:[%s43 + $0x278] sm:$0xff]
  %v4218 = vld [vmem:[%s43 + $0x280] sm:$0xff]
  %v4219 = vld [vmem:[%s43 + $0x288] sm:$0xff]
  %v4220 = vld [vmem:[%s43 + $0x290] sm:$0xff]
  %v4221 = vld [vmem:[%s43 + $0x298] sm:$0xff]
  %v4222 = vpack.c.bf16 %v3981, %v3977
  %v4223 = vpack.c.bf16 %v4135, %v4134
  %v4224 = vpack.c.bf16 %v4106, %v4105
  %v4225 = vpack.c.bf16 %v4137, %v4136
  %v4226 = vpack.c.bf16 %v4127, %v4126
  %v4227 = vpack.c.bf16 %v4124, %v4120
  %v4312 = vunpack.c.l.b16 %v4138
  %v4313 = vunpack.c.h.b16 %v4138
  %v4314 = vunpack.c.l.b16 %v4139
  %v4315 = vunpack.c.h.b16 %v4139
  %v4316 = vunpack.c.l.b16 %v4140
  %v4317 = vunpack.c.h.b16 %v4140
  %v4318 = vunpack.c.l.b16 %v4141
  %v4319 = vunpack.c.h.b16 %v4141
  %v4320 = vunpack.c.l.b16 %v4142
  %v4321 = vunpack.c.h.b16 %v4142
  %v4322 = vunpack.c.l.b16 %v4143
  %v4323 = vunpack.c.h.b16 %v4143
  %v4324 = vunpack.c.l.b16 %v4144
  %v4325 = vunpack.c.h.b16 %v4144
  %v4326 = vunpack.c.l.b16 %v4145
  %v4327 = vunpack.c.h.b16 %v4145
  %v4328 = vunpack.c.l.b16 %v4146
  %v4329 = vunpack.c.h.b16 %v4146
  %v4330 = vunpack.c.l.b16 %v4147
  %v4331 = vunpack.c.h.b16 %v4147
  %v4332 = vunpack.c.l.b16 %v4148
  %v4333 = vunpack.c.h.b16 %v4148
  %v4334 = vunpack.c.l.b16 %v4149
  %v4335 = vunpack.c.h.b16 %v4149
  %v4336 = vunpack.c.l.b16 %v4150
  %v4337 = vunpack.c.h.b16 %v4150
  %v4338 = vunpack.c.l.b16 %v4151
  %v4339 = vunpack.c.h.b16 %v4151
  %v4340 = vunpack.c.l.b16 %v4152
  %v4341 = vunpack.c.h.b16 %v4152
  %v4342 = vunpack.c.l.b16 %v4153
  %v4343 = vunpack.c.h.b16 %v4153
  %v4344 = vunpack.c.l.b16 %v4154
  %v4345 = vunpack.c.h.b16 %v4154
  %v4346 = vunpack.c.l.b16 %v4155
  %v4347 = vunpack.c.h.b16 %v4155
  %v4348 = vunpack.c.l.b16 %v4156
  %v4349 = vunpack.c.h.b16 %v4156
  %v4350 = vunpack.c.l.b16 %v4157
  %v4351 = vunpack.c.h.b16 %v4157
  %v4352 = vunpack.c.l.b16 %v4158
  %v4353 = vunpack.c.h.b16 %v4158
  %v4354 = vunpack.c.l.b16 %v4159
  %v4355 = vunpack.c.h.b16 %v4159
  %v4356 = vunpack.c.l.b16 %v4160
  %v4357 = vunpack.c.h.b16 %v4160
  %v4358 = vunpack.c.l.b16 %v4161
  %v4359 = vunpack.c.h.b16 %v4161
  %v4360 = vunpack.c.l.b16 %v4162
  %v4361 = vunpack.c.h.b16 %v4162
  %v4362 = vunpack.c.l.b16 %v4163
  %v4363 = vunpack.c.h.b16 %v4163
  %v4364 = vunpack.c.l.b16 %v4164
  %v4365 = vunpack.c.h.b16 %v4164
  %v4366 = vunpack.c.l.b16 %v4165
  %v4367 = vunpack.c.h.b16 %v4165
  %v4368 = vunpack.c.l.b16 %v4166
  %v4369 = vunpack.c.h.b16 %v4166
  %v4370 = vunpack.c.l.b16 %v4167
  %v4371 = vunpack.c.h.b16 %v4167
  %v4372 = vunpack.c.l.b16 %v4168
  %v4373 = vunpack.c.h.b16 %v4168
  %v4374 = vunpack.c.l.b16 %v4169
  %v4375 = vunpack.c.h.b16 %v4169
  %v4376 = vunpack.c.l.b16 %v4170
  %v4377 = vunpack.c.h.b16 %v4170
  %v4378 = vunpack.c.l.b16 %v4171
  %v4379 = vunpack.c.h.b16 %v4171
  %v4380 = vunpack.c.l.b16 %v4172
  %v4381 = vunpack.c.h.b16 %v4172
  %v4382 = vunpack.c.l.b16 %v4173
  %v4383 = vunpack.c.h.b16 %v4173
  %v4384 = vunpack.c.l.b16 %v4174
  %v4385 = vunpack.c.h.b16 %v4174
  %v4386 = vunpack.c.l.b16 %v4175
  %v4387 = vunpack.c.h.b16 %v4175
  %v4388 = vunpack.c.l.b16 %v4176
  %v4389 = vunpack.c.h.b16 %v4176
  %v4390 = vunpack.c.l.b16 %v4177
  %v4391 = vunpack.c.h.b16 %v4177
  %v4392 = vunpack.c.l.b16 %v4178
  %v4393 = vunpack.c.h.b16 %v4178
  %v4394 = vunpack.c.l.b16 %v4179
  %v4395 = vunpack.c.h.b16 %v4179
  %v4396 = vunpack.c.l.b16 %v4180
  %v4397 = vunpack.c.h.b16 %v4180
  %v4398 = vunpack.c.l.b16 %v4181
  %v4399 = vunpack.c.h.b16 %v4181
  %v4400 = vunpack.c.l.b16 %v4182
  %v4401 = vunpack.c.h.b16 %v4182
  %v4402 = vunpack.c.l.b16 %v4183
  %v4403 = vunpack.c.h.b16 %v4183
  %v4404 = vunpack.c.l.b16 %v4184
  %v4405 = vunpack.c.h.b16 %v4184
  %v4406 = vunpack.c.l.b16 %v4185
  %v4407 = vunpack.c.h.b16 %v4185
  %v4408 = vunpack.c.l.b16 %v4186
  %v4409 = vunpack.c.h.b16 %v4186
  %v4410 = vunpack.c.l.b16 %v4187
  %v4411 = vunpack.c.h.b16 %v4187
  %v4412 = vunpack.c.l.b16 %v4188
  %v4413 = vunpack.c.h.b16 %v4188
  %v4414 = vunpack.c.l.b16 %v4189
  %v4415 = vunpack.c.h.b16 %v4189
  %v4416 = vunpack.c.l.b16 %v4190
  %v4417 = vunpack.c.h.b16 %v4190
  %v4418 = vunpack.c.l.b16 %v4191
  %v4419 = vunpack.c.h.b16 %v4191
  %v4420 = vunpack.c.l.b16 %v4192
  %v4421 = vunpack.c.h.b16 %v4192
  %v4422 = vunpack.c.l.b16 %v4193
  %v4423 = vunpack.c.h.b16 %v4193
  %v4424 = vunpack.c.l.b16 %v4194
  %v4425 = vunpack.c.h.b16 %v4194
  %v4426 = vunpack.c.l.b16 %v4195
  %v4427 = vunpack.c.h.b16 %v4195
  %v4428 = vunpack.c.l.b16 %v4196
  %v4429 = vunpack.c.h.b16 %v4196
  %v4430 = vunpack.c.l.b16 %v4197
  %v4431 = vunpack.c.h.b16 %v4197
  %v4432 = vunpack.c.l.b16 %v4198
  %v4433 = vunpack.c.h.b16 %v4198
  %v4434 = vunpack.c.l.b16 %v4199
  %v4435 = vunpack.c.h.b16 %v4199
  %v4436 = vunpack.c.l.b16 %v4200
  %v4437 = vunpack.c.h.b16 %v4200
  %v4438 = vunpack.c.l.b16 %v4201
  %v4439 = vunpack.c.h.b16 %v4201
  %v4440 = vunpack.c.l.b16 %v4202
  %v4441 = vunpack.c.h.b16 %v4202
  %v4442 = vunpack.c.l.b16 %v4203
  %v4443 = vunpack.c.h.b16 %v4203
  %v4444 = vunpack.c.l.b16 %v4204
  %v4445 = vunpack.c.h.b16 %v4204
  %v4446 = vunpack.c.l.b16 %v4205
  %v4447 = vunpack.c.h.b16 %v4205
  %v4448 = vunpack.c.l.b16 %v4206
  %v4449 = vunpack.c.h.b16 %v4206
  %v4450 = vunpack.c.l.b16 %v4207
  %v4451 = vunpack.c.h.b16 %v4207
  %v4452 = vunpack.c.l.b16 %v4208
  %v4453 = vunpack.c.h.b16 %v4208
  %v4454 = vunpack.c.l.b16 %v4209
  %v4455 = vunpack.c.h.b16 %v4209
  %v4456 = vunpack.c.l.b16 %v4210
  %v4457 = vunpack.c.h.b16 %v4210
  %v4458 = vunpack.c.l.b16 %v4211
  %v4459 = vunpack.c.h.b16 %v4211
  %v4460 = vunpack.c.l.b16 %v4212
  %v4461 = vunpack.c.h.b16 %v4212
  %v4462 = vunpack.c.l.b16 %v4213
  %v4463 = vunpack.c.h.b16 %v4213
  %v4464 = vunpack.c.l.b16 %v4214
  %v4465 = vunpack.c.h.b16 %v4214
  %v4466 = vunpack.c.l.b16 %v4215
  %v4467 = vunpack.c.h.b16 %v4215
  %v4468 = vunpack.c.l.b16 %v4216
  %v4469 = vunpack.c.h.b16 %v4216
  %v4470 = vunpack.c.l.b16 %v4217
  %v4471 = vunpack.c.h.b16 %v4217
  %v4472 = vunpack.c.l.b16 %v4218
  %v4473 = vunpack.c.h.b16 %v4218
  %v4474 = vunpack.c.l.b16 %v4219
  %v4475 = vunpack.c.h.b16 %v4219
  %v4476 = vunpack.c.l.b16 %v4220
  %v4477 = vunpack.c.h.b16 %v4220
  %v4478 = vunpack.c.l.b16 %v4221
  %v4479 = vunpack.c.h.b16 %v4221
  %v4480 = vpack.c.b16 %v4314, %v4312
  %v4481 = vpack.c.b16 %v4315, %v4313
  %v4482 = vpack.c.b16 %v4318, %v4316
  %v4483 = vpack.c.b16 %v4319, %v4317
  %v4484 = vpack.c.b16 %v4322, %v4320
  %v4485 = vpack.c.b16 %v4323, %v4321
  %v4486 = vpack.c.b16 %v4326, %v4324
  %v4487 = vpack.c.b16 %v4327, %v4325
  %v4488 = vpack.c.b16 %v4330, %v4328
  %v4489 = vpack.c.b16 %v4331, %v4329
  %v4490 = vpack.c.b16 %v4334, %v4332
  %v4491 = vpack.c.b16 %v4335, %v4333
  %v4492 = vpack.c.b16 %v4338, %v4336
  %v4493 = vpack.c.b16 %v4339, %v4337
  %v4494 = vpack.c.b16 %v4342, %v4340
  %v4495 = vpack.c.b16 %v4343, %v4341
  %v4496 = vpack.c.b16 %v4346, %v4344
  %v4497 = vpack.c.b16 %v4347, %v4345
  %v4498 = vpack.c.b16 %v4350, %v4348
  %v4499 = vpack.c.b16 %v4351, %v4349
  %v4500 = vpack.c.b16 %v4354, %v4352
  %v4501 = vpack.c.b16 %v4355, %v4353
  %v4502 = vpack.c.b16 %v4358, %v4356
  %v4503 = vpack.c.b16 %v4359, %v4357
  %v4504 = vpack.c.b16 %v4362, %v4360
  %v4505 = vpack.c.b16 %v4363, %v4361
  %v4506 = vpack.c.b16 %v4366, %v4364
  %v4507 = vpack.c.b16 %v4367, %v4365
  %v4508 = vpack.c.b16 %v4370, %v4368
  %v4509 = vpack.c.b16 %v4371, %v4369
  %v4510 = vpack.c.b16 %v4374, %v4372
  %v4511 = vpack.c.b16 %v4375, %v4373
  %v4512 = vpack.c.b16 %v4378, %v4376
  %v4513 = vpack.c.b16 %v4379, %v4377
  %v4514 = vpack.c.b16 %v4382, %v4380
  %v4515 = vpack.c.b16 %v4383, %v4381
  %v4516 = vpack.c.b16 %v4386, %v4384
  %v4517 = vpack.c.b16 %v4387, %v4385
  %v4518 = vpack.c.b16 %v4390, %v4388
  %v4519 = vpack.c.b16 %v4391, %v4389
  %v4520 = vpack.c.b16 %v4394, %v4392
  %v4521 = vpack.c.b16 %v4395, %v4393
  %v4522 = vpack.c.b16 %v4398, %v4396
  %v4523 = vpack.c.b16 %v4399, %v4397
  %v4524 = vpack.c.b16 %v4402, %v4400
  %v4525 = vpack.c.b16 %v4403, %v4401
  %v4526 = vpack.c.b16 %v4406, %v4404
  %v4527 = vpack.c.b16 %v4407, %v4405
  %v4528 = vpack.c.b16 %v4410, %v4408
  %v4529 = vpack.c.b16 %v4411, %v4409
  %v4530 = vpack.c.b16 %v4414, %v4412
  %v4531 = vpack.c.b16 %v4415, %v4413
  %v4532 = vpack.c.b16 %v4418, %v4416
  %v4533 = vpack.c.b16 %v4419, %v4417
  %v4534 = vpack.c.b16 %v4422, %v4420
  %v4535 = vpack.c.b16 %v4423, %v4421
  %v4536 = vpack.c.b16 %v4426, %v4424
  %v4537 = vpack.c.b16 %v4427, %v4425
  %v4538 = vpack.c.b16 %v4430, %v4428
  %v4539 = vpack.c.b16 %v4431, %v4429
  %v4540 = vpack.c.b16 %v4434, %v4432
  %v4541 = vpack.c.b16 %v4435, %v4433
  %v4542 = vpack.c.b16 %v4438, %v4436
  %v4543 = vpack.c.b16 %v4439, %v4437
  %v4544 = vpack.c.b16 %v4442, %v4440
  %v4545 = vpack.c.b16 %v4443, %v4441
  %v4546 = vpack.c.b16 %v4446, %v4444
  %v4547 = vpack.c.b16 %v4447, %v4445
  %v4548 = vpack.c.b16 %v4450, %v4448
  %v4549 = vpack.c.b16 %v4451, %v4449
  %v4550 = vpack.c.b16 %v4454, %v4452
  %v4551 = vpack.c.b16 %v4455, %v4453
  %v4552 = vpack.c.b16 %v4458, %v4456
  %v4553 = vpack.c.b16 %v4459, %v4457
  %v4554 = vpack.c.b16 %v4462, %v4460
  %v4555 = vpack.c.b16 %v4463, %v4461
  %v4556 = vpack.c.b16 %v4466, %v4464
  %v4557 = vpack.c.b16 %v4467, %v4465
  %v4558 = vpack.c.b16 %v4470, %v4468
  %v4559 = vpack.c.b16 %v4471, %v4469
  %v4560 = vpack.c.b16 %v4474, %v4472
  %v4561 = vpack.c.b16 %v4475, %v4473
  %v4562 = vpack.c.b16 %v4478, %v4476
  %v4563 = vpack.c.b16 %v4479, %v4477
  %vm4648 = vcmask 261120
  %v4650 = vsel %vm4648, %v4227, 0
  %4652 = vmatprep.subr.bf16.mxu0 %v4495
  %4653 = vmatpush1.bf16.msra.mxu0 %v4494
  %4654 = vmatprep.subr.bf16.mxu0 %v4493
  %4655 = vmatpush1.bf16.msra.mxu0 %v4492
  %4656 = vmatprep.subr.bf16.mxu0 %v4491
  %4657 = vmatpush1.bf16.msra.mxu0 %v4490
  %4658 = vmatprep.subr.bf16.mxu0 %v4489
  %4659 = vmatpush1.bf16.msra.mxu0 %v4488
  %4660 = vmatprep.subr.bf16.mxu0 %v4487
  %4661 = vmatpush1.bf16.msra.mxu0 %v4486
  %4662 = vmatprep.subr.bf16.mxu0 %v4485
  %4663 = vmatpush1.bf16.msra.mxu0 %v4484
  %4664 = vmatprep.subr.bf16.mxu0 %v4483
  %4665 = vmatpush1.bf16.msra.mxu0 %v4482
  %4666 = vmatprep.subr.bf16.mxu0 %v4481
  %4667 = vmatpush1.bf16.msra.mxu0 %v4480
  %4668 = vmatprep.subr.bf16.mxu0 %v4511
  %4669 = vmatpush2.bf16.msra.mxu0 %v4510
  %4670 = vmatprep.subr.bf16.mxu0 %v4509
  %4671 = vmatpush2.bf16.msra.mxu0 %v4508
  %4672 = vmatprep.subr.bf16.mxu0 %v4507
  %4673 = vmatpush2.bf16.msra.mxu0 %v4506
  %4674 = vmatprep.subr.bf16.mxu0 %v4505
  %4675 = vmatpush2.bf16.msra.mxu0 %v4504
  %4676 = vmatprep.subr.bf16.mxu0 %v4503
  %4677 = vmatpush2.bf16.msra.mxu0 %v4502
  %4678 = vmatprep.subr.bf16.mxu0 %v4501
  %4679 = vmatpush2.bf16.msra.mxu0 %v4500
  %4680 = vmatprep.subr.bf16.mxu0 %v4499
  %4681 = vmatpush2.bf16.msra.mxu0 %v4498
  %4682 = vmatprep.subr.bf16.mxu0 %v4497
  %4683 = vmatpush2.bf16.msra.mxu0 %v4496
  %4684 = vmatprep.mubr.bf16.mxu0 %v4223
  %4685 = vmatmul.mubr.bf16.gmra.mxu0 %v4222
  %v4686 = vpop.f32.mrf.mxu0
  %v4687 = vadd.f32 0.0, %v4686
  %v4688 = vpop.f32.mrf.mxu0
  %v4689 = vadd.f32 0.0, %v4688
  %v4690 = vpop.f32.mrf.mxu0
  %v4691 = vadd.f32 0.0, %v4690
  %v4692 = vpop.f32.mrf.mxu0
  %v4693 = vadd.f32 0.0, %v4692
  %4694 = vdwg.mxu0
  %4695 = vmatprep.subr.bf16.mxu0 %v4527
  %4696 = vmatpush1.bf16.msra.mxu0 %v4526
  %4697 = vmatprep.subr.bf16.mxu0 %v4525
  %4698 = vmatpush1.bf16.msra.mxu0 %v4524
  %4699 = vmatprep.subr.bf16.mxu0 %v4523
  %4700 = vmatpush1.bf16.msra.mxu0 %v4522
  %4701 = vmatprep.subr.bf16.mxu0 %v4521
  %4702 = vmatpush1.bf16.msra.mxu0 %v4520
  %4703 = vmatprep.subr.bf16.mxu0 %v4519
  %4704 = vmatpush1.bf16.msra.mxu0 %v4518
  %4705 = vmatprep.subr.bf16.mxu0 %v4517
  %4706 = vmatpush1.bf16.msra.mxu0 %v4516
  %4707 = vmatprep.subr.bf16.mxu0 %v4515
  %4708 = vmatpush1.bf16.msra.mxu0 %v4514
  %4709 = vmatprep.subr.bf16.mxu0 %v4513
  %4710 = vmatpush1.bf16.msra.mxu0 %v4512
  %4711 = vmatprep.subr.bf16.mxu0 %v4543
  %4712 = vmatpush2.bf16.msra.mxu0 %v4542
  %4713 = vmatprep.subr.bf16.mxu0 %v4541
  %4714 = vmatpush2.bf16.msra.mxu0 %v4540
  %4715 = vmatprep.subr.bf16.mxu0 %v4539
  %4716 = vmatpush2.bf16.msra.mxu0 %v4538
  %4717 = vmatprep.subr.bf16.mxu0 %v4537
  %4718 = vmatpush2.bf16.msra.mxu0 %v4536
  %4719 = vmatprep.subr.bf16.mxu0 %v4535
  %4720 = vmatpush2.bf16.msra.mxu0 %v4534
  %4721 = vmatprep.subr.bf16.mxu0 %v4533
  %4722 = vmatpush2.bf16.msra.mxu0 %v4532
  %4723 = vmatprep.subr.bf16.mxu0 %v4531
  %4724 = vmatpush2.bf16.msra.mxu0 %v4530
  %4725 = vmatprep.subr.bf16.mxu0 %v4529
  %4726 = vmatpush2.bf16.msra.mxu0 %v4528
  %4727 = vmatprep.mubr.bf16.mxu0 %v4225
  %4728 = vmatmul.mubr.bf16.gmra.mxu0 %v4224
  %v4729 = vpop.f32.mrf.mxu0
  %v4730 = vadd.f32 %v4687, %v4729
  %v4731 = vpop.f32.mrf.mxu0
  %v4732 = vadd.f32 %v4689, %v4731
  %v4733 = vpop.f32.mrf.mxu0
  %v4734 = vadd.f32 %v4691, %v4733
  %v4735 = vpop.f32.mrf.mxu0
  %v4736 = vadd.f32 %v4693, %v4735
  %4737 = vdwg.mxu0
  %4738 = vmatprep.subr.bf16.mxu0 %v4559
  %4739 = vmatpush1.bf16.msra.mxu0 %v4558
  %4740 = vmatprep.subr.bf16.mxu0 %v4557
  %4741 = vmatpush1.bf16.msra.mxu0 %v4556
  %4742 = vmatprep.subr.bf16.mxu0 %v4555
  %4743 = vmatpush1.bf16.msra.mxu0 %v4554
  %4744 = vmatprep.subr.bf16.mxu0 %v4553
  %4745 = vmatpush1.bf16.msra.mxu0 %v4552
  %4746 = vmatprep.subr.bf16.mxu0 %v4551
  %4747 = vmatpush1.bf16.msra.mxu0 %v4550
  %4748 = vmatprep.subr.bf16.mxu0 %v4549
  %4749 = vmatpush1.bf16.msra.mxu0 %v4548
  %4750 = vmatprep.subr.bf16.mxu0 %v4547
  %4751 = vmatpush1.bf16.msra.mxu0 %v4546
  %4752 = vmatprep.subr.bf16.mxu0 %v4545
  %4753 = vmatpush1.bf16.msra.mxu0 %v4544
  %4754 = vmatprep.subr.bf16.mxu0 0
  %4755 = vmatpush2.bf16.msra.mxu0 0
  %4756 = vmatprep.subr.bf16.mxu0 0
  %4757 = vmatpush2.bf16.msra.mxu0 0
  %4758 = vmatprep.subr.bf16.mxu0 0
  %4759 = vmatpush2.bf16.msra.mxu0 0
  %4760 = vmatprep.subr.bf16.mxu0 0
  %4761 = vmatpush2.bf16.msra.mxu0 0
  %4762 = vmatprep.subr.bf16.mxu0 0
  %4763 = vmatpush2.bf16.msra.mxu0 0
  %4764 = vmatprep.subr.bf16.mxu0 0
  %4765 = vmatpush2.bf16.msra.mxu0 0
  %4766 = vmatprep.subr.bf16.mxu0 %v4563
  %4767 = vmatpush2.bf16.msra.mxu0 %v4562
  %4768 = vmatprep.subr.bf16.mxu0 %v4561
  %4769 = vmatpush2.bf16.msra.mxu0 %v4560
  %4770 = vmatprep.mubr.bf16.mxu0 %v4650
  %4771 = vmatmul.mubr.bf16.gmra.mxu0 %v4226
  %v4772 = vpop.f32.mrf.mxu0
  %v4773 = vadd.f32 %v4730, %v4772
  %v4774 = vpop.f32.mrf.mxu0
  %v4775 = vadd.f32 %v4732, %v4774
  %v4776 = vpop.f32.mrf.mxu0
  %v4777 = vadd.f32 %v4734, %v4776
  %v4778 = vpop.f32.mrf.mxu0
  %v4779 = vadd.f32 %v4736, %v4778
  %4780 = vdwg.mxu0
  %v4781 = vsel %vm3935, %v4777, 0.0
  %v4782 = vadd.f32 %v4773, %v4781
  %v4783 = vrot.slane %v4782, 4
  %v4784 = vadd.f32 %v4782, %v4783
  %v4785 = vrot.slane %v4784, 2
  %v4786 = vadd.f32 %v4784, %v4785
  %v4787 = vrot.slane %v4786, 1
  %v4788 = vadd.f32 %v4786, %v4787
  %v4789 = vsel %vm784, %v4775, 0.0
  %vm4790 = vcmask 783360
  %v4791 = vsel %vm4790, %v4779, 0.0
  %v4792 = vadd.f32 %v4789, %v4791
  %v4793 = vrot.slane %v4792, 4
  %v4794 = vadd.f32 %v4792, %v4793
  %v4795 = vrot.slane %v4794, 2
  %v4796 = vadd.f32 %v4794, %v4795
  %v4797 = vrot.slane %v4796, 1
  %v4798 = vadd.f32 %v4796, %v4797
  %v4799 = vld [vmem:[%s45] sm:$0xff]
  %v4800 = vld [vmem:[%s45 + $0x8] sm:$0xff]
  %v4801 = vld [vmem:[%s45 + $0x10] sm:$0xff]
  %v4802 = vld [vmem:[%s45 + $0x18] sm:$0xff]
  %v4803 = vld [vmem:[%s45 + $0x20] sm:$0xff]
  %v4804 = vld [vmem:[%s45 + $0x28] sm:$0xff]
  %v4805 = vld [vmem:[%s45 + $0x30] sm:$0xff]
  %v4806 = vld [vmem:[%s45 + $0x38] sm:$0xff]
  %v4807 = vld [vmem:[%s45 + $0x40] sm:$0xff]
  %v4808 = vld [vmem:[%s45 + $0x48] sm:$0xff]
  %v4809 = vld [vmem:[%s45 + $0x50] sm:$0xff]
  %v4810 = vld [vmem:[%s45 + $0x58] sm:$0xff]
  %v4811 = vld [vmem:[%s45 + $0x60] sm:$0xff]
  %v4812 = vld [vmem:[%s45 + $0x68] sm:$0xff]
  %v4813 = vld [vmem:[%s45 + $0x70] sm:$0xff]
  %v4814 = vld [vmem:[%s45 + $0x78] sm:$0xff]
  %v4815 = vld [vmem:[%s45 + $0x80] sm:$0xff]
  %v4816 = vld [vmem:[%s45 + $0x88] sm:$0xff]
  %v4817 = vld [vmem:[%s45 + $0x90] sm:$0xff]
  %v4818 = vld [vmem:[%s45 + $0x98] sm:$0xff]
  %v4819 = vld [vmem:[%s45 + $0xa0] sm:$0xff]
  %v4820 = vld [vmem:[%s45 + $0xa8] sm:$0xff]
  %v4821 = vld [vmem:[%s45 + $0xb0] sm:$0xff]
  %v4822 = vld [vmem:[%s45 + $0xb8] sm:$0xff]
  %v4823 = vld [vmem:[%s45 + $0xc0] sm:$0xff]
  %v4824 = vld [vmem:[%s45 + $0xc8] sm:$0xff]
  %v4825 = vld [vmem:[%s45 + $0xd0] sm:$0xff]
  %v4826 = vld [vmem:[%s45 + $0xd8] sm:$0xff]
  %v4828 = vsel %vm784, %v4798, 0
  %4830 = vmatprep.subr.mxu0 0.0
  %4831 = vmatpush1.msra.mxu0 %v4814
  %4832 = vmatprep.subr.mxu0 0.0
  %4833 = vmatpush1.msra.mxu0 %v4813
  %4834 = vmatprep.subr.mxu0 0.0
  %4835 = vmatpush1.msra.mxu0 %v4812
  %4836 = vmatprep.subr.mxu0 0.0
  %4837 = vmatpush1.msra.mxu0 %v4811
  %4838 = vmatprep.subr.mxu0 0.0
  %4839 = vmatpush1.msra.mxu0 %v4810
  %4840 = vmatprep.subr.mxu0 0.0
  %4841 = vmatpush1.msra.mxu0 %v4809
  %4842 = vmatprep.subr.mxu0 0.0
  %4843 = vmatpush1.msra.mxu0 %v4808
  %4844 = vmatprep.subr.mxu0 0.0
  %4845 = vmatpush1.msra.mxu0 %v4807
  %4846 = vmatprep.subr.mxu0 0.0
  %4847 = vmatpush1.msra.mxu0 %v4806
  %4848 = vmatprep.subr.mxu0 0.0
  %4849 = vmatpush1.msra.mxu0 %v4805
  %4850 = vmatprep.subr.mxu0 0.0
  %4851 = vmatpush1.msra.mxu0 %v4804
  %4852 = vmatprep.subr.mxu0 0.0
  %4853 = vmatpush1.msra.mxu0 %v4803
  %4854 = vmatprep.subr.mxu0 0.0
  %4855 = vmatpush1.msra.mxu0 %v4802
  %4856 = vmatprep.subr.mxu0 0.0
  %4857 = vmatpush1.msra.mxu0 %v4801
  %4858 = vmatprep.subr.mxu0 0.0
  %4859 = vmatpush1.msra.mxu0 %v4800
  %4860 = vmatprep.subr.mxu0 0.0
  %4861 = vmatpush1.msra.mxu0 %v4799
  %4862 = vmatprep.subr.mxu0 0.0
  %4863 = vmatpush2.msra.mxu0 0.0
  %4864 = vmatprep.subr.mxu0 0.0
  %4865 = vmatpush2.msra.mxu0 0.0
  %4866 = vmatprep.subr.mxu0 0.0
  %4867 = vmatpush2.msra.mxu0 0.0
  %4868 = vmatprep.subr.mxu0 0.0
  %4869 = vmatpush2.msra.mxu0 0.0
  %4870 = vmatprep.subr.mxu0 0.0
  %4871 = vmatpush2.msra.mxu0 %v4826
  %4872 = vmatprep.subr.mxu0 0.0
  %4873 = vmatpush2.msra.mxu0 %v4825
  %4874 = vmatprep.subr.mxu0 0.0
  %4875 = vmatpush2.msra.mxu0 %v4824
  %4876 = vmatprep.subr.mxu0 0.0
  %4877 = vmatpush2.msra.mxu0 %v4823
  %4878 = vmatprep.subr.mxu0 0.0
  %4879 = vmatpush2.msra.mxu0 %v4822
  %4880 = vmatprep.subr.mxu0 0.0
  %4881 = vmatpush2.msra.mxu0 %v4821
  %4882 = vmatprep.subr.mxu0 0.0
  %4883 = vmatpush2.msra.mxu0 %v4820
  %4884 = vmatprep.subr.mxu0 0.0
  %4885 = vmatpush2.msra.mxu0 %v4819
  %4886 = vmatprep.subr.mxu0 0.0
  %4887 = vmatpush2.msra.mxu0 %v4818
  %4888 = vmatprep.subr.mxu0 0.0
  %4889 = vmatpush2.msra.mxu0 %v4817
  %4890 = vmatprep.subr.mxu0 0.0
  %4891 = vmatpush2.msra.mxu0 %v4816
  %4892 = vmatprep.subr.mxu0 0.0
  %4893 = vmatpush2.msra.mxu0 %v4815
  %4894 = vmatprep.mubr.f32.mxu0 %v4828
  %4895 = vmatmul.mubr.f32.gmra.mxu0 %v4788
  %v4896 = vpop.f32.mrf.mxu0
  %v4897 = vadd.f32 0.0, %v4896
  %v4898 = vpop.f32.mrf.mxu0
  %4899 = vdwg.mxu0
  %v4900 = vmul.f32 %v4773, %v4773
  %v4901 = vmul.f32 %v4775, %v4775
  %v4902 = vmul.f32 %v4777, %v4777
  %v4903 = vmul.f32 %v4779, %v4779
  %v4904 = vsel %vm3935, %v4902, 0.0
  %v4905 = vadd.f32 %v4900, %v4904
  %v4906 = vrot.slane %v4905, 4
  %v4907 = vadd.f32 %v4905, %v4906
  %v4908 = vrot.slane %v4907, 2
  %v4909 = vadd.f32 %v4907, %v4908
  %v4910 = vrot.slane %v4909, 1
  %v4911 = vadd.f32 %v4909, %v4910
  %v4912 = vsel %vm784, %v4901, 0.0
  %v4913 = vsel %vm4790, %v4903, 0.0
  %v4914 = vadd.f32 %v4912, %v4913
  %v4915 = vrot.slane %v4914, 4
  %v4916 = vadd.f32 %v4914, %v4915
  %v4917 = vrot.slane %v4916, 2
  %v4918 = vadd.f32 %v4916, %v4917
  %v4919 = vrot.slane %v4918, 1
  %v4920 = vadd.f32 %v4918, %v4919
  %v4922 = vsel %vm784, %v4920, 0
  %4924 = vmatprep.subr.mxu0 0.0
  %4925 = vmatpush1.msra.mxu0 %v4814
  %4926 = vmatprep.subr.mxu0 0.0
  %4927 = vmatpush1.msra.mxu0 %v4813
  %4928 = vmatprep.subr.mxu0 0.0
  %4929 = vmatpush1.msra.mxu0 %v4812
  %4930 = vmatprep.subr.mxu0 0.0
  %4931 = vmatpush1.msra.mxu0 %v4811
  %4932 = vmatprep.subr.mxu0 0.0
  %4933 = vmatpush1.msra.mxu0 %v4810
  %4934 = vmatprep.subr.mxu0 0.0
  %4935 = vmatpush1.msra.mxu0 %v4809
  %4936 = vmatprep.subr.mxu0 0.0
  %4937 = vmatpush1.msra.mxu0 %v4808
  %4938 = vmatprep.subr.mxu0 0.0
  %4939 = vmatpush1.msra.mxu0 %v4807
  %4940 = vmatprep.subr.mxu0 0.0
  %4941 = vmatpush1.msra.mxu0 %v4806
  %4942 = vmatprep.subr.mxu0 0.0
  %4943 = vmatpush1.msra.mxu0 %v4805
  %4944 = vmatprep.subr.mxu0 0.0
  %4945 = vmatpush1.msra.mxu0 %v4804
  %4946 = vmatprep.subr.mxu0 0.0
  %4947 = vmatpush1.msra.mxu0 %v4803
  %4948 = vmatprep.subr.mxu0 0.0
  %4949 = vmatpush1.msra.mxu0 %v4802
  %4950 = vmatprep.subr.mxu0 0.0
  %4951 = vmatpush1.msra.mxu0 %v4801
  %4952 = vmatprep.subr.mxu0 0.0
  %4953 = vmatpush1.msra.mxu0 %v4800
  %4954 = vmatprep.subr.mxu0 0.0
  %4955 = vmatpush1.msra.mxu0 %v4799
  %4956 = vmatprep.subr.mxu0 0.0
  %4957 = vmatpush2.msra.mxu0 0.0
  %4958 = vmatprep.subr.mxu0 0.0
  %4959 = vmatpush2.msra.mxu0 0.0
  %4960 = vmatprep.subr.mxu0 0.0
  %4961 = vmatpush2.msra.mxu0 0.0
  %4962 = vmatprep.subr.mxu0 0.0
  %4963 = vmatpush2.msra.mxu0 0.0
  %4964 = vmatprep.subr.mxu0 0.0
  %4965 = vmatpush2.msra.mxu0 %v4826
  %4966 = vmatprep.subr.mxu0 0.0
  %4967 = vmatpush2.msra.mxu0 %v4825
  %4968 = vmatprep.subr.mxu0 0.0
  %4969 = vmatpush2.msra.mxu0 %v4824
  %4970 = vmatprep.subr.mxu0 0.0
  %4971 = vmatpush2.msra.mxu0 %v4823
  %4972 = vmatprep.subr.mxu0 0.0
  %4973 = vmatpush2.msra.mxu0 %v4822
  %4974 = vmatprep.subr.mxu0 0.0
  %4975 = vmatpush2.msra.mxu0 %v4821
  %4976 = vmatprep.subr.mxu0 0.0
  %4977 = vmatpush2.msra.mxu0 %v4820
  %4978 = vmatprep.subr.mxu0 0.0
  %4979 = vmatpush2.msra.mxu0 %v4819
  %4980 = vmatprep.subr.mxu0 0.0
  %4981 = vmatpush2.msra.mxu0 %v4818
  %4982 = vmatprep.subr.mxu0 0.0
  %4983 = vmatpush2.msra.mxu0 %v4817
  %4984 = vmatprep.subr.mxu0 0.0
  %4985 = vmatpush2.msra.mxu0 %v4816
  %4986 = vmatprep.subr.mxu0 0.0
  %4987 = vmatpush2.msra.mxu0 %v4815
  %4988 = vmatprep.mubr.f32.mxu0 %v4922
  %4989 = vmatmul.mubr.f32.gmra.mxu0 %v4911
  %v4990 = vpop.f32.mrf.mxu0
  %v4991 = vadd.f32 0.0, %v4990
  %v4992 = vpop.f32.mrf.mxu0
  %4993 = vdwg.mxu0
  %v4994 = vmul.f32 %v4897, 0.010204081
  %v4995 = vmul.f32 %v4991, 0.010204081
  %v4996 = vmul.f32 %v4994, %v4994
  %v4997 = vsub.f32 %v4995, %v4996
  %v4998 = vmax.f32 %v4997, 0.0
  %v4999 = vld [vmem:[%s49] sm:$0x3]
  %v5000 = vadd.f32 %v4998, 1e-05
  %v5001 = vrsqrt.pop %v5000
  %v5002 = vmul.f32 %v5001, %v4999
  %v5003 = vmul.f32 %v4994, %v5002
  %v5005 = vrot.slane %v5003, 7
  %v5007 = vsub.f32 %v4999, %v5005
  %v5008 = vld [vmem:[%s47] sm:$0xff]
  %v5009 = vld [vmem:[%s47 + $0x8] sm:$0xff]
  %v5010 = vld [vmem:[%s47 + $0x10] sm:$0xff]
  %v5011 = vld [vmem:[%s47 + $0x18] sm:$0xff]
  %v5012 = vld [vmem:[%s47 + $0x20] sm:$0xff]
  %v5013 = vld [vmem:[%s47 + $0x28] sm:$0xff]
  %v5014 = vld [vmem:[%s47 + $0x30] sm:$0xff]
  %v5015 = vld [vmem:[%s47 + $0x38] sm:$0xff]
  %v5017 = vsel %vm4648, %v5002, 0
  %5019 = vmatprep.subr.mxu0 0.0
  %5020 = vmatpush1.msra.mxu0 0.0
  %5021 = vmatprep.subr.mxu0 0.0
  %5022 = vmatpush1.msra.mxu0 0.0
  %5023 = vmatprep.subr.mxu0 0.0
  %5024 = vmatpush1.msra.mxu0 0.0
  %5025 = vmatprep.subr.mxu0 0.0
  %5026 = vmatpush1.msra.mxu0 0.0
  %5027 = vmatprep.subr.mxu0 0.0
  %5028 = vmatpush1.msra.mxu0 0.0
  %5029 = vmatprep.subr.mxu0 0.0
  %5030 = vmatpush1.msra.mxu0 0.0
  %5031 = vmatprep.subr.mxu0 0.0
  %5032 = vmatpush1.msra.mxu0 0.0
  %5033 = vmatprep.subr.mxu0 0.0
  %5034 = vmatpush1.msra.mxu0 0.0
  %5035 = vmatprep.subr.mxu0 0.0
  %5036 = vmatpush1.msra.mxu0 0.0
  %5037 = vmatprep.subr.mxu0 0.0
  %5038 = vmatpush1.msra.mxu0 0.0
  %5039 = vmatprep.subr.mxu0 0.0
  %5040 = vmatpush1.msra.mxu0 0.0
  %5041 = vmatprep.subr.mxu0 0.0
  %5042 = vmatpush1.msra.mxu0 0.0
  %5043 = vmatprep.subr.mxu0 %v5015
  %5044 = vmatpush1.msra.mxu0 %v5014
  %5045 = vmatprep.subr.mxu0 %v5013
  %5046 = vmatpush1.msra.mxu0 %v5012
  %5047 = vmatprep.subr.mxu0 %v5011
  %5048 = vmatpush1.msra.mxu0 %v5010
  %5049 = vmatprep.subr.mxu0 %v5009
  %5050 = vmatpush1.msra.mxu0 %v5008
  %5051 = vmatprep.subr.mxu0 0.0
  %5052 = vmatpush2.msra.mxu0 0.0
  %5053 = vmatprep.subr.mxu0 0.0
  %5054 = vmatpush2.msra.mxu0 0.0
  %5055 = vmatprep.subr.mxu0 0.0
  %5056 = vmatpush2.msra.mxu0 0.0
  %5057 = vmatprep.subr.mxu0 0.0
  %5058 = vmatpush2.msra.mxu0 0.0
  %5059 = vmatprep.subr.mxu0 0.0
  %5060 = vmatpush2.msra.mxu0 0.0
  %5061 = vmatprep.subr.mxu0 0.0
  %5062 = vmatpush2.msra.mxu0 0.0
  %5063 = vmatprep.subr.mxu0 0.0
  %5064 = vmatpush2.msra.mxu0 0.0
  %5065 = vmatprep.subr.mxu0 0.0
  %5066 = vmatpush2.msra.mxu0 0.0
  %5067 = vmatprep.subr.mxu0 0.0
  %5068 = vmatpush2.msra.mxu0 0.0
  %5069 = vmatprep.subr.mxu0 0.0
  %5070 = vmatpush2.msra.mxu0 0.0
  %5071 = vmatprep.subr.mxu0 0.0
  %5072 = vmatpush2.msra.mxu0 0.0
  %5073 = vmatprep.subr.mxu0 0.0
  %5074 = vmatpush2.msra.mxu0 0.0
  %5075 = vmatprep.subr.mxu0 0.0
  %5076 = vmatpush2.msra.mxu0 0.0
  %5077 = vmatprep.subr.mxu0 0.0
  %5078 = vmatpush2.msra.mxu0 0.0
  %5079 = vmatprep.subr.mxu0 0.0
  %5080 = vmatpush2.msra.mxu0 0.0
  %5081 = vmatprep.subr.mxu0 0.0
  %5082 = vmatpush2.msra.mxu0 0.0
  %5083 = vmatprep.mubr.f32.mxu0 0.0
  %5084 = vmatmul.mubr.f32.gmra.mxu0 %v5017
  %v5085 = vpop.f32.mrf.mxu0
  %v5086 = vadd.f32 0.0, %v5085
  %v5087 = vpop.f32.mrf.mxu0
  %v5088 = vadd.f32 0.0, %v5087
  %5089 = vdwg.mxu0
  %v5090 = vlaneseq
  %v5091 = vshrl.u32 %v5090, 7
  %v5092 = vsub.s32 0, %v5091
  %v5093 = vrot.slane %v5086, %v5092
  %v5094 = vlaneseq
  %v5095 = vshrl.u32 %v5094, 7
  %v5096 = vsub.s32 0, %v5095
  %v5097 = vrot.slane %v5088, %v5096
  %v5098 = vmul.f32 %v4773, %v5093
  %v5099 = vmul.f32 %v4775, %v5097
  %v5100 = vmul.f32 %v4777, %v5093
  %v5101 = vmul.f32 %v4779, %v5097
  %v5103 = vrot.slane %v5007, 1
  %v5104 = vsel %vm4648, %v5103, 0
  %5106 = vmatprep.subr.mxu0 0.0
  %5107 = vmatpush1.msra.mxu0 0.0
  %5108 = vmatprep.subr.mxu0 0.0
  %5109 = vmatpush1.msra.mxu0 0.0
  %5110 = vmatprep.subr.mxu0 0.0
  %5111 = vmatpush1.msra.mxu0 0.0
  %5112 = vmatprep.subr.mxu0 0.0
  %5113 = vmatpush1.msra.mxu0 0.0
  %5114 = vmatprep.subr.mxu0 0.0
  %5115 = vmatpush1.msra.mxu0 0.0
  %5116 = vmatprep.subr.mxu0 0.0
  %5117 = vmatpush1.msra.mxu0 0.0
  %5118 = vmatprep.subr.mxu0 0.0
  %5119 = vmatpush1.msra.mxu0 0.0
  %5120 = vmatprep.subr.mxu0 0.0
  %5121 = vmatpush1.msra.mxu0 0.0
  %5122 = vmatprep.subr.mxu0 0.0
  %5123 = vmatpush1.msra.mxu0 0.0
  %5124 = vmatprep.subr.mxu0 0.0
  %5125 = vmatpush1.msra.mxu0 0.0
  %5126 = vmatprep.subr.mxu0 0.0
  %5127 = vmatpush1.msra.mxu0 0.0
  %5128 = vmatprep.subr.mxu0 0.0
  %5129 = vmatpush1.msra.mxu0 0.0
  %5130 = vmatprep.subr.mxu0 %v5015
  %5131 = vmatpush1.msra.mxu0 %v5014
  %5132 = vmatprep.subr.mxu0 %v5013
  %5133 = vmatpush1.msra.mxu0 %v5012
  %5134 = vmatprep.subr.mxu0 %v5011
  %5135 = vmatpush1.msra.mxu0 %v5010
  %5136 = vmatprep.subr.mxu0 %v5009
  %5137 = vmatpush1.msra.mxu0 %v5008
  %5138 = vmatprep.subr.mxu0 0.0
  %5139 = vmatpush2.msra.mxu0 0.0
  %5140 = vmatprep.subr.mxu0 0.0
  %5141 = vmatpush2.msra.mxu0 0.0
  %5142 = vmatprep.subr.mxu0 0.0
  %5143 = vmatpush2.msra.mxu0 0.0
  %5144 = vmatprep.subr.mxu0 0.0
  %5145 = vmatpush2.msra.mxu0 0.0
  %5146 = vmatprep.subr.mxu0 0.0
  %5147 = vmatpush2.msra.mxu0 0.0
  %5148 = vmatprep.subr.mxu0 0.0
  %5149 = vmatpush2.msra.mxu0 0.0
  %5150 = vmatprep.subr.mxu0 0.0
  %5151 = vmatpush2.msra.mxu0 0.0
  %5152 = vmatprep.subr.mxu0 0.0
  %5153 = vmatpush2.msra.mxu0 0.0
  %5154 = vmatprep.subr.mxu0 0.0
  %5155 = vmatpush2.msra.mxu0 0.0
  %5156 = vmatprep.subr.mxu0 0.0
  %5157 = vmatpush2.msra.mxu0 0.0
  %5158 = vmatprep.subr.mxu0 0.0
  %5159 = vmatpush2.msra.mxu0 0.0
  %5160 = vmatprep.subr.mxu0 0.0
  %5161 = vmatpush2.msra.mxu0 0.0
  %5162 = vmatprep.subr.mxu0 0.0
  %5163 = vmatpush2.msra.mxu0 0.0
  %5164 = vmatprep.subr.mxu0 0.0
  %5165 = vmatpush2.msra.mxu0 0.0
  %5166 = vmatprep.subr.mxu0 0.0
  %5167 = vmatpush2.msra.mxu0 0.0
  %5168 = vmatprep.subr.mxu0 0.0
  %5169 = vmatpush2.msra.mxu0 0.0
  %5170 = vmatprep.mubr.f32.mxu0 0.0
  %5171 = vmatmul.mubr.f32.gmra.mxu0 %v5104
  %v5172 = vpop.f32.mrf.mxu0
  %v5173 = vadd.f32 0.0, %v5172
  %v5174 = vpop.f32.mrf.mxu0
  %v5175 = vadd.f32 0.0, %v5174
  %5176 = vdwg.mxu0
  %v5177 = vlaneseq
  %v5178 = vshrl.u32 %v5177, 7
  %v5179 = vsub.s32 0, %v5178
  %v5180 = vrot.slane %v5173, %v5179
  %v5181 = vlaneseq
  %v5182 = vshrl.u32 %v5181, 7
  %v5183 = vsub.s32 0, %v5182
  %v5184 = vrot.slane %v5175, %v5183
  %v5185 = vadd.f32 %v5098, %v5180
  %v5186 = vadd.f32 %v5099, %v5184
  %v5187 = vadd.f32 %v5100, %v5180
  %v5188 = vadd.f32 %v5101, %v5184
  %v5189 = vmax.f32 %v5185, 0.0
  %v5190 = vmax.f32 %v5186, 0.0
  %v5191 = vmax.f32 %v5187, 0.0
  %v5192 = vmax.f32 %v5188, 0.0
  %v5193 = vpack.c.bf16 %v5191, %v5189
  %v5194 = vpack.c.bf16 %v5192, %v5190
  %v5195 = vld [vmem:[%s51] sm:$0xf]
  %vm5196 = vcmask 113664
  %v5198 = vsel %vm5196, %v5195, 0
  %vm5200 = vcmask 1046528
  %v5202 = vsel %vm5200, %v5193, 0
  %v5205 = vsel %vm5200, %v5194, 0
  %5207 = vmatprep.subr.bf16.mxu0 0
  %5208 = vmatpush1.bf16.msra.mxu0 0
  %5209 = vmatprep.subr.bf16.mxu0 0
  %5210 = vmatpush1.bf16.msra.mxu0 0
  %5211 = vmatprep.subr.bf16.mxu0 0
  %5212 = vmatpush1.bf16.msra.mxu0 0
  %5213 = vmatprep.subr.bf16.mxu0 0
  %5214 = vmatpush1.bf16.msra.mxu0 0
  %5215 = vmatprep.subr.bf16.mxu0 0
  %5216 = vmatpush1.bf16.msra.mxu0 0
  %5217 = vmatprep.subr.bf16.mxu0 0
  %5218 = vmatpush1.bf16.msra.mxu0 0
  %5219 = vmatprep.subr.bf16.mxu0 0
  %5220 = vmatpush1.bf16.msra.mxu0 0
  %5221 = vmatprep.subr.bf16.mxu0 %v5205
  %5222 = vmatpush1.bf16.msra.mxu0 %v5202
  %5223 = vmatprep.subr.bf16.mxu0 0
  %5224 = vmatpush2.bf16.msra.mxu0 0
  %5225 = vmatprep.subr.bf16.mxu0 0
  %5226 = vmatpush2.bf16.msra.mxu0 0
  %5227 = vmatprep.subr.bf16.mxu0 0
  %5228 = vmatpush2.bf16.msra.mxu0 0
  %5229 = vmatprep.subr.bf16.mxu0 0
  %5230 = vmatpush2.bf16.msra.mxu0 0
  %5231 = vmatprep.subr.bf16.mxu0 0
  %5232 = vmatpush2.bf16.msra.mxu0 0
  %5233 = vmatprep.subr.bf16.mxu0 0
  %5234 = vmatpush2.bf16.msra.mxu0 0
  %5235 = vmatprep.subr.bf16.mxu0 0
  %5236 = vmatpush2.bf16.msra.mxu0 0
  %5237 = vmatprep.subr.bf16.mxu0 0
  %5238 = vmatpush2.bf16.msra.mxu0 0
  %5239 = vmatprep.mubr.bf16.mxu0 0
  %5240 = vmatmul.mubr.bf16.gmra.mxu0 %v5198
  %v5241 = vpop.f32.mrf.mxu0
  %v5242 = vadd.f32 0.0, %v5241
  %v5243 = vpop.f32.mrf.mxu0
  %v5244 = vadd.f32 0.0, %v5243
  %v5245 = vpop.f32.mrf.mxu0
  %v5246 = vpop.f32.mrf.mxu0
  %5247 = vdwg.mxu0
  %s5248 = scalar_lea.vmem %s51, 4
  %v5249 = vld [vmem:[%s5248] sm:$0xf]
  %v5251 = vsel %vm5196, %v5249, 0
  %5253 = vmatprep.subr.bf16.mxu0 0
  %5254 = vmatpush1.bf16.msra.mxu0 0
  %5255 = vmatprep.subr.bf16.mxu0 0
  %5256 = vmatpush1.bf16.msra.mxu0 0
  %5257 = vmatprep.subr.bf16.mxu0 0
  %5258 = vmatpush1.bf16.msra.mxu0 0
  %5259 = vmatprep.subr.bf16.mxu0 0
  %5260 = vmatpush1.bf16.msra.mxu0 0
  %5261 = vmatprep.subr.bf16.mxu0 0
  %5262 = vmatpush1.bf16.msra.mxu0 0
  %5263 = vmatprep.subr.bf16.mxu0 0
  %5264 = vmatpush1.bf16.msra.mxu0 0
  %5265 = vmatprep.subr.bf16.mxu0 0
  %5266 = vmatpush1.bf16.msra.mxu0 0
  %5267 = vmatprep.subr.bf16.mxu0 %v5205
  %5268 = vmatpush1.bf16.msra.mxu0 %v5202
  %5269 = vmatprep.subr.bf16.mxu0 0
  %5270 = vmatpush2.bf16.msra.mxu0 0
  %5271 = vmatprep.subr.bf16.mxu0 0
  %5272 = vmatpush2.bf16.msra.mxu0 0
  %5273 = vmatprep.subr.bf16.mxu0 0
  %5274 = vmatpush2.bf16.msra.mxu0 0
  %5275 = vmatprep.subr.bf16.mxu0 0
  %5276 = vmatpush2.bf16.msra.mxu0 0
  %5277 = vmatprep.subr.bf16.mxu0 0
  %5278 = vmatpush2.bf16.msra.mxu0 0
  %5279 = vmatprep.subr.bf16.mxu0 0
  %5280 = vmatpush2.bf16.msra.mxu0 0
  %5281 = vmatprep.subr.bf16.mxu0 0
  %5282 = vmatpush2.bf16.msra.mxu0 0
  %5283 = vmatprep.subr.bf16.mxu0 0
  %5284 = vmatpush2.bf16.msra.mxu0 0
  %5285 = vmatprep.mubr.bf16.mxu0 0
  %5286 = vmatmul.mubr.bf16.gmra.mxu0 %v5251
  %v5287 = vpop.f32.mrf.mxu0
  %v5288 = vadd.f32 0.0, %v5287
  %v5289 = vpop.f32.mrf.mxu0
  %v5290 = vadd.f32 0.0, %v5289
  %v5291 = vpop.f32.mrf.mxu0
  %v5292 = vpop.f32.mrf.mxu0
  %5293 = vdwg.mxu0
  %s5294 = scalar_lea.vmem %s51, 8
  %v5295 = vld [vmem:[%s5294] sm:$0xf]
  %v5297 = vsel %vm5196, %v5295, 0
  %5299 = vmatprep.subr.bf16.mxu0 0
  %5300 = vmatpush1.bf16.msra.mxu0 0
  %5301 = vmatprep.subr.bf16.mxu0 0
  %5302 = vmatpush1.bf16.msra.mxu0 0
  %5303 = vmatprep.subr.bf16.mxu0 0
  %5304 = vmatpush1.bf16.msra.mxu0 0
  %5305 = vmatprep.subr.bf16.mxu0 0
  %5306 = vmatpush1.bf16.msra.mxu0 0
  %5307 = vmatprep.subr.bf16.mxu0 0
  %5308 = vmatpush1.bf16.msra.mxu0 0
  %5309 = vmatprep.subr.bf16.mxu0 0
  %5310 = vmatpush1.bf16.msra.mxu0 0
  %5311 = vmatprep.subr.bf16.mxu0 0
  %5312 = vmatpush1.bf16.msra.mxu0 0
  %5313 = vmatprep.subr.bf16.mxu0 %v5205
  %5314 = vmatpush1.bf16.msra.mxu0 %v5202
  %5315 = vmatprep.subr.bf16.mxu0 0
  %5316 = vmatpush2.bf16.msra.mxu0 0
  %5317 = vmatprep.subr.bf16.mxu0 0
  %5318 = vmatpush2.bf16.msra.mxu0 0
  %5319 = vmatprep.subr.bf16.mxu0 0
  %5320 = vmatpush2.bf16.msra.mxu0 0
  %5321 = vmatprep.subr.bf16.mxu0 0
  %5322 = vmatpush2.bf16.msra.mxu0 0
  %5323 = vmatprep.subr.bf16.mxu0 0
  %5324 = vmatpush2.bf16.msra.mxu0 0
  %5325 = vmatprep.subr.bf16.mxu0 0
  %5326 = vmatpush2.bf16.msra.mxu0 0
  %5327 = vmatprep.subr.bf16.mxu0 0
  %5328 = vmatpush2.bf16.msra.mxu0 0
  %5329 = vmatprep.subr.bf16.mxu0 0
  %5330 = vmatpush2.bf16.msra.mxu0 0
  %5331 = vmatprep.mubr.bf16.mxu0 0
  %5332 = vmatmul.mubr.bf16.gmra.mxu0 %v5297
  %v5333 = vpop.f32.mrf.mxu0
  %v5334 = vadd.f32 0.0, %v5333
  %v5335 = vpop.f32.mrf.mxu0
  %v5336 = vadd.f32 0.0, %v5335
  %v5337 = vpop.f32.mrf.mxu0
  %v5338 = vpop.f32.mrf.mxu0
  %5339 = vdwg.mxu0
  %5342 = vrot.lane.b32.xlu0 %v5288, 96
  %v5343 = vpop.permute.xlu0 %5342
  %5344 = vrot.lane.b32.xlu0 %v5290, 96
  %v5345 = vpop.permute.xlu0 %5344
  %v5346 = vsel %vm784, %v5343, %v5345
  %5352 = vrot.lane.b32.xlu0 %v5334, 64
  %v5353 = vpop.permute.xlu0 %5352
  %5354 = vrot.lane.b32.xlu0 %v5336, 64
  %v5355 = vpop.permute.xlu0 %5354
  %v5356 = vsel %vm4125, %v5353, %v5355
  %v5360 = vsel %vm784, %v5244, %v5343
  %v5361 = vsel %vm4125, %v5345, %v5353
  %v5362 = vld [vmem:[%s53] sm:$0xff]
  %v5363 = vld [vmem:[%s53 + $0x8] sm:$0xff]
  %v5364 = vld [vmem:[%s53 + $0x10] sm:$0xff]
  %v5365 = vld [vmem:[%s53 + $0x18] sm:$0xff]
  %v5366 = vld [vmem:[%s53 + $0x20] sm:$0xff]
  %v5367 = vld [vmem:[%s53 + $0x28] sm:$0xff]
  %v5368 = vld [vmem:[%s53 + $0x30] sm:$0xff]
  %v5369 = vld [vmem:[%s53 + $0x38] sm:$0xff]
  %v5370 = vld [vmem:[%s53 + $0x40] sm:$0xff]
  %v5371 = vld [vmem:[%s53 + $0x48] sm:$0xff]
  %v5372 = vld [vmem:[%s53 + $0x50] sm:$0xff]
  %v5373 = vld [vmem:[%s53 + $0x58] sm:$0xff]
  %v5374 = vld [vmem:[%s53 + $0x60] sm:$0xff]
  %v5375 = vld [vmem:[%s53 + $0x68] sm:$0xff]
  %v5376 = vld [vmem:[%s53 + $0x70] sm:$0xff]
  %v5377 = vld [vmem:[%s53 + $0x78] sm:$0xff]
  %v5378 = vld [vmem:[%s53 + $0x80] sm:$0xff]
  %v5379 = vld [vmem:[%s53 + $0x88] sm:$0xff]
  %v5380 = vld [vmem:[%s53 + $0x90] sm:$0xff]
  %v5381 = vld [vmem:[%s53 + $0x98] sm:$0xff]
  %v5382 = vld [vmem:[%s53 + $0xa0] sm:$0xff]
  %v5383 = vld [vmem:[%s53 + $0xa8] sm:$0xff]
  %v5384 = vld [vmem:[%s53 + $0xb0] sm:$0xff]
  %v5385 = vld [vmem:[%s53 + $0xb8] sm:$0xff]
  %v5386 = vld [vmem:[%s53 + $0xc0] sm:$0xff]
  %v5387 = vld [vmem:[%s53 + $0xc8] sm:$0xff]
  %v5388 = vld [vmem:[%s53 + $0xd0] sm:$0xff]
  %v5389 = vld [vmem:[%s53 + $0xd8] sm:$0xff]
  %v5390 = vld [vmem:[%s53 + $0xe0] sm:$0xff]
  %v5391 = vld [vmem:[%s53 + $0xe8] sm:$0xff]
  %v5392 = vld [vmem:[%s53 + $0xf0] sm:$0xff]
  %v5393 = vld [vmem:[%s53 + $0xf8] sm:$0xff]
  %v5394 = vld [vmem:[%s53 + $0x100] sm:$0xff]
  %v5395 = vld [vmem:[%s53 + $0x108] sm:$0xff]
  %v5396 = vld [vmem:[%s53 + $0x110] sm:$0xff]
  %v5397 = vld [vmem:[%s53 + $0x118] sm:$0xff]
  %v5398 = vld [vmem:[%s53 + $0x120] sm:$0xff]
  %v5399 = vld [vmem:[%s53 + $0x128] sm:$0xff]
  %v5400 = vld [vmem:[%s53 + $0x130] sm:$0xff]
  %v5401 = vld [vmem:[%s53 + $0x138] sm:$0xff]
  %v5402 = vld [vmem:[%s53 + $0x140] sm:$0xff]
  %v5403 = vld [vmem:[%s53 + $0x148] sm:$0xff]
  %v5404 = vld [vmem:[%s53 + $0x150] sm:$0xff]
  %v5405 = vld [vmem:[%s53 + $0x158] sm:$0xff]
  %v5406 = vld [vmem:[%s53 + $0x160] sm:$0xff]
  %v5407 = vld [vmem:[%s53 + $0x168] sm:$0xff]
  %v5408 = vld [vmem:[%s53 + $0x170] sm:$0xff]
  %v5409 = vld [vmem:[%s53 + $0x178] sm:$0xff]
  %v5410 = vld [vmem:[%s53 + $0x180] sm:$0xff]
  %v5411 = vld [vmem:[%s53 + $0x188] sm:$0xff]
  %v5412 = vld [vmem:[%s53 + $0x190] sm:$0xff]
  %v5413 = vld [vmem:[%s53 + $0x198] sm:$0xff]
  %v5414 = vld [vmem:[%s53 + $0x1a0] sm:$0xff]
  %v5415 = vld [vmem:[%s53 + $0x1a8] sm:$0xff]
  %v5416 = vld [vmem:[%s53 + $0x1b0] sm:$0xff]
  %v5417 = vld [vmem:[%s53 + $0x1b8] sm:$0xff]
  %v5418 = vld [vmem:[%s53 + $0x1c0] sm:$0xff]
  %v5419 = vld [vmem:[%s53 + $0x1c8] sm:$0xff]
  %v5420 = vld [vmem:[%s53 + $0x1d0] sm:$0xff]
  %v5421 = vld [vmem:[%s53 + $0x1d8] sm:$0xff]
  %v5422 = vld [vmem:[%s53 + $0x1e0] sm:$0xff]
  %v5423 = vld [vmem:[%s53 + $0x1e8] sm:$0xff]
  %v5424 = vld [vmem:[%s53 + $0x1f0] sm:$0xff]
  %v5425 = vld [vmem:[%s53 + $0x1f8] sm:$0xff]
  %v5426 = vld [vmem:[%s53 + $0x200] sm:$0xff]
  %v5427 = vld [vmem:[%s53 + $0x208] sm:$0xff]
  %v5428 = vld [vmem:[%s53 + $0x210] sm:$0xff]
  %v5429 = vld [vmem:[%s53 + $0x218] sm:$0xff]
  %v5430 = vld [vmem:[%s53 + $0x220] sm:$0xff]
  %v5431 = vld [vmem:[%s53 + $0x228] sm:$0xff]
  %v5432 = vld [vmem:[%s53 + $0x230] sm:$0xff]
  %v5433 = vld [vmem:[%s53 + $0x238] sm:$0xff]
  %v5434 = vld [vmem:[%s53 + $0x240] sm:$0xff]
  %v5435 = vld [vmem:[%s53 + $0x248] sm:$0xff]
  %v5436 = vld [vmem:[%s53 + $0x250] sm:$0xff]
  %v5437 = vld [vmem:[%s53 + $0x258] sm:$0xff]
  %v5438 = vld [vmem:[%s53 + $0x260] sm:$0xff]
  %v5439 = vld [vmem:[%s53 + $0x268] sm:$0xff]
  %v5440 = vld [vmem:[%s53 + $0x270] sm:$0xff]
  %v5441 = vld [vmem:[%s53 + $0x278] sm:$0xff]
  %v5442 = vld [vmem:[%s53 + $0x280] sm:$0xff]
  %v5443 = vld [vmem:[%s53 + $0x288] sm:$0xff]
  %v5444 = vld [vmem:[%s53 + $0x290] sm:$0xff]
  %v5445 = vld [vmem:[%s53 + $0x298] sm:$0xff]
  %v5446 = vpack.c.bf16 %v5242, %v5242
  %v5447 = vpack.c.bf16 %v5360, %v5360
  %v5448 = vpack.c.bf16 %v5346, %v5346
  %v5449 = vpack.c.bf16 %v5361, %v5361
  %v5450 = vpack.c.bf16 %v5356, %v5356
  %v5451 = vpack.c.bf16 %v5355, %v5355
  %v5536 = vunpack.c.l.b16 %v5362
  %v5537 = vunpack.c.h.b16 %v5362
  %v5538 = vunpack.c.l.b16 %v5363
  %v5539 = vunpack.c.h.b16 %v5363
  %v5540 = vunpack.c.l.b16 %v5364
  %v5541 = vunpack.c.h.b16 %v5364
  %v5542 = vunpack.c.l.b16 %v5365
  %v5543 = vunpack.c.h.b16 %v5365
  %v5544 = vunpack.c.l.b16 %v5366
  %v5545 = vunpack.c.h.b16 %v5366
  %v5546 = vunpack.c.l.b16 %v5367
  %v5547 = vunpack.c.h.b16 %v5367
  %v5548 = vunpack.c.l.b16 %v5368
  %v5549 = vunpack.c.h.b16 %v5368
  %v5550 = vunpack.c.l.b16 %v5369
  %v5551 = vunpack.c.h.b16 %v5369
  %v5552 = vunpack.c.l.b16 %v5370
  %v5553 = vunpack.c.h.b16 %v5370
  %v5554 = vunpack.c.l.b16 %v5371
  %v5555 = vunpack.c.h.b16 %v5371
  %v5556 = vunpack.c.l.b16 %v5372
  %v5557 = vunpack.c.h.b16 %v5372
  %v5558 = vunpack.c.l.b16 %v5373
  %v5559 = vunpack.c.h.b16 %v5373
  %v5560 = vunpack.c.l.b16 %v5374
  %v5561 = vunpack.c.h.b16 %v5374
  %v5562 = vunpack.c.l.b16 %v5375
  %v5563 = vunpack.c.h.b16 %v5375
  %v5564 = vunpack.c.l.b16 %v5376
  %v5565 = vunpack.c.h.b16 %v5376
  %v5566 = vunpack.c.l.b16 %v5377
  %v5567 = vunpack.c.h.b16 %v5377
  %v5568 = vunpack.c.l.b16 %v5378
  %v5569 = vunpack.c.h.b16 %v5378
  %v5570 = vunpack.c.l.b16 %v5379
  %v5571 = vunpack.c.h.b16 %v5379
  %v5572 = vunpack.c.l.b16 %v5380
  %v5573 = vunpack.c.h.b16 %v5380
  %v5574 = vunpack.c.l.b16 %v5381
  %v5575 = vunpack.c.h.b16 %v5381
  %v5576 = vunpack.c.l.b16 %v5382
  %v5577 = vunpack.c.h.b16 %v5382
  %v5578 = vunpack.c.l.b16 %v5383
  %v5579 = vunpack.c.h.b16 %v5383
  %v5580 = vunpack.c.l.b16 %v5384
  %v5581 = vunpack.c.h.b16 %v5384
  %v5582 = vunpack.c.l.b16 %v5385
  %v5583 = vunpack.c.h.b16 %v5385
  %v5584 = vunpack.c.l.b16 %v5386
  %v5585 = vunpack.c.h.b16 %v5386
  %v5586 = vunpack.c.l.b16 %v5387
  %v5587 = vunpack.c.h.b16 %v5387
  %v5588 = vunpack.c.l.b16 %v5388
  %v5589 = vunpack.c.h.b16 %v5388
  %v5590 = vunpack.c.l.b16 %v5389
  %v5591 = vunpack.c.h.b16 %v5389
  %v5592 = vunpack.c.l.b16 %v5390
  %v5593 = vunpack.c.h.b16 %v5390
  %v5594 = vunpack.c.l.b16 %v5391
  %v5595 = vunpack.c.h.b16 %v5391
  %v5596 = vunpack.c.l.b16 %v5392
  %v5597 = vunpack.c.h.b16 %v5392
  %v5598 = vunpack.c.l.b16 %v5393
  %v5599 = vunpack.c.h.b16 %v5393
  %v5600 = vunpack.c.l.b16 %v5394
  %v5601 = vunpack.c.h.b16 %v5394
  %v5602 = vunpack.c.l.b16 %v5395
  %v5603 = vunpack.c.h.b16 %v5395
  %v5604 = vunpack.c.l.b16 %v5396
  %v5605 = vunpack.c.h.b16 %v5396
  %v5606 = vunpack.c.l.b16 %v5397
  %v5607 = vunpack.c.h.b16 %v5397
  %v5608 = vunpack.c.l.b16 %v5398
  %v5609 = vunpack.c.h.b16 %v5398
  %v5610 = vunpack.c.l.b16 %v5399
  %v5611 = vunpack.c.h.b16 %v5399
  %v5612 = vunpack.c.l.b16 %v5400
  %v5613 = vunpack.c.h.b16 %v5400
  %v5614 = vunpack.c.l.b16 %v5401
  %v5615 = vunpack.c.h.b16 %v5401
  %v5616 = vunpack.c.l.b16 %v5402
  %v5617 = vunpack.c.h.b16 %v5402
  %v5618 = vunpack.c.l.b16 %v5403
  %v5619 = vunpack.c.h.b16 %v5403
  %v5620 = vunpack.c.l.b16 %v5404
  %v5621 = vunpack.c.h.b16 %v5404
  %v5622 = vunpack.c.l.b16 %v5405
  %v5623 = vunpack.c.h.b16 %v5405
  %v5624 = vunpack.c.l.b16 %v5406
  %v5625 = vunpack.c.h.b16 %v5406
  %v5626 = vunpack.c.l.b16 %v5407
  %v5627 = vunpack.c.h.b16 %v5407
  %v5628 = vunpack.c.l.b16 %v5408
  %v5629 = vunpack.c.h.b16 %v5408
  %v5630 = vunpack.c.l.b16 %v5409
  %v5631 = vunpack.c.h.b16 %v5409
  %v5632 = vunpack.c.l.b16 %v5410
  %v5633 = vunpack.c.h.b16 %v5410
  %v5634 = vunpack.c.l.b16 %v5411
  %v5635 = vunpack.c.h.b16 %v5411
  %v5636 = vunpack.c.l.b16 %v5412
  %v5637 = vunpack.c.h.b16 %v5412
  %v5638 = vunpack.c.l.b16 %v5413
  %v5639 = vunpack.c.h.b16 %v5413
  %v5640 = vunpack.c.l.b16 %v5414
  %v5641 = vunpack.c.h.b16 %v5414
  %v5642 = vunpack.c.l.b16 %v5415
  %v5643 = vunpack.c.h.b16 %v5415
  %v5644 = vunpack.c.l.b16 %v5416
  %v5645 = vunpack.c.h.b16 %v5416
  %v5646 = vunpack.c.l.b16 %v5417
  %v5647 = vunpack.c.h.b16 %v5417
  %v5648 = vunpack.c.l.b16 %v5418
  %v5649 = vunpack.c.h.b16 %v5418
  %v5650 = vunpack.c.l.b16 %v5419
  %v5651 = vunpack.c.h.b16 %v5419
  %v5652 = vunpack.c.l.b16 %v5420
  %v5653 = vunpack.c.h.b16 %v5420
  %v5654 = vunpack.c.l.b16 %v5421
  %v5655 = vunpack.c.h.b16 %v5421
  %v5656 = vunpack.c.l.b16 %v5422
  %v5657 = vunpack.c.h.b16 %v5422
  %v5658 = vunpack.c.l.b16 %v5423
  %v5659 = vunpack.c.h.b16 %v5423
  %v5660 = vunpack.c.l.b16 %v5424
  %v5661 = vunpack.c.h.b16 %v5424
  %v5662 = vunpack.c.l.b16 %v5425
  %v5663 = vunpack.c.h.b16 %v5425
  %v5664 = vunpack.c.l.b16 %v5426
  %v5665 = vunpack.c.h.b16 %v5426
  %v5666 = vunpack.c.l.b16 %v5427
  %v5667 = vunpack.c.h.b16 %v5427
  %v5668 = vunpack.c.l.b16 %v5428
  %v5669 = vunpack.c.h.b16 %v5428
  %v5670 = vunpack.c.l.b16 %v5429
  %v5671 = vunpack.c.h.b16 %v5429
  %v5672 = vunpack.c.l.b16 %v5430
  %v5673 = vunpack.c.h.b16 %v5430
  %v5674 = vunpack.c.l.b16 %v5431
  %v5675 = vunpack.c.h.b16 %v5431
  %v5676 = vunpack.c.l.b16 %v5432
  %v5677 = vunpack.c.h.b16 %v5432
  %v5678 = vunpack.c.l.b16 %v5433
  %v5679 = vunpack.c.h.b16 %v5433
  %v5680 = vunpack.c.l.b16 %v5434
  %v5681 = vunpack.c.h.b16 %v5434
  %v5682 = vunpack.c.l.b16 %v5435
  %v5683 = vunpack.c.h.b16 %v5435
  %v5684 = vunpack.c.l.b16 %v5436
  %v5685 = vunpack.c.h.b16 %v5436
  %v5686 = vunpack.c.l.b16 %v5437
  %v5687 = vunpack.c.h.b16 %v5437
  %v5688 = vunpack.c.l.b16 %v5438
  %v5689 = vunpack.c.h.b16 %v5438
  %v5690 = vunpack.c.l.b16 %v5439
  %v5691 = vunpack.c.h.b16 %v5439
  %v5692 = vunpack.c.l.b16 %v5440
  %v5693 = vunpack.c.h.b16 %v5440
  %v5694 = vunpack.c.l.b16 %v5441
  %v5695 = vunpack.c.h.b16 %v5441
  %v5696 = vunpack.c.l.b16 %v5442
  %v5697 = vunpack.c.h.b16 %v5442
  %v5698 = vunpack.c.l.b16 %v5443
  %v5699 = vunpack.c.h.b16 %v5443
  %v5700 = vunpack.c.l.b16 %v5444
  %v5701 = vunpack.c.h.b16 %v5444
  %v5702 = vunpack.c.l.b16 %v5445
  %v5703 = vunpack.c.h.b16 %v5445
  %v5704 = vpack.c.b16 %v5538, %v5536
  %v5705 = vpack.c.b16 %v5539, %v5537
  %v5706 = vpack.c.b16 %v5542, %v5540
  %v5707 = vpack.c.b16 %v5543, %v5541
  %v5708 = vpack.c.b16 %v5546, %v5544
  %v5709 = vpack.c.b16 %v5547, %v5545
  %v5710 = vpack.c.b16 %v5550, %v5548
  %v5711 = vpack.c.b16 %v5551, %v5549
  %v5712 = vpack.c.b16 %v5554, %v5552
  %v5713 = vpack.c.b16 %v5555, %v5553
  %v5714 = vpack.c.b16 %v5558, %v5556
  %v5715 = vpack.c.b16 %v5559, %v5557
  %v5716 = vpack.c.b16 %v5562, %v5560
  %v5717 = vpack.c.b16 %v5563, %v5561
  %v5718 = vpack.c.b16 %v5566, %v5564
  %v5719 = vpack.c.b16 %v5567, %v5565
  %v5720 = vpack.c.b16 %v5570, %v5568
  %v5721 = vpack.c.b16 %v5571, %v5569
  %v5722 = vpack.c.b16 %v5574, %v5572
  %v5723 = vpack.c.b16 %v5575, %v5573
  %v5724 = vpack.c.b16 %v5578, %v5576
  %v5725 = vpack.c.b16 %v5579, %v5577
  %v5726 = vpack.c.b16 %v5582, %v5580
  %v5727 = vpack.c.b16 %v5583, %v5581
  %v5728 = vpack.c.b16 %v5586, %v5584
  %v5729 = vpack.c.b16 %v5587, %v5585
  %v5730 = vpack.c.b16 %v5590, %v5588
  %v5731 = vpack.c.b16 %v5591, %v5589
  %v5732 = vpack.c.b16 %v5594, %v5592
  %v5733 = vpack.c.b16 %v5595, %v5593
  %v5734 = vpack.c.b16 %v5598, %v5596
  %v5735 = vpack.c.b16 %v5599, %v5597
  %v5736 = vpack.c.b16 %v5602, %v5600
  %v5737 = vpack.c.b16 %v5603, %v5601
  %v5738 = vpack.c.b16 %v5606, %v5604
  %v5739 = vpack.c.b16 %v5607, %v5605
  %v5740 = vpack.c.b16 %v5610, %v5608
  %v5741 = vpack.c.b16 %v5611, %v5609
  %v5742 = vpack.c.b16 %v5614, %v5612
  %v5743 = vpack.c.b16 %v5615, %v5613
  %v5744 = vpack.c.b16 %v5618, %v5616
  %v5745 = vpack.c.b16 %v5619, %v5617
  %v5746 = vpack.c.b16 %v5622, %v5620
  %v5747 = vpack.c.b16 %v5623, %v5621
  %v5748 = vpack.c.b16 %v5626, %v5624
  %v5749 = vpack.c.b16 %v5627, %v5625
  %v5750 = vpack.c.b16 %v5630, %v5628
  %v5751 = vpack.c.b16 %v5631, %v5629
  %v5752 = vpack.c.b16 %v5634, %v5632
  %v5753 = vpack.c.b16 %v5635, %v5633
  %v5754 = vpack.c.b16 %v5638, %v5636
  %v5755 = vpack.c.b16 %v5639, %v5637
  %v5756 = vpack.c.b16 %v5642, %v5640
  %v5757 = vpack.c.b16 %v5643, %v5641
  %v5758 = vpack.c.b16 %v5646, %v5644
  %v5759 = vpack.c.b16 %v5647, %v5645
  %v5760 = vpack.c.b16 %v5650, %v5648
  %v5761 = vpack.c.b16 %v5651, %v5649
  %v5762 = vpack.c.b16 %v5654, %v5652
  %v5763 = vpack.c.b16 %v5655, %v5653
  %v5764 = vpack.c.b16 %v5658, %v5656
  %v5765 = vpack.c.b16 %v5659, %v5657
  %v5766 = vpack.c.b16 %v5662, %v5660
  %v5767 = vpack.c.b16 %v5663, %v5661
  %v5768 = vpack.c.b16 %v5666, %v5664
  %v5769 = vpack.c.b16 %v5667, %v5665
  %v5770 = vpack.c.b16 %v5670, %v5668
  %v5771 = vpack.c.b16 %v5671, %v5669
  %v5772 = vpack.c.b16 %v5674, %v5672
  %v5773 = vpack.c.b16 %v5675, %v5673
  %v5774 = vpack.c.b16 %v5678, %v5676
  %v5775 = vpack.c.b16 %v5679, %v5677
  %v5776 = vpack.c.b16 %v5682, %v5680
  %v5777 = vpack.c.b16 %v5683, %v5681
  %v5778 = vpack.c.b16 %v5686, %v5684
  %v5779 = vpack.c.b16 %v5687, %v5685
  %v5780 = vpack.c.b16 %v5690, %v5688
  %v5781 = vpack.c.b16 %v5691, %v5689
  %v5782 = vpack.c.b16 %v5694, %v5692
  %v5783 = vpack.c.b16 %v5695, %v5693
  %v5784 = vpack.c.b16 %v5698, %v5696
  %v5785 = vpack.c.b16 %v5699, %v5697
  %v5786 = vpack.c.b16 %v5702, %v5700
  %v5787 = vpack.c.b16 %v5703, %v5701
  %v5873 = vsel %vm4648, %v5451, 0
  %5875 = vmatprep.subr.bf16.mxu0 %v5719
  %5876 = vmatpush1.bf16.msra.mxu0 %v5718
  %5877 = vmatprep.subr.bf16.mxu0 %v5717
  %5878 = vmatpush1.bf16.msra.mxu0 %v5716
  %5879 = vmatprep.subr.bf16.mxu0 %v5715
  %5880 = vmatpush1.bf16.msra.mxu0 %v5714
  %5881 = vmatprep.subr.bf16.mxu0 %v5713
  %5882 = vmatpush1.bf16.msra.mxu0 %v5712
  %5883 = vmatprep.subr.bf16.mxu0 %v5711
  %5884 = vmatpush1.bf16.msra.mxu0 %v5710
  %5885 = vmatprep.subr.bf16.mxu0 %v5709
  %5886 = vmatpush1.bf16.msra.mxu0 %v5708
  %5887 = vmatprep.subr.bf16.mxu0 %v5707
  %5888 = vmatpush1.bf16.msra.mxu0 %v5706
  %5889 = vmatprep.subr.bf16.mxu0 %v5705
  %5890 = vmatpush1.bf16.msra.mxu0 %v5704
  %5891 = vmatprep.subr.bf16.mxu0 %v5735
  %5892 = vmatpush2.bf16.msra.mxu0 %v5734
  %5893 = vmatprep.subr.bf16.mxu0 %v5733
  %5894 = vmatpush2.bf16.msra.mxu0 %v5732
  %5895 = vmatprep.subr.bf16.mxu0 %v5731
  %5896 = vmatpush2.bf16.msra.mxu0 %v5730
  %5897 = vmatprep.subr.bf16.mxu0 %v5729
  %5898 = vmatpush2.bf16.msra.mxu0 %v5728
  %5899 = vmatprep.subr.bf16.mxu0 %v5727
  %5900 = vmatpush2.bf16.msra.mxu0 %v5726
  %5901 = vmatprep.subr.bf16.mxu0 %v5725
  %5902 = vmatpush2.bf16.msra.mxu0 %v5724
  %5903 = vmatprep.subr.bf16.mxu0 %v5723
  %5904 = vmatpush2.bf16.msra.mxu0 %v5722
  %5905 = vmatprep.subr.bf16.mxu0 %v5721
  %5906 = vmatpush2.bf16.msra.mxu0 %v5720
  %5907 = vmatprep.mubr.bf16.mxu0 %v5447
  %5908 = vmatmul.mubr.bf16.gmra.mxu0 %v5446
  %v5909 = vpop.f32.mrf.mxu0
  %v5910 = vadd.f32 0.0, %v5909
  %v5911 = vpop.f32.mrf.mxu0
  %v5912 = vadd.f32 0.0, %v5911
  %v5913 = vpop.f32.mrf.mxu0
  %v5914 = vpop.f32.mrf.mxu0
  %5915 = vdwg.mxu0
  %5916 = vmatprep.subr.bf16.mxu0 %v5751
  %5917 = vmatpush1.bf16.msra.mxu0 %v5750
  %5918 = vmatprep.subr.bf16.mxu0 %v5749
  %5919 = vmatpush1.bf16.msra.mxu0 %v5748
  %5920 = vmatprep.subr.bf16.mxu0 %v5747
  %5921 = vmatpush1.bf16.msra.mxu0 %v5746
  %5922 = vmatprep.subr.bf16.mxu0 %v5745
  %5923 = vmatpush1.bf16.msra.mxu0 %v5744
  %5924 = vmatprep.subr.bf16.mxu0 %v5743
  %5925 = vmatpush1.bf16.msra.mxu0 %v5742
  %5926 = vmatprep.subr.bf16.mxu0 %v5741
  %5927 = vmatpush1.bf16.msra.mxu0 %v5740
  %5928 = vmatprep.subr.bf16.mxu0 %v5739
  %5929 = vmatpush1.bf16.msra.mxu0 %v5738
  %5930 = vmatprep.subr.bf16.mxu0 %v5737
  %5931 = vmatpush1.bf16.msra.mxu0 %v5736
  %5932 = vmatprep.subr.bf16.mxu0 %v5767
  %5933 = vmatpush2.bf16.msra.mxu0 %v5766
  %5934 = vmatprep.subr.bf16.mxu0 %v5765
  %5935 = vmatpush2.bf16.msra.mxu0 %v5764
  %5936 = vmatprep.subr.bf16.mxu0 %v5763
  %5937 = vmatpush2.bf16.msra.mxu0 %v5762
  %5938 = vmatprep.subr.bf16.mxu0 %v5761
  %5939 = vmatpush2.bf16.msra.mxu0 %v5760
  %5940 = vmatprep.subr.bf16.mxu0 %v5759
  %5941 = vmatpush2.bf16.msra.mxu0 %v5758
  %5942 = vmatprep.subr.bf16.mxu0 %v5757
  %5943 = vmatpush2.bf16.msra.mxu0 %v5756
  %5944 = vmatprep.subr.bf16.mxu0 %v5755
  %5945 = vmatpush2.bf16.msra.mxu0 %v5754
  %5946 = vmatprep.subr.bf16.mxu0 %v5753
  %5947 = vmatpush2.bf16.msra.mxu0 %v5752
  %5948 = vmatprep.mubr.bf16.mxu0 %v5449
  %5949 = vmatmul.mubr.bf16.gmra.mxu0 %v5448
  %v5950 = vpop.f32.mrf.mxu0
  %v5951 = vadd.f32 %v5910, %v5950
  %v5952 = vpop.f32.mrf.mxu0
  %v5953 = vadd.f32 %v5912, %v5952
  %v5954 = vpop.f32.mrf.mxu0
  %v5955 = vpop.f32.mrf.mxu0
  %5956 = vdwg.mxu0
  %5957 = vmatprep.subr.bf16.mxu0 %v5783
  %5958 = vmatpush1.bf16.msra.mxu0 %v5782
  %5959 = vmatprep.subr.bf16.mxu0 %v5781
  %5960 = vmatpush1.bf16.msra.mxu0 %v5780
  %5961 = vmatprep.subr.bf16.mxu0 %v5779
  %5962 = vmatpush1.bf16.msra.mxu0 %v5778
  %5963 = vmatprep.subr.bf16.mxu0 %v5777
  %5964 = vmatpush1.bf16.msra.mxu0 %v5776
  %5965 = vmatprep.subr.bf16.mxu0 %v5775
  %5966 = vmatpush1.bf16.msra.mxu0 %v5774
  %5967 = vmatprep.subr.bf16.mxu0 %v5773
  %5968 = vmatpush1.bf16.msra.mxu0 %v5772
  %5969 = vmatprep.subr.bf16.mxu0 %v5771
  %5970 = vmatpush1.bf16.msra.mxu0 %v5770
  %5971 = vmatprep.subr.bf16.mxu0 %v5769
  %5972 = vmatpush1.bf16.msra.mxu0 %v5768
  %5973 = vmatprep.subr.bf16.mxu0 0
  %5974 = vmatpush2.bf16.msra.mxu0 0
  %5975 = vmatprep.subr.bf16.mxu0 0
  %5976 = vmatpush2.bf16.msra.mxu0 0
  %5977 = vmatprep.subr.bf16.mxu0 0
  %5978 = vmatpush2.bf16.msra.mxu0 0
  %5979 = vmatprep.subr.bf16.mxu0 0
  %5980 = vmatpush2.bf16.msra.mxu0 0
  %5981 = vmatprep.subr.bf16.mxu0 0
  %5982 = vmatpush2.bf16.msra.mxu0 0
  %5983 = vmatprep.subr.bf16.mxu0 0
  %5984 = vmatpush2.bf16.msra.mxu0 0
  %5985 = vmatprep.subr.bf16.mxu0 %v5787
  %5986 = vmatpush2.bf16.msra.mxu0 %v5786
  %5987 = vmatprep.subr.bf16.mxu0 %v5785
  %5988 = vmatpush2.bf16.msra.mxu0 %v5784
  %5989 = vmatprep.mubr.bf16.mxu0 %v5873
  %5990 = vmatmul.mubr.bf16.gmra.mxu0 %v5450
  %v5991 = vpop.f32.mrf.mxu0
  %v5992 = vadd.f32 %v5951, %v5991
  %v5993 = vpop.f32.mrf.mxu0
  %v5994 = vadd.f32 %v5953, %v5993
  %v5995 = vpop.f32.mrf.mxu0
  %v5996 = vpop.f32.mrf.mxu0
  %5997 = vdwg.mxu0
  %v5998 = vrot.slane %v5992, 4
  %v5999 = vadd.f32 %v5992, %v5998
  %v6000 = vrot.slane %v5999, 2
  %v6001 = vadd.f32 %v5999, %v6000
  %v6002 = vrot.slane %v6001, 1
  %v6003 = vadd.f32 %v6001, %v6002
  %v6004 = vrot.slane %v5994, 4
  %v6005 = vadd.f32 %v5994, %v6004
  %v6006 = vrot.slane %v6005, 2
  %v6007 = vadd.f32 %v6005, %v6006
  %v6008 = vrot.slane %v6007, 1
  %v6009 = vadd.f32 %v6007, %v6008
  %v6010 = vld [vmem:[%s55] sm:$0xff]
  %v6011 = vld [vmem:[%s55 + $0x8] sm:$0xff]
  %v6012 = vld [vmem:[%s55 + $0x10] sm:$0xff]
  %v6013 = vld [vmem:[%s55 + $0x18] sm:$0xff]
  %v6014 = vld [vmem:[%s55 + $0x20] sm:$0xff]
  %v6015 = vld [vmem:[%s55 + $0x28] sm:$0xff]
  %v6016 = vld [vmem:[%s55 + $0x30] sm:$0xff]
  %v6017 = vld [vmem:[%s55 + $0x38] sm:$0xff]
  %v6018 = vld [vmem:[%s55 + $0x40] sm:$0xff]
  %v6019 = vld [vmem:[%s55 + $0x48] sm:$0xff]
  %v6020 = vld [vmem:[%s55 + $0x50] sm:$0xff]
  %v6021 = vld [vmem:[%s55 + $0x58] sm:$0xff]
  %v6022 = vld [vmem:[%s55 + $0x60] sm:$0xff]
  %v6023 = vld [vmem:[%s55 + $0x68] sm:$0xff]
  %v6024 = vld [vmem:[%s55 + $0x70] sm:$0xff]
  %v6025 = vld [vmem:[%s55 + $0x78] sm:$0xff]
  %v6026 = vld [vmem:[%s55 + $0x80] sm:$0xff]
  %v6027 = vld [vmem:[%s55 + $0x88] sm:$0xff]
  %v6028 = vld [vmem:[%s55 + $0x90] sm:$0xff]
  %v6029 = vld [vmem:[%s55 + $0x98] sm:$0xff]
  %v6030 = vld [vmem:[%s55 + $0xa0] sm:$0xff]
  %v6031 = vld [vmem:[%s55 + $0xa8] sm:$0xff]
  %v6032 = vld [vmem:[%s55 + $0xb0] sm:$0xff]
  %v6033 = vld [vmem:[%s55 + $0xb8] sm:$0xff]
  %v6034 = vld [vmem:[%s55 + $0xc0] sm:$0xff]
  %v6035 = vld [vmem:[%s55 + $0xc8] sm:$0xff]
  %v6036 = vld [vmem:[%s55 + $0xd0] sm:$0xff]
  %v6037 = vld [vmem:[%s55 + $0xd8] sm:$0xff]
  %v6038 = vld [vmem:[%s55 + $0xe0] sm:$0xff]
  %v6039 = vld [vmem:[%s55 + $0xe8] sm:$0xff]
  %v6040 = vld [vmem:[%s55 + $0xf0] sm:$0xff]
  %v6041 = vld [vmem:[%s55 + $0xf8] sm:$0xff]
  %6042 = vmatprep.subr.mxu0 0.0
  %6043 = vmatpush1.msra.mxu0 %v6025
  %6044 = vmatprep.subr.mxu0 0.0
  %6045 = vmatpush1.msra.mxu0 %v6024
  %6046 = vmatprep.subr.mxu0 0.0
  %6047 = vmatpush1.msra.mxu0 %v6023
  %6048 = vmatprep.subr.mxu0 0.0
  %6049 = vmatpush1.msra.mxu0 %v6022
  %6050 = vmatprep.subr.mxu0 0.0
  %6051 = vmatpush1.msra.mxu0 %v6021
  %6052 = vmatprep.subr.mxu0 0.0
  %6053 = vmatpush1.msra.mxu0 %v6020
  %6054 = vmatprep.subr.mxu0 0.0
  %6055 = vmatpush1.msra.mxu0 %v6019
  %6056 = vmatprep.subr.mxu0 0.0
  %6057 = vmatpush1.msra.mxu0 %v6018
  %6058 = vmatprep.subr.mxu0 0.0
  %6059 = vmatpush1.msra.mxu0 %v6017
  %6060 = vmatprep.subr.mxu0 0.0
  %6061 = vmatpush1.msra.mxu0 %v6016
  %6062 = vmatprep.subr.mxu0 0.0
  %6063 = vmatpush1.msra.mxu0 %v6015
  %6064 = vmatprep.subr.mxu0 0.0
  %6065 = vmatpush1.msra.mxu0 %v6014
  %6066 = vmatprep.subr.mxu0 0.0
  %6067 = vmatpush1.msra.mxu0 %v6013
  %6068 = vmatprep.subr.mxu0 0.0
  %6069 = vmatpush1.msra.mxu0 %v6012
  %6070 = vmatprep.subr.mxu0 0.0
  %6071 = vmatpush1.msra.mxu0 %v6011
  %6072 = vmatprep.subr.mxu0 0.0
  %6073 = vmatpush1.msra.mxu0 %v6010
  %6074 = vmatprep.subr.mxu0 0.0
  %6075 = vmatpush2.msra.mxu0 %v6041
  %6076 = vmatprep.subr.mxu0 0.0
  %6077 = vmatpush2.msra.mxu0 %v6040
  %6078 = vmatprep.subr.mxu0 0.0
  %6079 = vmatpush2.msra.mxu0 %v6039
  %6080 = vmatprep.subr.mxu0 0.0
  %6081 = vmatpush2.msra.mxu0 %v6038
  %6082 = vmatprep.subr.mxu0 0.0
  %6083 = vmatpush2.msra.mxu0 %v6037
  %6084 = vmatprep.subr.mxu0 0.0
  %6085 = vmatpush2.msra.mxu0 %v6036
  %6086 = vmatprep.subr.mxu0 0.0
  %6087 = vmatpush2.msra.mxu0 %v6035
  %6088 = vmatprep.subr.mxu0 0.0
  %6089 = vmatpush2.msra.mxu0 %v6034
  %6090 = vmatprep.subr.mxu0 0.0
  %6091 = vmatpush2.msra.mxu0 %v6033
  %6092 = vmatprep.subr.mxu0 0.0
  %6093 = vmatpush2.msra.mxu0 %v6032
  %6094 = vmatprep.subr.mxu0 0.0
  %6095 = vmatpush2.msra.mxu0 %v6031
  %6096 = vmatprep.subr.mxu0 0.0
  %6097 = vmatpush2.msra.mxu0 %v6030
  %6098 = vmatprep.subr.mxu0 0.0
  %6099 = vmatpush2.msra.mxu0 %v6029
  %6100 = vmatprep.subr.mxu0 0.0
  %6101 = vmatpush2.msra.mxu0 %v6028
  %6102 = vmatprep.subr.mxu0 0.0
  %6103 = vmatpush2.msra.mxu0 %v6027
  %6104 = vmatprep.subr.mxu0 0.0
  %6105 = vmatpush2.msra.mxu0 %v6026
  %6106 = vmatprep.mubr.f32.mxu0 %v6009
  %6107 = vmatmul.mubr.f32.gmra.mxu0 %v6003
  %v6108 = vpop.f32.mrf.mxu0
  %v6109 = vadd.f32 0.0, %v6108
  %v6110 = vpop.f32.mrf.mxu0
  %6111 = vdwg.mxu0
  %v6112 = vmul.f32 %v5992, %v5992
  %v6113 = vmul.f32 %v5994, %v5994
  %v6114 = vrot.slane %v6112, 4
  %v6115 = vadd.f32 %v6112, %v6114
  %v6116 = vrot.slane %v6115, 2
  %v6117 = vadd.f32 %v6115, %v6116
  %v6118 = vrot.slane %v6117, 1
  %v6119 = vadd.f32 %v6117, %v6118
  %v6120 = vrot.slane %v6113, 4
  %v6121 = vadd.f32 %v6113, %v6120
  %v6122 = vrot.slane %v6121, 2
  %v6123 = vadd.f32 %v6121, %v6122
  %v6124 = vrot.slane %v6123, 1
  %v6125 = vadd.f32 %v6123, %v6124
  %6126 = vmatprep.subr.mxu0 0.0
  %6127 = vmatpush1.msra.mxu0 %v6025
  %6128 = vmatprep.subr.mxu0 0.0
  %6129 = vmatpush1.msra.mxu0 %v6024
  %6130 = vmatprep.subr.mxu0 0.0
  %6131 = vmatpush1.msra.mxu0 %v6023
  %6132 = vmatprep.subr.mxu0 0.0
  %6133 = vmatpush1.msra.mxu0 %v6022
  %6134 = vmatprep.subr.mxu0 0.0
  %6135 = vmatpush1.msra.mxu0 %v6021
  %6136 = vmatprep.subr.mxu0 0.0
  %6137 = vmatpush1.msra.mxu0 %v6020
  %6138 = vmatprep.subr.mxu0 0.0
  %6139 = vmatpush1.msra.mxu0 %v6019
  %6140 = vmatprep.subr.mxu0 0.0
  %6141 = vmatpush1.msra.mxu0 %v6018
  %6142 = vmatprep.subr.mxu0 0.0
  %6143 = vmatpush1.msra.mxu0 %v6017
  %6144 = vmatprep.subr.mxu0 0.0
  %6145 = vmatpush1.msra.mxu0 %v6016
  %6146 = vmatprep.subr.mxu0 0.0
  %6147 = vmatpush1.msra.mxu0 %v6015
  %6148 = vmatprep.subr.mxu0 0.0
  %6149 = vmatpush1.msra.mxu0 %v6014
  %6150 = vmatprep.subr.mxu0 0.0
  %6151 = vmatpush1.msra.mxu0 %v6013
  %6152 = vmatprep.subr.mxu0 0.0
  %6153 = vmatpush1.msra.mxu0 %v6012
  %6154 = vmatprep.subr.mxu0 0.0
  %6155 = vmatpush1.msra.mxu0 %v6011
  %6156 = vmatprep.subr.mxu0 0.0
  %6157 = vmatpush1.msra.mxu0 %v6010
  %6158 = vmatprep.subr.mxu0 0.0
  %6159 = vmatpush2.msra.mxu0 %v6041
  %6160 = vmatprep.subr.mxu0 0.0
  %6161 = vmatpush2.msra.mxu0 %v6040
  %6162 = vmatprep.subr.mxu0 0.0
  %6163 = vmatpush2.msra.mxu0 %v6039
  %6164 = vmatprep.subr.mxu0 0.0
  %6165 = vmatpush2.msra.mxu0 %v6038
  %6166 = vmatprep.subr.mxu0 0.0
  %6167 = vmatpush2.msra.mxu0 %v6037
  %6168 = vmatprep.subr.mxu0 0.0
  %6169 = vmatpush2.msra.mxu0 %v6036
  %6170 = vmatprep.subr.mxu0 0.0
  %6171 = vmatpush2.msra.mxu0 %v6035
  %6172 = vmatprep.subr.mxu0 0.0
  %6173 = vmatpush2.msra.mxu0 %v6034
  %6174 = vmatprep.subr.mxu0 0.0
  %6175 = vmatpush2.msra.mxu0 %v6033
  %6176 = vmatprep.subr.mxu0 0.0
  %6177 = vmatpush2.msra.mxu0 %v6032
  %6178 = vmatprep.subr.mxu0 0.0
  %6179 = vmatpush2.msra.mxu0 %v6031
  %6180 = vmatprep.subr.mxu0 0.0
  %6181 = vmatpush2.msra.mxu0 %v6030
  %6182 = vmatprep.subr.mxu0 0.0
  %6183 = vmatpush2.msra.mxu0 %v6029
  %6184 = vmatprep.subr.mxu0 0.0
  %6185 = vmatpush2.msra.mxu0 %v6028
  %6186 = vmatprep.subr.mxu0 0.0
  %6187 = vmatpush2.msra.mxu0 %v6027
  %6188 = vmatprep.subr.mxu0 0.0
  %6189 = vmatpush2.msra.mxu0 %v6026
  %6190 = vmatprep.mubr.f32.mxu0 %v6125
  %6191 = vmatmul.mubr.f32.gmra.mxu0 %v6119
  %v6192 = vpop.f32.mrf.mxu0
  %v6193 = vadd.f32 0.0, %v6192
  %v6194 = vpop.f32.mrf.mxu0
  %6195 = vdwg.mxu0
  %v6196 = vmul.f32 %v6109, 0.03125
  %v6197 = vmul.f32 %v6193, 0.03125
  %v6198 = vmul.f32 %v6196, %v6196
  %v6199 = vsub.f32 %v6197, %v6198
  %v6200 = vmax.f32 %v6199, 0.0
  %v6201 = vld [vmem:[%s59] sm:$0x3]
  %v6202 = vadd.f32 %v6200, 1e-05
  %v6203 = vrsqrt.pop %v6202
  %v6204 = vmul.f32 %v6203, %v6201
  %v6205 = vmul.f32 %v6196, %v6204
  %v6207 = vrot.slane %v6205, 7
  %v6209 = vsub.f32 %v6201, %v6207
  %v6210 = vld [vmem:[%s57] sm:$0xff]
  %v6211 = vld [vmem:[%s57 + $0x8] sm:$0xff]
  %v6212 = vld [vmem:[%s57 + $0x10] sm:$0xff]
  %v6213 = vld [vmem:[%s57 + $0x18] sm:$0xff]
  %v6214 = vld [vmem:[%s57 + $0x20] sm:$0xff]
  %v6215 = vld [vmem:[%s57 + $0x28] sm:$0xff]
  %v6216 = vld [vmem:[%s57 + $0x30] sm:$0xff]
  %v6217 = vld [vmem:[%s57 + $0x38] sm:$0xff]
  %v6218 = vld [vmem:[%s57 + $0x40] sm:$0xff]
  %v6219 = vld [vmem:[%s57 + $0x48] sm:$0xff]
  %v6220 = vld [vmem:[%s57 + $0x50] sm:$0xff]
  %v6221 = vld [vmem:[%s57 + $0x58] sm:$0xff]
  %v6222 = vld [vmem:[%s57 + $0x60] sm:$0xff]
  %v6223 = vld [vmem:[%s57 + $0x68] sm:$0xff]
  %v6224 = vld [vmem:[%s57 + $0x70] sm:$0xff]
  %v6225 = vld [vmem:[%s57 + $0x78] sm:$0xff]
  %v6227 = vsel %vm4125, %v6204, 0
  %6229 = vmatprep.subr.mxu0 0.0
  %6230 = vmatpush1.msra.mxu0 0.0
  %6231 = vmatprep.subr.mxu0 0.0
  %6232 = vmatpush1.msra.mxu0 0.0
  %6233 = vmatprep.subr.mxu0 0.0
  %6234 = vmatpush1.msra.mxu0 0.0
  %6235 = vmatprep.subr.mxu0 0.0
  %6236 = vmatpush1.msra.mxu0 0.0
  %6237 = vmatprep.subr.mxu0 0.0
  %6238 = vmatpush1.msra.mxu0 0.0
  %6239 = vmatprep.subr.mxu0 0.0
  %6240 = vmatpush1.msra.mxu0 0.0
  %6241 = vmatprep.subr.mxu0 0.0
  %6242 = vmatpush1.msra.mxu0 0.0
  %6243 = vmatprep.subr.mxu0 0.0
  %6244 = vmatpush1.msra.mxu0 0.0
  %6245 = vmatprep.subr.mxu0 %v6225
  %6246 = vmatpush1.msra.mxu0 %v6224
  %6247 = vmatprep.subr.mxu0 %v6223
  %6248 = vmatpush1.msra.mxu0 %v6222
  %6249 = vmatprep.subr.mxu0 %v6221
  %6250 = vmatpush1.msra.mxu0 %v6220
  %6251 = vmatprep.subr.mxu0 %v6219
  %6252 = vmatpush1.msra.mxu0 %v6218
  %6253 = vmatprep.subr.mxu0 %v6217
  %6254 = vmatpush1.msra.mxu0 %v6216
  %6255 = vmatprep.subr.mxu0 %v6215
  %6256 = vmatpush1.msra.mxu0 %v6214
  %6257 = vmatprep.subr.mxu0 %v6213
  %6258 = vmatpush1.msra.mxu0 %v6212
  %6259 = vmatprep.subr.mxu0 %v6211
  %6260 = vmatpush1.msra.mxu0 %v6210
  %6261 = vmatprep.subr.mxu0 0.0
  %6262 = vmatpush2.msra.mxu0 0.0
  %6263 = vmatprep.subr.mxu0 0.0
  %6264 = vmatpush2.msra.mxu0 0.0
  %6265 = vmatprep.subr.mxu0 0.0
  %6266 = vmatpush2.msra.mxu0 0.0
  %6267 = vmatprep.subr.mxu0 0.0
  %6268 = vmatpush2.msra.mxu0 0.0
  %6269 = vmatprep.subr.mxu0 0.0
  %6270 = vmatpush2.msra.mxu0 0.0
  %6271 = vmatprep.subr.mxu0 0.0
  %6272 = vmatpush2.msra.mxu0 0.0
  %6273 = vmatprep.subr.mxu0 0.0
  %6274 = vmatpush2.msra.mxu0 0.0
  %6275 = vmatprep.subr.mxu0 0.0
  %6276 = vmatpush2.msra.mxu0 0.0
  %6277 = vmatprep.subr.mxu0 0.0
  %6278 = vmatpush2.msra.mxu0 0.0
  %6279 = vmatprep.subr.mxu0 0.0
  %6280 = vmatpush2.msra.mxu0 0.0
  %6281 = vmatprep.subr.mxu0 0.0
  %6282 = vmatpush2.msra.mxu0 0.0
  %6283 = vmatprep.subr.mxu0 0.0
  %6284 = vmatpush2.msra.mxu0 0.0
  %6285 = vmatprep.subr.mxu0 0.0
  %6286 = vmatpush2.msra.mxu0 0.0
  %6287 = vmatprep.subr.mxu0 0.0
  %6288 = vmatpush2.msra.mxu0 0.0
  %6289 = vmatprep.subr.mxu0 0.0
  %6290 = vmatpush2.msra.mxu0 0.0
  %6291 = vmatprep.subr.mxu0 0.0
  %6292 = vmatpush2.msra.mxu0 0.0
  %6293 = vmatprep.mubr.f32.mxu0 0.0
  %6294 = vmatmul.mubr.f32.gmra.mxu0 %v6227
  %v6295 = vpop.f32.mrf.mxu0
  %v6296 = vadd.f32 0.0, %v6295
  %v6297 = vpop.f32.mrf.mxu0
  %v6298 = vadd.f32 0.0, %v6297
  %6299 = vdwg.mxu0
  %v6300 = vlaneseq
  %v6301 = vshrl.u32 %v6300, 7
  %v6302 = vsub.s32 0, %v6301
  %v6303 = vrot.slane %v6296, %v6302
  %v6304 = vlaneseq
  %v6305 = vshrl.u32 %v6304, 7
  %v6306 = vsub.s32 0, %v6305
  %v6307 = vrot.slane %v6298, %v6306
  %v6308 = vmul.f32 %v5992, %v6303
  %v6309 = vmul.f32 %v5994, %v6307
  %v6311 = vrot.slane %v6209, 1
  %v6312 = vsel %vm4125, %v6311, 0
  %6314 = vmatprep.subr.mxu0 0.0
  %6315 = vmatpush1.msra.mxu0 0.0
  %6316 = vmatprep.subr.mxu0 0.0
  %6317 = vmatpush1.msra.mxu0 0.0
  %6318 = vmatprep.subr.mxu0 0.0
  %6319 = vmatpush1.msra.mxu0 0.0
  %6320 = vmatprep.subr.mxu0 0.0
  %6321 = vmatpush1.msra.mxu0 0.0
  %6322 = vmatprep.subr.mxu0 0.0
  %6323 = vmatpush1.msra.mxu0 0.0
  %6324 = vmatprep.subr.mxu0 0.0
  %6325 = vmatpush1.msra.mxu0 0.0
  %6326 = vmatprep.subr.mxu0 0.0
  %6327 = vmatpush1.msra.mxu0 0.0
  %6328 = vmatprep.subr.mxu0 0.0
  %6329 = vmatpush1.msra.mxu0 0.0
  %6330 = vmatprep.subr.mxu0 %v6225
  %6331 = vmatpush1.msra.mxu0 %v6224
  %6332 = vmatprep.subr.mxu0 %v6223
  %6333 = vmatpush1.msra.mxu0 %v6222
  %6334 = vmatprep.subr.mxu0 %v6221
  %6335 = vmatpush1.msra.mxu0 %v6220
  %6336 = vmatprep.subr.mxu0 %v6219
  %6337 = vmatpush1.msra.mxu0 %v6218
  %6338 = vmatprep.subr.mxu0 %v6217
  %6339 = vmatpush1.msra.mxu0 %v6216
  %6340 = vmatprep.subr.mxu0 %v6215
  %6341 = vmatpush1.msra.mxu0 %v6214
  %6342 = vmatprep.subr.mxu0 %v6213
  %6343 = vmatpush1.msra.mxu0 %v6212
  %6344 = vmatprep.subr.mxu0 %v6211
  %6345 = vmatpush1.msra.mxu0 %v6210
  %6346 = vmatprep.subr.mxu0 0.0
  %6347 = vmatpush2.msra.mxu0 0.0
  %6348 = vmatprep.subr.mxu0 0.0
  %6349 = vmatpush2.msra.mxu0 0.0
  %6350 = vmatprep.subr.mxu0 0.0
  %6351 = vmatpush2.msra.mxu0 0.0
  %6352 = vmatprep.subr.mxu0 0.0
  %6353 = vmatpush2.msra.mxu0 0.0
  %6354 = vmatprep.subr.mxu0 0.0
  %6355 = vmatpush2.msra.mxu0 0.0
  %6356 = vmatprep.subr.mxu0 0.0
  %6357 = vmatpush2.msra.mxu0 0.0
  %6358 = vmatprep.subr.mxu0 0.0
  %6359 = vmatpush2.msra.mxu0 0.0
  %6360 = vmatprep.subr.mxu0 0.0
  %6361 = vmatpush2.msra.mxu0 0.0
  %6362 = vmatprep.subr.mxu0 0.0
  %6363 = vmatpush2.msra.mxu0 0.0
  %6364 = vmatprep.subr.mxu0 0.0
  %6365 = vmatpush2.msra.mxu0 0.0
  %6366 = vmatprep.subr.mxu0 0.0
  %6367 = vmatpush2.msra.mxu0 0.0
  %6368 = vmatprep.subr.mxu0 0.0
  %6369 = vmatpush2.msra.mxu0 0.0
  %6370 = vmatprep.subr.mxu0 0.0
  %6371 = vmatpush2.msra.mxu0 0.0
  %6372 = vmatprep.subr.mxu0 0.0
  %6373 = vmatpush2.msra.mxu0 0.0
  %6374 = vmatprep.subr.mxu0 0.0
  %6375 = vmatpush2.msra.mxu0 0.0
  %6376 = vmatprep.subr.mxu0 0.0
  %6377 = vmatpush2.msra.mxu0 0.0
  %6378 = vmatprep.mubr.f32.mxu0 0.0
  %6379 = vmatmul.mubr.f32.gmra.mxu0 %v6312
  %v6380 = vpop.f32.mrf.mxu0
  %v6381 = vadd.f32 0.0, %v6380
  %v6382 = vpop.f32.mrf.mxu0
  %v6383 = vadd.f32 0.0, %v6382
  %6384 = vdwg.mxu0
  %v6385 = vlaneseq
  %v6386 = vshrl.u32 %v6385, 7
  %v6387 = vsub.s32 0, %v6386
  %v6388 = vrot.slane %v6381, %v6387
  %v6389 = vlaneseq
  %v6390 = vshrl.u32 %v6389, 7
  %v6391 = vsub.s32 0, %v6390
  %v6392 = vrot.slane %v6383, %v6391
  %v6393 = vadd.f32 %v6308, %v6388
  %v6394 = vadd.f32 %v6309, %v6392
  %v6395 = vmax.f32 %v6393, 0.0
  %v6396 = vmax.f32 %v6394, 0.0
  %v6397 = vpack.c.bf16 %v6395, %v6395
  %v6398 = vpack.c.bf16 %v6396, %v6396
  %v6399 = vld [vmem:[%s61] sm:$0x1]
  %v6401 = vsel %vm1039, %v6399, 0
  %v6404 = vsel %vm694, %v6397, 0
  %v6407 = vsel %vm694, %v6398, 0
  %6409 = vmatprep.subr.bf16.mxu0 0
  %6410 = vmatpush1.bf16.msra.mxu0 0
  %6411 = vmatprep.subr.bf16.mxu0 0
  %6412 = vmatpush1.bf16.msra.mxu0 0
  %6413 = vmatprep.subr.bf16.mxu0 0
  %6414 = vmatpush1.bf16.msra.mxu0 0
  %6415 = vmatprep.subr.bf16.mxu0 0
  %6416 = vmatpush1.bf16.msra.mxu0 0
  %6417 = vmatprep.subr.bf16.mxu0 0
  %6418 = vmatpush1.bf16.msra.mxu0 0
  %6419 = vmatprep.subr.bf16.mxu0 0
  %6420 = vmatpush1.bf16.msra.mxu0 0
  %6421 = vmatprep.subr.bf16.mxu0 0
  %6422 = vmatpush1.bf16.msra.mxu0 0
  %6423 = vmatprep.subr.bf16.mxu0 %v6407
  %6424 = vmatpush1.bf16.msra.mxu0 %v6404
  %6425 = vmatprep.subr.bf16.mxu0 0
  %6426 = vmatpush2.bf16.msra.mxu0 0
  %6427 = vmatprep.subr.bf16.mxu0 0
  %6428 = vmatpush2.bf16.msra.mxu0 0
  %6429 = vmatprep.subr.bf16.mxu0 0
  %6430 = vmatpush2.bf16.msra.mxu0 0
  %6431 = vmatprep.subr.bf16.mxu0 0
  %6432 = vmatpush2.bf16.msra.mxu0 0
  %6433 = vmatprep.subr.bf16.mxu0 0
  %6434 = vmatpush2.bf16.msra.mxu0 0
  %6435 = vmatprep.subr.bf16.mxu0 0
  %6436 = vmatpush2.bf16.msra.mxu0 0
  %6437 = vmatprep.subr.bf16.mxu0 0
  %6438 = vmatpush2.bf16.msra.mxu0 0
  %6439 = vmatprep.subr.bf16.mxu0 0
  %6440 = vmatpush2.bf16.msra.mxu0 0
  %6441 = vmatprep.mubr.bf16.mxu0 0
  %6442 = vmatmul.mubr.bf16.gmra.mxu0 %v6401
  %v6443 = vpop.f32.mrf.mxu0
  %v6444 = vadd.f32 0.0, %v6443
  %v6445 = vpop.f32.mrf.mxu0
  %v6446 = vadd.f32 0.0, %v6445
  %v6447 = vpop.f32.mrf.mxu0
  %v6448 = vpop.f32.mrf.mxu0
  %6449 = vdwg.mxu0
  %s6450 = scalar_lea.vmem %s61, 1
  %v6451 = vld [vmem:[%s6450] sm:$0x1]
  %v6453 = vsel %vm1039, %v6451, 0
  %6455 = vmatprep.subr.bf16.mxu0 0
  %6456 = vmatpush1.bf16.msra.mxu0 0
  %6457 = vmatprep.subr.bf16.mxu0 0
  %6458 = vmatpush1.bf16.msra.mxu0 0
  %6459 = vmatprep.subr.bf16.mxu0 0
  %6460 = vmatpush1.bf16.msra.mxu0 0
  %6461 = vmatprep.subr.bf16.mxu0 0
  %6462 = vmatpush1.bf16.msra.mxu0 0
  %6463 = vmatprep.subr.bf16.mxu0 0
  %6464 = vmatpush1.bf16.msra.mxu0 0
  %6465 = vmatprep.subr.bf16.mxu0 0
  %6466 = vmatpush1.bf16.msra.mxu0 0
  %6467 = vmatprep.subr.bf16.mxu0 0
  %6468 = vmatpush1.bf16.msra.mxu0 0
  %6469 = vmatprep.subr.bf16.mxu0 %v6407
  %6470 = vmatpush1.bf16.msra.mxu0 %v6404
  %6471 = vmatprep.subr.bf16.mxu0 0
  %6472 = vmatpush2.bf16.msra.mxu0 0
  %6473 = vmatprep.subr.bf16.mxu0 0
  %6474 = vmatpush2.bf16.msra.mxu0 0
  %6475 = vmatprep.subr.bf16.mxu0 0
  %6476 = vmatpush2.bf16.msra.mxu0 0
  %6477 = vmatprep.subr.bf16.mxu0 0
  %6478 = vmatpush2.bf16.msra.mxu0 0
  %6479 = vmatprep.subr.bf16.mxu0 0
  %6480 = vmatpush2.bf16.msra.mxu0 0
  %6481 = vmatprep.subr.bf16.mxu0 0
  %6482 = vmatpush2.bf16.msra.mxu0 0
  %6483 = vmatprep.subr.bf16.mxu0 0
  %6484 = vmatpush2.bf16.msra.mxu0 0
  %6485 = vmatprep.subr.bf16.mxu0 0
  %6486 = vmatpush2.bf16.msra.mxu0 0
  %6487 = vmatprep.mubr.bf16.mxu0 0
  %6488 = vmatmul.mubr.bf16.gmra.mxu0 %v6453
  %v6489 = vpop.f32.mrf.mxu0
  %v6490 = vadd.f32 0.0, %v6489
  %v6491 = vpop.f32.mrf.mxu0
  %v6492 = vadd.f32 0.0, %v6491
  %v6493 = vpop.f32.mrf.mxu0
  %v6494 = vpop.f32.mrf.mxu0
  %6495 = vdwg.mxu0
  %s6496 = scalar_lea.vmem %s61, 2
  %v6497 = vld [vmem:[%s6496] sm:$0x1]
  %v6499 = vsel %vm1039, %v6497, 0
  %6501 = vmatprep.subr.bf16.mxu0 0
  %6502 = vmatpush1.bf16.msra.mxu0 0
  %6503 = vmatprep.subr.bf16.mxu0 0
  %6504 = vmatpush1.bf16.msra.mxu0 0
  %6505 = vmatprep.subr.bf16.mxu0 0
  %6506 = vmatpush1.bf16.msra.mxu0 0
  %6507 = vmatprep.subr.bf16.mxu0 0
  %6508 = vmatpush1.bf16.msra.mxu0 0
  %6509 = vmatprep.subr.bf16.mxu0 0
  %6510 = vmatpush1.bf16.msra.mxu0 0
  %6511 = vmatprep.subr.bf16.mxu0 0
  %6512 = vmatpush1.bf16.msra.mxu0 0
  %6513 = vmatprep.subr.bf16.mxu0 0
  %6514 = vmatpush1.bf16.msra.mxu0 0
  %6515 = vmatprep.subr.bf16.mxu0 %v6407
  %6516 = vmatpush1.bf16.msra.mxu0 %v6404
  %6517 = vmatprep.subr.bf16.mxu0 0
  %6518 = vmatpush2.bf16.msra.mxu0 0
  %6519 = vmatprep.subr.bf16.mxu0 0
  %6520 = vmatpush2.bf16.msra.mxu0 0
  %6521 = vmatprep.subr.bf16.mxu0 0
  %6522 = vmatpush2.bf16.msra.mxu0 0
  %6523 = vmatprep.subr.bf16.mxu0 0
  %6524 = vmatpush2.bf16.msra.mxu0 0
  %6525 = vmatprep.subr.bf16.mxu0 0
  %6526 = vmatpush2.bf16.msra.mxu0 0
  %6527 = vmatprep.subr.bf16.mxu0 0
  %6528 = vmatpush2.bf16.msra.mxu0 0
  %6529 = vmatprep.subr.bf16.mxu0 0
  %6530 = vmatpush2.bf16.msra.mxu0 0
  %6531 = vmatprep.subr.bf16.mxu0 0
  %6532 = vmatpush2.bf16.msra.mxu0 0
  %6533 = vmatprep.mubr.bf16.mxu0 0
  %6534 = vmatmul.mubr.bf16.gmra.mxu0 %v6499
  %v6535 = vpop.f32.mrf.mxu0
  %v6536 = vadd.f32 0.0, %v6535
  %v6537 = vpop.f32.mrf.mxu0
  %v6538 = vadd.f32 0.0, %v6537
  %v6539 = vpop.f32.mrf.mxu0
  %v6540 = vpop.f32.mrf.mxu0
  %6541 = vdwg.mxu0
  %s6542 = scalar_lea.vmem %s61, 3
  %v6543 = vld [vmem:[%s6542] sm:$0x1]
  %v6545 = vsel %vm1039, %v6543, 0
  %6547 = vmatprep.subr.bf16.mxu0 0
  %6548 = vmatpush1.bf16.msra.mxu0 0
  %6549 = vmatprep.subr.bf16.mxu0 0
  %6550 = vmatpush1.bf16.msra.mxu0 0
  %6551 = vmatprep.subr.bf16.mxu0 0
  %6552 = vmatpush1.bf16.msra.mxu0 0
  %6553 = vmatprep.subr.bf16.mxu0 0
  %6554 = vmatpush1.bf16.msra.mxu0 0
  %6555 = vmatprep.subr.bf16.mxu0 0
  %6556 = vmatpush1.bf16.msra.mxu0 0
  %6557 = vmatprep.subr.bf16.mxu0 0
  %6558 = vmatpush1.bf16.msra.mxu0 0
  %6559 = vmatprep.subr.bf16.mxu0 0
  %6560 = vmatpush1.bf16.msra.mxu0 0
  %6561 = vmatprep.subr.bf16.mxu0 %v6407
  %6562 = vmatpush1.bf16.msra.mxu0 %v6404
  %6563 = vmatprep.subr.bf16.mxu0 0
  %6564 = vmatpush2.bf16.msra.mxu0 0
  %6565 = vmatprep.subr.bf16.mxu0 0
  %6566 = vmatpush2.bf16.msra.mxu0 0
  %6567 = vmatprep.subr.bf16.mxu0 0
  %6568 = vmatpush2.bf16.msra.mxu0 0
  %6569 = vmatprep.subr.bf16.mxu0 0
  %6570 = vmatpush2.bf16.msra.mxu0 0
  %6571 = vmatprep.subr.bf16.mxu0 0
  %6572 = vmatpush2.bf16.msra.mxu0 0
  %6573 = vmatprep.subr.bf16.mxu0 0
  %6574 = vmatpush2.bf16.msra.mxu0 0
  %6575 = vmatprep.subr.bf16.mxu0 0
  %6576 = vmatpush2.bf16.msra.mxu0 0
  %6577 = vmatprep.subr.bf16.mxu0 0
  %6578 = vmatpush2.bf16.msra.mxu0 0
  %6579 = vmatprep.mubr.bf16.mxu0 0
  %6580 = vmatmul.mubr.bf16.gmra.mxu0 %v6545
  %v6581 = vpop.f32.mrf.mxu0
  %v6582 = vadd.f32 0.0, %v6581
  %v6583 = vpop.f32.mrf.mxu0
  %v6584 = vadd.f32 0.0, %v6583
  %v6585 = vpop.f32.mrf.mxu0
  %v6586 = vpop.f32.mrf.mxu0
  %6587 = vdwg.mxu0
  %v6588 = vld [vmem:[%s63] sm:$0xf]
  %v6589 = vld [vmem:[%s63 + $0x4] sm:$0xf]
  %v6590 = vld [vmem:[%s63 + $0x8] sm:$0xf]
  %v6591 = vld [vmem:[%s63 + $0xc] sm:$0xf]
  %v6592 = vld [vmem:[%s63 + $0x10] sm:$0xf]
  %v6593 = vld [vmem:[%s63 + $0x14] sm:$0xf]
  %v6594 = vld [vmem:[%s63 + $0x18] sm:$0xf]
  %v6595 = vld [vmem:[%s63 + $0x1c] sm:$0xf]
  %v6596 = vld [vmem:[%s63 + $0x20] sm:$0xf]
  %v6597 = vld [vmem:[%s63 + $0x24] sm:$0xf]
  %v6598 = vld [vmem:[%s63 + $0x28] sm:$0xf]
  %v6599 = vld [vmem:[%s63 + $0x2c] sm:$0xf]
  %v6600 = vld [vmem:[%s63 + $0x30] sm:$0xf]
  %v6601 = vld [vmem:[%s63 + $0x34] sm:$0xf]
  %v6602 = vld [vmem:[%s63 + $0x38] sm:$0xf]
  %v6603 = vld [vmem:[%s63 + $0x3c] sm:$0xf]
  %v6604 = vld [vmem:[%s63 + $0x40] sm:$0xf]
  %v6605 = vld [vmem:[%s63 + $0x44] sm:$0xf]
  %v6606 = vld [vmem:[%s63 + $0x48] sm:$0xf]
  %v6607 = vld [vmem:[%s63 + $0x4c] sm:$0xf]
  %v6608 = vld [vmem:[%s63 + $0x50] sm:$0xf]
  %v6609 = vld [vmem:[%s63 + $0x54] sm:$0xf]
  %v6610 = vld [vmem:[%s63 + $0x58] sm:$0xf]
  %v6611 = vld [vmem:[%s63 + $0x5c] sm:$0xf]
  %v6612 = vld [vmem:[%s63 + $0x60] sm:$0xf]
  %v6613 = vld [vmem:[%s63 + $0x64] sm:$0xf]
  %v6614 = vld [vmem:[%s63 + $0x68] sm:$0xf]
  %v6615 = vld [vmem:[%s63 + $0x6c] sm:$0xf]
  %v6616 = vld [vmem:[%s63 + $0x70] sm:$0xf]
  %v6617 = vld [vmem:[%s63 + $0x74] sm:$0xf]
  %v6618 = vld [vmem:[%s63 + $0x78] sm:$0xf]
  %v6619 = vld [vmem:[%s63 + $0x7c] sm:$0xf]
  %v6620 = vld [vmem:[%s63 + $0x80] sm:$0xf]
  %v6621 = vld [vmem:[%s63 + $0x84] sm:$0xf]
  %v6622 = vld [vmem:[%s63 + $0x88] sm:$0xf]
  %v6623 = vld [vmem:[%s63 + $0x8c] sm:$0xf]
  %v6624 = vld [vmem:[%s63 + $0x90] sm:$0xf]
  %v6625 = vld [vmem:[%s63 + $0x94] sm:$0xf]
  %v6626 = vld [vmem:[%s63 + $0x98] sm:$0xf]
  %v6627 = vld [vmem:[%s63 + $0x9c] sm:$0xf]
  %v6628 = vld [vmem:[%s63 + $0xa0] sm:$0xf]
  %v6629 = vld [vmem:[%s63 + $0xa4] sm:$0xf]
  %v6630 = vld [vmem:[%s63 + $0xa8] sm:$0xf]
  %v6631 = vld [vmem:[%s63 + $0xac] sm:$0xf]
  %v6632 = vld [vmem:[%s63 + $0xb0] sm:$0xf]
  %v6633 = vld [vmem:[%s63 + $0xb4] sm:$0xf]
  %v6634 = vld [vmem:[%s63 + $0xb8] sm:$0xf]
  %v6635 = vld [vmem:[%s63 + $0xbc] sm:$0xf]
  %v6636 = vld [vmem:[%s63 + $0xc0] sm:$0xf]
  %v6637 = vld [vmem:[%s63 + $0xc4] sm:$0xf]
  %v6638 = vld [vmem:[%s63 + $0xc8] sm:$0xf]
  %v6639 = vld [vmem:[%s63 + $0xcc] sm:$0xf]
  %v6640 = vld [vmem:[%s63 + $0xd0] sm:$0xf]
  %v6641 = vld [vmem:[%s63 + $0xd4] sm:$0xf]
  %v6642 = vld [vmem:[%s63 + $0xd8] sm:$0xf]
  %v6643 = vld [vmem:[%s63 + $0xdc] sm:$0xf]
  %v6644 = vld [vmem:[%s63 + $0xe0] sm:$0xf]
  %v6645 = vld [vmem:[%s63 + $0xe4] sm:$0xf]
  %v6646 = vld [vmem:[%s63 + $0xe8] sm:$0xf]
  %v6647 = vld [vmem:[%s63 + $0xec] sm:$0xf]
  %v6648 = vld [vmem:[%s63 + $0xf0] sm:$0xf]
  %v6649 = vld [vmem:[%s63 + $0xf4] sm:$0xf]
  %v6650 = vld [vmem:[%s63 + $0xf8] sm:$0xf]
  %v6651 = vld [vmem:[%s63 + $0xfc] sm:$0xf]
  %v6652 = vld [vmem:[%s63 + $0x100] sm:$0xf]
  %v6653 = vld [vmem:[%s63 + $0x104] sm:$0xf]
  %v6654 = vld [vmem:[%s63 + $0x108] sm:$0xf]
  %v6655 = vld [vmem:[%s63 + $0x10c] sm:$0xf]
  %v6656 = vld [vmem:[%s63 + $0x110] sm:$0xf]
  %v6657 = vld [vmem:[%s63 + $0x114] sm:$0xf]
  %v6658 = vld [vmem:[%s63 + $0x118] sm:$0xf]
  %v6659 = vld [vmem:[%s63 + $0x11c] sm:$0xf]
  %v6660 = vld [vmem:[%s63 + $0x120] sm:$0xf]
  %v6661 = vld [vmem:[%s63 + $0x124] sm:$0xf]
  %v6662 = vld [vmem:[%s63 + $0x128] sm:$0xf]
  %v6663 = vld [vmem:[%s63 + $0x12c] sm:$0xf]
  %v6664 = vld [vmem:[%s63 + $0x130] sm:$0xf]
  %v6665 = vld [vmem:[%s63 + $0x134] sm:$0xf]
  %v6666 = vld [vmem:[%s63 + $0x138] sm:$0xf]
  %v6667 = vld [vmem:[%s63 + $0x13c] sm:$0xf]
  %v6668 = vld [vmem:[%s63 + $0x140] sm:$0xf]
  %v6669 = vld [vmem:[%s63 + $0x144] sm:$0xf]
  %v6670 = vld [vmem:[%s63 + $0x148] sm:$0xf]
  %v6671 = vld [vmem:[%s63 + $0x14c] sm:$0xf]
  %v6672 = vld [vmem:[%s63 + $0x150] sm:$0xf]
  %v6673 = vld [vmem:[%s63 + $0x154] sm:$0xf]
  %v6674 = vld [vmem:[%s63 + $0x158] sm:$0xf]
  %v6675 = vld [vmem:[%s63 + $0x15c] sm:$0xf]
  %v6676 = vld [vmem:[%s63 + $0x160] sm:$0xf]
  %v6677 = vld [vmem:[%s63 + $0x164] sm:$0xf]
  %v6678 = vld [vmem:[%s63 + $0x168] sm:$0xf]
  %v6679 = vld [vmem:[%s63 + $0x16c] sm:$0xf]
  %v6680 = vld [vmem:[%s63 + $0x170] sm:$0xf]
  %v6681 = vld [vmem:[%s63 + $0x174] sm:$0xf]
  %v6682 = vld [vmem:[%s63 + $0x178] sm:$0xf]
  %v6683 = vld [vmem:[%s63 + $0x17c] sm:$0xf]
  %v6684 = vld [vmem:[%s63 + $0x180] sm:$0xf]
  %v6685 = vld [vmem:[%s63 + $0x184] sm:$0xf]
  %v6686 = vld [vmem:[%s63 + $0x188] sm:$0xf]
  %v6687 = vld [vmem:[%s63 + $0x18c] sm:$0xf]
  %v6688 = vld [vmem:[%s63 + $0x190] sm:$0xf]
  %v6689 = vld [vmem:[%s63 + $0x194] sm:$0xf]
  %v6690 = vld [vmem:[%s63 + $0x198] sm:$0xf]
  %v6691 = vld [vmem:[%s63 + $0x19c] sm:$0xf]
  %v6692 = vld [vmem:[%s63 + $0x1a0] sm:$0xf]
  %v6693 = vld [vmem:[%s63 + $0x1a4] sm:$0xf]
  %v6694 = vld [vmem:[%s63 + $0x1a8] sm:$0xf]
  %v6695 = vld [vmem:[%s63 + $0x1ac] sm:$0xf]
  %v6696 = vld [vmem:[%s63 + $0x1b0] sm:$0xf]
  %v6697 = vld [vmem:[%s63 + $0x1b4] sm:$0xf]
  %v6698 = vld [vmem:[%s63 + $0x1b8] sm:$0xf]
  %v6699 = vld [vmem:[%s63 + $0x1bc] sm:$0xf]
  %v6700 = vld [vmem:[%s63 + $0x1c0] sm:$0xf]
  %v6701 = vld [vmem:[%s63 + $0x1c4] sm:$0xf]
  %v6702 = vld [vmem:[%s63 + $0x1c8] sm:$0xf]
  %v6703 = vld [vmem:[%s63 + $0x1cc] sm:$0xf]
  %v6704 = vld [vmem:[%s63 + $0x1d0] sm:$0xf]
  %v6705 = vld [vmem:[%s63 + $0x1d4] sm:$0xf]
  %v6706 = vld [vmem:[%s63 + $0x1d8] sm:$0xf]
  %v6707 = vld [vmem:[%s63 + $0x1dc] sm:$0xf]
  %v6708 = vld [vmem:[%s63 + $0x1e0] sm:$0xf]
  %v6709 = vld [vmem:[%s63 + $0x1e4] sm:$0xf]
  %v6710 = vld [vmem:[%s63 + $0x1e8] sm:$0xf]
  %v6711 = vld [vmem:[%s63 + $0x1ec] sm:$0xf]
  %v6712 = vld [vmem:[%s63 + $0x1f0] sm:$0xf]
  %v6713 = vld [vmem:[%s63 + $0x1f4] sm:$0xf]
  %v6714 = vld [vmem:[%s63 + $0x1f8] sm:$0xf]
  %v6715 = vld [vmem:[%s63 + $0x1fc] sm:$0xf]
  %v6716 = vpack.c.bf16 %v6444, %v6444
  %v6717 = vpack.c.bf16 %v6446, %v6446
  %v6718 = vpack.c.bf16 %v6490, %v6490
  %v6719 = vpack.c.bf16 %v6492, %v6492
  %v6720 = vpack.c.bf16 %v6536, %v6536
  %v6721 = vpack.c.bf16 %v6538, %v6538
  %v6722 = vpack.c.bf16 %v6582, %v6582
  %v6723 = vpack.c.bf16 %v6584, %v6584
  %v6852 = vunpack.c.l.b16 %v6588
  %v6853 = vunpack.c.l.b16 %v6589
  %v6854 = vunpack.c.l.b16 %v6590
  %v6855 = vunpack.c.l.b16 %v6591
  %v6856 = vunpack.c.l.b16 %v6592
  %v6857 = vunpack.c.l.b16 %v6593
  %v6858 = vunpack.c.l.b16 %v6594
  %v6859 = vunpack.c.l.b16 %v6595
  %v6860 = vunpack.c.l.b16 %v6596
  %v6861 = vunpack.c.l.b16 %v6597
  %v6862 = vunpack.c.l.b16 %v6598
  %v6863 = vunpack.c.l.b16 %v6599
  %v6864 = vunpack.c.l.b16 %v6600
  %v6865 = vunpack.c.l.b16 %v6601
  %v6866 = vunpack.c.l.b16 %v6602
  %v6867 = vunpack.c.l.b16 %v6603
  %v6868 = vunpack.c.l.b16 %v6604
  %v6869 = vunpack.c.l.b16 %v6605
  %v6870 = vunpack.c.l.b16 %v6606
  %v6871 = vunpack.c.l.b16 %v6607
  %v6872 = vunpack.c.l.b16 %v6608
  %v6873 = vunpack.c.l.b16 %v6609
  %v6874 = vunpack.c.l.b16 %v6610
  %v6875 = vunpack.c.l.b16 %v6611
  %v6876 = vunpack.c.l.b16 %v6612
  %v6877 = vunpack.c.l.b16 %v6613
  %v6878 = vunpack.c.l.b16 %v6614
  %v6879 = vunpack.c.l.b16 %v6615
  %v6880 = vunpack.c.l.b16 %v6616
  %v6881 = vunpack.c.l.b16 %v6617
  %v6882 = vunpack.c.l.b16 %v6618
  %v6883 = vunpack.c.l.b16 %v6619
  %v6884 = vunpack.c.l.b16 %v6620
  %v6885 = vunpack.c.l.b16 %v6621
  %v6886 = vunpack.c.l.b16 %v6622
  %v6887 = vunpack.c.l.b16 %v6623
  %v6888 = vunpack.c.l.b16 %v6624
  %v6889 = vunpack.c.l.b16 %v6625
  %v6890 = vunpack.c.l.b16 %v6626
  %v6891 = vunpack.c.l.b16 %v6627
  %v6892 = vunpack.c.l.b16 %v6628
  %v6893 = vunpack.c.l.b16 %v6629
  %v6894 = vunpack.c.l.b16 %v6630
  %v6895 = vunpack.c.l.b16 %v6631
  %v6896 = vunpack.c.l.b16 %v6632
  %v6897 = vunpack.c.l.b16 %v6633
  %v6898 = vunpack.c.l.b16 %v6634
  %v6899 = vunpack.c.l.b16 %v6635
  %v6900 = vunpack.c.l.b16 %v6636
  %v6901 = vunpack.c.l.b16 %v6637
  %v6902 = vunpack.c.l.b16 %v6638
  %v6903 = vunpack.c.l.b16 %v6639
  %v6904 = vunpack.c.l.b16 %v6640
  %v6905 = vunpack.c.l.b16 %v6641
  %v6906 = vunpack.c.l.b16 %v6642
  %v6907 = vunpack.c.l.b16 %v6643
  %v6908 = vunpack.c.l.b16 %v6644
  %v6909 = vunpack.c.l.b16 %v6645
  %v6910 = vunpack.c.l.b16 %v6646
  %v6911 = vunpack.c.l.b16 %v6647
  %v6912 = vunpack.c.l.b16 %v6648
  %v6913 = vunpack.c.l.b16 %v6649
  %v6914 = vunpack.c.l.b16 %v6650
  %v6915 = vunpack.c.l.b16 %v6651
  %v6916 = vunpack.c.l.b16 %v6652
  %v6917 = vunpack.c.l.b16 %v6653
  %v6918 = vunpack.c.l.b16 %v6654
  %v6919 = vunpack.c.l.b16 %v6655
  %v6920 = vunpack.c.l.b16 %v6656
  %v6921 = vunpack.c.l.b16 %v6657
  %v6922 = vunpack.c.l.b16 %v6658
  %v6923 = vunpack.c.l.b16 %v6659
  %v6924 = vunpack.c.l.b16 %v6660
  %v6925 = vunpack.c.l.b16 %v6661
  %v6926 = vunpack.c.l.b16 %v6662
  %v6927 = vunpack.c.l.b16 %v6663
  %v6928 = vunpack.c.l.b16 %v6664
  %v6929 = vunpack.c.l.b16 %v6665
  %v6930 = vunpack.c.l.b16 %v6666
  %v6931 = vunpack.c.l.b16 %v6667
  %v6932 = vunpack.c.l.b16 %v6668
  %v6933 = vunpack.c.l.b16 %v6669
  %v6934 = vunpack.c.l.b16 %v6670
  %v6935 = vunpack.c.l.b16 %v6671
  %v6936 = vunpack.c.l.b16 %v6672
  %v6937 = vunpack.c.l.b16 %v6673
  %v6938 = vunpack.c.l.b16 %v6674
  %v6939 = vunpack.c.l.b16 %v6675
  %v6940 = vunpack.c.l.b16 %v6676
  %v6941 = vunpack.c.l.b16 %v6677
  %v6942 = vunpack.c.l.b16 %v6678
  %v6943 = vunpack.c.l.b16 %v6679
  %v6944 = vunpack.c.l.b16 %v6680
  %v6945 = vunpack.c.l.b16 %v6681
  %v6946 = vunpack.c.l.b16 %v6682
  %v6947 = vunpack.c.l.b16 %v6683
  %v6948 = vunpack.c.l.b16 %v6684
  %v6949 = vunpack.c.l.b16 %v6685
  %v6950 = vunpack.c.l.b16 %v6686
  %v6951 = vunpack.c.l.b16 %v6687
  %v6952 = vunpack.c.l.b16 %v6688
  %v6953 = vunpack.c.l.b16 %v6689
  %v6954 = vunpack.c.l.b16 %v6690
  %v6955 = vunpack.c.l.b16 %v6691
  %v6956 = vunpack.c.l.b16 %v6692
  %v6957 = vunpack.c.l.b16 %v6693
  %v6958 = vunpack.c.l.b16 %v6694
  %v6959 = vunpack.c.l.b16 %v6695
  %v6960 = vunpack.c.l.b16 %v6696
  %v6961 = vunpack.c.l.b16 %v6697
  %v6962 = vunpack.c.l.b16 %v6698
  %v6963 = vunpack.c.l.b16 %v6699
  %v6964 = vunpack.c.l.b16 %v6700
  %v6965 = vunpack.c.l.b16 %v6701
  %v6966 = vunpack.c.l.b16 %v6702
  %v6967 = vunpack.c.l.b16 %v6703
  %v6968 = vunpack.c.l.b16 %v6704
  %v6969 = vunpack.c.l.b16 %v6705
  %v6970 = vunpack.c.l.b16 %v6706
  %v6971 = vunpack.c.l.b16 %v6707
  %v6972 = vunpack.c.l.b16 %v6708
  %v6973 = vunpack.c.l.b16 %v6709
  %v6974 = vunpack.c.l.b16 %v6710
  %v6975 = vunpack.c.l.b16 %v6711
  %v6976 = vunpack.c.l.b16 %v6712
  %v6977 = vunpack.c.l.b16 %v6713
  %v6978 = vunpack.c.l.b16 %v6714
  %v6979 = vunpack.c.l.b16 %v6715
  %v6980 = vpack.c.b16 %v6853, %v6852
  %v6981 = vpack.c.b16 %v6855, %v6854
  %v6982 = vpack.c.b16 %v6857, %v6856
  %v6983 = vpack.c.b16 %v6859, %v6858
  %v6984 = vpack.c.b16 %v6861, %v6860
  %v6985 = vpack.c.b16 %v6863, %v6862
  %v6986 = vpack.c.b16 %v6865, %v6864
  %v6987 = vpack.c.b16 %v6867, %v6866
  %v6988 = vpack.c.b16 %v6869, %v6868
  %v6989 = vpack.c.b16 %v6871, %v6870
  %v6990 = vpack.c.b16 %v6873, %v6872
  %v6991 = vpack.c.b16 %v6875, %v6874
  %v6992 = vpack.c.b16 %v6877, %v6876
  %v6993 = vpack.c.b16 %v6879, %v6878
  %v6994 = vpack.c.b16 %v6881, %v6880
  %v6995 = vpack.c.b16 %v6883, %v6882
  %v6996 = vpack.c.b16 %v6885, %v6884
  %v6997 = vpack.c.b16 %v6887, %v6886
  %v6998 = vpack.c.b16 %v6889, %v6888
  %v6999 = vpack.c.b16 %v6891, %v6890
  %v7000 = vpack.c.b16 %v6893, %v6892
  %v7001 = vpack.c.b16 %v6895, %v6894
  %v7002 = vpack.c.b16 %v6897, %v6896
  %v7003 = vpack.c.b16 %v6899, %v6898
  %v7004 = vpack.c.b16 %v6901, %v6900
  %v7005 = vpack.c.b16 %v6903, %v6902
  %v7006 = vpack.c.b16 %v6905, %v6904
  %v7007 = vpack.c.b16 %v6907, %v6906
  %v7008 = vpack.c.b16 %v6909, %v6908
  %v7009 = vpack.c.b16 %v6911, %v6910
  %v7010 = vpack.c.b16 %v6913, %v6912
  %v7011 = vpack.c.b16 %v6915, %v6914
  %v7012 = vpack.c.b16 %v6917, %v6916
  %v7013 = vpack.c.b16 %v6919, %v6918
  %v7014 = vpack.c.b16 %v6921, %v6920
  %v7015 = vpack.c.b16 %v6923, %v6922
  %v7016 = vpack.c.b16 %v6925, %v6924
  %v7017 = vpack.c.b16 %v6927, %v6926
  %v7018 = vpack.c.b16 %v6929, %v6928
  %v7019 = vpack.c.b16 %v6931, %v6930
  %v7020 = vpack.c.b16 %v6933, %v6932
  %v7021 = vpack.c.b16 %v6935, %v6934
  %v7022 = vpack.c.b16 %v6937, %v6936
  %v7023 = vpack.c.b16 %v6939, %v6938
  %v7024 = vpack.c.b16 %v6941, %v6940
  %v7025 = vpack.c.b16 %v6943, %v6942
  %v7026 = vpack.c.b16 %v6945, %v6944
  %v7027 = vpack.c.b16 %v6947, %v6946
  %v7028 = vpack.c.b16 %v6949, %v6948
  %v7029 = vpack.c.b16 %v6951, %v6950
  %v7030 = vpack.c.b16 %v6953, %v6952
  %v7031 = vpack.c.b16 %v6955, %v6954
  %v7032 = vpack.c.b16 %v6957, %v6956
  %v7033 = vpack.c.b16 %v6959, %v6958
  %v7034 = vpack.c.b16 %v6961, %v6960
  %v7035 = vpack.c.b16 %v6963, %v6962
  %v7036 = vpack.c.b16 %v6965, %v6964
  %v7037 = vpack.c.b16 %v6967, %v6966
  %v7038 = vpack.c.b16 %v6969, %v6968
  %v7039 = vpack.c.b16 %v6971, %v6970
  %v7040 = vpack.c.b16 %v6973, %v6972
  %v7041 = vpack.c.b16 %v6975, %v6974
  %v7042 = vpack.c.b16 %v6977, %v6976
  %v7043 = vpack.c.b16 %v6979, %v6978
  %7108 = vmatprep.subr.bf16.mxu0 0
  %7109 = vmatpush1.bf16.msra.mxu0 %v6987
  %7110 = vmatprep.subr.bf16.mxu0 0
  %7111 = vmatpush1.bf16.msra.mxu0 %v6986
  %7112 = vmatprep.subr.bf16.mxu0 0
  %7113 = vmatpush1.bf16.msra.mxu0 %v6985
  %7114 = vmatprep.subr.bf16.mxu0 0
  %7115 = vmatpush1.bf16.msra.mxu0 %v6984
  %7116 = vmatprep.subr.bf16.mxu0 0
  %7117 = vmatpush1.bf16.msra.mxu0 %v6983
  %7118 = vmatprep.subr.bf16.mxu0 0
  %7119 = vmatpush1.bf16.msra.mxu0 %v6982
  %7120 = vmatprep.subr.bf16.mxu0 0
  %7121 = vmatpush1.bf16.msra.mxu0 %v6981
  %7122 = vmatprep.subr.bf16.mxu0 0
  %7123 = vmatpush1.bf16.msra.mxu0 %v6980
  %7124 = vmatprep.subr.bf16.mxu0 0
  %7125 = vmatpush2.bf16.msra.mxu0 %v6995
  %7126 = vmatprep.subr.bf16.mxu0 0
  %7127 = vmatpush2.bf16.msra.mxu0 %v6994
  %7128 = vmatprep.subr.bf16.mxu0 0
  %7129 = vmatpush2.bf16.msra.mxu0 %v6993
  %7130 = vmatprep.subr.bf16.mxu0 0
  %7131 = vmatpush2.bf16.msra.mxu0 %v6992
  %7132 = vmatprep.subr.bf16.mxu0 0
  %7133 = vmatpush2.bf16.msra.mxu0 %v6991
  %7134 = vmatprep.subr.bf16.mxu0 0
  %7135 = vmatpush2.bf16.msra.mxu0 %v6990
  %7136 = vmatprep.subr.bf16.mxu0 0
  %7137 = vmatpush2.bf16.msra.mxu0 %v6989
  %7138 = vmatprep.subr.bf16.mxu0 0
  %7139 = vmatpush2.bf16.msra.mxu0 %v6988
  %7140 = vmatprep.mubr.bf16.mxu0 %v6717
  %7141 = vmatmul.mubr.bf16.gmra.mxu0 %v6716
  %v7142 = vpop.f32.mrf.mxu0
  %v7143 = vadd.f32 0.0, %v7142
  %v7144 = vpop.f32.mrf.mxu0
  %v7145 = vpop.f32.mrf.mxu0
  %v7146 = vpop.f32.mrf.mxu0
  %7147 = vdwg.mxu0
  %7148 = vmatprep.subr.bf16.mxu0 0
  %7149 = vmatpush1.bf16.msra.mxu0 %v7003
  %7150 = vmatprep.subr.bf16.mxu0 0
  %7151 = vmatpush1.bf16.msra.mxu0 %v7002
  %7152 = vmatprep.subr.bf16.mxu0 0
  %7153 = vmatpush1.bf16.msra.mxu0 %v7001
  %7154 = vmatprep.subr.bf16.mxu0 0
  %7155 = vmatpush1.bf16.msra.mxu0 %v7000
  %7156 = vmatprep.subr.bf16.mxu0 0
  %7157 = vmatpush1.bf16.msra.mxu0 %v6999
  %7158 = vmatprep.subr.bf16.mxu0 0
  %7159 = vmatpush1.bf16.msra.mxu0 %v6998
  %7160 = vmatprep.subr.bf16.mxu0 0
  %7161 = vmatpush1.bf16.msra.mxu0 %v6997
  %7162 = vmatprep.subr.bf16.mxu0 0
  %7163 = vmatpush1.bf16.msra.mxu0 %v6996
  %7164 = vmatprep.subr.bf16.mxu0 0
  %7165 = vmatpush2.bf16.msra.mxu0 %v7011
  %7166 = vmatprep.subr.bf16.mxu0 0
  %7167 = vmatpush2.bf16.msra.mxu0 %v7010
  %7168 = vmatprep.subr.bf16.mxu0 0
  %7169 = vmatpush2.bf16.msra.mxu0 %v7009
  %7170 = vmatprep.subr.bf16.mxu0 0
  %7171 = vmatpush2.bf16.msra.mxu0 %v7008
  %7172 = vmatprep.subr.bf16.mxu0 0
  %7173 = vmatpush2.bf16.msra.mxu0 %v7007
  %7174 = vmatprep.subr.bf16.mxu0 0
  %7175 = vmatpush2.bf16.msra.mxu0 %v7006
  %7176 = vmatprep.subr.bf16.mxu0 0
  %7177 = vmatpush2.bf16.msra.mxu0 %v7005
  %7178 = vmatprep.subr.bf16.mxu0 0
  %7179 = vmatpush2.bf16.msra.mxu0 %v7004
  %7180 = vmatprep.mubr.bf16.mxu0 %v6719
  %7181 = vmatmul.mubr.bf16.gmra.mxu0 %v6718
  %v7182 = vpop.f32.mrf.mxu0
  %v7183 = vadd.f32 %v7143, %v7182
  %v7184 = vpop.f32.mrf.mxu0
  %v7185 = vpop.f32.mrf.mxu0
  %v7186 = vpop.f32.mrf.mxu0
  %7187 = vdwg.mxu0
  %7188 = vmatprep.subr.bf16.mxu0 0
  %7189 = vmatpush1.bf16.msra.mxu0 %v7019
  %7190 = vmatprep.subr.bf16.mxu0 0
  %7191 = vmatpush1.bf16.msra.mxu0 %v7018
  %7192 = vmatprep.subr.bf16.mxu0 0
  %7193 = vmatpush1.bf16.msra.mxu0 %v7017
  %7194 = vmatprep.subr.bf16.mxu0 0
  %7195 = vmatpush1.bf16.msra.mxu0 %v7016
  %7196 = vmatprep.subr.bf16.mxu0 0
  %7197 = vmatpush1.bf16.msra.mxu0 %v7015
  %7198 = vmatprep.subr.bf16.mxu0 0
  %7199 = vmatpush1.bf16.msra.mxu0 %v7014
  %7200 = vmatprep.subr.bf16.mxu0 0
  %7201 = vmatpush1.bf16.msra.mxu0 %v7013
  %7202 = vmatprep.subr.bf16.mxu0 0
  %7203 = vmatpush1.bf16.msra.mxu0 %v7012
  %7204 = vmatprep.subr.bf16.mxu0 0
  %7205 = vmatpush2.bf16.msra.mxu0 %v7027
  %7206 = vmatprep.subr.bf16.mxu0 0
  %7207 = vmatpush2.bf16.msra.mxu0 %v7026
  %7208 = vmatprep.subr.bf16.mxu0 0
  %7209 = vmatpush2.bf16.msra.mxu0 %v7025
  %7210 = vmatprep.subr.bf16.mxu0 0
  %7211 = vmatpush2.bf16.msra.mxu0 %v7024
  %7212 = vmatprep.subr.bf16.mxu0 0
  %7213 = vmatpush2.bf16.msra.mxu0 %v7023
  %7214 = vmatprep.subr.bf16.mxu0 0
  %7215 = vmatpush2.bf16.msra.mxu0 %v7022
  %7216 = vmatprep.subr.bf16.mxu0 0
  %7217 = vmatpush2.bf16.msra.mxu0 %v7021
  %7218 = vmatprep.subr.bf16.mxu0 0
  %7219 = vmatpush2.bf16.msra.mxu0 %v7020
  %7220 = vmatprep.mubr.bf16.mxu0 %v6721
  %7221 = vmatmul.mubr.bf16.gmra.mxu0 %v6720
  %v7222 = vpop.f32.mrf.mxu0
  %v7223 = vadd.f32 %v7183, %v7222
  %v7224 = vpop.f32.mrf.mxu0
  %v7225 = vpop.f32.mrf.mxu0
  %v7226 = vpop.f32.mrf.mxu0
  %7227 = vdwg.mxu0
  %7228 = vmatprep.subr.bf16.mxu0 0
  %7229 = vmatpush1.bf16.msra.mxu0 %v7035
  %7230 = vmatprep.subr.bf16.mxu0 0
  %7231 = vmatpush1.bf16.msra.mxu0 %v7034
  %7232 = vmatprep.subr.bf16.mxu0 0
  %7233 = vmatpush1.bf16.msra.mxu0 %v7033
  %7234 = vmatprep.subr.bf16.mxu0 0
  %7235 = vmatpush1.bf16.msra.mxu0 %v7032
  %7236 = vmatprep.subr.bf16.mxu0 0
  %7237 = vmatpush1.bf16.msra.mxu0 %v7031
  %7238 = vmatprep.subr.bf16.mxu0 0
  %7239 = vmatpush1.bf16.msra.mxu0 %v7030
  %7240 = vmatprep.subr.bf16.mxu0 0
  %7241 = vmatpush1.bf16.msra.mxu0 %v7029
  %7242 = vmatprep.subr.bf16.mxu0 0
  %7243 = vmatpush1.bf16.msra.mxu0 %v7028
  %7244 = vmatprep.subr.bf16.mxu0 0
  %7245 = vmatpush2.bf16.msra.mxu0 %v7043
  %7246 = vmatprep.subr.bf16.mxu0 0
  %7247 = vmatpush2.bf16.msra.mxu0 %v7042
  %7248 = vmatprep.subr.bf16.mxu0 0
  %7249 = vmatpush2.bf16.msra.mxu0 %v7041
  %7250 = vmatprep.subr.bf16.mxu0 0
  %7251 = vmatpush2.bf16.msra.mxu0 %v7040
  %7252 = vmatprep.subr.bf16.mxu0 0
  %7253 = vmatpush2.bf16.msra.mxu0 %v7039
  %7254 = vmatprep.subr.bf16.mxu0 0
  %7255 = vmatpush2.bf16.msra.mxu0 %v7038
  %7256 = vmatprep.subr.bf16.mxu0 0
  %7257 = vmatpush2.bf16.msra.mxu0 %v7037
  %7258 = vmatprep.subr.bf16.mxu0 0
  %7259 = vmatpush2.bf16.msra.mxu0 %v7036
  %7260 = vmatprep.mubr.bf16.mxu0 %v6723
  %7261 = vmatmul.mubr.bf16.gmra.mxu0 %v6722
  %v7262 = vpop.f32.mrf.mxu0
  %v7263 = vadd.f32 %v7223, %v7262
  %v7264 = vpop.f32.mrf.mxu0
  %v7265 = vpop.f32.mrf.mxu0
  %v7266 = vpop.f32.mrf.mxu0
  %7267 = vdwg.mxu0
  %vm7268 = vcmask 812032
  %v7269 = vsel %vm7268, %v7263, 0.0
  %v7270 = vrot.slane %v7269, 4
  %v7271 = vadd.f32 %v7269, %v7270
  %v7272 = vrot.slane %v7271, 2
  %v7273 = vadd.f32 %v7271, %v7272
  %v7274 = vrot.slane %v7273, 1
  %v7275 = vadd.f32 %v7273, %v7274
  %v7276 = vmul.f32 %v7263, %v7263
  %v7277 = vsel %vm7268, %v7276, 0.0
  %v7278 = vrot.slane %v7277, 4
  %v7279 = vadd.f32 %v7277, %v7278
  %v7280 = vrot.slane %v7279, 2
  %v7281 = vadd.f32 %v7279, %v7280
  %v7282 = vrot.slane %v7281, 1
  %v7283 = vadd.f32 %v7281, %v7282
  %v7284 = vmul.f32 %v7275, 0.5
  %v7285 = vmul.f32 %v7283, 0.5
  %v7286 = vmul.f32 %v7284, %v7284
  %v7287 = vsub.f32 %v7285, %v7286
  %v7288 = vmax.f32 %v7287, 0.0
  %v7289 = vld [vmem:[%s65] sm:$0x3]
  %v7290 = vadd.f32 %v7288, 1e-05
  %v7291 = vrsqrt.pop %v7290
  %v7292 = vmul.f32 %v7291, %v7289
  %v7293 = vlaneseq
  %v7294 = vshrl.u32 %v7293, 7
  %v7295 = vsub.s32 0, %v7294
  %v7296 = vrot.slane %v7292, %v7295
  %v7297 = vmul.f32 %v7263, %v7296
  %v7298 = vmul.f32 %v7284, %v7292
  %v7300 = vrot.slane %v7298, 7
  %v7302 = vsub.f32 %v7289, %v7300
  %v7303 = vlaneseq
  %v7304 = vshrl.u32 %v7303, 7
  %v7305 = vsub.s32 1, %v7304
  %v7306 = vrot.slane %v7302, %v7305
  %v7307 = vadd.f32 %v7297, %v7306
  %v7308 = vmax.f32 %v7307, 0.0
  %v7309 = vld [vmem:[%s67] sm:$0x1]
  %v7311 = vlaneseq
  %v7312 = vshrl.u32 %v7311, 7
  %v7313 = vsub.s32 0, %v7312
  %v7314 = vrot.slane %v7309, %v7313
  %v7316 = vmul.f32 %v7308, %v7314
  %v7317 = vsel %vm7268, %v7316, 0.0
  %7318 = vadd.xlane.f32.xlu0 %v7317
  %v7319 = vpop.xlane.xlu0 %7318
  %v7320 = vld [vmem:[#allocation2] sm:$0x1]
  %v7322 = vlaneseq
  %v7323 = vshrl.u32 %v7322, 7
  %v7324 = vsub.s32 0, %v7323
  %v7325 = vrot.slane %v7320, %v7324
  %v7327 = vadd.f32 %v7319, %v7325
  %vm7328 = vcmask 1024
  %7329 = vst.msk [vmem:[%s71] sm:$0x3] %vm7328, %v7327
  // Predicated region
  $region142: #{tpu_custom_call.1} parent=0 // pred_check
    _
  $region143: #{tpu_custom_call.1} parent=0 // pred_check_branch
    %7331 = sbr.rel (0) target = $region145
  $region144: #{tpu_custom_call.1} parent=0 // pred_region
    _
  $region145: #{tpu_custom_call.1} parent=0 // pred_fallthru
    _
  // Predicated region
  $region146: #{tpu_custom_call.1} parent=0 // pred_check
    _
  $region147: #{tpu_custom_call.1} parent=0 // pred_check_branch
    %7333 = sbr.rel (0) target = $region149
  $region148: #{tpu_custom_call.1} parent=0 // pred_region
    _
  $region149: #{tpu_custom_call.1} parent=0 // pred_fallthru
    _

</llo_original>
